<compile_context>
chip_gen: v7x
topology: tpu7x:2x2x1
jax: 0.10.0
libtpu: 0.0.40
codegen_flags: <defaults>
</compile_context>

<pallas_src>
import jax
import jax.numpy as jnp
from jax.experimental import pallas as pl
from jax.experimental.pallas import tpu as pltpu

# ----------------------------- configuration --------------------------------

CELLS = 2
NODES = 3
# adjacency dict in the same format ModelEncoder.adj_from_dict consumes.
ADJACENCY = {
    0: {(0, 1): ["conv3x3_relu"], (0, 2): ["conv1x1"], (1, 2): ["conv3x3_relu"]},
    1: {(0, 1): ["conv3x3_relu"], (0, 2): ["conv1x1"], (1, 2): ["conv3x3_relu"]},
}
BN_EPS = 1e-5

# ----------------------------- fused Pallas kernel ---------------------------


def _fused_forward_kernel(x_ref, bn_scale_ref, bn_shift_ref,
                          w0_ref, b0_ref, w1_ref, b1_ref,
                          hw_ref, hb_ref, o_ref, pad_ref):
    """One grid step = one batch image; runs both cells + head entirely in VMEM.

    x_ref        : (1, H, W, C)                input image (NHWC)
    bn_scale_ref : (2*CELLS, C)                folded BN scale, row = 2*cell + node
    bn_shift_ref : (2*CELLS, C)                folded BN shift
    w0_ref       : (CELLS, 9C, 2C)             node-0 merged weights (3x3 | 1x1-at-center-tap)
    b0_ref       : (CELLS, 1, 2C)              node-0 merged bias
    w1_ref       : (CELLS, 9C, C)              node-1 3x3 weights (im2col layout)
    b1_ref       : (CELLS, 1, C)               node-1 bias
    hw_ref       : (C, K), hb_ref: (1, K)      head (linear after global avg pool)
    o_ref        : (1, 1, K)                   logits for this image
    pad_ref      : (H+2, W+16, C) VMEM scratch zero-padded conv input buffer
                   (interior stored at rows [1:H+1], cols [8:8+W] -> sublane-aligned)
    """
    H = x_ref.shape[1]
    W = x_ref.shape[2]
    C = x_ref.shape[3]
    HW = H * W

    # Zero the halo buffer once; only the interior window is ever rewritten, so the
    # zero border stays valid across all conv invocations in this kernel call.
    pad_ref[...] = jnp.zeros(pad_ref.shape, pad_ref.dtype)

    def bn_conv(x2d, bn_row, w, b):
        # x2d: (HW, C) pre-norm node output.  Apply BN, zero-pad, im2col, one matmul.
        scale = bn_scale_ref[bn_row:bn_row + 1, :]          # (1, C)
        shift = bn_shift_ref[bn_row:bn_row + 1, :]          # (1, C)
        bnx = x2d * scale + shift                            # VPU mul/add
        pad_ref[1:H + 1, 8:8 + W, :] = bnx.reshape(H, W, C)  # interior (aligned cols)
        taps = [pad_ref[kh:kh + H, 7 + kw:7 + kw + W, :].reshape(HW, C)
                for kh in range(3) for kw in range(3)]       # tap-major order
        patches = jnp.concatenate(taps, axis=-1)             # (HW, 9C) im2col
        return jnp.dot(patches, w, preferred_element_type=jnp.float32) + b

    cell_in = x_ref[0].reshape(HW, C).astype(jnp.float32)
    for c in range(CELLS):
        # --- node 0: merged matmul produces both outgoing edges -------------
        y0 = bn_conv(cell_in, 2 * c + 0, w0_ref[c], b0_ref[c])   # (HW, 2C)
        node1 = jnp.maximum(y0[:, :C], 0.0)    # conv3x3 + ReLU  -> node 1
        node2 = y0[:, C:]                      # conv1x1         -> node 2
        # --- node 1: conv3x3 + ReLU -> node 2 --------------------------------
        y1 = bn_conv(node1, 2 * c + 1, w1_ref[c], b1_ref[c])     # (HW, C)
        node2 = node2 + jnp.maximum(y1, 0.0)
        # --- node 2 (last): pre-norm accumulated sum becomes next cell input -
        cell_in = node2

    # Head: global average pool (as an MXU matmul) + linear.
    pool = jnp.full((1, HW), 1.0 / HW, dtype=jnp.float32)
    pooled = jnp.dot(pool, cell_in, preferred_element_type=jnp.float32)      # (1, C)
    logits = jnp.dot(pooled, hw_ref[...],
                     preferred_element_type=jnp.float32) + hb_ref[...]        # (1, K)
    o_ref[0] = logits.astype(o_ref.dtype)


def model_encoder_forward(x_nchw, packed):
    """Mirrors ModelEncoder.forward.  Input: NCHW (PyTorch convention)."""
    x = jnp.transpose(x_nchw, (0, 2, 3, 1))  # -> NHWC
    B, H, W, C = x.shape
    K = packed["head_w"].shape[1]
    nine_c = 9 * C

    out = pl.pallas_call(
        _fused_forward_kernel,
        out_shape=jax.ShapeDtypeStruct((B, 1, K), jnp.float32),
        grid=(B,),
        in_specs=[
            pl.BlockSpec((1, H, W, C), lambda b: (b, 0, 0, 0)),
            pl.BlockSpec((2 * CELLS, C), lambda b: (0, 0)),
            pl.BlockSpec((2 * CELLS, C), lambda b: (0, 0)),
            pl.BlockSpec((CELLS, nine_c, 2 * C), lambda b: (0, 0, 0)),
            pl.BlockSpec((CELLS, 1, 2 * C), lambda b: (0, 0, 0)),
            pl.BlockSpec((CELLS, nine_c, C), lambda b: (0, 0, 0)),
            pl.BlockSpec((CELLS, 1, C), lambda b: (0, 0, 0)),
            pl.BlockSpec((C, K), lambda b: (0, 0)),
            pl.BlockSpec((1, K), lambda b: (0, 0)),
        ],
        out_specs=pl.BlockSpec((1, 1, K), lambda b: (b, 0, 0)),
        scratch_shapes=[pltpu.VMEM((H + 2, W + 16, C), jnp.float32)],
        compiler_params=pltpu.CompilerParams(dimension_semantics=("parallel",)),
    )(x, packed["bn_scale"], packed["bn_shift"], packed["w0"], packed["b0"],
      packed["w1"], packed["b1"], packed["head_w"], packed["head_b"])
    return out.reshape(B, K)


# ----------------------------- parameters ------------------------------------


def init_params(key, C, num_classes):
    """Logical (per-edge / per-node) parameters, mirroring the PyTorch module."""
    params = {"edges": {}, "bn": {}, "head": {}}
    for c in range(CELLS):
        for (na, nb), ops in sorted(ADJACENCY[c].items()):
            for i, name in enumerate(ops):
                key, k1, k2 = jax.random.split(key, 3)
                if name == "conv3x3_relu":
                    w = 0.1 * jax.random.normal(k1, (3, 3, C, C), jnp.float32)
                else:  # conv1x1
                    w = 0.1 * jax.random.normal(k1, (C, C), jnp.float32)
                b = 0.01 * jax.random.normal(k2, (1, C), jnp.float32)
                params["edges"][(c, na, nb, i)] = {"name": name, "w": w, "b": b}
        for n in range(NODES):
            key, k1, k2, k3, k4 = jax.random.split(key, 5)
            gamma = 1.0 + 0.1 * jax.random.normal(k1, (C,), jnp.float32)
            beta = 0.05 * jax.random.normal(k2, (C,), jnp.float32)
            mean = 0.1 * jax.random.normal(k3, (C,), jnp.float32)
            var = 1.0 + 0.1 * jnp.abs(jax.random.normal(k4, (C,), jnp.float32))
            scale = gamma / jnp.sqrt(var + BN_EPS)
            shift = beta - mean * scale
            params["bn"][(c, n)] = {"scale": scale, "shift": shift}
    key, k1, k2 = jax.random.split(key, 3)
    params["head"] = {
        "w": 0.1 * jax.random.normal(k1, (C, num_classes), jnp.float32),
        "b": 0.01 * jax.random.normal(k2, (1, num_classes), jnp.float32),
    }
    return params


def pack_params(params, C):
    """Pack logical params into the fused-kernel layout (im2col / merged weights)."""
    nine_c = 9 * C
    bn_scale, bn_shift = [], []
    w0_list, b0_list, w1_list, b1_list = [], [], [], []
    for c in range(CELLS):
        for n in (0, 1):  # node 2 has no outgoing edges -> its BN has no effect
            bn_scale.append(params["bn"][(c, n)]["scale"].reshape(C))
            bn_shift.append(params["bn"][(c, n)]["shift"].reshape(C))
        e01 = params["edges"][(c, 0, 1, 0)]   # conv3x3_relu, node0 -> node1
        e02 = params["edges"][(c, 0, 2, 0)]   # conv1x1,      node0 -> node2
        e12 = params["edges"][(c, 1, 2, 0)]   # conv3x3_relu, node1 -> node2
        w3_01 = e01["w"].reshape(nine_c, C)   # HWIO -> tap-major (9C, C)
        w_merged = jnp.zeros((nine_c, 2 * C), jnp.float32)
        w_merged = w_merged.at[:, :C].set(w3_01)
        # 1x1 conv lives on the center tap (kh=1, kw=1 -> tap index 4)
        w_merged = w_merged.at[4 * C:5 * C, C:].set(e02["w"])
        b_merged = jnp.concatenate([e01["b"], e02["b"]], axis=-1)     # (1, 2C)
        w0_list.append(w_merged)
        b0_list.append(b_merged)
        w1_list.append(e12["w"].reshape(nine_c, C))
        b1_list.append(e12["b"])
    return {
        "bn_scale": jnp.stack(bn_scale),        # (2*CELLS, C)
        "bn_shift": jnp.stack(bn_shift),        # (2*CELLS, C)
        "w0": jnp.stack(w0_list),               # (CELLS, 9C, 2C)
        "b0": jnp.stack(b0_list),               # (CELLS, 1, 2C)
        "w1": jnp.stack(w1_list),               # (CELLS, 9C, C)
        "b1": jnp.stack(b1_list),               # (CELLS, 1, C)
        "head_w": params["head"]["w"],          # (C, K)
        "head_b": params["head"]["b"],          # (1, K)
    }


# ----------------------------- pure-JAX reference -----------------------------


def _reference_forward(x_nhwc, params):
    hi = jax.lax.Precision.HIGHEST

    def conv3(x, w, b):
        y = jax.lax.conv_general_dilated(
            x, w, (1, 1), "SAME",
            dimension_numbers=("NHWC", "HWIO", "NHWC"), precision=hi)
        return y + b.reshape(1, 1, 1, -1)

    def conv1(x, w, b):
        y = jnp.einsum("bhwc,cd->bhwd", x, w, precision=hi)
        return y + b.reshape(1, 1, 1, -1)

    def bn(x, c, n):
        p = params["bn"][(c, n)]
        return x * p["scale"].reshape(1, 1, 1, -1) + p["shift"].reshape(1, 1, 1, -1)

    cell_in = x_nhwc
    for c in range(CELLS):
        xi0 = bn(cell_in, c, 0)
        n1 = jax.nn.relu(conv3(xi0, params["edges"][(c, 0, 1, 0)]["w"],
                               params["edges"][(c, 0, 1, 0)]["b"]))
        n2 = conv1(xi0, params["edges"][(c, 0, 2, 0)]["w"],
                   params["edges"][(c, 0, 2, 0)]["b"])
        xi1 = bn(n1, c, 1)
        n2 = n2 + jax.nn.relu(conv3(xi1, params["edges"][(c, 1, 2, 0)]["w"],
                                    params["edges"][(c, 1, 2, 0)]["b"]))
        cell_in = n2
    pooled = jnp.mean(cell_in, axis=(1, 2))
    return jnp.dot(pooled, params["head"]["w"], precision=hi) + params["head"]["b"]


# ----------------------------- main -------------------------------------------

if __name__ == "__main__":
    B, C, H, W = 2, 8, 16, 16
    NUM_CLASSES = 10

    key = jax.random.PRNGKey(0)
    kx, kp = jax.random.split(key)
    x = jax.random.normal(kx, (B, C, H, W), dtype=jnp.float32)  # NCHW like PyTorch
    params = init_params(kp, C, NUM_CLASSES)
    packed = pack_params(params, C)

    out = model_encoder_forward(x, packed)
    out = jax.block_until_ready(out)
    assert out.shape == (B, NUM_CLASSES), out.shape
    assert bool(jnp.all(jnp.isfinite(out)))

    ref = _reference_forward(jnp.transpose(x, (0, 2, 3, 1)), params)
    assert bool(jnp.allclose(out, ref, rtol=2e-3, atol=2e-3)), (out, ref)
    print("KERNEL_OK")
</pallas_src>

<mosaic_0001>
module attributes {stable_mosaic.version = 11 : i64} {
  func.func @_fused_forward_kernel(%arg0: i32, %arg1: memref<1x16x16x8xf32, #tpu.memory_space<vmem>>, %arg2: memref<4x8xf32, #tpu.memory_space<vmem>>, %arg3: memref<4x8xf32, #tpu.memory_space<vmem>>, %arg4: memref<2x72x16xf32, #tpu.memory_space<vmem>>, %arg5: memref<2x1x16xf32, #tpu.memory_space<vmem>>, %arg6: memref<2x72x8xf32, #tpu.memory_space<vmem>>, %arg7: memref<2x1x8xf32, #tpu.memory_space<vmem>>, %arg8: memref<8x10xf32, #tpu.memory_space<vmem>>, %arg9: memref<1x10xf32, #tpu.memory_space<vmem>>, %arg10: memref<1x1x10xf32, #tpu.memory_space<vmem>>, %arg11: memref<18x32x8xf32, #tpu.memory_space<vmem>>) attributes {dimension_semantics = [#tpu.dimension_semantics<parallel>], iteration_bounds = array<i64: 2>, scalar_prefetch = 0 : i64, scratch_operands = 1 : i64, tpu.core_type = #tpu.core_type<tc>, window_params = [{transform_indices = @transform_0, window_bounds = array<i64: 1, 16, 16, 8>}, {pipeline_mode = #tpu.pipeline_mode<synchronous>, transform_indices = @transform_1, window_bounds = array<i64: 4, 8>}, {pipeline_mode = #tpu.pipeline_mode<synchronous>, transform_indices = @transform_2, window_bounds = array<i64: 4, 8>}, {pipeline_mode = #tpu.pipeline_mode<synchronous>, transform_indices = @transform_3, window_bounds = array<i64: 2, 72, 16>}, {pipeline_mode = #tpu.pipeline_mode<synchronous>, transform_indices = @transform_4, window_bounds = array<i64: 2, 1, 16>}, {pipeline_mode = #tpu.pipeline_mode<synchronous>, transform_indices = @transform_5, window_bounds = array<i64: 2, 72, 8>}, {pipeline_mode = #tpu.pipeline_mode<synchronous>, transform_indices = @transform_6, window_bounds = array<i64: 2, 1, 8>}, {pipeline_mode = #tpu.pipeline_mode<synchronous>, transform_indices = @transform_7, window_bounds = array<i64: 8, 10>}, {pipeline_mode = #tpu.pipeline_mode<synchronous>, transform_indices = @transform_8, window_bounds = array<i64: 1, 10>}, {transform_indices = @transform_9, window_bounds = array<i64: 1, 1, 10>}]} {
    %cst = arith.constant 0.000000e+00 : f32
    %0 = vector.broadcast %cst : f32 to vector<18x32x8xf32>
    %c0 = arith.constant 0 : index
    %c0_0 = arith.constant 0 : index
    %c0_1 = arith.constant 0 : index
    %1 = vector.load %arg11[%c0, %c0_0, %c0_1] : memref<18x32x8xf32, #tpu.memory_space<vmem>>, vector<18x32x8xf32>
    tpu.vector_store %arg11[%c0, %c0_0, %c0_1], %0 {strides = array<i32>} : memref<18x32x8xf32, #tpu.memory_space<vmem>>, vector<18x32x8xf32>,
    %c0_2 = arith.constant 0 : index
    %c0_3 = arith.constant 0 : index
    %c0_4 = arith.constant 0 : index
    %c0_5 = arith.constant 0 : index
    %2 = vector.load %arg1[%c0_2, %c0_3, %c0_4, %c0_5] : memref<1x16x16x8xf32, #tpu.memory_space<vmem>>, vector<1x16x16x8xf32>
    %3 = vector.shape_cast %2 : vector<1x16x16x8xf32> to vector<16x16x8xf32>
    %4 = vector.shape_cast %3 : vector<16x16x8xf32> to vector<256x8xf32>
    %c0_6 = arith.constant 0 : index
    %c0_7 = arith.constant 0 : index
    %c0_8 = arith.constant 0 : index
    %5 = vector.load %arg4[%c0_6, %c0_7, %c0_8] : memref<2x72x16xf32, #tpu.memory_space<vmem>>, vector<1x72x16xf32>
    %6 = vector.shape_cast %5 : vector<1x72x16xf32> to vector<72x16xf32>
    %c0_9 = arith.constant 0 : index
    %c0_10 = arith.constant 0 : index
    %c0_11 = arith.constant 0 : index
    %7 = vector.load %arg5[%c0_9, %c0_10, %c0_11] : memref<2x1x16xf32, #tpu.memory_space<vmem>>, vector<1x1x16xf32>
    %8 = vector.shape_cast %7 : vector<1x1x16xf32> to vector<1x16xf32>
    %c0_12 = arith.constant 0 : index
    %c0_13 = arith.constant 0 : index
    %9 = vector.load %arg2[%c0_12, %c0_13] : memref<4x8xf32, #tpu.memory_space<vmem>>, vector<1x8xf32>
    %c0_14 = arith.constant 0 : index
    %c0_15 = arith.constant 0 : index
    %10 = vector.load %arg3[%c0_14, %c0_15] : memref<4x8xf32, #tpu.memory_space<vmem>>, vector<1x8xf32>
    %11 = vector.broadcast %9 : vector<1x8xf32> to vector<256x8xf32>
    %12 = arith.mulf %4, %11 : vector<256x8xf32>
    %13 = vector.broadcast %10 : vector<1x8xf32> to vector<256x8xf32>
    %14 = arith.addf %12, %13 : vector<256x8xf32>
    %15 = vector.shape_cast %14 : vector<256x8xf32> to vector<16x16x8xf32>
    %c1 = arith.constant 1 : index
    %c8 = arith.constant 8 : index
    %c0_16 = arith.constant 0 : index
    %16 = vector.load %arg11[%c1, %c8, %c0_16] : memref<18x32x8xf32, #tpu.memory_space<vmem>>, vector<16x16x8xf32>
    tpu.vector_store %arg11[%c1, %c8, %c0_16], %15 {strides = array<i32>} : memref<18x32x8xf32, #tpu.memory_space<vmem>>, vector<16x16x8xf32>,
    %c0_17 = arith.constant 0 : index
    %c7 = arith.constant 7 : index
    %c0_18 = arith.constant 0 : index
    %17 = vector.load %arg11[%c0_17, %c7, %c0_18] : memref<18x32x8xf32, #tpu.memory_space<vmem>>, vector<16x16x8xf32>
    %18 = vector.shape_cast %17 : vector<16x16x8xf32> to vector<256x8xf32>
    %c0_19 = arith.constant 0 : index
    %c8_20 = arith.constant 8 : index
    %c0_21 = arith.constant 0 : index
    %19 = vector.load %arg11[%c0_19, %c8_20, %c0_21] : memref<18x32x8xf32, #tpu.memory_space<vmem>>, vector<16x16x8xf32>
    %20 = vector.shape_cast %19 : vector<16x16x8xf32> to vector<256x8xf32>
    %c0_22 = arith.constant 0 : index
    %c9 = arith.constant 9 : index
    %c0_23 = arith.constant 0 : index
    %21 = vector.load %arg11[%c0_22, %c9, %c0_23] : memref<18x32x8xf32, #tpu.memory_space<vmem>>, vector<16x16x8xf32>
    %22 = vector.shape_cast %21 : vector<16x16x8xf32> to vector<256x8xf32>
    %c1_24 = arith.constant 1 : index
    %c7_25 = arith.constant 7 : index
    %c0_26 = arith.constant 0 : index
    %23 = vector.load %arg11[%c1_24, %c7_25, %c0_26] : memref<18x32x8xf32, #tpu.memory_space<vmem>>, vector<16x16x8xf32>
    %24 = vector.shape_cast %23 : vector<16x16x8xf32> to vector<256x8xf32>
    %c1_27 = arith.constant 1 : index
    %c8_28 = arith.constant 8 : index
    %c0_29 = arith.constant 0 : index
    %25 = vector.load %arg11[%c1_27, %c8_28, %c0_29] : memref<18x32x8xf32, #tpu.memory_space<vmem>>, vector<16x16x8xf32>
    %26 = vector.shape_cast %25 : vector<16x16x8xf32> to vector<256x8xf32>
    %c1_30 = arith.constant 1 : index
    %c9_31 = arith.constant 9 : index
    %c0_32 = arith.constant 0 : index
    %27 = vector.load %arg11[%c1_30, %c9_31, %c0_32] : memref<18x32x8xf32, #tpu.memory_space<vmem>>, vector<16x16x8xf32>
    %28 = vector.shape_cast %27 : vector<16x16x8xf32> to vector<256x8xf32>
    %c2 = arith.constant 2 : index
    %c7_33 = arith.constant 7 : index
    %c0_34 = arith.constant 0 : index
    %29 = vector.load %arg11[%c2, %c7_33, %c0_34] : memref<18x32x8xf32, #tpu.memory_space<vmem>>, vector<16x16x8xf32>
    %30 = vector.shape_cast %29 : vector<16x16x8xf32> to vector<256x8xf32>
    %c2_35 = arith.constant 2 : index
    %c8_36 = arith.constant 8 : index
    %c0_37 = arith.constant 0 : index
    %31 = vector.load %arg11[%c2_35, %c8_36, %c0_37] : memref<18x32x8xf32, #tpu.memory_space<vmem>>, vector<16x16x8xf32>
    %32 = vector.shape_cast %31 : vector<16x16x8xf32> to vector<256x8xf32>
    %c2_38 = arith.constant 2 : index
    %c9_39 = arith.constant 9 : index
    %c0_40 = arith.constant 0 : index
    %33 = vector.load %arg11[%c2_38, %c9_39, %c0_40] : memref<18x32x8xf32, #tpu.memory_space<vmem>>, vector<16x16x8xf32>
    %34 = vector.shape_cast %33 : vector<16x16x8xf32> to vector<256x8xf32>
    %35 = tpu.concatenate %18, %20, %22, %24, %26, %28, %30, %32, %34 in 1 : vector<256x8xf32>, vector<256x8xf32>, vector<256x8xf32>, vector<256x8xf32>, vector<256x8xf32>, vector<256x8xf32>, vector<256x8xf32>, vector<256x8xf32>, vector<256x8xf32> -> vector<256x72xf32>
    %cst_41 = arith.constant dense<0.000000e+00> : vector<256x16xf32>
    %36 = tpu.matmul %35, %6, %cst_41 {dimension_numbers = #tpu.dot_dimension_numbers<[1], [0], [0], [1], [0, 0, 1, 1], [], []>} : vector<256x72xf32>, vector<72x16xf32>, vector<256x16xf32> -> vector<256x16xf32>
    %37 = vector.broadcast %8 : vector<1x16xf32> to vector<256x16xf32>
    %38 = arith.addf %36, %37 : vector<256x16xf32>
    %39 = vector.extract_strided_slice %38 {offsets = [0, 0], sizes = [256, 8], strides = [1, 1]} : vector<256x16xf32> to vector<256x8xf32>
    %cst_42 = arith.constant 0.000000e+00 : f32
    %40 = vector.broadcast %cst_42 : f32 to vector<256x8xf32>
    %41 = arith.maximumf %39, %40 : vector<256x8xf32>
    %42 = vector.extract_strided_slice %38 {offsets = [0, 8], sizes = [256, 8], strides = [1, 1]} : vector<256x16xf32> to vector<256x8xf32>
    %c0_43 = arith.constant 0 : index
    %c0_44 = arith.constant 0 : index
    %c0_45 = arith.constant 0 : index
    %43 = vector.load %arg6[%c0_43, %c0_44, %c0_45] : memref<2x72x8xf32, #tpu.memory_space<vmem>>, vector<1x72x8xf32>
    %44 = vector.shape_cast %43 : vector<1x72x8xf32> to vector<72x8xf32>
    %c0_46 = arith.constant 0 : index
    %c0_47 = arith.constant 0 : index
    %c0_48 = arith.constant 0 : index
    %45 = vector.load %arg7[%c0_46, %c0_47, %c0_48] : memref<2x1x8xf32, #tpu.memory_space<vmem>>, vector<1x1x8xf32>
    %46 = vector.shape_cast %45 : vector<1x1x8xf32> to vector<1x8xf32>
    %c1_49 = arith.constant 1 : index
    %c0_50 = arith.constant 0 : index
    %47 = vector.load %arg2[%c1_49, %c0_50] : memref<4x8xf32, #tpu.memory_space<vmem>>, vector<1x8xf32>
    %c1_51 = arith.constant 1 : index
    %c0_52 = arith.constant 0 : index
    %48 = vector.load %arg3[%c1_51, %c0_52] : memref<4x8xf32, #tpu.memory_space<vmem>>, vector<1x8xf32>
    %49 = vector.broadcast %47 : vector<1x8xf32> to vector<256x8xf32>
    %50 = arith.mulf %41, %49 : vector<256x8xf32>
    %51 = vector.broadcast %48 : vector<1x8xf32> to vector<256x8xf32>
    %52 = arith.addf %50, %51 : vector<256x8xf32>
    %53 = vector.shape_cast %52 : vector<256x8xf32> to vector<16x16x8xf32>
    %c1_53 = arith.constant 1 : index
    %c8_54 = arith.constant 8 : index
    %c0_55 = arith.constant 0 : index
    %54 = vector.load %arg11[%c1_53, %c8_54, %c0_55] : memref<18x32x8xf32, #tpu.memory_space<vmem>>, vector<16x16x8xf32>
    tpu.vector_store %arg11[%c1_53, %c8_54, %c0_55], %53 {strides = array<i32>} : memref<18x32x8xf32, #tpu.memory_space<vmem>>, vector<16x16x8xf32>,
    %c0_56 = arith.constant 0 : index
    %c7_57 = arith.constant 7 : index
    %c0_58 = arith.constant 0 : index
    %55 = vector.load %arg11[%c0_56, %c7_57, %c0_58] : memref<18x32x8xf32, #tpu.memory_space<vmem>>, vector<16x16x8xf32>
    %56 = vector.shape_cast %55 : vector<16x16x8xf32> to vector<256x8xf32>
    %c0_59 = arith.constant 0 : index
    %c8_60 = arith.constant 8 : index
    %c0_61 = arith.constant 0 : index
    %57 = vector.load %arg11[%c0_59, %c8_60, %c0_61] : memref<18x32x8xf32, #tpu.memory_space<vmem>>, vector<16x16x8xf32>
    %58 = vector.shape_cast %57 : vector<16x16x8xf32> to vector<256x8xf32>
    %c0_62 = arith.constant 0 : index
    %c9_63 = arith.constant 9 : index
    %c0_64 = arith.constant 0 : index
    %59 = vector.load %arg11[%c0_62, %c9_63, %c0_64] : memref<18x32x8xf32, #tpu.memory_space<vmem>>, vector<16x16x8xf32>
    %60 = vector.shape_cast %59 : vector<16x16x8xf32> to vector<256x8xf32>
    %c1_65 = arith.constant 1 : index
    %c7_66 = arith.constant 7 : index
    %c0_67 = arith.constant 0 : index
    %61 = vector.load %arg11[%c1_65, %c7_66, %c0_67] : memref<18x32x8xf32, #tpu.memory_space<vmem>>, vector<16x16x8xf32>
    %62 = vector.shape_cast %61 : vector<16x16x8xf32> to vector<256x8xf32>
    %c1_68 = arith.constant 1 : index
    %c8_69 = arith.constant 8 : index
    %c0_70 = arith.constant 0 : index
    %63 = vector.load %arg11[%c1_68, %c8_69, %c0_70] : memref<18x32x8xf32, #tpu.memory_space<vmem>>, vector<16x16x8xf32>
    %64 = vector.shape_cast %63 : vector<16x16x8xf32> to vector<256x8xf32>
    %c1_71 = arith.constant 1 : index
    %c9_72 = arith.constant 9 : index
    %c0_73 = arith.constant 0 : index
    %65 = vector.load %arg11[%c1_71, %c9_72, %c0_73] : memref<18x32x8xf32, #tpu.memory_space<vmem>>, vector<16x16x8xf32>
    %66 = vector.shape_cast %65 : vector<16x16x8xf32> to vector<256x8xf32>
    %c2_74 = arith.constant 2 : index
    %c7_75 = arith.constant 7 : index
    %c0_76 = arith.constant 0 : index
    %67 = vector.load %arg11[%c2_74, %c7_75, %c0_76] : memref<18x32x8xf32, #tpu.memory_space<vmem>>, vector<16x16x8xf32>
    %68 = vector.shape_cast %67 : vector<16x16x8xf32> to vector<256x8xf32>
    %c2_77 = arith.constant 2 : index
    %c8_78 = arith.constant 8 : index
    %c0_79 = arith.constant 0 : index
    %69 = vector.load %arg11[%c2_77, %c8_78, %c0_79] : memref<18x32x8xf32, #tpu.memory_space<vmem>>, vector<16x16x8xf32>
    %70 = vector.shape_cast %69 : vector<16x16x8xf32> to vector<256x8xf32>
    %c2_80 = arith.constant 2 : index
    %c9_81 = arith.constant 9 : index
    %c0_82 = arith.constant 0 : index
    %71 = vector.load %arg11[%c2_80, %c9_81, %c0_82] : memref<18x32x8xf32, #tpu.memory_space<vmem>>, vector<16x16x8xf32>
    %72 = vector.shape_cast %71 : vector<16x16x8xf32> to vector<256x8xf32>
    %73 = tpu.concatenate %56, %58, %60, %62, %64, %66, %68, %70, %72 in 1 : vector<256x8xf32>, vector<256x8xf32>, vector<256x8xf32>, vector<256x8xf32>, vector<256x8xf32>, vector<256x8xf32>, vector<256x8xf32>, vector<256x8xf32>, vector<256x8xf32> -> vector<256x72xf32>
    %cst_83 = arith.constant dense<0.000000e+00> : vector<256x8xf32>
    %74 = tpu.matmul %73, %44, %cst_83 {dimension_numbers = #tpu.dot_dimension_numbers<[1], [0], [0], [1], [0, 0, 1, 1], [], []>} : vector<256x72xf32>, vector<72x8xf32>, vector<256x8xf32> -> vector<256x8xf32>
    %75 = vector.broadcast %46 : vector<1x8xf32> to vector<256x8xf32>
    %76 = arith.addf %74, %75 : vector<256x8xf32>
    %cst_84 = arith.constant 0.000000e+00 : f32
    %77 = vector.broadcast %cst_84 : f32 to vector<256x8xf32>
    %78 = arith.maximumf %76, %77 : vector<256x8xf32>
    %79 = arith.addf %42, %78 : vector<256x8xf32>
    %c1_85 = arith.constant 1 : index
    %c0_86 = arith.constant 0 : index
    %c0_87 = arith.constant 0 : index
    %80 = vector.load %arg4[%c1_85, %c0_86, %c0_87] : memref<2x72x16xf32, #tpu.memory_space<vmem>>, vector<1x72x16xf32>
    %81 = vector.shape_cast %80 : vector<1x72x16xf32> to vector<72x16xf32>
    %c1_88 = arith.constant 1 : index
    %c0_89 = arith.constant 0 : index
    %c0_90 = arith.constant 0 : index
    %82 = vector.load %arg5[%c1_88, %c0_89, %c0_90] : memref<2x1x16xf32, #tpu.memory_space<vmem>>, vector<1x1x16xf32>
    %83 = vector.shape_cast %82 : vector<1x1x16xf32> to vector<1x16xf32>
    %c2_91 = arith.constant 2 : index
    %c0_92 = arith.constant 0 : index
    %84 = vector.load %arg2[%c2_91, %c0_92] : memref<4x8xf32, #tpu.memory_space<vmem>>, vector<1x8xf32>
    %c2_93 = arith.constant 2 : index
    %c0_94 = arith.constant 0 : index
    %85 = vector.load %arg3[%c2_93, %c0_94] : memref<4x8xf32, #tpu.memory_space<vmem>>, vector<1x8xf32>
    %86 = vector.broadcast %84 : vector<1x8xf32> to vector<256x8xf32>
    %87 = arith.mulf %79, %86 : vector<256x8xf32>
    %88 = vector.broadcast %85 : vector<1x8xf32> to vector<256x8xf32>
    %89 = arith.addf %87, %88 : vector<256x8xf32>
    %90 = vector.shape_cast %89 : vector<256x8xf32> to vector<16x16x8xf32>
    %c1_95 = arith.constant 1 : index
    %c8_96 = arith.constant 8 : index
    %c0_97 = arith.constant 0 : index
    %91 = vector.load %arg11[%c1_95, %c8_96, %c0_97] : memref<18x32x8xf32, #tpu.memory_space<vmem>>, vector<16x16x8xf32>
    tpu.vector_store %arg11[%c1_95, %c8_96, %c0_97], %90 {strides = array<i32>} : memref<18x32x8xf32, #tpu.memory_space<vmem>>, vector<16x16x8xf32>,
    %c0_98 = arith.constant 0 : index
    %c7_99 = arith.constant 7 : index
    %c0_100 = arith.constant 0 : index
    %92 = vector.load %arg11[%c0_98, %c7_99, %c0_100] : memref<18x32x8xf32, #tpu.memory_space<vmem>>, vector<16x16x8xf32>
    %93 = vector.shape_cast %92 : vector<16x16x8xf32> to vector<256x8xf32>
    %c0_101 = arith.constant 0 : index
    %c8_102 = arith.constant 8 : index
    %c0_103 = arith.constant 0 : index
    %94 = vector.load %arg11[%c0_101, %c8_102, %c0_103] : memref<18x32x8xf32, #tpu.memory_space<vmem>>, vector<16x16x8xf32>
    %95 = vector.shape_cast %94 : vector<16x16x8xf32> to vector<256x8xf32>
    %c0_104 = arith.constant 0 : index
    %c9_105 = arith.constant 9 : index
    %c0_106 = arith.constant 0 : index
    %96 = vector.load %arg11[%c0_104, %c9_105, %c0_106] : memref<18x32x8xf32, #tpu.memory_space<vmem>>, vector<16x16x8xf32>
    %97 = vector.shape_cast %96 : vector<16x16x8xf32> to vector<256x8xf32>
    %c1_107 = arith.constant 1 : index
    %c7_108 = arith.constant 7 : index
    %c0_109 = arith.constant 0 : index
    %98 = vector.load %arg11[%c1_107, %c7_108, %c0_109] : memref<18x32x8xf32, #tpu.memory_space<vmem>>, vector<16x16x8xf32>
    %99 = vector.shape_cast %98 : vector<16x16x8xf32> to vector<256x8xf32>
    %c1_110 = arith.constant 1 : index
    %c8_111 = arith.constant 8 : index
    %c0_112 = arith.constant 0 : index
    %100 = vector.load %arg11[%c1_110, %c8_111, %c0_112] : memref<18x32x8xf32, #tpu.memory_space<vmem>>, vector<16x16x8xf32>
    %101 = vector.shape_cast %100 : vector<16x16x8xf32> to vector<256x8xf32>
    %c1_113 = arith.constant 1 : index
    %c9_114 = arith.constant 9 : index
    %c0_115 = arith.constant 0 : index
    %102 = vector.load %arg11[%c1_113, %c9_114, %c0_115] : memref<18x32x8xf32, #tpu.memory_space<vmem>>, vector<16x16x8xf32>
    %103 = vector.shape_cast %102 : vector<16x16x8xf32> to vector<256x8xf32>
    %c2_116 = arith.constant 2 : index
    %c7_117 = arith.constant 7 : index
    %c0_118 = arith.constant 0 : index
    %104 = vector.load %arg11[%c2_116, %c7_117, %c0_118] : memref<18x32x8xf32, #tpu.memory_space<vmem>>, vector<16x16x8xf32>
    %105 = vector.shape_cast %104 : vector<16x16x8xf32> to vector<256x8xf32>
    %c2_119 = arith.constant 2 : index
    %c8_120 = arith.constant 8 : index
    %c0_121 = arith.constant 0 : index
    %106 = vector.load %arg11[%c2_119, %c8_120, %c0_121] : memref<18x32x8xf32, #tpu.memory_space<vmem>>, vector<16x16x8xf32>
    %107 = vector.shape_cast %106 : vector<16x16x8xf32> to vector<256x8xf32>
    %c2_122 = arith.constant 2 : index
    %c9_123 = arith.constant 9 : index
    %c0_124 = arith.constant 0 : index
    %108 = vector.load %arg11[%c2_122, %c9_123, %c0_124] : memref<18x32x8xf32, #tpu.memory_space<vmem>>, vector<16x16x8xf32>
    %109 = vector.shape_cast %108 : vector<16x16x8xf32> to vector<256x8xf32>
    %110 = tpu.concatenate %93, %95, %97, %99, %101, %103, %105, %107, %109 in 1 : vector<256x8xf32>, vector<256x8xf32>, vector<256x8xf32>, vector<256x8xf32>, vector<256x8xf32>, vector<256x8xf32>, vector<256x8xf32>, vector<256x8xf32>, vector<256x8xf32> -> vector<256x72xf32>
    %cst_125 = arith.constant dense<0.000000e+00> : vector<256x16xf32>
    %111 = tpu.matmul %110, %81, %cst_125 {dimension_numbers = #tpu.dot_dimension_numbers<[1], [0], [0], [1], [0, 0, 1, 1], [], []>} : vector<256x72xf32>, vector<72x16xf32>, vector<256x16xf32> -> vector<256x16xf32>
    %112 = vector.broadcast %83 : vector<1x16xf32> to vector<256x16xf32>
    %113 = arith.addf %111, %112 : vector<256x16xf32>
    %114 = vector.extract_strided_slice %113 {offsets = [0, 0], sizes = [256, 8], strides = [1, 1]} : vector<256x16xf32> to vector<256x8xf32>
    %cst_126 = arith.constant 0.000000e+00 : f32
    %115 = vector.broadcast %cst_126 : f32 to vector<256x8xf32>
    %116 = arith.maximumf %114, %115 : vector<256x8xf32>
    %117 = vector.extract_strided_slice %113 {offsets = [0, 8], sizes = [256, 8], strides = [1, 1]} : vector<256x16xf32> to vector<256x8xf32>
    %c1_127 = arith.constant 1 : index
    %c0_128 = arith.constant 0 : index
    %c0_129 = arith.constant 0 : index
    %118 = vector.load %arg6[%c1_127, %c0_128, %c0_129] : memref<2x72x8xf32, #tpu.memory_space<vmem>>, vector<1x72x8xf32>
    %119 = vector.shape_cast %118 : vector<1x72x8xf32> to vector<72x8xf32>
    %c1_130 = arith.constant 1 : index
    %c0_131 = arith.constant 0 : index
    %c0_132 = arith.constant 0 : index
    %120 = vector.load %arg7[%c1_130, %c0_131, %c0_132] : memref<2x1x8xf32, #tpu.memory_space<vmem>>, vector<1x1x8xf32>
    %121 = vector.shape_cast %120 : vector<1x1x8xf32> to vector<1x8xf32>
    %c3 = arith.constant 3 : index
    %c0_133 = arith.constant 0 : index
    %122 = vector.load %arg2[%c3, %c0_133] : memref<4x8xf32, #tpu.memory_space<vmem>>, vector<1x8xf32>
    %c3_134 = arith.constant 3 : index
    %c0_135 = arith.constant 0 : index
    %123 = vector.load %arg3[%c3_134, %c0_135] : memref<4x8xf32, #tpu.memory_space<vmem>>, vector<1x8xf32>
    %124 = vector.broadcast %122 : vector<1x8xf32> to vector<256x8xf32>
    %125 = arith.mulf %116, %124 : vector<256x8xf32>
    %126 = vector.broadcast %123 : vector<1x8xf32> to vector<256x8xf32>
    %127 = arith.addf %125, %126 : vector<256x8xf32>
    %128 = vector.shape_cast %127 : vector<256x8xf32> to vector<16x16x8xf32>
    %c1_136 = arith.constant 1 : index
    %c8_137 = arith.constant 8 : index
    %c0_138 = arith.constant 0 : index
    %129 = vector.load %arg11[%c1_136, %c8_137, %c0_138] : memref<18x32x8xf32, #tpu.memory_space<vmem>>, vector<16x16x8xf32>
    tpu.vector_store %arg11[%c1_136, %c8_137, %c0_138], %128 {strides = array<i32>} : memref<18x32x8xf32, #tpu.memory_space<vmem>>, vector<16x16x8xf32>,
    %c0_139 = arith.constant 0 : index
    %c7_140 = arith.constant 7 : index
    %c0_141 = arith.constant 0 : index
    %130 = vector.load %arg11[%c0_139, %c7_140, %c0_141] : memref<18x32x8xf32, #tpu.memory_space<vmem>>, vector<16x16x8xf32>
    %131 = vector.shape_cast %130 : vector<16x16x8xf32> to vector<256x8xf32>
    %c0_142 = arith.constant 0 : index
    %c8_143 = arith.constant 8 : index
    %c0_144 = arith.constant 0 : index
    %132 = vector.load %arg11[%c0_142, %c8_143, %c0_144] : memref<18x32x8xf32, #tpu.memory_space<vmem>>, vector<16x16x8xf32>
    %133 = vector.shape_cast %132 : vector<16x16x8xf32> to vector<256x8xf32>
    %c0_145 = arith.constant 0 : index
    %c9_146 = arith.constant 9 : index
    %c0_147 = arith.constant 0 : index
    %134 = vector.load %arg11[%c0_145, %c9_146, %c0_147] : memref<18x32x8xf32, #tpu.memory_space<vmem>>, vector<16x16x8xf32>
    %135 = vector.shape_cast %134 : vector<16x16x8xf32> to vector<256x8xf32>
    %c1_148 = arith.constant 1 : index
    %c7_149 = arith.constant 7 : index
    %c0_150 = arith.constant 0 : index
    %136 = vector.load %arg11[%c1_148, %c7_149, %c0_150] : memref<18x32x8xf32, #tpu.memory_space<vmem>>, vector<16x16x8xf32>
    %137 = vector.shape_cast %136 : vector<16x16x8xf32> to vector<256x8xf32>
    %c1_151 = arith.constant 1 : index
    %c8_152 = arith.constant 8 : index
    %c0_153 = arith.constant 0 : index
    %138 = vector.load %arg11[%c1_151, %c8_152, %c0_153] : memref<18x32x8xf32, #tpu.memory_space<vmem>>, vector<16x16x8xf32>
    %139 = vector.shape_cast %138 : vector<16x16x8xf32> to vector<256x8xf32>
    %c1_154 = arith.constant 1 : index
    %c9_155 = arith.constant 9 : index
    %c0_156 = arith.constant 0 : index
    %140 = vector.load %arg11[%c1_154, %c9_155, %c0_156] : memref<18x32x8xf32, #tpu.memory_space<vmem>>, vector<16x16x8xf32>
    %141 = vector.shape_cast %140 : vector<16x16x8xf32> to vector<256x8xf32>
    %c2_157 = arith.constant 2 : index
    %c7_158 = arith.constant 7 : index
    %c0_159 = arith.constant 0 : index
    %142 = vector.load %arg11[%c2_157, %c7_158, %c0_159] : memref<18x32x8xf32, #tpu.memory_space<vmem>>, vector<16x16x8xf32>
    %143 = vector.shape_cast %142 : vector<16x16x8xf32> to vector<256x8xf32>
    %c2_160 = arith.constant 2 : index
    %c8_161 = arith.constant 8 : index
    %c0_162 = arith.constant 0 : index
    %144 = vector.load %arg11[%c2_160, %c8_161, %c0_162] : memref<18x32x8xf32, #tpu.memory_space<vmem>>, vector<16x16x8xf32>
    %145 = vector.shape_cast %144 : vector<16x16x8xf32> to vector<256x8xf32>
    %c2_163 = arith.constant 2 : index
    %c9_164 = arith.constant 9 : index
    %c0_165 = arith.constant 0 : index
    %146 = vector.load %arg11[%c2_163, %c9_164, %c0_165] : memref<18x32x8xf32, #tpu.memory_space<vmem>>, vector<16x16x8xf32>
    %147 = vector.shape_cast %146 : vector<16x16x8xf32> to vector<256x8xf32>
    %148 = tpu.concatenate %131, %133, %135, %137, %139, %141, %143, %145, %147 in 1 : vector<256x8xf32>, vector<256x8xf32>, vector<256x8xf32>, vector<256x8xf32>, vector<256x8xf32>, vector<256x8xf32>, vector<256x8xf32>, vector<256x8xf32>, vector<256x8xf32> -> vector<256x72xf32>
    %cst_166 = arith.constant dense<0.000000e+00> : vector<256x8xf32>
    %149 = tpu.matmul %148, %119, %cst_166 {dimension_numbers = #tpu.dot_dimension_numbers<[1], [0], [0], [1], [0, 0, 1, 1], [], []>} : vector<256x72xf32>, vector<72x8xf32>, vector<256x8xf32> -> vector<256x8xf32>
    %150 = vector.broadcast %121 : vector<1x8xf32> to vector<256x8xf32>
    %151 = arith.addf %149, %150 : vector<256x8xf32>
    %cst_167 = arith.constant 0.000000e+00 : f32
    %152 = vector.broadcast %cst_167 : f32 to vector<256x8xf32>
    %153 = arith.maximumf %151, %152 : vector<256x8xf32>
    %154 = arith.addf %117, %153 : vector<256x8xf32>
    %cst_168 = arith.constant 3.906250e-03 : f32
    %155 = vector.broadcast %cst_168 : f32 to vector<1x256xf32>
    %cst_169 = arith.constant dense<0.000000e+00> : vector<1x8xf32>
    %156 = tpu.matmul %155, %154, %cst_169 {dimension_numbers = #tpu.dot_dimension_numbers<[1], [0], [0], [1], [0, 0, 1, 1], [], []>} : vector<1x256xf32>, vector<256x8xf32>, vector<1x8xf32> -> vector<1x8xf32>
    %c0_170 = arith.constant 0 : index
    %c0_171 = arith.constant 0 : index
    %157 = vector.load %arg8[%c0_170, %c0_171] : memref<8x10xf32, #tpu.memory_space<vmem>>, vector<8x10xf32>
    %cst_172 = arith.constant dense<0.000000e+00> : vector<1x10xf32>
    %158 = tpu.matmul %156, %157, %cst_172 {dimension_numbers = #tpu.dot_dimension_numbers<[1], [0], [0], [1], [0, 0, 1, 1], [], []>} : vector<1x8xf32>, vector<8x10xf32>, vector<1x10xf32> -> vector<1x10xf32>
    %c0_173 = arith.constant 0 : index
    %c0_174 = arith.constant 0 : index
    %159 = vector.load %arg9[%c0_173, %c0_174] : memref<1x10xf32, #tpu.memory_space<vmem>>, vector<1x10xf32>
    %160 = arith.addf %158, %159 : vector<1x10xf32>
    %c0_175 = arith.constant 0 : index
    %c0_176 = arith.constant 0 : index
    %c0_177 = arith.constant 0 : index
    %161 = vector.load %arg10[%c0_175, %c0_176, %c0_177] : memref<1x1x10xf32, #tpu.memory_space<vmem>>, vector<1x1x10xf32>
    %162 = vector.shape_cast %161 : vector<1x1x10xf32> to vector<1x10xf32>
    %163 = vector.shape_cast %160 : vector<1x10xf32> to vector<1x1x10xf32>
    tpu.vector_store %arg10[%c0_175, %c0_176, %c0_177], %163 {strides = array<i32>} : memref<1x1x10xf32, #tpu.memory_space<vmem>>, vector<1x1x10xf32>,
    return
  }
  func.func @transform_0(%arg0: i32) -> (i32, i32, i32, i32) {
    %c0_i32 = arith.constant 0 : i32
    %c0_i32_0 = arith.constant 0 : i32
    %c0_i32_1 = arith.constant 0 : i32
    %c0_i32_2 = arith.constant 0 : i32
    return %arg0, %c0_i32, %c0_i32_0, %c0_i32_1 : i32, i32, i32, i32
  }
  func.func @transform_1(%arg0: i32) -> (i32, i32) {
    %c0_i32 = arith.constant 0 : i32
    %c0_i32_0 = arith.constant 0 : i32
    %c0_i32_1 = arith.constant 0 : i32
    return %c0_i32, %c0_i32_0 : i32, i32
  }
  func.func @transform_2(%arg0: i32) -> (i32, i32) {
    %c0_i32 = arith.constant 0 : i32
    %c0_i32_0 = arith.constant 0 : i32
    %c0_i32_1 = arith.constant 0 : i32
    return %c0_i32, %c0_i32_0 : i32, i32
  }
  func.func @transform_3(%arg0: i32) -> (i32, i32, i32) {
    %c0_i32 = arith.constant 0 : i32
    %c0_i32_0 = arith.constant 0 : i32
    %c0_i32_1 = arith.constant 0 : i32
    %c0_i32_2 = arith.constant 0 : i32
    return %c0_i32, %c0_i32_0, %c0_i32_1 : i32, i32, i32
  }
  func.func @transform_4(%arg0: i32) -> (i32, i32, i32) {
    %c0_i32 = arith.constant 0 : i32
    %c0_i32_0 = arith.constant 0 : i32
    %c0_i32_1 = arith.constant 0 : i32
    %c0_i32_2 = arith.constant 0 : i32
    return %c0_i32, %c0_i32_0, %c0_i32_1 : i32, i32, i32
  }
  func.func @transform_5(%arg0: i32) -> (i32, i32, i32) {
    %c0_i32 = arith.constant 0 : i32
    %c0_i32_0 = arith.constant 0 : i32
    %c0_i32_1 = arith.constant 0 : i32
    %c0_i32_2 = arith.constant 0 : i32
    return %c0_i32, %c0_i32_0, %c0_i32_1 : i32, i32, i32
  }
  func.func @transform_6(%arg0: i32) -> (i32, i32, i32) {
    %c0_i32 = arith.constant 0 : i32
    %c0_i32_0 = arith.constant 0 : i32
    %c0_i32_1 = arith.constant 0 : i32
    %c0_i32_2 = arith.constant 0 : i32
    return %c0_i32, %c0_i32_0, %c0_i32_1 : i32, i32, i32
  }
  func.func @transform_7(%arg0: i32) -> (i32, i32) {
    %c0_i32 = arith.constant 0 : i32
    %c0_i32_0 = arith.constant 0 : i32
    %c0_i32_1 = arith.constant 0 : i32
    return %c0_i32, %c0_i32_0 : i32, i32
  }
  func.func @transform_8(%arg0: i32) -> (i32, i32) {
    %c0_i32 = arith.constant 0 : i32
    %c0_i32_0 = arith.constant 0 : i32
    %c0_i32_1 = arith.constant 0 : i32
    return %c0_i32, %c0_i32_0 : i32, i32
  }
  func.func @transform_9(%arg0: i32) -> (i32, i32, i32) {
    %c0_i32 = arith.constant 0 : i32
    %c0_i32_0 = arith.constant 0 : i32
    %c0_i32_1 = arith.constant 0 : i32
    return %arg0, %c0_i32, %c0_i32_0 : i32, i32, i32
  }
}

</mosaic_0001>

<llo_original>
// kernel: tpu_custom_call.1
$region0: #{tpu_custom_call.1}
  #allocation0 [shape = 'u32[]', space=smem, size = 0x4, offset = 0x4, fixed_abs, tag = 'smem constant byte address 0x4 - core index']
  #allocation1 [shape = 'u32[144,128]{1,0:T(1,128)}', space=vmem, size = 0x12000, scoped, tag = 'internal scratch']
  #allocation2 [shape = 'f32[18,32,8]{2,1,0:T(8,128)}', space=vmem, size = 0x48000, scoped, tag = 'scratch operand']
  %s0 = inlined_call_operand.vmem [shape: f32[2,16,16,8], index: 0, kind: input, shape index: {}]
  %s1 = inlined_call_operand.vmem [shape: f32[4,8], index: 1, kind: input, shape index: {}]
  %s2 = inlined_call_operand.vmem [shape: f32[4,8], index: 2, kind: input, shape index: {}]
  %s3 = inlined_call_operand.vmem [shape: f32[2,72,16], index: 3, kind: input, shape index: {}]
  %s4 = inlined_call_operand.vmem [shape: f32[2,1,16], index: 4, kind: input, shape index: {}]
  %s5 = inlined_call_operand.vmem [shape: f32[2,72,8], index: 5, kind: input, shape index: {}]
  %s6 = inlined_call_operand.vmem [shape: f32[2,1,8], index: 6, kind: input, shape index: {}]
  %s7 = inlined_call_operand.vmem [shape: f32[8,10], index: 7, kind: input, shape index: {}]
  %s8 = inlined_call_operand.vmem [shape: f32[1,10], index: 8, kind: input, shape index: {}]
  %s9 = inlined_call_operand.hbm [shape: f32[2,1,10], index: 9, kind: output, shape index: {}]
  %s10 = sld [smem:[#allocation0]]
  $region69: #{tpu_custom_call.1} parent=0
    _
  %s12 = ssub.s32 1, %s10
  %s13 = scalar_select 0, %s12, %s10
  $region1: #{tpu_custom_call.1} parent=0
    #allocation3 [shape = 'u8[1024]{0}', space=vmem, size = 0x400, scoped, tag = 'output window, operand 0']
    #allocation4 [shape = 's32[2]{0}', space=sflag, size = 0x8, scoped, tag = 'scoped memory for tpu_custom_call.1']
    %14 = vsyncpa [#allocation4], 0
    %s15 = scalar_lea.sflag [#allocation4], 1
    %16 = vsyncpa %s15, 0
    loop: start=0, step=1, limit=4
    $region2: #{tpu_custom_call.1} parent=1 // loop_pre_header
      _
    $region3: #{tpu_custom_call.1} parent=1 // loop_header
      %s18 = sphi 0, %s22
      %p19 = scmp.ge.s32.totalorder %s18, 4
      %s28 = sphi 0, %s30
      %s31 = sphi 0, %s28
      %s32 = sphi 0, %s31
      %s48 = sphi 0, %s32
      %s52 = sphi 0, %s52
      %s54 = sphi 0, %s52
      %s55 = sphi 0, %s54
      %s69 = sphi 0, %s55
      %s73 = sphi 0, %s73
      %s75 = sphi 0, %s73
      %s76 = sphi 0, %s75
      %s90 = sphi 0, %s76
      %s94 = sphi 0, %s94
      %s96 = sphi 0, %s94
      %s97 = sphi 0, %s96
      %s111 = sphi 0, %s97
      %s115 = sphi 0, %s115
      %s117 = sphi 0, %s115
      %s118 = sphi 0, %s117
      %s132 = sphi 0, %s118
      %s136 = sphi 0, %s136
      %s138 = sphi 0, %s136
      %s139 = sphi 0, %s138
      %s153 = sphi 0, %s139
      %s157 = sphi 0, %s157
      %s159 = sphi 0, %s157
      %s160 = sphi 0, %s159
      %s174 = sphi 0, %s160
      %s178 = sphi 0, %s178
      %s180 = sphi 0, %s178
      %s181 = sphi 0, %s180
      %s195 = sphi 0, %s181
      %s199 = sphi 0, %s199
      %s201 = sphi 0, %s199
      %s202 = sphi 0, %s201
      %s216 = sphi 0, %s202
      %s222 = sphi 0, %s224
      %s225 = sphi 0, %s222
      %s226 = sphi 0, %s225
      %s242 = sphi 0, %s226
    $region4: #{tpu_custom_call.1} parent=1 // loop_header_branch
      %21 = sbr.rel (%p19) target = $region8
    $region5: #{tpu_custom_call.1} parent=1 // loop_body
      %s23 = ssub.s32 %s18, 1
      %s24 = ssub.s32 %s18, 2
      %s25 = sadd.s32 %s18, 1
      %s26 = ssub.s32 %s18, %s25
      %p27 = scmp.eq.s32.totalorder %s26, 0
      %s29 = sadd.s32 %s28, 1
      %s30 = scalar_select %p27, %s28, %s29
      %p33 = pneg %p27
      %p34 = scmp.eq.s32.totalorder %s18, 1
      %p35 = por %p33, %p34
      %p36 = scmp.ne.s32.totalorder %s28, %s31
      %p37 = scmp.eq.s32.totalorder %s18, 0
      %p38 = por %p36, %p37
      %p39 = scmp.ne.s32.totalorder %s28, %s31
      %p40 = scmp.eq.s32.totalorder %s23, 1
      %p41 = por %p39, %p40
      %p42 = scmp.ne.s32.totalorder %s31, %s32
      %p43 = scmp.eq.s32.totalorder %s23, 0
      %p44 = por %p42, %p43
      %p45 = scmp.ne.s32.totalorder %s31, %s32
      %p46 = scmp.eq.s32.totalorder %s24, 1
      %p47 = por %p45, %p46
      %p49 = scmp.ne.s32.totalorder %s32, %s48
      %p50 = scmp.eq.s32.totalorder %s24, 0
      %p51 = por %p49, %p50
      %s53 = sadd.s32 %s52, 1
      %p56 = scmp.eq.s32.totalorder %s18, 1
      %p57 = scmp.ne.s32.totalorder %s52, %s54
      %p58 = scmp.eq.s32.totalorder %s18, 0
      %p59 = por %p57, %p58
      %p60 = scmp.ne.s32.totalorder %s52, %s54
      %p61 = scmp.eq.s32.totalorder %s23, 1
      %p62 = por %p60, %p61
      %p63 = scmp.ne.s32.totalorder %s54, %s55
      %p64 = scmp.eq.s32.totalorder %s23, 0
      %p65 = por %p63, %p64
      %p66 = scmp.ne.s32.totalorder %s54, %s55
      %p67 = scmp.eq.s32.totalorder %s24, 1
      %p68 = por %p66, %p67
      %p70 = scmp.ne.s32.totalorder %s55, %s69
      %p71 = scmp.eq.s32.totalorder %s24, 0
      %p72 = por %p70, %p71
      %s74 = sadd.s32 %s73, 1
      %p77 = scmp.eq.s32.totalorder %s18, 1
      %p78 = scmp.ne.s32.totalorder %s73, %s75
      %p79 = scmp.eq.s32.totalorder %s18, 0
      %p80 = por %p78, %p79
      %p81 = scmp.ne.s32.totalorder %s73, %s75
      %p82 = scmp.eq.s32.totalorder %s23, 1
      %p83 = por %p81, %p82
      %p84 = scmp.ne.s32.totalorder %s75, %s76
      %p85 = scmp.eq.s32.totalorder %s23, 0
      %p86 = por %p84, %p85
      %p87 = scmp.ne.s32.totalorder %s75, %s76
      %p88 = scmp.eq.s32.totalorder %s24, 1
      %p89 = por %p87, %p88
      %p91 = scmp.ne.s32.totalorder %s76, %s90
      %p92 = scmp.eq.s32.totalorder %s24, 0
      %p93 = por %p91, %p92
      %s95 = sadd.s32 %s94, 1
      %p98 = scmp.eq.s32.totalorder %s18, 1
      %p99 = scmp.ne.s32.totalorder %s94, %s96
      %p100 = scmp.eq.s32.totalorder %s18, 0
      %p101 = por %p99, %p100
      %p102 = scmp.ne.s32.totalorder %s94, %s96
      %p103 = scmp.eq.s32.totalorder %s23, 1
      %p104 = por %p102, %p103
      %p105 = scmp.ne.s32.totalorder %s96, %s97
      %p106 = scmp.eq.s32.totalorder %s23, 0
      %p107 = por %p105, %p106
      %p108 = scmp.ne.s32.totalorder %s96, %s97
      %p109 = scmp.eq.s32.totalorder %s24, 1
      %p110 = por %p108, %p109
      %p112 = scmp.ne.s32.totalorder %s97, %s111
      %p113 = scmp.eq.s32.totalorder %s24, 0
      %p114 = por %p112, %p113
      %s116 = sadd.s32 %s115, 1
      %p119 = scmp.eq.s32.totalorder %s18, 1
      %p120 = scmp.ne.s32.totalorder %s115, %s117
      %p121 = scmp.eq.s32.totalorder %s18, 0
      %p122 = por %p120, %p121
      %p123 = scmp.ne.s32.totalorder %s115, %s117
      %p124 = scmp.eq.s32.totalorder %s23, 1
      %p125 = por %p123, %p124
      %p126 = scmp.ne.s32.totalorder %s117, %s118
      %p127 = scmp.eq.s32.totalorder %s23, 0
      %p128 = por %p126, %p127
      %p129 = scmp.ne.s32.totalorder %s117, %s118
      %p130 = scmp.eq.s32.totalorder %s24, 1
      %p131 = por %p129, %p130
      %p133 = scmp.ne.s32.totalorder %s118, %s132
      %p134 = scmp.eq.s32.totalorder %s24, 0
      %p135 = por %p133, %p134
      %s137 = sadd.s32 %s136, 1
      %p140 = scmp.eq.s32.totalorder %s18, 1
      %p141 = scmp.ne.s32.totalorder %s136, %s138
      %p142 = scmp.eq.s32.totalorder %s18, 0
      %p143 = por %p141, %p142
      %p144 = scmp.ne.s32.totalorder %s136, %s138
      %p145 = scmp.eq.s32.totalorder %s23, 1
      %p146 = por %p144, %p145
      %p147 = scmp.ne.s32.totalorder %s138, %s139
      %p148 = scmp.eq.s32.totalorder %s23, 0
      %p149 = por %p147, %p148
      %p150 = scmp.ne.s32.totalorder %s138, %s139
      %p151 = scmp.eq.s32.totalorder %s24, 1
      %p152 = por %p150, %p151
      %p154 = scmp.ne.s32.totalorder %s139, %s153
      %p155 = scmp.eq.s32.totalorder %s24, 0
      %p156 = por %p154, %p155
      %s158 = sadd.s32 %s157, 1
      %p161 = scmp.eq.s32.totalorder %s18, 1
      %p162 = scmp.ne.s32.totalorder %s157, %s159
      %p163 = scmp.eq.s32.totalorder %s18, 0
      %p164 = por %p162, %p163
      %p165 = scmp.ne.s32.totalorder %s157, %s159
      %p166 = scmp.eq.s32.totalorder %s23, 1
      %p167 = por %p165, %p166
      %p168 = scmp.ne.s32.totalorder %s159, %s160
      %p169 = scmp.eq.s32.totalorder %s23, 0
      %p170 = por %p168, %p169
      %p171 = scmp.ne.s32.totalorder %s159, %s160
      %p172 = scmp.eq.s32.totalorder %s24, 1
      %p173 = por %p171, %p172
      %p175 = scmp.ne.s32.totalorder %s160, %s174
      %p176 = scmp.eq.s32.totalorder %s24, 0
      %p177 = por %p175, %p176
      %s179 = sadd.s32 %s178, 1
      %p182 = scmp.eq.s32.totalorder %s18, 1
      %p183 = scmp.ne.s32.totalorder %s178, %s180
      %p184 = scmp.eq.s32.totalorder %s18, 0
      %p185 = por %p183, %p184
      %p186 = scmp.ne.s32.totalorder %s178, %s180
      %p187 = scmp.eq.s32.totalorder %s23, 1
      %p188 = por %p186, %p187
      %p189 = scmp.ne.s32.totalorder %s180, %s181
      %p190 = scmp.eq.s32.totalorder %s23, 0
      %p191 = por %p189, %p190
      %p192 = scmp.ne.s32.totalorder %s180, %s181
      %p193 = scmp.eq.s32.totalorder %s24, 1
      %p194 = por %p192, %p193
      %p196 = scmp.ne.s32.totalorder %s181, %s195
      %p197 = scmp.eq.s32.totalorder %s24, 0
      %p198 = por %p196, %p197
      %s200 = sadd.s32 %s199, 1
      %p203 = scmp.eq.s32.totalorder %s18, 1
      %p204 = scmp.ne.s32.totalorder %s199, %s201
      %p205 = scmp.eq.s32.totalorder %s18, 0
      %p206 = por %p204, %p205
      %p207 = scmp.ne.s32.totalorder %s199, %s201
      %p208 = scmp.eq.s32.totalorder %s23, 1
      %p209 = por %p207, %p208
      %p210 = scmp.ne.s32.totalorder %s201, %s202
      %p211 = scmp.eq.s32.totalorder %s23, 0
      %p212 = por %p210, %p211
      %p213 = scmp.ne.s32.totalorder %s201, %s202
      %p214 = scmp.eq.s32.totalorder %s24, 1
      %p215 = por %p213, %p214
      %p217 = scmp.ne.s32.totalorder %s202, %s216
      %p218 = scmp.eq.s32.totalorder %s24, 0
      %p219 = por %p217, %p218
      %s220 = ssub.s32 %s18, %s25
      %p221 = scmp.eq.s32.totalorder %s220, 0
      %s223 = sadd.s32 %s222, 1
      %s224 = scalar_select %p221, %s222, %s223
      %p227 = pneg %p221
      %p228 = scmp.eq.s32.totalorder %s18, 1
      %p229 = por %p227, %p228
      %p230 = scmp.ne.s32.totalorder %s222, %s225
      %p231 = scmp.eq.s32.totalorder %s18, 0
      %p232 = por %p230, %p231
      %p233 = scmp.ne.s32.totalorder %s222, %s225
      %p234 = scmp.eq.s32.totalorder %s23, 1
      %p235 = por %p233, %p234
      %p236 = scmp.ne.s32.totalorder %s225, %s226
      %p237 = scmp.eq.s32.totalorder %s23, 0
      %p238 = por %p236, %p237
      %p239 = scmp.ne.s32.totalorder %s225, %s226
      %p240 = scmp.eq.s32.totalorder %s24, 1
      %p241 = por %p239, %p240
      %p243 = scmp.ne.s32.totalorder %s226, %s242
      %p244 = scmp.eq.s32.totalorder %s24, 0
      %p245 = por %p243, %p244
      %p246 = scmp.le.s32.totalorder 1, %s18
      %p247 = scmp.lt.s32.totalorder %s18, 3
      %p248 = pnand %p246, %p247
      %p249 = pneg %p248
      // Predicated region
      $region9: #{tpu_custom_call.1} parent=5 // pred_check
        _
      $region10: #{tpu_custom_call.1} parent=5 // pred_check_branch
        %251 = sbr.rel (%p248) target = $region12
      $region11: #{tpu_custom_call.1} parent=5 // pred_region
        %s252 = ssub.s32 %s18, 1
        // Predicated region
        $region13: #{tpu_custom_call.1} parent=11 // pred_check
          %p253 = pneg %p65
        $region14: #{tpu_custom_call.1} parent=11 // pred_check_branch
          %255 = sbr.rel (%p253) target = $region16
        $region15: #{tpu_custom_call.1} parent=11 // pred_region
          _
        $region16: #{tpu_custom_call.1} parent=11 // pred_fallthru
          _
        // Predicated region
        $region17: #{tpu_custom_call.1} parent=11 // pred_check
          %p256 = pneg %p86
        $region18: #{tpu_custom_call.1} parent=11 // pred_check_branch
          %258 = sbr.rel (%p256) target = $region20
        $region19: #{tpu_custom_call.1} parent=11 // pred_region
          _
        $region20: #{tpu_custom_call.1} parent=11 // pred_fallthru
          _
        // Predicated region
        $region21: #{tpu_custom_call.1} parent=11 // pred_check
          %p259 = pneg %p107
        $region22: #{tpu_custom_call.1} parent=11 // pred_check_branch
          %261 = sbr.rel (%p259) target = $region24
        $region23: #{tpu_custom_call.1} parent=11 // pred_region
          _
        $region24: #{tpu_custom_call.1} parent=11 // pred_fallthru
          _
        // Predicated region
        $region25: #{tpu_custom_call.1} parent=11 // pred_check
          %p262 = pneg %p128
        $region26: #{tpu_custom_call.1} parent=11 // pred_check_branch
          %264 = sbr.rel (%p262) target = $region28
        $region27: #{tpu_custom_call.1} parent=11 // pred_region
          _
        $region28: #{tpu_custom_call.1} parent=11 // pred_fallthru
          _
        // Predicated region
        $region29: #{tpu_custom_call.1} parent=11 // pred_check
          %p265 = pneg %p149
        $region30: #{tpu_custom_call.1} parent=11 // pred_check_branch
          %267 = sbr.rel (%p265) target = $region32
        $region31: #{tpu_custom_call.1} parent=11 // pred_region
          _
        $region32: #{tpu_custom_call.1} parent=11 // pred_fallthru
          _
        // Predicated region
        $region33: #{tpu_custom_call.1} parent=11 // pred_check
          %p268 = pneg %p170
        $region34: #{tpu_custom_call.1} parent=11 // pred_check_branch
          %270 = sbr.rel (%p268) target = $region36
        $region35: #{tpu_custom_call.1} parent=11 // pred_region
          _
        $region36: #{tpu_custom_call.1} parent=11 // pred_fallthru
          _
        // Predicated region
        $region37: #{tpu_custom_call.1} parent=11 // pred_check
          %p271 = pneg %p191
        $region38: #{tpu_custom_call.1} parent=11 // pred_check_branch
          %273 = sbr.rel (%p271) target = $region40
        $region39: #{tpu_custom_call.1} parent=11 // pred_region
          _
        $region40: #{tpu_custom_call.1} parent=11 // pred_fallthru
          _
        // Predicated region
        $region41: #{tpu_custom_call.1} parent=11 // pred_check
          %p274 = pneg %p212
        $region42: #{tpu_custom_call.1} parent=11 // pred_check_branch
          %276 = sbr.rel (%p274) target = $region44
        $region43: #{tpu_custom_call.1} parent=11 // pred_region
          _
        $region44: #{tpu_custom_call.1} parent=11 // pred_fallthru
          _
      $region12: #{tpu_custom_call.1} parent=5 // pred_fallthru
        _
      %p277 = scmp.lt.s32.totalorder %s18, 2
      // Predicated region
      $region45: #{tpu_custom_call.1} parent=5 // pred_check
        %p278 = pneg %p277
      $region46: #{tpu_custom_call.1} parent=5 // pred_check_branch
        %280 = sbr.rel (%p278) target = $region48
      $region47: #{tpu_custom_call.1} parent=5 // pred_region
        // Predicated region
        $region49: #{tpu_custom_call.1} parent=47 // pred_check
          %p281 = pneg %p38
        $region50: #{tpu_custom_call.1} parent=47 // pred_check_branch
          %283 = sbr.rel (%p281) target = $region52
        $region51: #{tpu_custom_call.1} parent=47 // pred_region
          %p284 = scmp.lt.s32.totalorder %s18, 1
          %s285 = scalar_select %p284, %s18, 1
          %s286 = smul.addr %s285, 32
          %s287 = smul.addr %s286, 8
          %s288 = scalar_lea.vmem %s0, %s287
        $region52: #{tpu_custom_call.1} parent=47 // pred_fallthru
          _
      $region48: #{tpu_custom_call.1} parent=5 // pred_fallthru
        _
      %p289 = scmp.le.s32.totalorder 1, %s18
      %p290 = scmp.lt.s32.totalorder %s18, 3
      %p291 = pnand %p289, %p290
      %p292 = pneg %p291
      // Predicated region
      $region53: #{tpu_custom_call.1} parent=5 // pred_check
        _
      $region54: #{tpu_custom_call.1} parent=5 // pred_check_branch
        %294 = sbr.rel (%p291) target = $region56
      $region55: #{tpu_custom_call.1} parent=5 // pred_region
        %s295 = ssub.s32 %s18, 1
        %p296 = scmp.lt.s32.totalorder %s23, 1
        %s297 = scalar_select %p296, %s23, 1
        %s298 = smul.addr %s297, 32
        %s299 = smul.addr %s298, 8
        %s300 = scalar_lea.vmem %s0, %s299
        %p301 = pneg %p44
        %p302 = pneg %p41
        %p303 = pneg %p65
        %p304 = pneg %p62
        %p305 = pneg %p86
        %p306 = pneg %p83
        %p307 = pneg %p107
        %p308 = pneg %p104
        %p309 = pneg %p128
        %p310 = pneg %p125
        %p311 = pneg %p149
        %p312 = pneg %p146
        %p313 = pneg %p170
        %p314 = pneg %p167
        %p315 = pneg %p191
        %p316 = pneg %p188
        %p317 = pneg %p212
        %p318 = pneg %p209
        %p319 = pneg %p238
        %p320 = pneg %p235
        %s321 = sand.u32 %s225, 1
        %s322 = scalar_lea.sflag [#allocation4], %s321
        %s323 = sand.u32 %s225, 1
        %s324 = scalar_lea.vmem [#allocation3], %s323
        %p325 = scmp.lt.s32.totalorder %s23, 1
        %s326 = scalar_select %p325, %s23, 1
        %s327 = smul.addr %s326, 32
        %s328 = smul.addr %s327, 8
        %s329 = scalar_lea.vmem %s0, %s328
        %vm330 = vcmask 64512
        %331 = vst.msk [vmem:[#allocation2] sm:$0xff] %vm330, 0.0
        %332 = vst.msk [vmem:[#allocation2 + $0x8] sm:$0xff] %vm330, 0.0
        %333 = vst.msk [vmem:[#allocation2 + $0x10] sm:$0xff] %vm330, 0.0
        %334 = vst.msk [vmem:[#allocation2 + $0x18] sm:$0xff] %vm330, 0.0
        %335 = vst.msk [vmem:[#allocation2 + $0x20] sm:$0xff] %vm330, 0.0
        %336 = vst.msk [vmem:[#allocation2 + $0x28] sm:$0xff] %vm330, 0.0
        %337 = vst.msk [vmem:[#allocation2 + $0x30] sm:$0xff] %vm330, 0.0
        %338 = vst.msk [vmem:[#allocation2 + $0x38] sm:$0xff] %vm330, 0.0
        %339 = vst.msk [vmem:[#allocation2 + $0x40] sm:$0xff] %vm330, 0.0
        %340 = vst.msk [vmem:[#allocation2 + $0x48] sm:$0xff] %vm330, 0.0
        %341 = vst.msk [vmem:[#allocation2 + $0x50] sm:$0xff] %vm330, 0.0
        %342 = vst.msk [vmem:[#allocation2 + $0x58] sm:$0xff] %vm330, 0.0
        %343 = vst.msk [vmem:[#allocation2 + $0x60] sm:$0xff] %vm330, 0.0
        %344 = vst.msk [vmem:[#allocation2 + $0x68] sm:$0xff] %vm330, 0.0
        %345 = vst.msk [vmem:[#allocation2 + $0x70] sm:$0xff] %vm330, 0.0
        %346 = vst.msk [vmem:[#allocation2 + $0x78] sm:$0xff] %vm330, 0.0
        %347 = vst.msk [vmem:[#allocation2 + $0x80] sm:$0xff] %vm330, 0.0
        %348 = vst.msk [vmem:[#allocation2 + $0x88] sm:$0xff] %vm330, 0.0
        %349 = vst.msk [vmem:[#allocation2 + $0x90] sm:$0xff] %vm330, 0.0
        %350 = vst.msk [vmem:[#allocation2 + $0x98] sm:$0xff] %vm330, 0.0
        %351 = vst.msk [vmem:[#allocation2 + $0xa0] sm:$0xff] %vm330, 0.0
        %352 = vst.msk [vmem:[#allocation2 + $0xa8] sm:$0xff] %vm330, 0.0
        %353 = vst.msk [vmem:[#allocation2 + $0xb0] sm:$0xff] %vm330, 0.0
        %354 = vst.msk [vmem:[#allocation2 + $0xb8] sm:$0xff] %vm330, 0.0
        %355 = vst.msk [vmem:[#allocation2 + $0xc0] sm:$0xff] %vm330, 0.0
        %356 = vst.msk [vmem:[#allocation2 + $0xc8] sm:$0xff] %vm330, 0.0
        %357 = vst.msk [vmem:[#allocation2 + $0xd0] sm:$0xff] %vm330, 0.0
        %358 = vst.msk [vmem:[#allocation2 + $0xd8] sm:$0xff] %vm330, 0.0
        %359 = vst.msk [vmem:[#allocation2 + $0xe0] sm:$0xff] %vm330, 0.0
        %360 = vst.msk [vmem:[#allocation2 + $0xe8] sm:$0xff] %vm330, 0.0
        %361 = vst.msk [vmem:[#allocation2 + $0xf0] sm:$0xff] %vm330, 0.0
        %362 = vst.msk [vmem:[#allocation2 + $0xf8] sm:$0xff] %vm330, 0.0
        %363 = vst.msk [vmem:[#allocation2 + $0x100] sm:$0xff] %vm330, 0.0
        %364 = vst.msk [vmem:[#allocation2 + $0x108] sm:$0xff] %vm330, 0.0
        %365 = vst.msk [vmem:[#allocation2 + $0x110] sm:$0xff] %vm330, 0.0
        %366 = vst.msk [vmem:[#allocation2 + $0x118] sm:$0xff] %vm330, 0.0
        %367 = vst.msk [vmem:[#allocation2 + $0x120] sm:$0xff] %vm330, 0.0
        %368 = vst.msk [vmem:[#allocation2 + $0x128] sm:$0xff] %vm330, 0.0
        %369 = vst.msk [vmem:[#allocation2 + $0x130] sm:$0xff] %vm330, 0.0
        %370 = vst.msk [vmem:[#allocation2 + $0x138] sm:$0xff] %vm330, 0.0
        %371 = vst.msk [vmem:[#allocation2 + $0x140] sm:$0xff] %vm330, 0.0
        %372 = vst.msk [vmem:[#allocation2 + $0x148] sm:$0xff] %vm330, 0.0
        %373 = vst.msk [vmem:[#allocation2 + $0x150] sm:$0xff] %vm330, 0.0
        %374 = vst.msk [vmem:[#allocation2 + $0x158] sm:$0xff] %vm330, 0.0
        %375 = vst.msk [vmem:[#allocation2 + $0x160] sm:$0xff] %vm330, 0.0
        %376 = vst.msk [vmem:[#allocation2 + $0x168] sm:$0xff] %vm330, 0.0
        %377 = vst.msk [vmem:[#allocation2 + $0x170] sm:$0xff] %vm330, 0.0
        %378 = vst.msk [vmem:[#allocation2 + $0x178] sm:$0xff] %vm330, 0.0
        %379 = vst.msk [vmem:[#allocation2 + $0x180] sm:$0xff] %vm330, 0.0
        %380 = vst.msk [vmem:[#allocation2 + $0x188] sm:$0xff] %vm330, 0.0
        %381 = vst.msk [vmem:[#allocation2 + $0x190] sm:$0xff] %vm330, 0.0
        %382 = vst.msk [vmem:[#allocation2 + $0x198] sm:$0xff] %vm330, 0.0
        %383 = vst.msk [vmem:[#allocation2 + $0x1a0] sm:$0xff] %vm330, 0.0
        %384 = vst.msk [vmem:[#allocation2 + $0x1a8] sm:$0xff] %vm330, 0.0
        %385 = vst.msk [vmem:[#allocation2 + $0x1b0] sm:$0xff] %vm330, 0.0
        %386 = vst.msk [vmem:[#allocation2 + $0x1b8] sm:$0xff] %vm330, 0.0
        %387 = vst.msk [vmem:[#allocation2 + $0x1c0] sm:$0xff] %vm330, 0.0
        %388 = vst.msk [vmem:[#allocation2 + $0x1c8] sm:$0xff] %vm330, 0.0
        %389 = vst.msk [vmem:[#allocation2 + $0x1d0] sm:$0xff] %vm330, 0.0
        %390 = vst.msk [vmem:[#allocation2 + $0x1d8] sm:$0xff] %vm330, 0.0
        %391 = vst.msk [vmem:[#allocation2 + $0x1e0] sm:$0xff] %vm330, 0.0
        %392 = vst.msk [vmem:[#allocation2 + $0x1e8] sm:$0xff] %vm330, 0.0
        %393 = vst.msk [vmem:[#allocation2 + $0x1f0] sm:$0xff] %vm330, 0.0
        %394 = vst.msk [vmem:[#allocation2 + $0x1f8] sm:$0xff] %vm330, 0.0
        %395 = vst.msk [vmem:[#allocation2 + $0x200] sm:$0xff] %vm330, 0.0
        %396 = vst.msk [vmem:[#allocation2 + $0x208] sm:$0xff] %vm330, 0.0
        %397 = vst.msk [vmem:[#allocation2 + $0x210] sm:$0xff] %vm330, 0.0
        %398 = vst.msk [vmem:[#allocation2 + $0x218] sm:$0xff] %vm330, 0.0
        %399 = vst.msk [vmem:[#allocation2 + $0x220] sm:$0xff] %vm330, 0.0
        %400 = vst.msk [vmem:[#allocation2 + $0x228] sm:$0xff] %vm330, 0.0
        %401 = vst.msk [vmem:[#allocation2 + $0x230] sm:$0xff] %vm330, 0.0
        %402 = vst.msk [vmem:[#allocation2 + $0x238] sm:$0xff] %vm330, 0.0
        %v403 = vld [vmem:[%s329] sm:$0xff]
        %v404 = vld [vmem:[%s329 + $0x8] sm:$0xff]
        %v405 = vld [vmem:[%s329 + $0x10] sm:$0xff]
        %v406 = vld [vmem:[%s329 + $0x18] sm:$0xff]
        %v407 = vld [vmem:[%s329 + $0x20] sm:$0xff]
        %v408 = vld [vmem:[%s329 + $0x28] sm:$0xff]
        %v409 = vld [vmem:[%s329 + $0x30] sm:$0xff]
        %v410 = vld [vmem:[%s329 + $0x38] sm:$0xff]
        %v411 = vld [vmem:[%s329 + $0x40] sm:$0xff]
        %v412 = vld [vmem:[%s329 + $0x48] sm:$0xff]
        %v413 = vld [vmem:[%s329 + $0x50] sm:$0xff]
        %v414 = vld [vmem:[%s329 + $0x58] sm:$0xff]
        %v415 = vld [vmem:[%s329 + $0x60] sm:$0xff]
        %v416 = vld [vmem:[%s329 + $0x68] sm:$0xff]
        %v417 = vld [vmem:[%s329 + $0x70] sm:$0xff]
        %v418 = vld [vmem:[%s329 + $0x78] sm:$0xff]
        %v419 = vld [vmem:[%s329 + $0x80] sm:$0xff]
        %v420 = vld [vmem:[%s329 + $0x88] sm:$0xff]
        %v421 = vld [vmem:[%s329 + $0x90] sm:$0xff]
        %v422 = vld [vmem:[%s329 + $0x98] sm:$0xff]
        %v423 = vld [vmem:[%s329 + $0xa0] sm:$0xff]
        %v424 = vld [vmem:[%s329 + $0xa8] sm:$0xff]
        %v425 = vld [vmem:[%s329 + $0xb0] sm:$0xff]
        %v426 = vld [vmem:[%s329 + $0xb8] sm:$0xff]
        %v427 = vld [vmem:[%s329 + $0xc0] sm:$0xff]
        %v428 = vld [vmem:[%s329 + $0xc8] sm:$0xff]
        %v429 = vld [vmem:[%s329 + $0xd0] sm:$0xff]
        %v430 = vld [vmem:[%s329 + $0xd8] sm:$0xff]
        %v431 = vld [vmem:[%s329 + $0xe0] sm:$0xff]
        %v432 = vld [vmem:[%s329 + $0xe8] sm:$0xff]
        %v433 = vld [vmem:[%s329 + $0xf0] sm:$0xff]
        %v434 = vld [vmem:[%s329 + $0xf8] sm:$0xff]
        %v435 = vld [vmem:[%s3] sm:$0xff]
        %v436 = vld [vmem:[%s3 + $0x8] sm:$0xff]
        %v437 = vld [vmem:[%s3 + $0x10] sm:$0xff]
        %v438 = vld [vmem:[%s3 + $0x18] sm:$0xff]
        %v439 = vld [vmem:[%s3 + $0x20] sm:$0xff]
        %v440 = vld [vmem:[%s3 + $0x28] sm:$0xff]
        %v441 = vld [vmem:[%s3 + $0x30] sm:$0xff]
        %v442 = vld [vmem:[%s3 + $0x38] sm:$0xff]
        %v443 = vld [vmem:[%s3 + $0x40] sm:$0xff]
        %v444 = vld [vmem:[%s4] sm:$0x1]
        %v445 = vld [vmem:[%s1] sm:$0x1]
        %v446 = vld [vmem:[%s2] sm:$0x1]
        %v447 = vlaneseq
        %v448 = vshrl.u32 %v447, 7
        %v449 = vsub.s32 0, %v448
        %v450 = vrot.slane %v445, %v449
        %v451 = vmul.f32 %v403, %v450
        %v452 = vmul.f32 %v404, %v450
        %v453 = vmul.f32 %v405, %v450
        %v454 = vmul.f32 %v406, %v450
        %v455 = vmul.f32 %v407, %v450
        %v456 = vmul.f32 %v408, %v450
        %v457 = vmul.f32 %v409, %v450
        %v458 = vmul.f32 %v410, %v450
        %v459 = vmul.f32 %v411, %v450
        %v460 = vmul.f32 %v412, %v450
        %v461 = vmul.f32 %v413, %v450
        %v462 = vmul.f32 %v414, %v450
        %v463 = vmul.f32 %v415, %v450
        %v464 = vmul.f32 %v416, %v450
        %v465 = vmul.f32 %v417, %v450
        %v466 = vmul.f32 %v418, %v450
        %v467 = vmul.f32 %v419, %v450
        %v468 = vmul.f32 %v420, %v450
        %v469 = vmul.f32 %v421, %v450
        %v470 = vmul.f32 %v422, %v450
        %v471 = vmul.f32 %v423, %v450
        %v472 = vmul.f32 %v424, %v450
        %v473 = vmul.f32 %v425, %v450
        %v474 = vmul.f32 %v426, %v450
        %v475 = vmul.f32 %v427, %v450
        %v476 = vmul.f32 %v428, %v450
        %v477 = vmul.f32 %v429, %v450
        %v478 = vmul.f32 %v430, %v450
        %v479 = vmul.f32 %v431, %v450
        %v480 = vmul.f32 %v432, %v450
        %v481 = vmul.f32 %v433, %v450
        %v482 = vmul.f32 %v434, %v450
        %v483 = vlaneseq
        %v484 = vshrl.u32 %v483, 7
        %v485 = vsub.s32 0, %v484
        %v486 = vrot.slane %v446, %v485
        %v487 = vadd.f32 %v451, %v486
        %v488 = vadd.f32 %v452, %v486
        %v489 = vadd.f32 %v453, %v486
        %v490 = vadd.f32 %v454, %v486
        %v491 = vadd.f32 %v455, %v486
        %v492 = vadd.f32 %v456, %v486
        %v493 = vadd.f32 %v457, %v486
        %v494 = vadd.f32 %v458, %v486
        %v495 = vadd.f32 %v459, %v486
        %v496 = vadd.f32 %v460, %v486
        %v497 = vadd.f32 %v461, %v486
        %v498 = vadd.f32 %v462, %v486
        %v499 = vadd.f32 %v463, %v486
        %v500 = vadd.f32 %v464, %v486
        %v501 = vadd.f32 %v465, %v486
        %v502 = vadd.f32 %v466, %v486
        %v503 = vadd.f32 %v467, %v486
        %v504 = vadd.f32 %v468, %v486
        %v505 = vadd.f32 %v469, %v486
        %v506 = vadd.f32 %v470, %v486
        %v507 = vadd.f32 %v471, %v486
        %v508 = vadd.f32 %v472, %v486
        %v509 = vadd.f32 %v473, %v486
        %v510 = vadd.f32 %v474, %v486
        %v511 = vadd.f32 %v475, %v486
        %v512 = vadd.f32 %v476, %v486
        %v513 = vadd.f32 %v477, %v486
        %v514 = vadd.f32 %v478, %v486
        %v515 = vadd.f32 %v479, %v486
        %v516 = vadd.f32 %v480, %v486
        %v517 = vadd.f32 %v481, %v486
        %v518 = vadd.f32 %v482, %v486
        %s519 = scalar_lea.vmem [#allocation2], 32
        %520 = vst.msk [vmem:[%s519 + $0x8] sm:$0xff] %vm330, %v487
        %521 = vst.msk [vmem:[%s519 + $0x10] sm:$0xff] %vm330, %v488
        %522 = vst.msk [vmem:[%s519 + $0x28] sm:$0xff] %vm330, %v489
        %523 = vst.msk [vmem:[%s519 + $0x30] sm:$0xff] %vm330, %v490
        %524 = vst.msk [vmem:[%s519 + $0x48] sm:$0xff] %vm330, %v491
        %525 = vst.msk [vmem:[%s519 + $0x50] sm:$0xff] %vm330, %v492
        %526 = vst.msk [vmem:[%s519 + $0x68] sm:$0xff] %vm330, %v493
        %527 = vst.msk [vmem:[%s519 + $0x70] sm:$0xff] %vm330, %v494
        %528 = vst.msk [vmem:[%s519 + $0x88] sm:$0xff] %vm330, %v495
        %529 = vst.msk [vmem:[%s519 + $0x90] sm:$0xff] %vm330, %v496
        %530 = vst.msk [vmem:[%s519 + $0xa8] sm:$0xff] %vm330, %v497
        %531 = vst.msk [vmem:[%s519 + $0xb0] sm:$0xff] %vm330, %v498
        %532 = vst.msk [vmem:[%s519 + $0xc8] sm:$0xff] %vm330, %v499
        %533 = vst.msk [vmem:[%s519 + $0xd0] sm:$0xff] %vm330, %v500
        %534 = vst.msk [vmem:[%s519 + $0xe8] sm:$0xff] %vm330, %v501
        %535 = vst.msk [vmem:[%s519 + $0xf0] sm:$0xff] %vm330, %v502
        %536 = vst.msk [vmem:[%s519 + $0x108] sm:$0xff] %vm330, %v503
        %537 = vst.msk [vmem:[%s519 + $0x110] sm:$0xff] %vm330, %v504
        %538 = vst.msk [vmem:[%s519 + $0x128] sm:$0xff] %vm330, %v505
        %539 = vst.msk [vmem:[%s519 + $0x130] sm:$0xff] %vm330, %v506
        %540 = vst.msk [vmem:[%s519 + $0x148] sm:$0xff] %vm330, %v507
        %541 = vst.msk [vmem:[%s519 + $0x150] sm:$0xff] %vm330, %v508
        %542 = vst.msk [vmem:[%s519 + $0x168] sm:$0xff] %vm330, %v509
        %543 = vst.msk [vmem:[%s519 + $0x170] sm:$0xff] %vm330, %v510
        %544 = vst.msk [vmem:[%s519 + $0x188] sm:$0xff] %vm330, %v511
        %545 = vst.msk [vmem:[%s519 + $0x190] sm:$0xff] %vm330, %v512
        %546 = vst.msk [vmem:[%s519 + $0x1a8] sm:$0xff] %vm330, %v513
        %547 = vst.msk [vmem:[%s519 + $0x1b0] sm:$0xff] %vm330, %v514
        %548 = vst.msk [vmem:[%s519 + $0x1c8] sm:$0xff] %vm330, %v515
        %549 = vst.msk [vmem:[%s519 + $0x1d0] sm:$0xff] %vm330, %v516
        %550 = vst.msk [vmem:[%s519 + $0x1e8] sm:$0xff] %vm330, %v517
        %551 = vst.msk [vmem:[%s519 + $0x1f0] sm:$0xff] %vm330, %v518
        %v552 = vld [vmem:[#allocation2 + $0x7] sm:$0xff]
        %v553 = vld [vmem:[#allocation2 + $0xf] sm:$0xff]
        %v554 = vld [vmem:[#allocation2 + $0x27] sm:$0xff]
        %v555 = vld [vmem:[#allocation2 + $0x2f] sm:$0xff]
        %v556 = vld [vmem:[#allocation2 + $0x47] sm:$0xff]
        %v557 = vld [vmem:[#allocation2 + $0x4f] sm:$0xff]
        %v558 = vld [vmem:[#allocation2 + $0x67] sm:$0xff]
        %v559 = vld [vmem:[#allocation2 + $0x6f] sm:$0xff]
        %v560 = vld [vmem:[#allocation2 + $0x87] sm:$0xff]
        %v561 = vld [vmem:[#allocation2 + $0x8f] sm:$0xff]
        %v562 = vld [vmem:[#allocation2 + $0xa7] sm:$0xff]
        %v563 = vld [vmem:[#allocation2 + $0xaf] sm:$0xff]
        %v564 = vld [vmem:[#allocation2 + $0xc7] sm:$0xff]
        %v565 = vld [vmem:[#allocation2 + $0xcf] sm:$0xff]
        %v566 = vld [vmem:[#allocation2 + $0xe7] sm:$0xff]
        %v567 = vld [vmem:[#allocation2 + $0xef] sm:$0xff]
        %v568 = vld [vmem:[#allocation2 + $0x107] sm:$0xff]
        %v569 = vld [vmem:[#allocation2 + $0x10f] sm:$0xff]
        %v570 = vld [vmem:[#allocation2 + $0x127] sm:$0xff]
        %v571 = vld [vmem:[#allocation2 + $0x12f] sm:$0xff]
        %v572 = vld [vmem:[#allocation2 + $0x147] sm:$0xff]
        %v573 = vld [vmem:[#allocation2 + $0x14f] sm:$0xff]
        %v574 = vld [vmem:[#allocation2 + $0x167] sm:$0xff]
        %v575 = vld [vmem:[#allocation2 + $0x16f] sm:$0xff]
        %v576 = vld [vmem:[#allocation2 + $0x187] sm:$0xff]
        %v577 = vld [vmem:[#allocation2 + $0x18f] sm:$0xff]
        %v578 = vld [vmem:[#allocation2 + $0x1a7] sm:$0xff]
        %v579 = vld [vmem:[#allocation2 + $0x1af] sm:$0xff]
        %v580 = vld [vmem:[#allocation2 + $0x1c7] sm:$0xff]
        %v581 = vld [vmem:[#allocation2 + $0x1cf] sm:$0xff]
        %v582 = vld [vmem:[#allocation2 + $0x1e7] sm:$0xff]
        %v583 = vld [vmem:[#allocation2 + $0x1ef] sm:$0xff]
        %v584 = vld [vmem:[#allocation2 + $0x8] sm:$0xff]
        %v585 = vld [vmem:[#allocation2 + $0x10] sm:$0xff]
        %v586 = vld [vmem:[#allocation2 + $0x28] sm:$0xff]
        %v587 = vld [vmem:[#allocation2 + $0x30] sm:$0xff]
        %v588 = vld [vmem:[#allocation2 + $0x48] sm:$0xff]
        %v589 = vld [vmem:[#allocation2 + $0x50] sm:$0xff]
        %v590 = vld [vmem:[#allocation2 + $0x68] sm:$0xff]
        %v591 = vld [vmem:[#allocation2 + $0x70] sm:$0xff]
        %v592 = vld [vmem:[#allocation2 + $0x88] sm:$0xff]
        %v593 = vld [vmem:[#allocation2 + $0x90] sm:$0xff]
        %v594 = vld [vmem:[#allocation2 + $0xa8] sm:$0xff]
        %v595 = vld [vmem:[#allocation2 + $0xb0] sm:$0xff]
        %v596 = vld [vmem:[#allocation2 + $0xc8] sm:$0xff]
        %v597 = vld [vmem:[#allocation2 + $0xd0] sm:$0xff]
        %v598 = vld [vmem:[#allocation2 + $0xe8] sm:$0xff]
        %v599 = vld [vmem:[#allocation2 + $0xf0] sm:$0xff]
        %v600 = vld [vmem:[#allocation2 + $0x108] sm:$0xff]
        %v601 = vld [vmem:[#allocation2 + $0x110] sm:$0xff]
        %v602 = vld [vmem:[#allocation2 + $0x128] sm:$0xff]
        %v603 = vld [vmem:[#allocation2 + $0x130] sm:$0xff]
        %v604 = vld [vmem:[#allocation2 + $0x148] sm:$0xff]
        %v605 = vld [vmem:[#allocation2 + $0x150] sm:$0xff]
        %v606 = vld [vmem:[#allocation2 + $0x168] sm:$0xff]
        %v607 = vld [vmem:[#allocation2 + $0x170] sm:$0xff]
        %v608 = vld [vmem:[#allocation2 + $0x188] sm:$0xff]
        %v609 = vld [vmem:[#allocation2 + $0x190] sm:$0xff]
        %v610 = vld [vmem:[#allocation2 + $0x1a8] sm:$0xff]
        %v611 = vld [vmem:[#allocation2 + $0x1b0] sm:$0xff]
        %v612 = vld [vmem:[#allocation2 + $0x1c8] sm:$0xff]
        %v613 = vld [vmem:[#allocation2 + $0x1d0] sm:$0xff]
        %v614 = vld [vmem:[#allocation2 + $0x1e8] sm:$0xff]
        %v615 = vld [vmem:[#allocation2 + $0x1f0] sm:$0xff]
        %v616 = vld [vmem:[#allocation2 + $0x9] sm:$0xff]
        %v617 = vld [vmem:[#allocation2 + $0x11] sm:$0xff]
        %v618 = vld [vmem:[#allocation2 + $0x29] sm:$0xff]
        %v619 = vld [vmem:[#allocation2 + $0x31] sm:$0xff]
        %v620 = vld [vmem:[#allocation2 + $0x49] sm:$0xff]
        %v621 = vld [vmem:[#allocation2 + $0x51] sm:$0xff]
        %v622 = vld [vmem:[#allocation2 + $0x69] sm:$0xff]
        %v623 = vld [vmem:[#allocation2 + $0x71] sm:$0xff]
        %v624 = vld [vmem:[#allocation2 + $0x89] sm:$0xff]
        %v625 = vld [vmem:[#allocation2 + $0x91] sm:$0xff]
        %v626 = vld [vmem:[#allocation2 + $0xa9] sm:$0xff]
        %v627 = vld [vmem:[#allocation2 + $0xb1] sm:$0xff]
        %v628 = vld [vmem:[#allocation2 + $0xc9] sm:$0xff]
        %v629 = vld [vmem:[#allocation2 + $0xd1] sm:$0xff]
        %v630 = vld [vmem:[#allocation2 + $0xe9] sm:$0xff]
        %v631 = vld [vmem:[#allocation2 + $0xf1] sm:$0xff]
        %v632 = vld [vmem:[#allocation2 + $0x109] sm:$0xff]
        %v633 = vld [vmem:[#allocation2 + $0x111] sm:$0xff]
        %v634 = vld [vmem:[#allocation2 + $0x129] sm:$0xff]
        %v635 = vld [vmem:[#allocation2 + $0x131] sm:$0xff]
        %v636 = vld [vmem:[#allocation2 + $0x149] sm:$0xff]
        %v637 = vld [vmem:[#allocation2 + $0x151] sm:$0xff]
        %v638 = vld [vmem:[#allocation2 + $0x169] sm:$0xff]
        %v639 = vld [vmem:[#allocation2 + $0x171] sm:$0xff]
        %v640 = vld [vmem:[#allocation2 + $0x189] sm:$0xff]
        %v641 = vld [vmem:[#allocation2 + $0x191] sm:$0xff]
        %v642 = vld [vmem:[#allocation2 + $0x1a9] sm:$0xff]
        %v643 = vld [vmem:[#allocation2 + $0x1b1] sm:$0xff]
        %v644 = vld [vmem:[#allocation2 + $0x1c9] sm:$0xff]
        %v645 = vld [vmem:[#allocation2 + $0x1d1] sm:$0xff]
        %v646 = vld [vmem:[#allocation2 + $0x1e9] sm:$0xff]
        %v647 = vld [vmem:[#allocation2 + $0x1f1] sm:$0xff]
        %v648 = vld [vmem:[%s519 + $0x7] sm:$0xff]
        %v649 = vld [vmem:[%s519 + $0xf] sm:$0xff]
        %v650 = vld [vmem:[%s519 + $0x27] sm:$0xff]
        %v651 = vld [vmem:[%s519 + $0x2f] sm:$0xff]
        %v652 = vld [vmem:[%s519 + $0x47] sm:$0xff]
        %v653 = vld [vmem:[%s519 + $0x4f] sm:$0xff]
        %v654 = vld [vmem:[%s519 + $0x67] sm:$0xff]
        %v655 = vld [vmem:[%s519 + $0x6f] sm:$0xff]
        %v656 = vld [vmem:[%s519 + $0x87] sm:$0xff]
        %v657 = vld [vmem:[%s519 + $0x8f] sm:$0xff]
        %v658 = vld [vmem:[%s519 + $0xa7] sm:$0xff]
        %v659 = vld [vmem:[%s519 + $0xaf] sm:$0xff]
        %v660 = vld [vmem:[%s519 + $0xc7] sm:$0xff]
        %v661 = vld [vmem:[%s519 + $0xcf] sm:$0xff]
        %v662 = vld [vmem:[%s519 + $0xe7] sm:$0xff]
        %v663 = vld [vmem:[%s519 + $0xef] sm:$0xff]
        %v664 = vld [vmem:[%s519 + $0x107] sm:$0xff]
        %v665 = vld [vmem:[%s519 + $0x10f] sm:$0xff]
        %v666 = vld [vmem:[%s519 + $0x127] sm:$0xff]
        %v667 = vld [vmem:[%s519 + $0x12f] sm:$0xff]
        %v668 = vld [vmem:[%s519 + $0x147] sm:$0xff]
        %v669 = vld [vmem:[%s519 + $0x14f] sm:$0xff]
        %v670 = vld [vmem:[%s519 + $0x167] sm:$0xff]
        %v671 = vld [vmem:[%s519 + $0x16f] sm:$0xff]
        %v672 = vld [vmem:[%s519 + $0x187] sm:$0xff]
        %v673 = vld [vmem:[%s519 + $0x18f] sm:$0xff]
        %v674 = vld [vmem:[%s519 + $0x1a7] sm:$0xff]
        %v675 = vld [vmem:[%s519 + $0x1af] sm:$0xff]
        %v676 = vld [vmem:[%s519 + $0x1c7] sm:$0xff]
        %v677 = vld [vmem:[%s519 + $0x1cf] sm:$0xff]
        %v678 = vld [vmem:[%s519 + $0x1e7] sm:$0xff]
        %v679 = vld [vmem:[%s519 + $0x1ef] sm:$0xff]
        %v680 = vld [vmem:[%s519 + $0x8] sm:$0xff]
        %v681 = vld [vmem:[%s519 + $0x10] sm:$0xff]
        %v682 = vld [vmem:[%s519 + $0x28] sm:$0xff]
        %v683 = vld [vmem:[%s519 + $0x30] sm:$0xff]
        %v684 = vld [vmem:[%s519 + $0x48] sm:$0xff]
        %v685 = vld [vmem:[%s519 + $0x50] sm:$0xff]
        %v686 = vld [vmem:[%s519 + $0x68] sm:$0xff]
        %v687 = vld [vmem:[%s519 + $0x70] sm:$0xff]
        %v688 = vld [vmem:[%s519 + $0x88] sm:$0xff]
        %v689 = vld [vmem:[%s519 + $0x90] sm:$0xff]
        %v690 = vld [vmem:[%s519 + $0xa8] sm:$0xff]
        %v691 = vld [vmem:[%s519 + $0xb0] sm:$0xff]
        %v692 = vld [vmem:[%s519 + $0xc8] sm:$0xff]
        %v693 = vld [vmem:[%s519 + $0xd0] sm:$0xff]
        %v694 = vld [vmem:[%s519 + $0xe8] sm:$0xff]
        %v695 = vld [vmem:[%s519 + $0xf0] sm:$0xff]
        %v696 = vld [vmem:[%s519 + $0x108] sm:$0xff]
        %v697 = vld [vmem:[%s519 + $0x110] sm:$0xff]
        %v698 = vld [vmem:[%s519 + $0x128] sm:$0xff]
        %v699 = vld [vmem:[%s519 + $0x130] sm:$0xff]
        %v700 = vld [vmem:[%s519 + $0x148] sm:$0xff]
        %v701 = vld [vmem:[%s519 + $0x150] sm:$0xff]
        %v702 = vld [vmem:[%s519 + $0x168] sm:$0xff]
        %v703 = vld [vmem:[%s519 + $0x170] sm:$0xff]
        %v704 = vld [vmem:[%s519 + $0x188] sm:$0xff]
        %v705 = vld [vmem:[%s519 + $0x190] sm:$0xff]
        %v706 = vld [vmem:[%s519 + $0x1a8] sm:$0xff]
        %v707 = vld [vmem:[%s519 + $0x1b0] sm:$0xff]
        %v708 = vld [vmem:[%s519 + $0x1c8] sm:$0xff]
        %v709 = vld [vmem:[%s519 + $0x1d0] sm:$0xff]
        %v710 = vld [vmem:[%s519 + $0x1e8] sm:$0xff]
        %v711 = vld [vmem:[%s519 + $0x1f0] sm:$0xff]
        %v712 = vld [vmem:[%s519 + $0x9] sm:$0xff]
        %v713 = vld [vmem:[%s519 + $0x11] sm:$0xff]
        %v714 = vld [vmem:[%s519 + $0x29] sm:$0xff]
        %v715 = vld [vmem:[%s519 + $0x31] sm:$0xff]
        %v716 = vld [vmem:[%s519 + $0x49] sm:$0xff]
        %v717 = vld [vmem:[%s519 + $0x51] sm:$0xff]
        %v718 = vld [vmem:[%s519 + $0x69] sm:$0xff]
        %v719 = vld [vmem:[%s519 + $0x71] sm:$0xff]
        %v720 = vld [vmem:[%s519 + $0x89] sm:$0xff]
        %v721 = vld [vmem:[%s519 + $0x91] sm:$0xff]
        %v722 = vld [vmem:[%s519 + $0xa9] sm:$0xff]
        %v723 = vld [vmem:[%s519 + $0xb1] sm:$0xff]
        %v724 = vld [vmem:[%s519 + $0xc9] sm:$0xff]
        %v725 = vld [vmem:[%s519 + $0xd1] sm:$0xff]
        %v726 = vld [vmem:[%s519 + $0xe9] sm:$0xff]
        %v727 = vld [vmem:[%s519 + $0xf1] sm:$0xff]
        %v728 = vld [vmem:[%s519 + $0x109] sm:$0xff]
        %v729 = vld [vmem:[%s519 + $0x111] sm:$0xff]
        %v730 = vld [vmem:[%s519 + $0x129] sm:$0xff]
        %v731 = vld [vmem:[%s519 + $0x131] sm:$0xff]
        %v732 = vld [vmem:[%s519 + $0x149] sm:$0xff]
        %v733 = vld [vmem:[%s519 + $0x151] sm:$0xff]
        %v734 = vld [vmem:[%s519 + $0x169] sm:$0xff]
        %v735 = vld [vmem:[%s519 + $0x171] sm:$0xff]
        %v736 = vld [vmem:[%s519 + $0x189] sm:$0xff]
        %v737 = vld [vmem:[%s519 + $0x191] sm:$0xff]
        %v738 = vld [vmem:[%s519 + $0x1a9] sm:$0xff]
        %v739 = vld [vmem:[%s519 + $0x1b1] sm:$0xff]
        %v740 = vld [vmem:[%s519 + $0x1c9] sm:$0xff]
        %v741 = vld [vmem:[%s519 + $0x1d1] sm:$0xff]
        %v742 = vld [vmem:[%s519 + $0x1e9] sm:$0xff]
        %v743 = vld [vmem:[%s519 + $0x1f1] sm:$0xff]
        %s744 = scalar_lea.vmem [#allocation2], 64
        %v745 = vld [vmem:[%s744 + $0x7] sm:$0xff]
        %v746 = vld [vmem:[%s744 + $0xf] sm:$0xff]
        %v747 = vld [vmem:[%s744 + $0x27] sm:$0xff]
        %v748 = vld [vmem:[%s744 + $0x2f] sm:$0xff]
        %v749 = vld [vmem:[%s744 + $0x47] sm:$0xff]
        %v750 = vld [vmem:[%s744 + $0x4f] sm:$0xff]
        %v751 = vld [vmem:[%s744 + $0x67] sm:$0xff]
        %v752 = vld [vmem:[%s744 + $0x6f] sm:$0xff]
        %v753 = vld [vmem:[%s744 + $0x87] sm:$0xff]
        %v754 = vld [vmem:[%s744 + $0x8f] sm:$0xff]
        %v755 = vld [vmem:[%s744 + $0xa7] sm:$0xff]
        %v756 = vld [vmem:[%s744 + $0xaf] sm:$0xff]
        %v757 = vld [vmem:[%s744 + $0xc7] sm:$0xff]
        %v758 = vld [vmem:[%s744 + $0xcf] sm:$0xff]
        %v759 = vld [vmem:[%s744 + $0xe7] sm:$0xff]
        %v760 = vld [vmem:[%s744 + $0xef] sm:$0xff]
        %v761 = vld [vmem:[%s744 + $0x107] sm:$0xff]
        %v762 = vld [vmem:[%s744 + $0x10f] sm:$0xff]
        %v763 = vld [vmem:[%s744 + $0x127] sm:$0xff]
        %v764 = vld [vmem:[%s744 + $0x12f] sm:$0xff]
        %v765 = vld [vmem:[%s744 + $0x147] sm:$0xff]
        %v766 = vld [vmem:[%s744 + $0x14f] sm:$0xff]
        %v767 = vld [vmem:[%s744 + $0x167] sm:$0xff]
        %v768 = vld [vmem:[%s744 + $0x16f] sm:$0xff]
        %v769 = vld [vmem:[%s744 + $0x187] sm:$0xff]
        %v770 = vld [vmem:[%s744 + $0x18f] sm:$0xff]
        %v771 = vld [vmem:[%s744 + $0x1a7] sm:$0xff]
        %v772 = vld [vmem:[%s744 + $0x1af] sm:$0xff]
        %v773 = vld [vmem:[%s744 + $0x1c7] sm:$0xff]
        %v774 = vld [vmem:[%s744 + $0x1cf] sm:$0xff]
        %v775 = vld [vmem:[%s744 + $0x1e7] sm:$0xff]
        %v776 = vld [vmem:[%s744 + $0x1ef] sm:$0xff]
        %v777 = vld [vmem:[%s744 + $0x8] sm:$0xff]
        %v778 = vld [vmem:[%s744 + $0x10] sm:$0xff]
        %v779 = vld [vmem:[%s744 + $0x28] sm:$0xff]
        %v780 = vld [vmem:[%s744 + $0x30] sm:$0xff]
        %v781 = vld [vmem:[%s744 + $0x48] sm:$0xff]
        %v782 = vld [vmem:[%s744 + $0x50] sm:$0xff]
        %v783 = vld [vmem:[%s744 + $0x68] sm:$0xff]
        %v784 = vld [vmem:[%s744 + $0x70] sm:$0xff]
        %v785 = vld [vmem:[%s744 + $0x88] sm:$0xff]
        %v786 = vld [vmem:[%s744 + $0x90] sm:$0xff]
        %v787 = vld [vmem:[%s744 + $0xa8] sm:$0xff]
        %v788 = vld [vmem:[%s744 + $0xb0] sm:$0xff]
        %v789 = vld [vmem:[%s744 + $0xc8] sm:$0xff]
        %v790 = vld [vmem:[%s744 + $0xd0] sm:$0xff]
        %v791 = vld [vmem:[%s744 + $0xe8] sm:$0xff]
        %v792 = vld [vmem:[%s744 + $0xf0] sm:$0xff]
        %v793 = vld [vmem:[%s744 + $0x108] sm:$0xff]
        %v794 = vld [vmem:[%s744 + $0x110] sm:$0xff]
        %v795 = vld [vmem:[%s744 + $0x128] sm:$0xff]
        %v796 = vld [vmem:[%s744 + $0x130] sm:$0xff]
        %v797 = vld [vmem:[%s744 + $0x148] sm:$0xff]
        %v798 = vld [vmem:[%s744 + $0x150] sm:$0xff]
        %v799 = vld [vmem:[%s744 + $0x168] sm:$0xff]
        %v800 = vld [vmem:[%s744 + $0x170] sm:$0xff]
        %v801 = vld [vmem:[%s744 + $0x188] sm:$0xff]
        %v802 = vld [vmem:[%s744 + $0x190] sm:$0xff]
        %v803 = vld [vmem:[%s744 + $0x1a8] sm:$0xff]
        %v804 = vld [vmem:[%s744 + $0x1b0] sm:$0xff]
        %v805 = vld [vmem:[%s744 + $0x1c8] sm:$0xff]
        %v806 = vld [vmem:[%s744 + $0x1d0] sm:$0xff]
        %v807 = vld [vmem:[%s744 + $0x1e8] sm:$0xff]
        %v808 = vld [vmem:[%s744 + $0x1f0] sm:$0xff]
        %v809 = vld [vmem:[%s744 + $0x9] sm:$0xff]
        %v810 = vld [vmem:[%s744 + $0x11] sm:$0xff]
        %v811 = vld [vmem:[%s744 + $0x29] sm:$0xff]
        %v812 = vld [vmem:[%s744 + $0x31] sm:$0xff]
        %v813 = vld [vmem:[%s744 + $0x49] sm:$0xff]
        %v814 = vld [vmem:[%s744 + $0x51] sm:$0xff]
        %v815 = vld [vmem:[%s744 + $0x69] sm:$0xff]
        %v816 = vld [vmem:[%s744 + $0x71] sm:$0xff]
        %v817 = vld [vmem:[%s744 + $0x89] sm:$0xff]
        %v818 = vld [vmem:[%s744 + $0x91] sm:$0xff]
        %v819 = vld [vmem:[%s744 + $0xa9] sm:$0xff]
        %v820 = vld [vmem:[%s744 + $0xb1] sm:$0xff]
        %v821 = vld [vmem:[%s744 + $0xc9] sm:$0xff]
        %v822 = vld [vmem:[%s744 + $0xd1] sm:$0xff]
        %v823 = vld [vmem:[%s744 + $0xe9] sm:$0xff]
        %v824 = vld [vmem:[%s744 + $0xf1] sm:$0xff]
        %v825 = vld [vmem:[%s744 + $0x109] sm:$0xff]
        %v826 = vld [vmem:[%s744 + $0x111] sm:$0xff]
        %v827 = vld [vmem:[%s744 + $0x129] sm:$0xff]
        %v828 = vld [vmem:[%s744 + $0x131] sm:$0xff]
        %v829 = vld [vmem:[%s744 + $0x149] sm:$0xff]
        %v830 = vld [vmem:[%s744 + $0x151] sm:$0xff]
        %v831 = vld [vmem:[%s744 + $0x169] sm:$0xff]
        %v832 = vld [vmem:[%s744 + $0x171] sm:$0xff]
        %v833 = vld [vmem:[%s744 + $0x189] sm:$0xff]
        %v834 = vld [vmem:[%s744 + $0x191] sm:$0xff]
        %v835 = vld [vmem:[%s744 + $0x1a9] sm:$0xff]
        %v836 = vld [vmem:[%s744 + $0x1b1] sm:$0xff]
        %v837 = vld [vmem:[%s744 + $0x1c9] sm:$0xff]
        %v838 = vld [vmem:[%s744 + $0x1d1] sm:$0xff]
        %v839 = vld [vmem:[%s744 + $0x1e9] sm:$0xff]
        %v840 = vld [vmem:[%s744 + $0x1f1] sm:$0xff]
        %873 = vrot.lane.b32.xlu0 %v584, 8
        %v874 = vpop.permute.xlu0 %873
        %875 = vrot.lane.b32.xlu0 %v585, 8
        %v876 = vpop.permute.xlu0 %875
        %877 = vrot.lane.b32.xlu0 %v586, 8
        %v878 = vpop.permute.xlu0 %877
        %879 = vrot.lane.b32.xlu0 %v587, 8
        %v880 = vpop.permute.xlu0 %879
        %881 = vrot.lane.b32.xlu0 %v588, 8
        %v882 = vpop.permute.xlu0 %881
        %883 = vrot.lane.b32.xlu0 %v589, 8
        %v884 = vpop.permute.xlu0 %883
        %885 = vrot.lane.b32.xlu0 %v590, 8
        %v886 = vpop.permute.xlu0 %885
        %887 = vrot.lane.b32.xlu0 %v591, 8
        %v888 = vpop.permute.xlu0 %887
        %889 = vrot.lane.b32.xlu0 %v592, 8
        %v890 = vpop.permute.xlu0 %889
        %891 = vrot.lane.b32.xlu0 %v593, 8
        %v892 = vpop.permute.xlu0 %891
        %893 = vrot.lane.b32.xlu0 %v594, 8
        %v894 = vpop.permute.xlu0 %893
        %895 = vrot.lane.b32.xlu0 %v595, 8
        %v896 = vpop.permute.xlu0 %895
        %897 = vrot.lane.b32.xlu0 %v596, 8
        %v898 = vpop.permute.xlu0 %897
        %899 = vrot.lane.b32.xlu0 %v597, 8
        %v900 = vpop.permute.xlu0 %899
        %901 = vrot.lane.b32.xlu0 %v598, 8
        %v902 = vpop.permute.xlu0 %901
        %903 = vrot.lane.b32.xlu0 %v599, 8
        %v904 = vpop.permute.xlu0 %903
        %905 = vrot.lane.b32.xlu0 %v600, 8
        %v906 = vpop.permute.xlu0 %905
        %907 = vrot.lane.b32.xlu0 %v601, 8
        %v908 = vpop.permute.xlu0 %907
        %909 = vrot.lane.b32.xlu0 %v602, 8
        %v910 = vpop.permute.xlu0 %909
        %911 = vrot.lane.b32.xlu0 %v603, 8
        %v912 = vpop.permute.xlu0 %911
        %913 = vrot.lane.b32.xlu0 %v604, 8
        %v914 = vpop.permute.xlu0 %913
        %915 = vrot.lane.b32.xlu0 %v605, 8
        %v916 = vpop.permute.xlu0 %915
        %917 = vrot.lane.b32.xlu0 %v606, 8
        %v918 = vpop.permute.xlu0 %917
        %919 = vrot.lane.b32.xlu0 %v607, 8
        %v920 = vpop.permute.xlu0 %919
        %921 = vrot.lane.b32.xlu0 %v608, 8
        %v922 = vpop.permute.xlu0 %921
        %923 = vrot.lane.b32.xlu0 %v609, 8
        %v924 = vpop.permute.xlu0 %923
        %925 = vrot.lane.b32.xlu0 %v610, 8
        %v926 = vpop.permute.xlu0 %925
        %927 = vrot.lane.b32.xlu0 %v611, 8
        %v928 = vpop.permute.xlu0 %927
        %929 = vrot.lane.b32.xlu0 %v612, 8
        %v930 = vpop.permute.xlu0 %929
        %931 = vrot.lane.b32.xlu0 %v613, 8
        %v932 = vpop.permute.xlu0 %931
        %933 = vrot.lane.b32.xlu0 %v614, 8
        %v934 = vpop.permute.xlu0 %933
        %935 = vrot.lane.b32.xlu0 %v615, 8
        %v936 = vpop.permute.xlu0 %935
        %1001 = vrot.lane.b32.xlu0 %v616, 16
        %v1002 = vpop.permute.xlu0 %1001
        %1003 = vrot.lane.b32.xlu0 %v617, 16
        %v1004 = vpop.permute.xlu0 %1003
        %1005 = vrot.lane.b32.xlu0 %v618, 16
        %v1006 = vpop.permute.xlu0 %1005
        %1007 = vrot.lane.b32.xlu0 %v619, 16
        %v1008 = vpop.permute.xlu0 %1007
        %1009 = vrot.lane.b32.xlu0 %v620, 16
        %v1010 = vpop.permute.xlu0 %1009
        %1011 = vrot.lane.b32.xlu0 %v621, 16
        %v1012 = vpop.permute.xlu0 %1011
        %1013 = vrot.lane.b32.xlu0 %v622, 16
        %v1014 = vpop.permute.xlu0 %1013
        %1015 = vrot.lane.b32.xlu0 %v623, 16
        %v1016 = vpop.permute.xlu0 %1015
        %1017 = vrot.lane.b32.xlu0 %v624, 16
        %v1018 = vpop.permute.xlu0 %1017
        %1019 = vrot.lane.b32.xlu0 %v625, 16
        %v1020 = vpop.permute.xlu0 %1019
        %1021 = vrot.lane.b32.xlu0 %v626, 16
        %v1022 = vpop.permute.xlu0 %1021
        %1023 = vrot.lane.b32.xlu0 %v627, 16
        %v1024 = vpop.permute.xlu0 %1023
        %1025 = vrot.lane.b32.xlu0 %v628, 16
        %v1026 = vpop.permute.xlu0 %1025
        %1027 = vrot.lane.b32.xlu0 %v629, 16
        %v1028 = vpop.permute.xlu0 %1027
        %1029 = vrot.lane.b32.xlu0 %v630, 16
        %v1030 = vpop.permute.xlu0 %1029
        %1031 = vrot.lane.b32.xlu0 %v631, 16
        %v1032 = vpop.permute.xlu0 %1031
        %1033 = vrot.lane.b32.xlu0 %v632, 16
        %v1034 = vpop.permute.xlu0 %1033
        %1035 = vrot.lane.b32.xlu0 %v633, 16
        %v1036 = vpop.permute.xlu0 %1035
        %1037 = vrot.lane.b32.xlu0 %v634, 16
        %v1038 = vpop.permute.xlu0 %1037
        %1039 = vrot.lane.b32.xlu0 %v635, 16
        %v1040 = vpop.permute.xlu0 %1039
        %1041 = vrot.lane.b32.xlu0 %v636, 16
        %v1042 = vpop.permute.xlu0 %1041
        %1043 = vrot.lane.b32.xlu0 %v637, 16
        %v1044 = vpop.permute.xlu0 %1043
        %1045 = vrot.lane.b32.xlu0 %v638, 16
        %v1046 = vpop.permute.xlu0 %1045
        %1047 = vrot.lane.b32.xlu0 %v639, 16
        %v1048 = vpop.permute.xlu0 %1047
        %1049 = vrot.lane.b32.xlu0 %v640, 16
        %v1050 = vpop.permute.xlu0 %1049
        %1051 = vrot.lane.b32.xlu0 %v641, 16
        %v1052 = vpop.permute.xlu0 %1051
        %1053 = vrot.lane.b32.xlu0 %v642, 16
        %v1054 = vpop.permute.xlu0 %1053
        %1055 = vrot.lane.b32.xlu0 %v643, 16
        %v1056 = vpop.permute.xlu0 %1055
        %1057 = vrot.lane.b32.xlu0 %v644, 16
        %v1058 = vpop.permute.xlu0 %1057
        %1059 = vrot.lane.b32.xlu0 %v645, 16
        %v1060 = vpop.permute.xlu0 %1059
        %1061 = vrot.lane.b32.xlu0 %v646, 16
        %v1062 = vpop.permute.xlu0 %1061
        %1063 = vrot.lane.b32.xlu0 %v647, 16
        %v1064 = vpop.permute.xlu0 %1063
        %1129 = vrot.lane.b32.xlu0 %v648, 24
        %v1130 = vpop.permute.xlu0 %1129
        %1131 = vrot.lane.b32.xlu0 %v649, 24
        %v1132 = vpop.permute.xlu0 %1131
        %1133 = vrot.lane.b32.xlu0 %v650, 24
        %v1134 = vpop.permute.xlu0 %1133
        %1135 = vrot.lane.b32.xlu0 %v651, 24
        %v1136 = vpop.permute.xlu0 %1135
        %1137 = vrot.lane.b32.xlu0 %v652, 24
        %v1138 = vpop.permute.xlu0 %1137
        %1139 = vrot.lane.b32.xlu0 %v653, 24
        %v1140 = vpop.permute.xlu0 %1139
        %1141 = vrot.lane.b32.xlu0 %v654, 24
        %v1142 = vpop.permute.xlu0 %1141
        %1143 = vrot.lane.b32.xlu0 %v655, 24
        %v1144 = vpop.permute.xlu0 %1143
        %1145 = vrot.lane.b32.xlu0 %v656, 24
        %v1146 = vpop.permute.xlu0 %1145
        %1147 = vrot.lane.b32.xlu0 %v657, 24
        %v1148 = vpop.permute.xlu0 %1147
        %1149 = vrot.lane.b32.xlu0 %v658, 24
        %v1150 = vpop.permute.xlu0 %1149
        %1151 = vrot.lane.b32.xlu0 %v659, 24
        %v1152 = vpop.permute.xlu0 %1151
        %1153 = vrot.lane.b32.xlu0 %v660, 24
        %v1154 = vpop.permute.xlu0 %1153
        %1155 = vrot.lane.b32.xlu0 %v661, 24
        %v1156 = vpop.permute.xlu0 %1155
        %1157 = vrot.lane.b32.xlu0 %v662, 24
        %v1158 = vpop.permute.xlu0 %1157
        %1159 = vrot.lane.b32.xlu0 %v663, 24
        %v1160 = vpop.permute.xlu0 %1159
        %1161 = vrot.lane.b32.xlu0 %v664, 24
        %v1162 = vpop.permute.xlu0 %1161
        %1163 = vrot.lane.b32.xlu0 %v665, 24
        %v1164 = vpop.permute.xlu0 %1163
        %1165 = vrot.lane.b32.xlu0 %v666, 24
        %v1166 = vpop.permute.xlu0 %1165
        %1167 = vrot.lane.b32.xlu0 %v667, 24
        %v1168 = vpop.permute.xlu0 %1167
        %1169 = vrot.lane.b32.xlu0 %v668, 24
        %v1170 = vpop.permute.xlu0 %1169
        %1171 = vrot.lane.b32.xlu0 %v669, 24
        %v1172 = vpop.permute.xlu0 %1171
        %1173 = vrot.lane.b32.xlu0 %v670, 24
        %v1174 = vpop.permute.xlu0 %1173
        %1175 = vrot.lane.b32.xlu0 %v671, 24
        %v1176 = vpop.permute.xlu0 %1175
        %1177 = vrot.lane.b32.xlu0 %v672, 24
        %v1178 = vpop.permute.xlu0 %1177
        %1179 = vrot.lane.b32.xlu0 %v673, 24
        %v1180 = vpop.permute.xlu0 %1179
        %1181 = vrot.lane.b32.xlu0 %v674, 24
        %v1182 = vpop.permute.xlu0 %1181
        %1183 = vrot.lane.b32.xlu0 %v675, 24
        %v1184 = vpop.permute.xlu0 %1183
        %1185 = vrot.lane.b32.xlu0 %v676, 24
        %v1186 = vpop.permute.xlu0 %1185
        %1187 = vrot.lane.b32.xlu0 %v677, 24
        %v1188 = vpop.permute.xlu0 %1187
        %1189 = vrot.lane.b32.xlu0 %v678, 24
        %v1190 = vpop.permute.xlu0 %1189
        %1191 = vrot.lane.b32.xlu0 %v679, 24
        %v1192 = vpop.permute.xlu0 %1191
        %1257 = vrot.lane.b32.xlu0 %v680, 32
        %v1258 = vpop.permute.xlu0 %1257
        %1259 = vrot.lane.b32.xlu0 %v681, 32
        %v1260 = vpop.permute.xlu0 %1259
        %1261 = vrot.lane.b32.xlu0 %v682, 32
        %v1262 = vpop.permute.xlu0 %1261
        %1263 = vrot.lane.b32.xlu0 %v683, 32
        %v1264 = vpop.permute.xlu0 %1263
        %1265 = vrot.lane.b32.xlu0 %v684, 32
        %v1266 = vpop.permute.xlu0 %1265
        %1267 = vrot.lane.b32.xlu0 %v685, 32
        %v1268 = vpop.permute.xlu0 %1267
        %1269 = vrot.lane.b32.xlu0 %v686, 32
        %v1270 = vpop.permute.xlu0 %1269
        %1271 = vrot.lane.b32.xlu0 %v687, 32
        %v1272 = vpop.permute.xlu0 %1271
        %1273 = vrot.lane.b32.xlu0 %v688, 32
        %v1274 = vpop.permute.xlu0 %1273
        %1275 = vrot.lane.b32.xlu0 %v689, 32
        %v1276 = vpop.permute.xlu0 %1275
        %1277 = vrot.lane.b32.xlu0 %v690, 32
        %v1278 = vpop.permute.xlu0 %1277
        %1279 = vrot.lane.b32.xlu0 %v691, 32
        %v1280 = vpop.permute.xlu0 %1279
        %1281 = vrot.lane.b32.xlu0 %v692, 32
        %v1282 = vpop.permute.xlu0 %1281
        %1283 = vrot.lane.b32.xlu0 %v693, 32
        %v1284 = vpop.permute.xlu0 %1283
        %1285 = vrot.lane.b32.xlu0 %v694, 32
        %v1286 = vpop.permute.xlu0 %1285
        %1287 = vrot.lane.b32.xlu0 %v695, 32
        %v1288 = vpop.permute.xlu0 %1287
        %1289 = vrot.lane.b32.xlu0 %v696, 32
        %v1290 = vpop.permute.xlu0 %1289
        %1291 = vrot.lane.b32.xlu0 %v697, 32
        %v1292 = vpop.permute.xlu0 %1291
        %1293 = vrot.lane.b32.xlu0 %v698, 32
        %v1294 = vpop.permute.xlu0 %1293
        %1295 = vrot.lane.b32.xlu0 %v699, 32
        %v1296 = vpop.permute.xlu0 %1295
        %1297 = vrot.lane.b32.xlu0 %v700, 32
        %v1298 = vpop.permute.xlu0 %1297
        %1299 = vrot.lane.b32.xlu0 %v701, 32
        %v1300 = vpop.permute.xlu0 %1299
        %1301 = vrot.lane.b32.xlu0 %v702, 32
        %v1302 = vpop.permute.xlu0 %1301
        %1303 = vrot.lane.b32.xlu0 %v703, 32
        %v1304 = vpop.permute.xlu0 %1303
        %1305 = vrot.lane.b32.xlu0 %v704, 32
        %v1306 = vpop.permute.xlu0 %1305
        %1307 = vrot.lane.b32.xlu0 %v705, 32
        %v1308 = vpop.permute.xlu0 %1307
        %1309 = vrot.lane.b32.xlu0 %v706, 32
        %v1310 = vpop.permute.xlu0 %1309
        %1311 = vrot.lane.b32.xlu0 %v707, 32
        %v1312 = vpop.permute.xlu0 %1311
        %1313 = vrot.lane.b32.xlu0 %v708, 32
        %v1314 = vpop.permute.xlu0 %1313
        %1315 = vrot.lane.b32.xlu0 %v709, 32
        %v1316 = vpop.permute.xlu0 %1315
        %1317 = vrot.lane.b32.xlu0 %v710, 32
        %v1318 = vpop.permute.xlu0 %1317
        %1319 = vrot.lane.b32.xlu0 %v711, 32
        %v1320 = vpop.permute.xlu0 %1319
        %1385 = vrot.lane.b32.xlu0 %v712, 40
        %v1386 = vpop.permute.xlu0 %1385
        %1387 = vrot.lane.b32.xlu0 %v713, 40
        %v1388 = vpop.permute.xlu0 %1387
        %1389 = vrot.lane.b32.xlu0 %v714, 40
        %v1390 = vpop.permute.xlu0 %1389
        %1391 = vrot.lane.b32.xlu0 %v715, 40
        %v1392 = vpop.permute.xlu0 %1391
        %1393 = vrot.lane.b32.xlu0 %v716, 40
        %v1394 = vpop.permute.xlu0 %1393
        %1395 = vrot.lane.b32.xlu0 %v717, 40
        %v1396 = vpop.permute.xlu0 %1395
        %1397 = vrot.lane.b32.xlu0 %v718, 40
        %v1398 = vpop.permute.xlu0 %1397
        %1399 = vrot.lane.b32.xlu0 %v719, 40
        %v1400 = vpop.permute.xlu0 %1399
        %1401 = vrot.lane.b32.xlu0 %v720, 40
        %v1402 = vpop.permute.xlu0 %1401
        %1403 = vrot.lane.b32.xlu0 %v721, 40
        %v1404 = vpop.permute.xlu0 %1403
        %1405 = vrot.lane.b32.xlu0 %v722, 40
        %v1406 = vpop.permute.xlu0 %1405
        %1407 = vrot.lane.b32.xlu0 %v723, 40
        %v1408 = vpop.permute.xlu0 %1407
        %1409 = vrot.lane.b32.xlu0 %v724, 40
        %v1410 = vpop.permute.xlu0 %1409
        %1411 = vrot.lane.b32.xlu0 %v725, 40
        %v1412 = vpop.permute.xlu0 %1411
        %1413 = vrot.lane.b32.xlu0 %v726, 40
        %v1414 = vpop.permute.xlu0 %1413
        %1415 = vrot.lane.b32.xlu0 %v727, 40
        %v1416 = vpop.permute.xlu0 %1415
        %1417 = vrot.lane.b32.xlu0 %v728, 40
        %v1418 = vpop.permute.xlu0 %1417
        %1419 = vrot.lane.b32.xlu0 %v729, 40
        %v1420 = vpop.permute.xlu0 %1419
        %1421 = vrot.lane.b32.xlu0 %v730, 40
        %v1422 = vpop.permute.xlu0 %1421
        %1423 = vrot.lane.b32.xlu0 %v731, 40
        %v1424 = vpop.permute.xlu0 %1423
        %1425 = vrot.lane.b32.xlu0 %v732, 40
        %v1426 = vpop.permute.xlu0 %1425
        %1427 = vrot.lane.b32.xlu0 %v733, 40
        %v1428 = vpop.permute.xlu0 %1427
        %1429 = vrot.lane.b32.xlu0 %v734, 40
        %v1430 = vpop.permute.xlu0 %1429
        %1431 = vrot.lane.b32.xlu0 %v735, 40
        %v1432 = vpop.permute.xlu0 %1431
        %1433 = vrot.lane.b32.xlu0 %v736, 40
        %v1434 = vpop.permute.xlu0 %1433
        %1435 = vrot.lane.b32.xlu0 %v737, 40
        %v1436 = vpop.permute.xlu0 %1435
        %1437 = vrot.lane.b32.xlu0 %v738, 40
        %v1438 = vpop.permute.xlu0 %1437
        %1439 = vrot.lane.b32.xlu0 %v739, 40
        %v1440 = vpop.permute.xlu0 %1439
        %1441 = vrot.lane.b32.xlu0 %v740, 40
        %v1442 = vpop.permute.xlu0 %1441
        %1443 = vrot.lane.b32.xlu0 %v741, 40
        %v1444 = vpop.permute.xlu0 %1443
        %1445 = vrot.lane.b32.xlu0 %v742, 40
        %v1446 = vpop.permute.xlu0 %1445
        %1447 = vrot.lane.b32.xlu0 %v743, 40
        %v1448 = vpop.permute.xlu0 %1447
        %1513 = vrot.lane.b32.xlu0 %v745, 48
        %v1514 = vpop.permute.xlu0 %1513
        %1515 = vrot.lane.b32.xlu0 %v746, 48
        %v1516 = vpop.permute.xlu0 %1515
        %1517 = vrot.lane.b32.xlu0 %v747, 48
        %v1518 = vpop.permute.xlu0 %1517
        %1519 = vrot.lane.b32.xlu0 %v748, 48
        %v1520 = vpop.permute.xlu0 %1519
        %1521 = vrot.lane.b32.xlu0 %v749, 48
        %v1522 = vpop.permute.xlu0 %1521
        %1523 = vrot.lane.b32.xlu0 %v750, 48
        %v1524 = vpop.permute.xlu0 %1523
        %1525 = vrot.lane.b32.xlu0 %v751, 48
        %v1526 = vpop.permute.xlu0 %1525
        %1527 = vrot.lane.b32.xlu0 %v752, 48
        %v1528 = vpop.permute.xlu0 %1527
        %1529 = vrot.lane.b32.xlu0 %v753, 48
        %v1530 = vpop.permute.xlu0 %1529
        %1531 = vrot.lane.b32.xlu0 %v754, 48
        %v1532 = vpop.permute.xlu0 %1531
        %1533 = vrot.lane.b32.xlu0 %v755, 48
        %v1534 = vpop.permute.xlu0 %1533
        %1535 = vrot.lane.b32.xlu0 %v756, 48
        %v1536 = vpop.permute.xlu0 %1535
        %1537 = vrot.lane.b32.xlu0 %v757, 48
        %v1538 = vpop.permute.xlu0 %1537
        %1539 = vrot.lane.b32.xlu0 %v758, 48
        %v1540 = vpop.permute.xlu0 %1539
        %1541 = vrot.lane.b32.xlu0 %v759, 48
        %v1542 = vpop.permute.xlu0 %1541
        %1543 = vrot.lane.b32.xlu0 %v760, 48
        %v1544 = vpop.permute.xlu0 %1543
        %1545 = vrot.lane.b32.xlu0 %v761, 48
        %v1546 = vpop.permute.xlu0 %1545
        %1547 = vrot.lane.b32.xlu0 %v762, 48
        %v1548 = vpop.permute.xlu0 %1547
        %1549 = vrot.lane.b32.xlu0 %v763, 48
        %v1550 = vpop.permute.xlu0 %1549
        %1551 = vrot.lane.b32.xlu0 %v764, 48
        %v1552 = vpop.permute.xlu0 %1551
        %1553 = vrot.lane.b32.xlu0 %v765, 48
        %v1554 = vpop.permute.xlu0 %1553
        %1555 = vrot.lane.b32.xlu0 %v766, 48
        %v1556 = vpop.permute.xlu0 %1555
        %1557 = vrot.lane.b32.xlu0 %v767, 48
        %v1558 = vpop.permute.xlu0 %1557
        %1559 = vrot.lane.b32.xlu0 %v768, 48
        %v1560 = vpop.permute.xlu0 %1559
        %1561 = vrot.lane.b32.xlu0 %v769, 48
        %v1562 = vpop.permute.xlu0 %1561
        %1563 = vrot.lane.b32.xlu0 %v770, 48
        %v1564 = vpop.permute.xlu0 %1563
        %1565 = vrot.lane.b32.xlu0 %v771, 48
        %v1566 = vpop.permute.xlu0 %1565
        %1567 = vrot.lane.b32.xlu0 %v772, 48
        %v1568 = vpop.permute.xlu0 %1567
        %1569 = vrot.lane.b32.xlu0 %v773, 48
        %v1570 = vpop.permute.xlu0 %1569
        %1571 = vrot.lane.b32.xlu0 %v774, 48
        %v1572 = vpop.permute.xlu0 %1571
        %1573 = vrot.lane.b32.xlu0 %v775, 48
        %v1574 = vpop.permute.xlu0 %1573
        %1575 = vrot.lane.b32.xlu0 %v776, 48
        %v1576 = vpop.permute.xlu0 %1575
        %1641 = vrot.lane.b32.xlu0 %v777, 56
        %v1642 = vpop.permute.xlu0 %1641
        %1643 = vrot.lane.b32.xlu0 %v778, 56
        %v1644 = vpop.permute.xlu0 %1643
        %1645 = vrot.lane.b32.xlu0 %v779, 56
        %v1646 = vpop.permute.xlu0 %1645
        %1647 = vrot.lane.b32.xlu0 %v780, 56
        %v1648 = vpop.permute.xlu0 %1647
        %1649 = vrot.lane.b32.xlu0 %v781, 56
        %v1650 = vpop.permute.xlu0 %1649
        %1651 = vrot.lane.b32.xlu0 %v782, 56
        %v1652 = vpop.permute.xlu0 %1651
        %1653 = vrot.lane.b32.xlu0 %v783, 56
        %v1654 = vpop.permute.xlu0 %1653
        %1655 = vrot.lane.b32.xlu0 %v784, 56
        %v1656 = vpop.permute.xlu0 %1655
        %1657 = vrot.lane.b32.xlu0 %v785, 56
        %v1658 = vpop.permute.xlu0 %1657
        %1659 = vrot.lane.b32.xlu0 %v786, 56
        %v1660 = vpop.permute.xlu0 %1659
        %1661 = vrot.lane.b32.xlu0 %v787, 56
        %v1662 = vpop.permute.xlu0 %1661
        %1663 = vrot.lane.b32.xlu0 %v788, 56
        %v1664 = vpop.permute.xlu0 %1663
        %1665 = vrot.lane.b32.xlu0 %v789, 56
        %v1666 = vpop.permute.xlu0 %1665
        %1667 = vrot.lane.b32.xlu0 %v790, 56
        %v1668 = vpop.permute.xlu0 %1667
        %1669 = vrot.lane.b32.xlu0 %v791, 56
        %v1670 = vpop.permute.xlu0 %1669
        %1671 = vrot.lane.b32.xlu0 %v792, 56
        %v1672 = vpop.permute.xlu0 %1671
        %1673 = vrot.lane.b32.xlu0 %v793, 56
        %v1674 = vpop.permute.xlu0 %1673
        %1675 = vrot.lane.b32.xlu0 %v794, 56
        %v1676 = vpop.permute.xlu0 %1675
        %1677 = vrot.lane.b32.xlu0 %v795, 56
        %v1678 = vpop.permute.xlu0 %1677
        %1679 = vrot.lane.b32.xlu0 %v796, 56
        %v1680 = vpop.permute.xlu0 %1679
        %1681 = vrot.lane.b32.xlu0 %v797, 56
        %v1682 = vpop.permute.xlu0 %1681
        %1683 = vrot.lane.b32.xlu0 %v798, 56
        %v1684 = vpop.permute.xlu0 %1683
        %1685 = vrot.lane.b32.xlu0 %v799, 56
        %v1686 = vpop.permute.xlu0 %1685
        %1687 = vrot.lane.b32.xlu0 %v800, 56
        %v1688 = vpop.permute.xlu0 %1687
        %1689 = vrot.lane.b32.xlu0 %v801, 56
        %v1690 = vpop.permute.xlu0 %1689
        %1691 = vrot.lane.b32.xlu0 %v802, 56
        %v1692 = vpop.permute.xlu0 %1691
        %1693 = vrot.lane.b32.xlu0 %v803, 56
        %v1694 = vpop.permute.xlu0 %1693
        %1695 = vrot.lane.b32.xlu0 %v804, 56
        %v1696 = vpop.permute.xlu0 %1695
        %1697 = vrot.lane.b32.xlu0 %v805, 56
        %v1698 = vpop.permute.xlu0 %1697
        %1699 = vrot.lane.b32.xlu0 %v806, 56
        %v1700 = vpop.permute.xlu0 %1699
        %1701 = vrot.lane.b32.xlu0 %v807, 56
        %v1702 = vpop.permute.xlu0 %1701
        %1703 = vrot.lane.b32.xlu0 %v808, 56
        %v1704 = vpop.permute.xlu0 %1703
        %1769 = vrot.lane.b32.xlu0 %v809, 64
        %v1770 = vpop.permute.xlu0 %1769
        %1771 = vrot.lane.b32.xlu0 %v810, 64
        %v1772 = vpop.permute.xlu0 %1771
        %1773 = vrot.lane.b32.xlu0 %v811, 64
        %v1774 = vpop.permute.xlu0 %1773
        %1775 = vrot.lane.b32.xlu0 %v812, 64
        %v1776 = vpop.permute.xlu0 %1775
        %1777 = vrot.lane.b32.xlu0 %v813, 64
        %v1778 = vpop.permute.xlu0 %1777
        %1779 = vrot.lane.b32.xlu0 %v814, 64
        %v1780 = vpop.permute.xlu0 %1779
        %1781 = vrot.lane.b32.xlu0 %v815, 64
        %v1782 = vpop.permute.xlu0 %1781
        %1783 = vrot.lane.b32.xlu0 %v816, 64
        %v1784 = vpop.permute.xlu0 %1783
        %1785 = vrot.lane.b32.xlu0 %v817, 64
        %v1786 = vpop.permute.xlu0 %1785
        %1787 = vrot.lane.b32.xlu0 %v818, 64
        %v1788 = vpop.permute.xlu0 %1787
        %1789 = vrot.lane.b32.xlu0 %v819, 64
        %v1790 = vpop.permute.xlu0 %1789
        %1791 = vrot.lane.b32.xlu0 %v820, 64
        %v1792 = vpop.permute.xlu0 %1791
        %1793 = vrot.lane.b32.xlu0 %v821, 64
        %v1794 = vpop.permute.xlu0 %1793
        %1795 = vrot.lane.b32.xlu0 %v822, 64
        %v1796 = vpop.permute.xlu0 %1795
        %1797 = vrot.lane.b32.xlu0 %v823, 64
        %v1798 = vpop.permute.xlu0 %1797
        %1799 = vrot.lane.b32.xlu0 %v824, 64
        %v1800 = vpop.permute.xlu0 %1799
        %1801 = vrot.lane.b32.xlu0 %v825, 64
        %v1802 = vpop.permute.xlu0 %1801
        %1803 = vrot.lane.b32.xlu0 %v826, 64
        %v1804 = vpop.permute.xlu0 %1803
        %1805 = vrot.lane.b32.xlu0 %v827, 64
        %v1806 = vpop.permute.xlu0 %1805
        %1807 = vrot.lane.b32.xlu0 %v828, 64
        %v1808 = vpop.permute.xlu0 %1807
        %1809 = vrot.lane.b32.xlu0 %v829, 64
        %v1810 = vpop.permute.xlu0 %1809
        %1811 = vrot.lane.b32.xlu0 %v830, 64
        %v1812 = vpop.permute.xlu0 %1811
        %1813 = vrot.lane.b32.xlu0 %v831, 64
        %v1814 = vpop.permute.xlu0 %1813
        %1815 = vrot.lane.b32.xlu0 %v832, 64
        %v1816 = vpop.permute.xlu0 %1815
        %1817 = vrot.lane.b32.xlu0 %v833, 64
        %v1818 = vpop.permute.xlu0 %1817
        %1819 = vrot.lane.b32.xlu0 %v834, 64
        %v1820 = vpop.permute.xlu0 %1819
        %1821 = vrot.lane.b32.xlu0 %v835, 64
        %v1822 = vpop.permute.xlu0 %1821
        %1823 = vrot.lane.b32.xlu0 %v836, 64
        %v1824 = vpop.permute.xlu0 %1823
        %1825 = vrot.lane.b32.xlu0 %v837, 64
        %v1826 = vpop.permute.xlu0 %1825
        %1827 = vrot.lane.b32.xlu0 %v838, 64
        %v1828 = vpop.permute.xlu0 %1827
        %1829 = vrot.lane.b32.xlu0 %v839, 64
        %v1830 = vpop.permute.xlu0 %1829
        %1831 = vrot.lane.b32.xlu0 %v840, 64
        %v1832 = vpop.permute.xlu0 %1831
        %v1865 = vsel %vm330, %v552, %v874
        %v1866 = vsel %vm330, %v553, %v876
        %v1867 = vsel %vm330, %v554, %v878
        %v1868 = vsel %vm330, %v555, %v880
        %v1869 = vsel %vm330, %v556, %v882
        %v1870 = vsel %vm330, %v557, %v884
        %v1871 = vsel %vm330, %v558, %v886
        %v1872 = vsel %vm330, %v559, %v888
        %v1873 = vsel %vm330, %v560, %v890
        %v1874 = vsel %vm330, %v561, %v892
        %v1875 = vsel %vm330, %v562, %v894
        %v1876 = vsel %vm330, %v563, %v896
        %v1877 = vsel %vm330, %v564, %v898
        %v1878 = vsel %vm330, %v565, %v900
        %v1879 = vsel %vm330, %v566, %v902
        %v1880 = vsel %vm330, %v567, %v904
        %v1881 = vsel %vm330, %v568, %v906
        %v1882 = vsel %vm330, %v569, %v908
        %v1883 = vsel %vm330, %v570, %v910
        %v1884 = vsel %vm330, %v571, %v912
        %v1885 = vsel %vm330, %v572, %v914
        %v1886 = vsel %vm330, %v573, %v916
        %v1887 = vsel %vm330, %v574, %v918
        %v1888 = vsel %vm330, %v575, %v920
        %v1889 = vsel %vm330, %v576, %v922
        %v1890 = vsel %vm330, %v577, %v924
        %v1891 = vsel %vm330, %v578, %v926
        %v1892 = vsel %vm330, %v579, %v928
        %v1893 = vsel %vm330, %v580, %v930
        %v1894 = vsel %vm330, %v581, %v932
        %v1895 = vsel %vm330, %v582, %v934
        %v1896 = vsel %vm330, %v583, %v936
        %vm1897 = vcmask 130048
        %v1898 = vsel %vm1897, %v1865, %v1002
        %v1899 = vsel %vm1897, %v1866, %v1004
        %v1900 = vsel %vm1897, %v1867, %v1006
        %v1901 = vsel %vm1897, %v1868, %v1008
        %v1902 = vsel %vm1897, %v1869, %v1010
        %v1903 = vsel %vm1897, %v1870, %v1012
        %v1904 = vsel %vm1897, %v1871, %v1014
        %v1905 = vsel %vm1897, %v1872, %v1016
        %v1906 = vsel %vm1897, %v1873, %v1018
        %v1907 = vsel %vm1897, %v1874, %v1020
        %v1908 = vsel %vm1897, %v1875, %v1022
        %v1909 = vsel %vm1897, %v1876, %v1024
        %v1910 = vsel %vm1897, %v1877, %v1026
        %v1911 = vsel %vm1897, %v1878, %v1028
        %v1912 = vsel %vm1897, %v1879, %v1030
        %v1913 = vsel %vm1897, %v1880, %v1032
        %v1914 = vsel %vm1897, %v1881, %v1034
        %v1915 = vsel %vm1897, %v1882, %v1036
        %v1916 = vsel %vm1897, %v1883, %v1038
        %v1917 = vsel %vm1897, %v1884, %v1040
        %v1918 = vsel %vm1897, %v1885, %v1042
        %v1919 = vsel %vm1897, %v1886, %v1044
        %v1920 = vsel %vm1897, %v1887, %v1046
        %v1921 = vsel %vm1897, %v1888, %v1048
        %v1922 = vsel %vm1897, %v1889, %v1050
        %v1923 = vsel %vm1897, %v1890, %v1052
        %v1924 = vsel %vm1897, %v1891, %v1054
        %v1925 = vsel %vm1897, %v1892, %v1056
        %v1926 = vsel %vm1897, %v1893, %v1058
        %v1927 = vsel %vm1897, %v1894, %v1060
        %v1928 = vsel %vm1897, %v1895, %v1062
        %v1929 = vsel %vm1897, %v1896, %v1064
        %vm1930 = vcmask 195584
        %v1931 = vsel %vm1930, %v1898, %v1130
        %v1932 = vsel %vm1930, %v1899, %v1132
        %v1933 = vsel %vm1930, %v1900, %v1134
        %v1934 = vsel %vm1930, %v1901, %v1136
        %v1935 = vsel %vm1930, %v1902, %v1138
        %v1936 = vsel %vm1930, %v1903, %v1140
        %v1937 = vsel %vm1930, %v1904, %v1142
        %v1938 = vsel %vm1930, %v1905, %v1144
        %v1939 = vsel %vm1930, %v1906, %v1146
        %v1940 = vsel %vm1930, %v1907, %v1148
        %v1941 = vsel %vm1930, %v1908, %v1150
        %v1942 = vsel %vm1930, %v1909, %v1152
        %v1943 = vsel %vm1930, %v1910, %v1154
        %v1944 = vsel %vm1930, %v1911, %v1156
        %v1945 = vsel %vm1930, %v1912, %v1158
        %v1946 = vsel %vm1930, %v1913, %v1160
        %v1947 = vsel %vm1930, %v1914, %v1162
        %v1948 = vsel %vm1930, %v1915, %v1164
        %v1949 = vsel %vm1930, %v1916, %v1166
        %v1950 = vsel %vm1930, %v1917, %v1168
        %v1951 = vsel %vm1930, %v1918, %v1170
        %v1952 = vsel %vm1930, %v1919, %v1172
        %v1953 = vsel %vm1930, %v1920, %v1174
        %v1954 = vsel %vm1930, %v1921, %v1176
        %v1955 = vsel %vm1930, %v1922, %v1178
        %v1956 = vsel %vm1930, %v1923, %v1180
        %v1957 = vsel %vm1930, %v1924, %v1182
        %v1958 = vsel %vm1930, %v1925, %v1184
        %v1959 = vsel %vm1930, %v1926, %v1186
        %v1960 = vsel %vm1930, %v1927, %v1188
        %v1961 = vsel %vm1930, %v1928, %v1190
        %v1962 = vsel %vm1930, %v1929, %v1192
        %vm1963 = vcmask 261120
        %v1964 = vsel %vm1963, %v1931, %v1258
        %v1965 = vsel %vm1963, %v1932, %v1260
        %v1966 = vsel %vm1963, %v1933, %v1262
        %v1967 = vsel %vm1963, %v1934, %v1264
        %v1968 = vsel %vm1963, %v1935, %v1266
        %v1969 = vsel %vm1963, %v1936, %v1268
        %v1970 = vsel %vm1963, %v1937, %v1270
        %v1971 = vsel %vm1963, %v1938, %v1272
        %v1972 = vsel %vm1963, %v1939, %v1274
        %v1973 = vsel %vm1963, %v1940, %v1276
        %v1974 = vsel %vm1963, %v1941, %v1278
        %v1975 = vsel %vm1963, %v1942, %v1280
        %v1976 = vsel %vm1963, %v1943, %v1282
        %v1977 = vsel %vm1963, %v1944, %v1284
        %v1978 = vsel %vm1963, %v1945, %v1286
        %v1979 = vsel %vm1963, %v1946, %v1288
        %v1980 = vsel %vm1963, %v1947, %v1290
        %v1981 = vsel %vm1963, %v1948, %v1292
        %v1982 = vsel %vm1963, %v1949, %v1294
        %v1983 = vsel %vm1963, %v1950, %v1296
        %v1984 = vsel %vm1963, %v1951, %v1298
        %v1985 = vsel %vm1963, %v1952, %v1300
        %v1986 = vsel %vm1963, %v1953, %v1302
        %v1987 = vsel %vm1963, %v1954, %v1304
        %v1988 = vsel %vm1963, %v1955, %v1306
        %v1989 = vsel %vm1963, %v1956, %v1308
        %v1990 = vsel %vm1963, %v1957, %v1310
        %v1991 = vsel %vm1963, %v1958, %v1312
        %v1992 = vsel %vm1963, %v1959, %v1314
        %v1993 = vsel %vm1963, %v1960, %v1316
        %v1994 = vsel %vm1963, %v1961, %v1318
        %v1995 = vsel %vm1963, %v1962, %v1320
        %vm1996 = vcmask 326656
        %v1997 = vsel %vm1996, %v1964, %v1386
        %v1998 = vsel %vm1996, %v1965, %v1388
        %v1999 = vsel %vm1996, %v1966, %v1390
        %v2000 = vsel %vm1996, %v1967, %v1392
        %v2001 = vsel %vm1996, %v1968, %v1394
        %v2002 = vsel %vm1996, %v1969, %v1396
        %v2003 = vsel %vm1996, %v1970, %v1398
        %v2004 = vsel %vm1996, %v1971, %v1400
        %v2005 = vsel %vm1996, %v1972, %v1402
        %v2006 = vsel %vm1996, %v1973, %v1404
        %v2007 = vsel %vm1996, %v1974, %v1406
        %v2008 = vsel %vm1996, %v1975, %v1408
        %v2009 = vsel %vm1996, %v1976, %v1410
        %v2010 = vsel %vm1996, %v1977, %v1412
        %v2011 = vsel %vm1996, %v1978, %v1414
        %v2012 = vsel %vm1996, %v1979, %v1416
        %v2013 = vsel %vm1996, %v1980, %v1418
        %v2014 = vsel %vm1996, %v1981, %v1420
        %v2015 = vsel %vm1996, %v1982, %v1422
        %v2016 = vsel %vm1996, %v1983, %v1424
        %v2017 = vsel %vm1996, %v1984, %v1426
        %v2018 = vsel %vm1996, %v1985, %v1428
        %v2019 = vsel %vm1996, %v1986, %v1430
        %v2020 = vsel %vm1996, %v1987, %v1432
        %v2021 = vsel %vm1996, %v1988, %v1434
        %v2022 = vsel %vm1996, %v1989, %v1436
        %v2023 = vsel %vm1996, %v1990, %v1438
        %v2024 = vsel %vm1996, %v1991, %v1440
        %v2025 = vsel %vm1996, %v1992, %v1442
        %v2026 = vsel %vm1996, %v1993, %v1444
        %v2027 = vsel %vm1996, %v1994, %v1446
        %v2028 = vsel %vm1996, %v1995, %v1448
        %vm2029 = vcmask 392192
        %v2030 = vsel %vm2029, %v1997, %v1514
        %v2031 = vsel %vm2029, %v1998, %v1516
        %v2032 = vsel %vm2029, %v1999, %v1518
        %v2033 = vsel %vm2029, %v2000, %v1520
        %v2034 = vsel %vm2029, %v2001, %v1522
        %v2035 = vsel %vm2029, %v2002, %v1524
        %v2036 = vsel %vm2029, %v2003, %v1526
        %v2037 = vsel %vm2029, %v2004, %v1528
        %v2038 = vsel %vm2029, %v2005, %v1530
        %v2039 = vsel %vm2029, %v2006, %v1532
        %v2040 = vsel %vm2029, %v2007, %v1534
        %v2041 = vsel %vm2029, %v2008, %v1536
        %v2042 = vsel %vm2029, %v2009, %v1538
        %v2043 = vsel %vm2029, %v2010, %v1540
        %v2044 = vsel %vm2029, %v2011, %v1542
        %v2045 = vsel %vm2029, %v2012, %v1544
        %v2046 = vsel %vm2029, %v2013, %v1546
        %v2047 = vsel %vm2029, %v2014, %v1548
        %v2048 = vsel %vm2029, %v2015, %v1550
        %v2049 = vsel %vm2029, %v2016, %v1552
        %v2050 = vsel %vm2029, %v2017, %v1554
        %v2051 = vsel %vm2029, %v2018, %v1556
        %v2052 = vsel %vm2029, %v2019, %v1558
        %v2053 = vsel %vm2029, %v2020, %v1560
        %v2054 = vsel %vm2029, %v2021, %v1562
        %v2055 = vsel %vm2029, %v2022, %v1564
        %v2056 = vsel %vm2029, %v2023, %v1566
        %v2057 = vsel %vm2029, %v2024, %v1568
        %v2058 = vsel %vm2029, %v2025, %v1570
        %v2059 = vsel %vm2029, %v2026, %v1572
        %v2060 = vsel %vm2029, %v2027, %v1574
        %v2061 = vsel %vm2029, %v2028, %v1576
        %vm2062 = vcmask 457728
        %v2063 = vsel %vm2062, %v2030, %v1642
        %v2064 = vsel %vm2062, %v2031, %v1644
        %v2065 = vsel %vm2062, %v2032, %v1646
        %v2066 = vsel %vm2062, %v2033, %v1648
        %v2067 = vsel %vm2062, %v2034, %v1650
        %v2068 = vsel %vm2062, %v2035, %v1652
        %v2069 = vsel %vm2062, %v2036, %v1654
        %v2070 = vsel %vm2062, %v2037, %v1656
        %v2071 = vsel %vm2062, %v2038, %v1658
        %v2072 = vsel %vm2062, %v2039, %v1660
        %v2073 = vsel %vm2062, %v2040, %v1662
        %v2074 = vsel %vm2062, %v2041, %v1664
        %v2075 = vsel %vm2062, %v2042, %v1666
        %v2076 = vsel %vm2062, %v2043, %v1668
        %v2077 = vsel %vm2062, %v2044, %v1670
        %v2078 = vsel %vm2062, %v2045, %v1672
        %v2079 = vsel %vm2062, %v2046, %v1674
        %v2080 = vsel %vm2062, %v2047, %v1676
        %v2081 = vsel %vm2062, %v2048, %v1678
        %v2082 = vsel %vm2062, %v2049, %v1680
        %v2083 = vsel %vm2062, %v2050, %v1682
        %v2084 = vsel %vm2062, %v2051, %v1684
        %v2085 = vsel %vm2062, %v2052, %v1686
        %v2086 = vsel %vm2062, %v2053, %v1688
        %v2087 = vsel %vm2062, %v2054, %v1690
        %v2088 = vsel %vm2062, %v2055, %v1692
        %v2089 = vsel %vm2062, %v2056, %v1694
        %v2090 = vsel %vm2062, %v2057, %v1696
        %v2091 = vsel %vm2062, %v2058, %v1698
        %v2092 = vsel %vm2062, %v2059, %v1700
        %v2093 = vsel %vm2062, %v2060, %v1702
        %v2094 = vsel %vm2062, %v2061, %v1704
        %vm2095 = vcmask 523264
        %v2096 = vsel %vm2095, %v2063, %v1770
        %v2097 = vsel %vm2095, %v2064, %v1772
        %v2098 = vsel %vm2095, %v2065, %v1774
        %v2099 = vsel %vm2095, %v2066, %v1776
        %v2100 = vsel %vm2095, %v2067, %v1778
        %v2101 = vsel %vm2095, %v2068, %v1780
        %v2102 = vsel %vm2095, %v2069, %v1782
        %v2103 = vsel %vm2095, %v2070, %v1784
        %v2104 = vsel %vm2095, %v2071, %v1786
        %v2105 = vsel %vm2095, %v2072, %v1788
        %v2106 = vsel %vm2095, %v2073, %v1790
        %v2107 = vsel %vm2095, %v2074, %v1792
        %v2108 = vsel %vm2095, %v2075, %v1794
        %v2109 = vsel %vm2095, %v2076, %v1796
        %v2110 = vsel %vm2095, %v2077, %v1798
        %v2111 = vsel %vm2095, %v2078, %v1800
        %v2112 = vsel %vm2095, %v2079, %v1802
        %v2113 = vsel %vm2095, %v2080, %v1804
        %v2114 = vsel %vm2095, %v2081, %v1806
        %v2115 = vsel %vm2095, %v2082, %v1808
        %v2116 = vsel %vm2095, %v2083, %v1810
        %v2117 = vsel %vm2095, %v2084, %v1812
        %v2118 = vsel %vm2095, %v2085, %v1814
        %v2119 = vsel %vm2095, %v2086, %v1816
        %v2120 = vsel %vm2095, %v2087, %v1818
        %v2121 = vsel %vm2095, %v2088, %v1820
        %v2122 = vsel %vm2095, %v2089, %v1822
        %v2123 = vsel %vm2095, %v2090, %v1824
        %v2124 = vsel %vm2095, %v2091, %v1826
        %v2125 = vsel %vm2095, %v2092, %v1828
        %v2126 = vsel %vm2095, %v2093, %v1830
        %v2127 = vsel %vm2095, %v2094, %v1832
        %v2129 = vlaneseq
        %v2130 = vshrl.u32 %v2129, 7
        %v2131 = vsub.s32 0, %v2130
        %v2132 = vrot.slane %v444, %v2131
        %vm2134 = vcmask 588800
        %v2136 = vsel %vm2134, %v2096, 0
        %v2139 = vsel %vm2134, %v2097, 0
        %v2142 = vsel %vm2134, %v2098, 0
        %v2145 = vsel %vm2134, %v2099, 0
        %v2148 = vsel %vm2134, %v2100, 0
        %v2151 = vsel %vm2134, %v2101, 0
        %v2154 = vsel %vm2134, %v2102, 0
        %v2157 = vsel %vm2134, %v2103, 0
        %v2160 = vsel %vm2134, %v2104, 0
        %v2163 = vsel %vm2134, %v2105, 0
        %v2166 = vsel %vm2134, %v2106, 0
        %v2169 = vsel %vm2134, %v2107, 0
        %v2172 = vsel %vm2134, %v2108, 0
        %v2175 = vsel %vm2134, %v2109, 0
        %v2178 = vsel %vm2134, %v2110, 0
        %v2181 = vsel %vm2134, %v2111, 0
        %v2184 = vsel %vm2134, %v2112, 0
        %v2187 = vsel %vm2134, %v2113, 0
        %v2190 = vsel %vm2134, %v2114, 0
        %v2193 = vsel %vm2134, %v2115, 0
        %v2196 = vsel %vm2134, %v2116, 0
        %v2199 = vsel %vm2134, %v2117, 0
        %v2202 = vsel %vm2134, %v2118, 0
        %v2205 = vsel %vm2134, %v2119, 0
        %v2208 = vsel %vm2134, %v2120, 0
        %v2211 = vsel %vm2134, %v2121, 0
        %v2214 = vsel %vm2134, %v2122, 0
        %v2217 = vsel %vm2134, %v2123, 0
        %v2220 = vsel %vm2134, %v2124, 0
        %v2223 = vsel %vm2134, %v2125, 0
        %v2226 = vsel %vm2134, %v2126, 0
        %v2229 = vsel %vm2134, %v2127, 0
        %2231 = vmatprep.subr.mxu0 0.0
        %2232 = vmatpush1.msra.mxu0 %v435
        %2233 = vmatprep.subr.mxu0 0.0
        %2234 = vmatpush1.msra.mxu0 %v436
        %2235 = vmatprep.subr.mxu0 0.0
        %2236 = vmatpush1.msra.mxu0 %v437
        %2237 = vmatprep.subr.mxu0 0.0
        %2238 = vmatpush1.msra.mxu0 %v438
        %2239 = vmatprep.subr.mxu0 0.0
        %2240 = vmatpush1.msra.mxu0 %v439
        %2241 = vmatprep.subr.mxu0 0.0
        %2242 = vmatpush1.msra.mxu0 %v440
        %2243 = vmatprep.subr.mxu0 0.0
        %2244 = vmatpush1.msra.mxu0 %v441
        %2245 = vmatprep.subr.mxu0 0.0
        %2246 = vmatpush1.msra.mxu0 %v442
        %2247 = vmatprep.subr.mxu0 0.0
        %2248 = vmatpush1.msra.mxu0 %v443
        %2249 = vmatprep.subr.mxu0 0.0
        %2250 = vmatpush1.msra.mxu0 0.0
        %2251 = vmatprep.subr.mxu0 0.0
        %2252 = vmatpush1.msra.mxu0 0.0
        %2253 = vmatprep.subr.mxu0 0.0
        %2254 = vmatpush1.msra.mxu0 0.0
        %2255 = vmatprep.subr.mxu0 0.0
        %2256 = vmatpush1.msra.mxu0 0.0
        %2257 = vmatprep.subr.mxu0 0.0
        %2258 = vmatpush1.msra.mxu0 0.0
        %2259 = vmatprep.subr.mxu0 0.0
        %2260 = vmatpush1.msra.mxu0 0.0
        %2261 = vmatprep.subr.mxu0 0.0
        %2262 = vmatpush1.msra.mxu0 0.0
        %2263 = vmatprep.subr.mxu0 0.0
        %2264 = vmatpush1.msra.mxu0 0.0
        %2265 = vmatprep.subr.mxu0 0.0
        %2266 = vmatpush1.msra.mxu0 0.0
        %2267 = vmatprep.subr.mxu0 0.0
        %2268 = vmatpush1.msra.mxu0 0.0
        %2269 = vmatprep.subr.mxu0 0.0
        %2270 = vmatpush1.msra.mxu0 0.0
        %2271 = vmatprep.subr.mxu0 0.0
        %2272 = vmatpush1.msra.mxu0 0.0
        %2273 = vmatprep.subr.mxu0 0.0
        %2274 = vmatpush1.msra.mxu0 0.0
        %2275 = vmatprep.subr.mxu0 0.0
        %2276 = vmatpush1.msra.mxu0 0.0
        %2277 = vmatprep.subr.mxu0 0.0
        %2278 = vmatpush1.msra.mxu0 0.0
        %2279 = vmatprep.subr.mxu0 0.0
        %2280 = vmatpush1.msra.mxu0 0.0
        %2281 = vmatprep.subr.mxu0 0.0
        %2282 = vmatpush1.msra.mxu0 0.0
        %2283 = vmatprep.subr.mxu0 0.0
        %2284 = vmatpush1.msra.mxu0 0.0
        %2285 = vmatprep.subr.mxu0 0.0
        %2286 = vmatpush1.msra.mxu0 0.0
        %2287 = vmatprep.subr.mxu0 0.0
        %2288 = vmatpush1.msra.mxu0 0.0
        %2289 = vmatprep.subr.mxu0 0.0
        %2290 = vmatpush1.msra.mxu0 0.0
        %2291 = vmatprep.subr.mxu0 0.0
        %2292 = vmatpush1.msra.mxu0 0.0
        %2293 = vmatprep.subr.mxu0 0.0
        %2294 = vmatpush1.msra.mxu0 0.0
        %2295 = vmatprep.mubr.f32.mxu0 0.0
        %2296 = vmatmul.mubr.f32.gmra.mrb[0].mxu0 %v2136
        %v2297 = vpop.f32.mrb[0].mxu0
        %v2298 = vadd.f32 %v2132, %v2297
        %v2299 = vpop.f32.mrb[0].mxu0
        %2300 = vmatprep.mubr.f32.mxu0 0.0
        %2301 = vmatmul.mubr.f32.gmra.mrb[0].mxu0 %v2139
        %v2302 = vpop.f32.mrb[0].mxu0
        %v2303 = vadd.f32 %v2132, %v2302
        %v2304 = vpop.f32.mrb[0].mxu0
        %2305 = vmatprep.mubr.f32.mxu0 0.0
        %2306 = vmatmul.mubr.f32.gmra.mrb[0].mxu0 %v2142
        %v2307 = vpop.f32.mrb[0].mxu0
        %v2308 = vadd.f32 %v2132, %v2307
        %v2309 = vpop.f32.mrb[0].mxu0
        %2310 = vmatprep.mubr.f32.mxu0 0.0
        %2311 = vmatmul.mubr.f32.gmra.mrb[0].mxu0 %v2145
        %v2312 = vpop.f32.mrb[0].mxu0
        %v2313 = vadd.f32 %v2132, %v2312
        %v2314 = vpop.f32.mrb[0].mxu0
        %2315 = vmatprep.mubr.f32.mxu0 0.0
        %2316 = vmatmul.mubr.f32.gmra.mrb[0].mxu0 %v2148
        %v2317 = vpop.f32.mrb[0].mxu0
        %v2318 = vadd.f32 %v2132, %v2317
        %v2319 = vpop.f32.mrb[0].mxu0
        %2320 = vmatprep.mubr.f32.mxu0 0.0
        %2321 = vmatmul.mubr.f32.gmra.mrb[0].mxu0 %v2151
        %v2322 = vpop.f32.mrb[0].mxu0
        %v2323 = vadd.f32 %v2132, %v2322
        %v2324 = vpop.f32.mrb[0].mxu0
        %2325 = vmatprep.mubr.f32.mxu0 0.0
        %2326 = vmatmul.mubr.f32.gmra.mrb[0].mxu0 %v2154
        %v2327 = vpop.f32.mrb[0].mxu0
        %v2328 = vadd.f32 %v2132, %v2327
        %v2329 = vpop.f32.mrb[0].mxu0
        %2330 = vmatprep.mubr.f32.mxu0 0.0
        %2331 = vmatmul.mubr.f32.gmra.mrb[0].mxu0 %v2157
        %v2332 = vpop.f32.mrb[0].mxu0
        %v2333 = vadd.f32 %v2132, %v2332
        %v2334 = vpop.f32.mrb[0].mxu0
        %2335 = vmatprep.mubr.f32.mxu0 0.0
        %2336 = vmatmul.mubr.f32.gmra.mrb[0].mxu0 %v2160
        %v2337 = vpop.f32.mrb[0].mxu0
        %v2338 = vadd.f32 %v2132, %v2337
        %v2339 = vpop.f32.mrb[0].mxu0
        %2340 = vmatprep.mubr.f32.mxu0 0.0
        %2341 = vmatmul.mubr.f32.gmra.mrb[0].mxu0 %v2163
        %v2342 = vpop.f32.mrb[0].mxu0
        %v2343 = vadd.f32 %v2132, %v2342
        %v2344 = vpop.f32.mrb[0].mxu0
        %2345 = vmatprep.mubr.f32.mxu0 0.0
        %2346 = vmatmul.mubr.f32.gmra.mrb[0].mxu0 %v2166
        %v2347 = vpop.f32.mrb[0].mxu0
        %v2348 = vadd.f32 %v2132, %v2347
        %v2349 = vpop.f32.mrb[0].mxu0
        %2350 = vmatprep.mubr.f32.mxu0 0.0
        %2351 = vmatmul.mubr.f32.gmra.mrb[0].mxu0 %v2169
        %v2352 = vpop.f32.mrb[0].mxu0
        %v2353 = vadd.f32 %v2132, %v2352
        %v2354 = vpop.f32.mrb[0].mxu0
        %2355 = vmatprep.mubr.f32.mxu0 0.0
        %2356 = vmatmul.mubr.f32.gmra.mrb[0].mxu0 %v2172
        %v2357 = vpop.f32.mrb[0].mxu0
        %v2358 = vadd.f32 %v2132, %v2357
        %v2359 = vpop.f32.mrb[0].mxu0
        %2360 = vmatprep.mubr.f32.mxu0 0.0
        %2361 = vmatmul.mubr.f32.gmra.mrb[0].mxu0 %v2175
        %v2362 = vpop.f32.mrb[0].mxu0
        %v2363 = vadd.f32 %v2132, %v2362
        %v2364 = vpop.f32.mrb[0].mxu0
        %2365 = vmatprep.mubr.f32.mxu0 0.0
        %2366 = vmatmul.mubr.f32.gmra.mrb[0].mxu0 %v2178
        %v2367 = vpop.f32.mrb[0].mxu0
        %v2368 = vadd.f32 %v2132, %v2367
        %v2369 = vpop.f32.mrb[0].mxu0
        %2370 = vmatprep.mubr.f32.mxu0 0.0
        %2371 = vmatmul.mubr.f32.gmra.mrb[0].mxu0 %v2181
        %v2372 = vpop.f32.mrb[0].mxu0
        %v2373 = vadd.f32 %v2132, %v2372
        %v2374 = vpop.f32.mrb[0].mxu0
        %2375 = vmatprep.mubr.f32.mxu0 0.0
        %2376 = vmatmul.mubr.f32.gmra.mrb[0].mxu0 %v2184
        %v2377 = vpop.f32.mrb[0].mxu0
        %v2378 = vadd.f32 %v2132, %v2377
        %v2379 = vpop.f32.mrb[0].mxu0
        %2380 = vmatprep.mubr.f32.mxu0 0.0
        %2381 = vmatmul.mubr.f32.gmra.mrb[0].mxu0 %v2187
        %v2382 = vpop.f32.mrb[0].mxu0
        %v2383 = vadd.f32 %v2132, %v2382
        %v2384 = vpop.f32.mrb[0].mxu0
        %2385 = vmatprep.mubr.f32.mxu0 0.0
        %2386 = vmatmul.mubr.f32.gmra.mrb[0].mxu0 %v2190
        %v2387 = vpop.f32.mrb[0].mxu0
        %v2388 = vadd.f32 %v2132, %v2387
        %v2389 = vpop.f32.mrb[0].mxu0
        %2390 = vmatprep.mubr.f32.mxu0 0.0
        %2391 = vmatmul.mubr.f32.gmra.mrb[0].mxu0 %v2193
        %v2392 = vpop.f32.mrb[0].mxu0
        %v2393 = vadd.f32 %v2132, %v2392
        %v2394 = vpop.f32.mrb[0].mxu0
        %2395 = vmatprep.mubr.f32.mxu0 0.0
        %2396 = vmatmul.mubr.f32.gmra.mrb[0].mxu0 %v2196
        %v2397 = vpop.f32.mrb[0].mxu0
        %v2398 = vadd.f32 %v2132, %v2397
        %v2399 = vpop.f32.mrb[0].mxu0
        %2400 = vmatprep.mubr.f32.mxu0 0.0
        %2401 = vmatmul.mubr.f32.gmra.mrb[0].mxu0 %v2199
        %v2402 = vpop.f32.mrb[0].mxu0
        %v2403 = vadd.f32 %v2132, %v2402
        %v2404 = vpop.f32.mrb[0].mxu0
        %2405 = vmatprep.mubr.f32.mxu0 0.0
        %2406 = vmatmul.mubr.f32.gmra.mrb[0].mxu0 %v2202
        %v2407 = vpop.f32.mrb[0].mxu0
        %v2408 = vadd.f32 %v2132, %v2407
        %v2409 = vpop.f32.mrb[0].mxu0
        %2410 = vmatprep.mubr.f32.mxu0 0.0
        %2411 = vmatmul.mubr.f32.gmra.mrb[0].mxu0 %v2205
        %v2412 = vpop.f32.mrb[0].mxu0
        %v2413 = vadd.f32 %v2132, %v2412
        %v2414 = vpop.f32.mrb[0].mxu0
        %2415 = vmatprep.mubr.f32.mxu0 0.0
        %2416 = vmatmul.mubr.f32.gmra.mrb[0].mxu0 %v2208
        %v2417 = vpop.f32.mrb[0].mxu0
        %v2418 = vadd.f32 %v2132, %v2417
        %v2419 = vpop.f32.mrb[0].mxu0
        %2420 = vmatprep.mubr.f32.mxu0 0.0
        %2421 = vmatmul.mubr.f32.gmra.mrb[0].mxu0 %v2211
        %v2422 = vpop.f32.mrb[0].mxu0
        %v2423 = vadd.f32 %v2132, %v2422
        %v2424 = vpop.f32.mrb[0].mxu0
        %2425 = vmatprep.mubr.f32.mxu0 0.0
        %2426 = vmatmul.mubr.f32.gmra.mrb[0].mxu0 %v2214
        %v2427 = vpop.f32.mrb[0].mxu0
        %v2428 = vadd.f32 %v2132, %v2427
        %v2429 = vpop.f32.mrb[0].mxu0
        %2430 = vmatprep.mubr.f32.mxu0 0.0
        %2431 = vmatmul.mubr.f32.gmra.mrb[0].mxu0 %v2217
        %v2432 = vpop.f32.mrb[0].mxu0
        %v2433 = vadd.f32 %v2132, %v2432
        %v2434 = vpop.f32.mrb[0].mxu0
        %2435 = vmatprep.mubr.f32.mxu0 0.0
        %2436 = vmatmul.mubr.f32.gmra.mrb[0].mxu0 %v2220
        %v2437 = vpop.f32.mrb[0].mxu0
        %v2438 = vadd.f32 %v2132, %v2437
        %v2439 = vpop.f32.mrb[0].mxu0
        %2440 = vmatprep.mubr.f32.mxu0 0.0
        %2441 = vmatmul.mubr.f32.gmra.mrb[0].mxu0 %v2223
        %v2442 = vpop.f32.mrb[0].mxu0
        %v2443 = vadd.f32 %v2132, %v2442
        %v2444 = vpop.f32.mrb[0].mxu0
        %2445 = vmatprep.mubr.f32.mxu0 0.0
        %2446 = vmatmul.mubr.f32.gmra.mrb[0].mxu0 %v2226
        %v2447 = vpop.f32.mrb[0].mxu0
        %v2448 = vadd.f32 %v2132, %v2447
        %v2449 = vpop.f32.mrb[0].mxu0
        %2450 = vmatprep.mubr.f32.mxu0 0.0
        %2451 = vmatmul.mubr.f32.gmra.mrb[0].mxu0 %v2229
        %v2452 = vpop.f32.mrb[0].mxu0
        %v2453 = vadd.f32 %v2132, %v2452
        %v2454 = vpop.f32.mrb[0].mxu0
        %2455 = vdwg.mxu0
        %v2456 = vmax.f32 %v2298, 0.0
        %v2457 = vmax.f32 %v2303, 0.0
        %v2458 = vmax.f32 %v2308, 0.0
        %v2459 = vmax.f32 %v2313, 0.0
        %v2460 = vmax.f32 %v2318, 0.0
        %v2461 = vmax.f32 %v2323, 0.0
        %v2462 = vmax.f32 %v2328, 0.0
        %v2463 = vmax.f32 %v2333, 0.0
        %v2464 = vmax.f32 %v2338, 0.0
        %v2465 = vmax.f32 %v2343, 0.0
        %v2466 = vmax.f32 %v2348, 0.0
        %v2467 = vmax.f32 %v2353, 0.0
        %v2468 = vmax.f32 %v2358, 0.0
        %v2469 = vmax.f32 %v2363, 0.0
        %v2470 = vmax.f32 %v2368, 0.0
        %v2471 = vmax.f32 %v2373, 0.0
        %v2472 = vmax.f32 %v2378, 0.0
        %v2473 = vmax.f32 %v2383, 0.0
        %v2474 = vmax.f32 %v2388, 0.0
        %v2475 = vmax.f32 %v2393, 0.0
        %v2476 = vmax.f32 %v2398, 0.0
        %v2477 = vmax.f32 %v2403, 0.0
        %v2478 = vmax.f32 %v2408, 0.0
        %v2479 = vmax.f32 %v2413, 0.0
        %v2480 = vmax.f32 %v2418, 0.0
        %v2481 = vmax.f32 %v2423, 0.0
        %v2482 = vmax.f32 %v2428, 0.0
        %v2483 = vmax.f32 %v2433, 0.0
        %v2484 = vmax.f32 %v2438, 0.0
        %v2485 = vmax.f32 %v2443, 0.0
        %v2486 = vmax.f32 %v2448, 0.0
        %v2487 = vmax.f32 %v2453, 0.0
        %v2488 = vld [vmem:[%s5] sm:$0xff]
        %v2489 = vld [vmem:[%s5 + $0x8] sm:$0xff]
        %v2490 = vld [vmem:[%s5 + $0x10] sm:$0xff]
        %v2491 = vld [vmem:[%s5 + $0x18] sm:$0xff]
        %v2492 = vld [vmem:[%s5 + $0x20] sm:$0xff]
        %v2493 = vld [vmem:[%s5 + $0x28] sm:$0xff]
        %v2494 = vld [vmem:[%s5 + $0x30] sm:$0xff]
        %v2495 = vld [vmem:[%s5 + $0x38] sm:$0xff]
        %v2496 = vld [vmem:[%s5 + $0x40] sm:$0xff]
        %v2497 = vld [vmem:[%s6] sm:$0x1]
        %v2498 = vld [vmem:[%s1 + $0x1] sm:$0x1]
        %v2499 = vld [vmem:[%s2 + $0x1] sm:$0x1]
        %v2500 = vlaneseq
        %v2501 = vshrl.u32 %v2500, 7
        %v2502 = vsub.s32 0, %v2501
        %v2503 = vrot.slane %v2498, %v2502
        %v2504 = vmul.f32 %v2456, %v2503
        %v2505 = vmul.f32 %v2457, %v2503
        %v2506 = vmul.f32 %v2458, %v2503
        %v2507 = vmul.f32 %v2459, %v2503
        %v2508 = vmul.f32 %v2460, %v2503
        %v2509 = vmul.f32 %v2461, %v2503
        %v2510 = vmul.f32 %v2462, %v2503
        %v2511 = vmul.f32 %v2463, %v2503
        %v2512 = vmul.f32 %v2464, %v2503
        %v2513 = vmul.f32 %v2465, %v2503
        %v2514 = vmul.f32 %v2466, %v2503
        %v2515 = vmul.f32 %v2467, %v2503
        %v2516 = vmul.f32 %v2468, %v2503
        %v2517 = vmul.f32 %v2469, %v2503
        %v2518 = vmul.f32 %v2470, %v2503
        %v2519 = vmul.f32 %v2471, %v2503
        %v2520 = vmul.f32 %v2472, %v2503
        %v2521 = vmul.f32 %v2473, %v2503
        %v2522 = vmul.f32 %v2474, %v2503
        %v2523 = vmul.f32 %v2475, %v2503
        %v2524 = vmul.f32 %v2476, %v2503
        %v2525 = vmul.f32 %v2477, %v2503
        %v2526 = vmul.f32 %v2478, %v2503
        %v2527 = vmul.f32 %v2479, %v2503
        %v2528 = vmul.f32 %v2480, %v2503
        %v2529 = vmul.f32 %v2481, %v2503
        %v2530 = vmul.f32 %v2482, %v2503
        %v2531 = vmul.f32 %v2483, %v2503
        %v2532 = vmul.f32 %v2484, %v2503
        %v2533 = vmul.f32 %v2485, %v2503
        %v2534 = vmul.f32 %v2486, %v2503
        %v2535 = vmul.f32 %v2487, %v2503
        %v2536 = vlaneseq
        %v2537 = vshrl.u32 %v2536, 7
        %v2538 = vsub.s32 0, %v2537
        %v2539 = vrot.slane %v2499, %v2538
        %v2540 = vadd.f32 %v2504, %v2539
        %v2541 = vadd.f32 %v2505, %v2539
        %v2542 = vadd.f32 %v2506, %v2539
        %v2543 = vadd.f32 %v2507, %v2539
        %v2544 = vadd.f32 %v2508, %v2539
        %v2545 = vadd.f32 %v2509, %v2539
        %v2546 = vadd.f32 %v2510, %v2539
        %v2547 = vadd.f32 %v2511, %v2539
        %v2548 = vadd.f32 %v2512, %v2539
        %v2549 = vadd.f32 %v2513, %v2539
        %v2550 = vadd.f32 %v2514, %v2539
        %v2551 = vadd.f32 %v2515, %v2539
        %v2552 = vadd.f32 %v2516, %v2539
        %v2553 = vadd.f32 %v2517, %v2539
        %v2554 = vadd.f32 %v2518, %v2539
        %v2555 = vadd.f32 %v2519, %v2539
        %v2556 = vadd.f32 %v2520, %v2539
        %v2557 = vadd.f32 %v2521, %v2539
        %v2558 = vadd.f32 %v2522, %v2539
        %v2559 = vadd.f32 %v2523, %v2539
        %v2560 = vadd.f32 %v2524, %v2539
        %v2561 = vadd.f32 %v2525, %v2539
        %v2562 = vadd.f32 %v2526, %v2539
        %v2563 = vadd.f32 %v2527, %v2539
        %v2564 = vadd.f32 %v2528, %v2539
        %v2565 = vadd.f32 %v2529, %v2539
        %v2566 = vadd.f32 %v2530, %v2539
        %v2567 = vadd.f32 %v2531, %v2539
        %v2568 = vadd.f32 %v2532, %v2539
        %v2569 = vadd.f32 %v2533, %v2539
        %v2570 = vadd.f32 %v2534, %v2539
        %v2571 = vadd.f32 %v2535, %v2539
        %2572 = vst.msk [vmem:[%s519 + $0x8] sm:$0xff] %vm330, %v2540
        %2573 = vst.msk [vmem:[%s519 + $0x10] sm:$0xff] %vm330, %v2541
        %2574 = vst.msk [vmem:[%s519 + $0x28] sm:$0xff] %vm330, %v2542
        %2575 = vst.msk [vmem:[%s519 + $0x30] sm:$0xff] %vm330, %v2543
        %2576 = vst.msk [vmem:[%s519 + $0x48] sm:$0xff] %vm330, %v2544
        %2577 = vst.msk [vmem:[%s519 + $0x50] sm:$0xff] %vm330, %v2545
        %2578 = vst.msk [vmem:[%s519 + $0x68] sm:$0xff] %vm330, %v2546
        %2579 = vst.msk [vmem:[%s519 + $0x70] sm:$0xff] %vm330, %v2547
        %2580 = vst.msk [vmem:[%s519 + $0x88] sm:$0xff] %vm330, %v2548
        %2581 = vst.msk [vmem:[%s519 + $0x90] sm:$0xff] %vm330, %v2549
        %2582 = vst.msk [vmem:[%s519 + $0xa8] sm:$0xff] %vm330, %v2550
        %2583 = vst.msk [vmem:[%s519 + $0xb0] sm:$0xff] %vm330, %v2551
        %2584 = vst.msk [vmem:[%s519 + $0xc8] sm:$0xff] %vm330, %v2552
        %2585 = vst.msk [vmem:[%s519 + $0xd0] sm:$0xff] %vm330, %v2553
        %2586 = vst.msk [vmem:[%s519 + $0xe8] sm:$0xff] %vm330, %v2554
        %2587 = vst.msk [vmem:[%s519 + $0xf0] sm:$0xff] %vm330, %v2555
        %2588 = vst.msk [vmem:[%s519 + $0x108] sm:$0xff] %vm330, %v2556
        %2589 = vst.msk [vmem:[%s519 + $0x110] sm:$0xff] %vm330, %v2557
        %2590 = vst.msk [vmem:[%s519 + $0x128] sm:$0xff] %vm330, %v2558
        %2591 = vst.msk [vmem:[%s519 + $0x130] sm:$0xff] %vm330, %v2559
        %2592 = vst.msk [vmem:[%s519 + $0x148] sm:$0xff] %vm330, %v2560
        %2593 = vst.msk [vmem:[%s519 + $0x150] sm:$0xff] %vm330, %v2561
        %2594 = vst.msk [vmem:[%s519 + $0x168] sm:$0xff] %vm330, %v2562
        %2595 = vst.msk [vmem:[%s519 + $0x170] sm:$0xff] %vm330, %v2563
        %2596 = vst.msk [vmem:[%s519 + $0x188] sm:$0xff] %vm330, %v2564
        %2597 = vst.msk [vmem:[%s519 + $0x190] sm:$0xff] %vm330, %v2565
        %2598 = vst.msk [vmem:[%s519 + $0x1a8] sm:$0xff] %vm330, %v2566
        %2599 = vst.msk [vmem:[%s519 + $0x1b0] sm:$0xff] %vm330, %v2567
        %2600 = vst.msk [vmem:[%s519 + $0x1c8] sm:$0xff] %vm330, %v2568
        %2601 = vst.msk [vmem:[%s519 + $0x1d0] sm:$0xff] %vm330, %v2569
        %2602 = vst.msk [vmem:[%s519 + $0x1e8] sm:$0xff] %vm330, %v2570
        %2603 = vst.msk [vmem:[%s519 + $0x1f0] sm:$0xff] %vm330, %v2571
        %v2604 = vld [vmem:[#allocation2 + $0x7] sm:$0xff]
        %v2605 = vld [vmem:[#allocation2 + $0xf] sm:$0xff]
        %v2606 = vld [vmem:[#allocation2 + $0x27] sm:$0xff]
        %v2607 = vld [vmem:[#allocation2 + $0x2f] sm:$0xff]
        %v2608 = vld [vmem:[#allocation2 + $0x47] sm:$0xff]
        %v2609 = vld [vmem:[#allocation2 + $0x4f] sm:$0xff]
        %v2610 = vld [vmem:[#allocation2 + $0x67] sm:$0xff]
        %v2611 = vld [vmem:[#allocation2 + $0x6f] sm:$0xff]
        %v2612 = vld [vmem:[#allocation2 + $0x87] sm:$0xff]
        %v2613 = vld [vmem:[#allocation2 + $0x8f] sm:$0xff]
        %v2614 = vld [vmem:[#allocation2 + $0xa7] sm:$0xff]
        %v2615 = vld [vmem:[#allocation2 + $0xaf] sm:$0xff]
        %v2616 = vld [vmem:[#allocation2 + $0xc7] sm:$0xff]
        %v2617 = vld [vmem:[#allocation2 + $0xcf] sm:$0xff]
        %v2618 = vld [vmem:[#allocation2 + $0xe7] sm:$0xff]
        %v2619 = vld [vmem:[#allocation2 + $0xef] sm:$0xff]
        %v2620 = vld [vmem:[#allocation2 + $0x107] sm:$0xff]
        %v2621 = vld [vmem:[#allocation2 + $0x10f] sm:$0xff]
        %v2622 = vld [vmem:[#allocation2 + $0x127] sm:$0xff]
        %v2623 = vld [vmem:[#allocation2 + $0x12f] sm:$0xff]
        %v2624 = vld [vmem:[#allocation2 + $0x147] sm:$0xff]
        %v2625 = vld [vmem:[#allocation2 + $0x14f] sm:$0xff]
        %v2626 = vld [vmem:[#allocation2 + $0x167] sm:$0xff]
        %v2627 = vld [vmem:[#allocation2 + $0x16f] sm:$0xff]
        %v2628 = vld [vmem:[#allocation2 + $0x187] sm:$0xff]
        %v2629 = vld [vmem:[#allocation2 + $0x18f] sm:$0xff]
        %v2630 = vld [vmem:[#allocation2 + $0x1a7] sm:$0xff]
        %v2631 = vld [vmem:[#allocation2 + $0x1af] sm:$0xff]
        %v2632 = vld [vmem:[#allocation2 + $0x1c7] sm:$0xff]
        %v2633 = vld [vmem:[#allocation2 + $0x1cf] sm:$0xff]
        %v2634 = vld [vmem:[#allocation2 + $0x1e7] sm:$0xff]
        %v2635 = vld [vmem:[#allocation2 + $0x1ef] sm:$0xff]
        %v2636 = vld [vmem:[#allocation2 + $0x8] sm:$0xff]
        %v2637 = vld [vmem:[#allocation2 + $0x10] sm:$0xff]
        %v2638 = vld [vmem:[#allocation2 + $0x28] sm:$0xff]
        %v2639 = vld [vmem:[#allocation2 + $0x30] sm:$0xff]
        %v2640 = vld [vmem:[#allocation2 + $0x48] sm:$0xff]
        %v2641 = vld [vmem:[#allocation2 + $0x50] sm:$0xff]
        %v2642 = vld [vmem:[#allocation2 + $0x68] sm:$0xff]
        %v2643 = vld [vmem:[#allocation2 + $0x70] sm:$0xff]
        %v2644 = vld [vmem:[#allocation2 + $0x88] sm:$0xff]
        %v2645 = vld [vmem:[#allocation2 + $0x90] sm:$0xff]
        %v2646 = vld [vmem:[#allocation2 + $0xa8] sm:$0xff]
        %v2647 = vld [vmem:[#allocation2 + $0xb0] sm:$0xff]
        %v2648 = vld [vmem:[#allocation2 + $0xc8] sm:$0xff]
        %v2649 = vld [vmem:[#allocation2 + $0xd0] sm:$0xff]
        %v2650 = vld [vmem:[#allocation2 + $0xe8] sm:$0xff]
        %v2651 = vld [vmem:[#allocation2 + $0xf0] sm:$0xff]
        %v2652 = vld [vmem:[#allocation2 + $0x108] sm:$0xff]
        %v2653 = vld [vmem:[#allocation2 + $0x110] sm:$0xff]
        %v2654 = vld [vmem:[#allocation2 + $0x128] sm:$0xff]
        %v2655 = vld [vmem:[#allocation2 + $0x130] sm:$0xff]
        %v2656 = vld [vmem:[#allocation2 + $0x148] sm:$0xff]
        %v2657 = vld [vmem:[#allocation2 + $0x150] sm:$0xff]
        %v2658 = vld [vmem:[#allocation2 + $0x168] sm:$0xff]
        %v2659 = vld [vmem:[#allocation2 + $0x170] sm:$0xff]
        %v2660 = vld [vmem:[#allocation2 + $0x188] sm:$0xff]
        %v2661 = vld [vmem:[#allocation2 + $0x190] sm:$0xff]
        %v2662 = vld [vmem:[#allocation2 + $0x1a8] sm:$0xff]
        %v2663 = vld [vmem:[#allocation2 + $0x1b0] sm:$0xff]
        %v2664 = vld [vmem:[#allocation2 + $0x1c8] sm:$0xff]
        %v2665 = vld [vmem:[#allocation2 + $0x1d0] sm:$0xff]
        %v2666 = vld [vmem:[#allocation2 + $0x1e8] sm:$0xff]
        %v2667 = vld [vmem:[#allocation2 + $0x1f0] sm:$0xff]
        %v2668 = vld [vmem:[#allocation2 + $0x9] sm:$0xff]
        %v2669 = vld [vmem:[#allocation2 + $0x11] sm:$0xff]
        %v2670 = vld [vmem:[#allocation2 + $0x29] sm:$0xff]
        %v2671 = vld [vmem:[#allocation2 + $0x31] sm:$0xff]
        %v2672 = vld [vmem:[#allocation2 + $0x49] sm:$0xff]
        %v2673 = vld [vmem:[#allocation2 + $0x51] sm:$0xff]
        %v2674 = vld [vmem:[#allocation2 + $0x69] sm:$0xff]
        %v2675 = vld [vmem:[#allocation2 + $0x71] sm:$0xff]
        %v2676 = vld [vmem:[#allocation2 + $0x89] sm:$0xff]
        %v2677 = vld [vmem:[#allocation2 + $0x91] sm:$0xff]
        %v2678 = vld [vmem:[#allocation2 + $0xa9] sm:$0xff]
        %v2679 = vld [vmem:[#allocation2 + $0xb1] sm:$0xff]
        %v2680 = vld [vmem:[#allocation2 + $0xc9] sm:$0xff]
        %v2681 = vld [vmem:[#allocation2 + $0xd1] sm:$0xff]
        %v2682 = vld [vmem:[#allocation2 + $0xe9] sm:$0xff]
        %v2683 = vld [vmem:[#allocation2 + $0xf1] sm:$0xff]
        %v2684 = vld [vmem:[#allocation2 + $0x109] sm:$0xff]
        %v2685 = vld [vmem:[#allocation2 + $0x111] sm:$0xff]
        %v2686 = vld [vmem:[#allocation2 + $0x129] sm:$0xff]
        %v2687 = vld [vmem:[#allocation2 + $0x131] sm:$0xff]
        %v2688 = vld [vmem:[#allocation2 + $0x149] sm:$0xff]
        %v2689 = vld [vmem:[#allocation2 + $0x151] sm:$0xff]
        %v2690 = vld [vmem:[#allocation2 + $0x169] sm:$0xff]
        %v2691 = vld [vmem:[#allocation2 + $0x171] sm:$0xff]
        %v2692 = vld [vmem:[#allocation2 + $0x189] sm:$0xff]
        %v2693 = vld [vmem:[#allocation2 + $0x191] sm:$0xff]
        %v2694 = vld [vmem:[#allocation2 + $0x1a9] sm:$0xff]
        %v2695 = vld [vmem:[#allocation2 + $0x1b1] sm:$0xff]
        %v2696 = vld [vmem:[#allocation2 + $0x1c9] sm:$0xff]
        %v2697 = vld [vmem:[#allocation2 + $0x1d1] sm:$0xff]
        %v2698 = vld [vmem:[#allocation2 + $0x1e9] sm:$0xff]
        %v2699 = vld [vmem:[#allocation2 + $0x1f1] sm:$0xff]
        %v2700 = vld [vmem:[%s519 + $0x7] sm:$0xff]
        %v2701 = vld [vmem:[%s519 + $0xf] sm:$0xff]
        %v2702 = vld [vmem:[%s519 + $0x27] sm:$0xff]
        %v2703 = vld [vmem:[%s519 + $0x2f] sm:$0xff]
        %v2704 = vld [vmem:[%s519 + $0x47] sm:$0xff]
        %v2705 = vld [vmem:[%s519 + $0x4f] sm:$0xff]
        %v2706 = vld [vmem:[%s519 + $0x67] sm:$0xff]
        %v2707 = vld [vmem:[%s519 + $0x6f] sm:$0xff]
        %v2708 = vld [vmem:[%s519 + $0x87] sm:$0xff]
        %v2709 = vld [vmem:[%s519 + $0x8f] sm:$0xff]
        %v2710 = vld [vmem:[%s519 + $0xa7] sm:$0xff]
        %v2711 = vld [vmem:[%s519 + $0xaf] sm:$0xff]
        %v2712 = vld [vmem:[%s519 + $0xc7] sm:$0xff]
        %v2713 = vld [vmem:[%s519 + $0xcf] sm:$0xff]
        %v2714 = vld [vmem:[%s519 + $0xe7] sm:$0xff]
        %v2715 = vld [vmem:[%s519 + $0xef] sm:$0xff]
        %v2716 = vld [vmem:[%s519 + $0x107] sm:$0xff]
        %v2717 = vld [vmem:[%s519 + $0x10f] sm:$0xff]
        %v2718 = vld [vmem:[%s519 + $0x127] sm:$0xff]
        %v2719 = vld [vmem:[%s519 + $0x12f] sm:$0xff]
        %v2720 = vld [vmem:[%s519 + $0x147] sm:$0xff]
        %v2721 = vld [vmem:[%s519 + $0x14f] sm:$0xff]
        %v2722 = vld [vmem:[%s519 + $0x167] sm:$0xff]
        %v2723 = vld [vmem:[%s519 + $0x16f] sm:$0xff]
        %v2724 = vld [vmem:[%s519 + $0x187] sm:$0xff]
        %v2725 = vld [vmem:[%s519 + $0x18f] sm:$0xff]
        %v2726 = vld [vmem:[%s519 + $0x1a7] sm:$0xff]
        %v2727 = vld [vmem:[%s519 + $0x1af] sm:$0xff]
        %v2728 = vld [vmem:[%s519 + $0x1c7] sm:$0xff]
        %v2729 = vld [vmem:[%s519 + $0x1cf] sm:$0xff]
        %v2730 = vld [vmem:[%s519 + $0x1e7] sm:$0xff]
        %v2731 = vld [vmem:[%s519 + $0x1ef] sm:$0xff]
        %v2732 = vld [vmem:[%s519 + $0x8] sm:$0xff]
        %v2733 = vld [vmem:[%s519 + $0x10] sm:$0xff]
        %v2734 = vld [vmem:[%s519 + $0x28] sm:$0xff]
        %v2735 = vld [vmem:[%s519 + $0x30] sm:$0xff]
        %v2736 = vld [vmem:[%s519 + $0x48] sm:$0xff]
        %v2737 = vld [vmem:[%s519 + $0x50] sm:$0xff]
        %v2738 = vld [vmem:[%s519 + $0x68] sm:$0xff]
        %v2739 = vld [vmem:[%s519 + $0x70] sm:$0xff]
        %v2740 = vld [vmem:[%s519 + $0x88] sm:$0xff]
        %v2741 = vld [vmem:[%s519 + $0x90] sm:$0xff]
        %v2742 = vld [vmem:[%s519 + $0xa8] sm:$0xff]
        %v2743 = vld [vmem:[%s519 + $0xb0] sm:$0xff]
        %v2744 = vld [vmem:[%s519 + $0xc8] sm:$0xff]
        %v2745 = vld [vmem:[%s519 + $0xd0] sm:$0xff]
        %v2746 = vld [vmem:[%s519 + $0xe8] sm:$0xff]
        %v2747 = vld [vmem:[%s519 + $0xf0] sm:$0xff]
        %v2748 = vld [vmem:[%s519 + $0x108] sm:$0xff]
        %v2749 = vld [vmem:[%s519 + $0x110] sm:$0xff]
        %v2750 = vld [vmem:[%s519 + $0x128] sm:$0xff]
        %v2751 = vld [vmem:[%s519 + $0x130] sm:$0xff]
        %v2752 = vld [vmem:[%s519 + $0x148] sm:$0xff]
        %v2753 = vld [vmem:[%s519 + $0x150] sm:$0xff]
        %v2754 = vld [vmem:[%s519 + $0x168] sm:$0xff]
        %v2755 = vld [vmem:[%s519 + $0x170] sm:$0xff]
        %v2756 = vld [vmem:[%s519 + $0x188] sm:$0xff]
        %v2757 = vld [vmem:[%s519 + $0x190] sm:$0xff]
        %v2758 = vld [vmem:[%s519 + $0x1a8] sm:$0xff]
        %v2759 = vld [vmem:[%s519 + $0x1b0] sm:$0xff]
        %v2760 = vld [vmem:[%s519 + $0x1c8] sm:$0xff]
        %v2761 = vld [vmem:[%s519 + $0x1d0] sm:$0xff]
        %v2762 = vld [vmem:[%s519 + $0x1e8] sm:$0xff]
        %v2763 = vld [vmem:[%s519 + $0x1f0] sm:$0xff]
        %v2764 = vld [vmem:[%s519 + $0x9] sm:$0xff]
        %v2765 = vld [vmem:[%s519 + $0x11] sm:$0xff]
        %v2766 = vld [vmem:[%s519 + $0x29] sm:$0xff]
        %v2767 = vld [vmem:[%s519 + $0x31] sm:$0xff]
        %v2768 = vld [vmem:[%s519 + $0x49] sm:$0xff]
        %v2769 = vld [vmem:[%s519 + $0x51] sm:$0xff]
        %v2770 = vld [vmem:[%s519 + $0x69] sm:$0xff]
        %v2771 = vld [vmem:[%s519 + $0x71] sm:$0xff]
        %v2772 = vld [vmem:[%s519 + $0x89] sm:$0xff]
        %v2773 = vld [vmem:[%s519 + $0x91] sm:$0xff]
        %v2774 = vld [vmem:[%s519 + $0xa9] sm:$0xff]
        %v2775 = vld [vmem:[%s519 + $0xb1] sm:$0xff]
        %v2776 = vld [vmem:[%s519 + $0xc9] sm:$0xff]
        %v2777 = vld [vmem:[%s519 + $0xd1] sm:$0xff]
        %v2778 = vld [vmem:[%s519 + $0xe9] sm:$0xff]
        %v2779 = vld [vmem:[%s519 + $0xf1] sm:$0xff]
        %v2780 = vld [vmem:[%s519 + $0x109] sm:$0xff]
        %v2781 = vld [vmem:[%s519 + $0x111] sm:$0xff]
        %v2782 = vld [vmem:[%s519 + $0x129] sm:$0xff]
        %v2783 = vld [vmem:[%s519 + $0x131] sm:$0xff]
        %v2784 = vld [vmem:[%s519 + $0x149] sm:$0xff]
        %v2785 = vld [vmem:[%s519 + $0x151] sm:$0xff]
        %v2786 = vld [vmem:[%s519 + $0x169] sm:$0xff]
        %v2787 = vld [vmem:[%s519 + $0x171] sm:$0xff]
        %v2788 = vld [vmem:[%s519 + $0x189] sm:$0xff]
        %v2789 = vld [vmem:[%s519 + $0x191] sm:$0xff]
        %v2790 = vld [vmem:[%s519 + $0x1a9] sm:$0xff]
        %v2791 = vld [vmem:[%s519 + $0x1b1] sm:$0xff]
        %v2792 = vld [vmem:[%s519 + $0x1c9] sm:$0xff]
        %v2793 = vld [vmem:[%s519 + $0x1d1] sm:$0xff]
        %v2794 = vld [vmem:[%s519 + $0x1e9] sm:$0xff]
        %v2795 = vld [vmem:[%s519 + $0x1f1] sm:$0xff]
        %v2796 = vld [vmem:[%s744 + $0x7] sm:$0xff]
        %v2797 = vld [vmem:[%s744 + $0xf] sm:$0xff]
        %v2798 = vld [vmem:[%s744 + $0x27] sm:$0xff]
        %v2799 = vld [vmem:[%s744 + $0x2f] sm:$0xff]
        %v2800 = vld [vmem:[%s744 + $0x47] sm:$0xff]
        %v2801 = vld [vmem:[%s744 + $0x4f] sm:$0xff]
        %v2802 = vld [vmem:[%s744 + $0x67] sm:$0xff]
        %v2803 = vld [vmem:[%s744 + $0x6f] sm:$0xff]
        %v2804 = vld [vmem:[%s744 + $0x87] sm:$0xff]
        %v2805 = vld [vmem:[%s744 + $0x8f] sm:$0xff]
        %v2806 = vld [vmem:[%s744 + $0xa7] sm:$0xff]
        %v2807 = vld [vmem:[%s744 + $0xaf] sm:$0xff]
        %v2808 = vld [vmem:[%s744 + $0xc7] sm:$0xff]
        %v2809 = vld [vmem:[%s744 + $0xcf] sm:$0xff]
        %v2810 = vld [vmem:[%s744 + $0xe7] sm:$0xff]
        %v2811 = vld [vmem:[%s744 + $0xef] sm:$0xff]
        %v2812 = vld [vmem:[%s744 + $0x107] sm:$0xff]
        %v2813 = vld [vmem:[%s744 + $0x10f] sm:$0xff]
        %v2814 = vld [vmem:[%s744 + $0x127] sm:$0xff]
        %v2815 = vld [vmem:[%s744 + $0x12f] sm:$0xff]
        %v2816 = vld [vmem:[%s744 + $0x147] sm:$0xff]
        %v2817 = vld [vmem:[%s744 + $0x14f] sm:$0xff]
        %v2818 = vld [vmem:[%s744 + $0x167] sm:$0xff]
        %v2819 = vld [vmem:[%s744 + $0x16f] sm:$0xff]
        %v2820 = vld [vmem:[%s744 + $0x187] sm:$0xff]
        %v2821 = vld [vmem:[%s744 + $0x18f] sm:$0xff]
        %v2822 = vld [vmem:[%s744 + $0x1a7] sm:$0xff]
        %v2823 = vld [vmem:[%s744 + $0x1af] sm:$0xff]
        %v2824 = vld [vmem:[%s744 + $0x1c7] sm:$0xff]
        %v2825 = vld [vmem:[%s744 + $0x1cf] sm:$0xff]
        %v2826 = vld [vmem:[%s744 + $0x1e7] sm:$0xff]
        %v2827 = vld [vmem:[%s744 + $0x1ef] sm:$0xff]
        %v2828 = vld [vmem:[%s744 + $0x8] sm:$0xff]
        %v2829 = vld [vmem:[%s744 + $0x10] sm:$0xff]
        %v2830 = vld [vmem:[%s744 + $0x28] sm:$0xff]
        %v2831 = vld [vmem:[%s744 + $0x30] sm:$0xff]
        %v2832 = vld [vmem:[%s744 + $0x48] sm:$0xff]
        %v2833 = vld [vmem:[%s744 + $0x50] sm:$0xff]
        %v2834 = vld [vmem:[%s744 + $0x68] sm:$0xff]
        %v2835 = vld [vmem:[%s744 + $0x70] sm:$0xff]
        %v2836 = vld [vmem:[%s744 + $0x88] sm:$0xff]
        %v2837 = vld [vmem:[%s744 + $0x90] sm:$0xff]
        %v2838 = vld [vmem:[%s744 + $0xa8] sm:$0xff]
        %v2839 = vld [vmem:[%s744 + $0xb0] sm:$0xff]
        %v2840 = vld [vmem:[%s744 + $0xc8] sm:$0xff]
        %v2841 = vld [vmem:[%s744 + $0xd0] sm:$0xff]
        %v2842 = vld [vmem:[%s744 + $0xe8] sm:$0xff]
        %v2843 = vld [vmem:[%s744 + $0xf0] sm:$0xff]
        %v2844 = vld [vmem:[%s744 + $0x108] sm:$0xff]
        %v2845 = vld [vmem:[%s744 + $0x110] sm:$0xff]
        %v2846 = vld [vmem:[%s744 + $0x128] sm:$0xff]
        %v2847 = vld [vmem:[%s744 + $0x130] sm:$0xff]
        %v2848 = vld [vmem:[%s744 + $0x148] sm:$0xff]
        %v2849 = vld [vmem:[%s744 + $0x150] sm:$0xff]
        %v2850 = vld [vmem:[%s744 + $0x168] sm:$0xff]
        %v2851 = vld [vmem:[%s744 + $0x170] sm:$0xff]
        %v2852 = vld [vmem:[%s744 + $0x188] sm:$0xff]
        %v2853 = vld [vmem:[%s744 + $0x190] sm:$0xff]
        %v2854 = vld [vmem:[%s744 + $0x1a8] sm:$0xff]
        %v2855 = vld [vmem:[%s744 + $0x1b0] sm:$0xff]
        %v2856 = vld [vmem:[%s744 + $0x1c8] sm:$0xff]
        %v2857 = vld [vmem:[%s744 + $0x1d0] sm:$0xff]
        %v2858 = vld [vmem:[%s744 + $0x1e8] sm:$0xff]
        %v2859 = vld [vmem:[%s744 + $0x1f0] sm:$0xff]
        %v2860 = vld [vmem:[%s744 + $0x9] sm:$0xff]
        %v2861 = vld [vmem:[%s744 + $0x11] sm:$0xff]
        %v2862 = vld [vmem:[%s744 + $0x29] sm:$0xff]
        %v2863 = vld [vmem:[%s744 + $0x31] sm:$0xff]
        %v2864 = vld [vmem:[%s744 + $0x49] sm:$0xff]
        %v2865 = vld [vmem:[%s744 + $0x51] sm:$0xff]
        %v2866 = vld [vmem:[%s744 + $0x69] sm:$0xff]
        %v2867 = vld [vmem:[%s744 + $0x71] sm:$0xff]
        %v2868 = vld [vmem:[%s744 + $0x89] sm:$0xff]
        %v2869 = vld [vmem:[%s744 + $0x91] sm:$0xff]
        %v2870 = vld [vmem:[%s744 + $0xa9] sm:$0xff]
        %v2871 = vld [vmem:[%s744 + $0xb1] sm:$0xff]
        %v2872 = vld [vmem:[%s744 + $0xc9] sm:$0xff]
        %v2873 = vld [vmem:[%s744 + $0xd1] sm:$0xff]
        %v2874 = vld [vmem:[%s744 + $0xe9] sm:$0xff]
        %v2875 = vld [vmem:[%s744 + $0xf1] sm:$0xff]
        %v2876 = vld [vmem:[%s744 + $0x109] sm:$0xff]
        %v2877 = vld [vmem:[%s744 + $0x111] sm:$0xff]
        %v2878 = vld [vmem:[%s744 + $0x129] sm:$0xff]
        %v2879 = vld [vmem:[%s744 + $0x131] sm:$0xff]
        %v2880 = vld [vmem:[%s744 + $0x149] sm:$0xff]
        %v2881 = vld [vmem:[%s744 + $0x151] sm:$0xff]
        %v2882 = vld [vmem:[%s744 + $0x169] sm:$0xff]
        %v2883 = vld [vmem:[%s744 + $0x171] sm:$0xff]
        %v2884 = vld [vmem:[%s744 + $0x189] sm:$0xff]
        %v2885 = vld [vmem:[%s744 + $0x191] sm:$0xff]
        %v2886 = vld [vmem:[%s744 + $0x1a9] sm:$0xff]
        %v2887 = vld [vmem:[%s744 + $0x1b1] sm:$0xff]
        %v2888 = vld [vmem:[%s744 + $0x1c9] sm:$0xff]
        %v2889 = vld [vmem:[%s744 + $0x1d1] sm:$0xff]
        %v2890 = vld [vmem:[%s744 + $0x1e9] sm:$0xff]
        %v2891 = vld [vmem:[%s744 + $0x1f1] sm:$0xff]
        %2924 = vrot.lane.b32.xlu0 %v2636, 8
        %v2925 = vpop.permute.xlu0 %2924
        %2926 = vrot.lane.b32.xlu0 %v2637, 8
        %v2927 = vpop.permute.xlu0 %2926
        %2928 = vrot.lane.b32.xlu0 %v2638, 8
        %v2929 = vpop.permute.xlu0 %2928
        %2930 = vrot.lane.b32.xlu0 %v2639, 8
        %v2931 = vpop.permute.xlu0 %2930
        %2932 = vrot.lane.b32.xlu0 %v2640, 8
        %v2933 = vpop.permute.xlu0 %2932
        %2934 = vrot.lane.b32.xlu0 %v2641, 8
        %v2935 = vpop.permute.xlu0 %2934
        %2936 = vrot.lane.b32.xlu0 %v2642, 8
        %v2937 = vpop.permute.xlu0 %2936
        %2938 = vrot.lane.b32.xlu0 %v2643, 8
        %v2939 = vpop.permute.xlu0 %2938
        %2940 = vrot.lane.b32.xlu0 %v2644, 8
        %v2941 = vpop.permute.xlu0 %2940
        %2942 = vrot.lane.b32.xlu0 %v2645, 8
        %v2943 = vpop.permute.xlu0 %2942
        %2944 = vrot.lane.b32.xlu0 %v2646, 8
        %v2945 = vpop.permute.xlu0 %2944
        %2946 = vrot.lane.b32.xlu0 %v2647, 8
        %v2947 = vpop.permute.xlu0 %2946
        %2948 = vrot.lane.b32.xlu0 %v2648, 8
        %v2949 = vpop.permute.xlu0 %2948
        %2950 = vrot.lane.b32.xlu0 %v2649, 8
        %v2951 = vpop.permute.xlu0 %2950
        %2952 = vrot.lane.b32.xlu0 %v2650, 8
        %v2953 = vpop.permute.xlu0 %2952
        %2954 = vrot.lane.b32.xlu0 %v2651, 8
        %v2955 = vpop.permute.xlu0 %2954
        %2956 = vrot.lane.b32.xlu0 %v2652, 8
        %v2957 = vpop.permute.xlu0 %2956
        %2958 = vrot.lane.b32.xlu0 %v2653, 8
        %v2959 = vpop.permute.xlu0 %2958
        %2960 = vrot.lane.b32.xlu0 %v2654, 8
        %v2961 = vpop.permute.xlu0 %2960
        %2962 = vrot.lane.b32.xlu0 %v2655, 8
        %v2963 = vpop.permute.xlu0 %2962
        %2964 = vrot.lane.b32.xlu0 %v2656, 8
        %v2965 = vpop.permute.xlu0 %2964
        %2966 = vrot.lane.b32.xlu0 %v2657, 8
        %v2967 = vpop.permute.xlu0 %2966
        %2968 = vrot.lane.b32.xlu0 %v2658, 8
        %v2969 = vpop.permute.xlu0 %2968
        %2970 = vrot.lane.b32.xlu0 %v2659, 8
        %v2971 = vpop.permute.xlu0 %2970
        %2972 = vrot.lane.b32.xlu0 %v2660, 8
        %v2973 = vpop.permute.xlu0 %2972
        %2974 = vrot.lane.b32.xlu0 %v2661, 8
        %v2975 = vpop.permute.xlu0 %2974
        %2976 = vrot.lane.b32.xlu0 %v2662, 8
        %v2977 = vpop.permute.xlu0 %2976
        %2978 = vrot.lane.b32.xlu0 %v2663, 8
        %v2979 = vpop.permute.xlu0 %2978
        %2980 = vrot.lane.b32.xlu0 %v2664, 8
        %v2981 = vpop.permute.xlu0 %2980
        %2982 = vrot.lane.b32.xlu0 %v2665, 8
        %v2983 = vpop.permute.xlu0 %2982
        %2984 = vrot.lane.b32.xlu0 %v2666, 8
        %v2985 = vpop.permute.xlu0 %2984
        %2986 = vrot.lane.b32.xlu0 %v2667, 8
        %v2987 = vpop.permute.xlu0 %2986
        %3052 = vrot.lane.b32.xlu0 %v2668, 16
        %v3053 = vpop.permute.xlu0 %3052
        %3054 = vrot.lane.b32.xlu0 %v2669, 16
        %v3055 = vpop.permute.xlu0 %3054
        %3056 = vrot.lane.b32.xlu0 %v2670, 16
        %v3057 = vpop.permute.xlu0 %3056
        %3058 = vrot.lane.b32.xlu0 %v2671, 16
        %v3059 = vpop.permute.xlu0 %3058
        %3060 = vrot.lane.b32.xlu0 %v2672, 16
        %v3061 = vpop.permute.xlu0 %3060
        %3062 = vrot.lane.b32.xlu0 %v2673, 16
        %v3063 = vpop.permute.xlu0 %3062
        %3064 = vrot.lane.b32.xlu0 %v2674, 16
        %v3065 = vpop.permute.xlu0 %3064
        %3066 = vrot.lane.b32.xlu0 %v2675, 16
        %v3067 = vpop.permute.xlu0 %3066
        %3068 = vrot.lane.b32.xlu0 %v2676, 16
        %v3069 = vpop.permute.xlu0 %3068
        %3070 = vrot.lane.b32.xlu0 %v2677, 16
        %v3071 = vpop.permute.xlu0 %3070
        %3072 = vrot.lane.b32.xlu0 %v2678, 16
        %v3073 = vpop.permute.xlu0 %3072
        %3074 = vrot.lane.b32.xlu0 %v2679, 16
        %v3075 = vpop.permute.xlu0 %3074
        %3076 = vrot.lane.b32.xlu0 %v2680, 16
        %v3077 = vpop.permute.xlu0 %3076
        %3078 = vrot.lane.b32.xlu0 %v2681, 16
        %v3079 = vpop.permute.xlu0 %3078
        %3080 = vrot.lane.b32.xlu0 %v2682, 16
        %v3081 = vpop.permute.xlu0 %3080
        %3082 = vrot.lane.b32.xlu0 %v2683, 16
        %v3083 = vpop.permute.xlu0 %3082
        %3084 = vrot.lane.b32.xlu0 %v2684, 16
        %v3085 = vpop.permute.xlu0 %3084
        %3086 = vrot.lane.b32.xlu0 %v2685, 16
        %v3087 = vpop.permute.xlu0 %3086
        %3088 = vrot.lane.b32.xlu0 %v2686, 16
        %v3089 = vpop.permute.xlu0 %3088
        %3090 = vrot.lane.b32.xlu0 %v2687, 16
        %v3091 = vpop.permute.xlu0 %3090
        %3092 = vrot.lane.b32.xlu0 %v2688, 16
        %v3093 = vpop.permute.xlu0 %3092
        %3094 = vrot.lane.b32.xlu0 %v2689, 16
        %v3095 = vpop.permute.xlu0 %3094
        %3096 = vrot.lane.b32.xlu0 %v2690, 16
        %v3097 = vpop.permute.xlu0 %3096
        %3098 = vrot.lane.b32.xlu0 %v2691, 16
        %v3099 = vpop.permute.xlu0 %3098
        %3100 = vrot.lane.b32.xlu0 %v2692, 16
        %v3101 = vpop.permute.xlu0 %3100
        %3102 = vrot.lane.b32.xlu0 %v2693, 16
        %v3103 = vpop.permute.xlu0 %3102
        %3104 = vrot.lane.b32.xlu0 %v2694, 16
        %v3105 = vpop.permute.xlu0 %3104
        %3106 = vrot.lane.b32.xlu0 %v2695, 16
        %v3107 = vpop.permute.xlu0 %3106
        %3108 = vrot.lane.b32.xlu0 %v2696, 16
        %v3109 = vpop.permute.xlu0 %3108
        %3110 = vrot.lane.b32.xlu0 %v2697, 16
        %v3111 = vpop.permute.xlu0 %3110
        %3112 = vrot.lane.b32.xlu0 %v2698, 16
        %v3113 = vpop.permute.xlu0 %3112
        %3114 = vrot.lane.b32.xlu0 %v2699, 16
        %v3115 = vpop.permute.xlu0 %3114
        %3180 = vrot.lane.b32.xlu0 %v2700, 24
        %v3181 = vpop.permute.xlu0 %3180
        %3182 = vrot.lane.b32.xlu0 %v2701, 24
        %v3183 = vpop.permute.xlu0 %3182
        %3184 = vrot.lane.b32.xlu0 %v2702, 24
        %v3185 = vpop.permute.xlu0 %3184
        %3186 = vrot.lane.b32.xlu0 %v2703, 24
        %v3187 = vpop.permute.xlu0 %3186
        %3188 = vrot.lane.b32.xlu0 %v2704, 24
        %v3189 = vpop.permute.xlu0 %3188
        %3190 = vrot.lane.b32.xlu0 %v2705, 24
        %v3191 = vpop.permute.xlu0 %3190
        %3192 = vrot.lane.b32.xlu0 %v2706, 24
        %v3193 = vpop.permute.xlu0 %3192
        %3194 = vrot.lane.b32.xlu0 %v2707, 24
        %v3195 = vpop.permute.xlu0 %3194
        %3196 = vrot.lane.b32.xlu0 %v2708, 24
        %v3197 = vpop.permute.xlu0 %3196
        %3198 = vrot.lane.b32.xlu0 %v2709, 24
        %v3199 = vpop.permute.xlu0 %3198
        %3200 = vrot.lane.b32.xlu0 %v2710, 24
        %v3201 = vpop.permute.xlu0 %3200
        %3202 = vrot.lane.b32.xlu0 %v2711, 24
        %v3203 = vpop.permute.xlu0 %3202
        %3204 = vrot.lane.b32.xlu0 %v2712, 24
        %v3205 = vpop.permute.xlu0 %3204
        %3206 = vrot.lane.b32.xlu0 %v2713, 24
        %v3207 = vpop.permute.xlu0 %3206
        %3208 = vrot.lane.b32.xlu0 %v2714, 24
        %v3209 = vpop.permute.xlu0 %3208
        %3210 = vrot.lane.b32.xlu0 %v2715, 24
        %v3211 = vpop.permute.xlu0 %3210
        %3212 = vrot.lane.b32.xlu0 %v2716, 24
        %v3213 = vpop.permute.xlu0 %3212
        %3214 = vrot.lane.b32.xlu0 %v2717, 24
        %v3215 = vpop.permute.xlu0 %3214
        %3216 = vrot.lane.b32.xlu0 %v2718, 24
        %v3217 = vpop.permute.xlu0 %3216
        %3218 = vrot.lane.b32.xlu0 %v2719, 24
        %v3219 = vpop.permute.xlu0 %3218
        %3220 = vrot.lane.b32.xlu0 %v2720, 24
        %v3221 = vpop.permute.xlu0 %3220
        %3222 = vrot.lane.b32.xlu0 %v2721, 24
        %v3223 = vpop.permute.xlu0 %3222
        %3224 = vrot.lane.b32.xlu0 %v2722, 24
        %v3225 = vpop.permute.xlu0 %3224
        %3226 = vrot.lane.b32.xlu0 %v2723, 24
        %v3227 = vpop.permute.xlu0 %3226
        %3228 = vrot.lane.b32.xlu0 %v2724, 24
        %v3229 = vpop.permute.xlu0 %3228
        %3230 = vrot.lane.b32.xlu0 %v2725, 24
        %v3231 = vpop.permute.xlu0 %3230
        %3232 = vrot.lane.b32.xlu0 %v2726, 24
        %v3233 = vpop.permute.xlu0 %3232
        %3234 = vrot.lane.b32.xlu0 %v2727, 24
        %v3235 = vpop.permute.xlu0 %3234
        %3236 = vrot.lane.b32.xlu0 %v2728, 24
        %v3237 = vpop.permute.xlu0 %3236
        %3238 = vrot.lane.b32.xlu0 %v2729, 24
        %v3239 = vpop.permute.xlu0 %3238
        %3240 = vrot.lane.b32.xlu0 %v2730, 24
        %v3241 = vpop.permute.xlu0 %3240
        %3242 = vrot.lane.b32.xlu0 %v2731, 24
        %v3243 = vpop.permute.xlu0 %3242
        %3308 = vrot.lane.b32.xlu0 %v2732, 32
        %v3309 = vpop.permute.xlu0 %3308
        %3310 = vrot.lane.b32.xlu0 %v2733, 32
        %v3311 = vpop.permute.xlu0 %3310
        %3312 = vrot.lane.b32.xlu0 %v2734, 32
        %v3313 = vpop.permute.xlu0 %3312
        %3314 = vrot.lane.b32.xlu0 %v2735, 32
        %v3315 = vpop.permute.xlu0 %3314
        %3316 = vrot.lane.b32.xlu0 %v2736, 32
        %v3317 = vpop.permute.xlu0 %3316
        %3318 = vrot.lane.b32.xlu0 %v2737, 32
        %v3319 = vpop.permute.xlu0 %3318
        %3320 = vrot.lane.b32.xlu0 %v2738, 32
        %v3321 = vpop.permute.xlu0 %3320
        %3322 = vrot.lane.b32.xlu0 %v2739, 32
        %v3323 = vpop.permute.xlu0 %3322
        %3324 = vrot.lane.b32.xlu0 %v2740, 32
        %v3325 = vpop.permute.xlu0 %3324
        %3326 = vrot.lane.b32.xlu0 %v2741, 32
        %v3327 = vpop.permute.xlu0 %3326
        %3328 = vrot.lane.b32.xlu0 %v2742, 32
        %v3329 = vpop.permute.xlu0 %3328
        %3330 = vrot.lane.b32.xlu0 %v2743, 32
        %v3331 = vpop.permute.xlu0 %3330
        %3332 = vrot.lane.b32.xlu0 %v2744, 32
        %v3333 = vpop.permute.xlu0 %3332
        %3334 = vrot.lane.b32.xlu0 %v2745, 32
        %v3335 = vpop.permute.xlu0 %3334
        %3336 = vrot.lane.b32.xlu0 %v2746, 32
        %v3337 = vpop.permute.xlu0 %3336
        %3338 = vrot.lane.b32.xlu0 %v2747, 32
        %v3339 = vpop.permute.xlu0 %3338
        %3340 = vrot.lane.b32.xlu0 %v2748, 32
        %v3341 = vpop.permute.xlu0 %3340
        %3342 = vrot.lane.b32.xlu0 %v2749, 32
        %v3343 = vpop.permute.xlu0 %3342
        %3344 = vrot.lane.b32.xlu0 %v2750, 32
        %v3345 = vpop.permute.xlu0 %3344
        %3346 = vrot.lane.b32.xlu0 %v2751, 32
        %v3347 = vpop.permute.xlu0 %3346
        %3348 = vrot.lane.b32.xlu0 %v2752, 32
        %v3349 = vpop.permute.xlu0 %3348
        %3350 = vrot.lane.b32.xlu0 %v2753, 32
        %v3351 = vpop.permute.xlu0 %3350
        %3352 = vrot.lane.b32.xlu0 %v2754, 32
        %v3353 = vpop.permute.xlu0 %3352
        %3354 = vrot.lane.b32.xlu0 %v2755, 32
        %v3355 = vpop.permute.xlu0 %3354
        %3356 = vrot.lane.b32.xlu0 %v2756, 32
        %v3357 = vpop.permute.xlu0 %3356
        %3358 = vrot.lane.b32.xlu0 %v2757, 32
        %v3359 = vpop.permute.xlu0 %3358
        %3360 = vrot.lane.b32.xlu0 %v2758, 32
        %v3361 = vpop.permute.xlu0 %3360
        %3362 = vrot.lane.b32.xlu0 %v2759, 32
        %v3363 = vpop.permute.xlu0 %3362
        %3364 = vrot.lane.b32.xlu0 %v2760, 32
        %v3365 = vpop.permute.xlu0 %3364
        %3366 = vrot.lane.b32.xlu0 %v2761, 32
        %v3367 = vpop.permute.xlu0 %3366
        %3368 = vrot.lane.b32.xlu0 %v2762, 32
        %v3369 = vpop.permute.xlu0 %3368
        %3370 = vrot.lane.b32.xlu0 %v2763, 32
        %v3371 = vpop.permute.xlu0 %3370
        %3436 = vrot.lane.b32.xlu0 %v2764, 40
        %v3437 = vpop.permute.xlu0 %3436
        %3438 = vrot.lane.b32.xlu0 %v2765, 40
        %v3439 = vpop.permute.xlu0 %3438
        %3440 = vrot.lane.b32.xlu0 %v2766, 40
        %v3441 = vpop.permute.xlu0 %3440
        %3442 = vrot.lane.b32.xlu0 %v2767, 40
        %v3443 = vpop.permute.xlu0 %3442
        %3444 = vrot.lane.b32.xlu0 %v2768, 40
        %v3445 = vpop.permute.xlu0 %3444
        %3446 = vrot.lane.b32.xlu0 %v2769, 40
        %v3447 = vpop.permute.xlu0 %3446
        %3448 = vrot.lane.b32.xlu0 %v2770, 40
        %v3449 = vpop.permute.xlu0 %3448
        %3450 = vrot.lane.b32.xlu0 %v2771, 40
        %v3451 = vpop.permute.xlu0 %3450
        %3452 = vrot.lane.b32.xlu0 %v2772, 40
        %v3453 = vpop.permute.xlu0 %3452
        %3454 = vrot.lane.b32.xlu0 %v2773, 40
        %v3455 = vpop.permute.xlu0 %3454
        %3456 = vrot.lane.b32.xlu0 %v2774, 40
        %v3457 = vpop.permute.xlu0 %3456
        %3458 = vrot.lane.b32.xlu0 %v2775, 40
        %v3459 = vpop.permute.xlu0 %3458
        %3460 = vrot.lane.b32.xlu0 %v2776, 40
        %v3461 = vpop.permute.xlu0 %3460
        %3462 = vrot.lane.b32.xlu0 %v2777, 40
        %v3463 = vpop.permute.xlu0 %3462
        %3464 = vrot.lane.b32.xlu0 %v2778, 40
        %v3465 = vpop.permute.xlu0 %3464
        %3466 = vrot.lane.b32.xlu0 %v2779, 40
        %v3467 = vpop.permute.xlu0 %3466
        %3468 = vrot.lane.b32.xlu0 %v2780, 40
        %v3469 = vpop.permute.xlu0 %3468
        %3470 = vrot.lane.b32.xlu0 %v2781, 40
        %v3471 = vpop.permute.xlu0 %3470
        %3472 = vrot.lane.b32.xlu0 %v2782, 40
        %v3473 = vpop.permute.xlu0 %3472
        %3474 = vrot.lane.b32.xlu0 %v2783, 40
        %v3475 = vpop.permute.xlu0 %3474
        %3476 = vrot.lane.b32.xlu0 %v2784, 40
        %v3477 = vpop.permute.xlu0 %3476
        %3478 = vrot.lane.b32.xlu0 %v2785, 40
        %v3479 = vpop.permute.xlu0 %3478
        %3480 = vrot.lane.b32.xlu0 %v2786, 40
        %v3481 = vpop.permute.xlu0 %3480
        %3482 = vrot.lane.b32.xlu0 %v2787, 40
        %v3483 = vpop.permute.xlu0 %3482
        %3484 = vrot.lane.b32.xlu0 %v2788, 40
        %v3485 = vpop.permute.xlu0 %3484
        %3486 = vrot.lane.b32.xlu0 %v2789, 40
        %v3487 = vpop.permute.xlu0 %3486
        %3488 = vrot.lane.b32.xlu0 %v2790, 40
        %v3489 = vpop.permute.xlu0 %3488
        %3490 = vrot.lane.b32.xlu0 %v2791, 40
        %v3491 = vpop.permute.xlu0 %3490
        %3492 = vrot.lane.b32.xlu0 %v2792, 40
        %v3493 = vpop.permute.xlu0 %3492
        %3494 = vrot.lane.b32.xlu0 %v2793, 40
        %v3495 = vpop.permute.xlu0 %3494
        %3496 = vrot.lane.b32.xlu0 %v2794, 40
        %v3497 = vpop.permute.xlu0 %3496
        %3498 = vrot.lane.b32.xlu0 %v2795, 40
        %v3499 = vpop.permute.xlu0 %3498
        %3564 = vrot.lane.b32.xlu0 %v2796, 48
        %v3565 = vpop.permute.xlu0 %3564
        %3566 = vrot.lane.b32.xlu0 %v2797, 48
        %v3567 = vpop.permute.xlu0 %3566
        %3568 = vrot.lane.b32.xlu0 %v2798, 48
        %v3569 = vpop.permute.xlu0 %3568
        %3570 = vrot.lane.b32.xlu0 %v2799, 48
        %v3571 = vpop.permute.xlu0 %3570
        %3572 = vrot.lane.b32.xlu0 %v2800, 48
        %v3573 = vpop.permute.xlu0 %3572
        %3574 = vrot.lane.b32.xlu0 %v2801, 48
        %v3575 = vpop.permute.xlu0 %3574
        %3576 = vrot.lane.b32.xlu0 %v2802, 48
        %v3577 = vpop.permute.xlu0 %3576
        %3578 = vrot.lane.b32.xlu0 %v2803, 48
        %v3579 = vpop.permute.xlu0 %3578
        %3580 = vrot.lane.b32.xlu0 %v2804, 48
        %v3581 = vpop.permute.xlu0 %3580
        %3582 = vrot.lane.b32.xlu0 %v2805, 48
        %v3583 = vpop.permute.xlu0 %3582
        %3584 = vrot.lane.b32.xlu0 %v2806, 48
        %v3585 = vpop.permute.xlu0 %3584
        %3586 = vrot.lane.b32.xlu0 %v2807, 48
        %v3587 = vpop.permute.xlu0 %3586
        %3588 = vrot.lane.b32.xlu0 %v2808, 48
        %v3589 = vpop.permute.xlu0 %3588
        %3590 = vrot.lane.b32.xlu0 %v2809, 48
        %v3591 = vpop.permute.xlu0 %3590
        %3592 = vrot.lane.b32.xlu0 %v2810, 48
        %v3593 = vpop.permute.xlu0 %3592
        %3594 = vrot.lane.b32.xlu0 %v2811, 48
        %v3595 = vpop.permute.xlu0 %3594
        %3596 = vrot.lane.b32.xlu0 %v2812, 48
        %v3597 = vpop.permute.xlu0 %3596
        %3598 = vrot.lane.b32.xlu0 %v2813, 48
        %v3599 = vpop.permute.xlu0 %3598
        %3600 = vrot.lane.b32.xlu0 %v2814, 48
        %v3601 = vpop.permute.xlu0 %3600
        %3602 = vrot.lane.b32.xlu0 %v2815, 48
        %v3603 = vpop.permute.xlu0 %3602
        %3604 = vrot.lane.b32.xlu0 %v2816, 48
        %v3605 = vpop.permute.xlu0 %3604
        %3606 = vrot.lane.b32.xlu0 %v2817, 48
        %v3607 = vpop.permute.xlu0 %3606
        %3608 = vrot.lane.b32.xlu0 %v2818, 48
        %v3609 = vpop.permute.xlu0 %3608
        %3610 = vrot.lane.b32.xlu0 %v2819, 48
        %v3611 = vpop.permute.xlu0 %3610
        %3612 = vrot.lane.b32.xlu0 %v2820, 48
        %v3613 = vpop.permute.xlu0 %3612
        %3614 = vrot.lane.b32.xlu0 %v2821, 48
        %v3615 = vpop.permute.xlu0 %3614
        %3616 = vrot.lane.b32.xlu0 %v2822, 48
        %v3617 = vpop.permute.xlu0 %3616
        %3618 = vrot.lane.b32.xlu0 %v2823, 48
        %v3619 = vpop.permute.xlu0 %3618
        %3620 = vrot.lane.b32.xlu0 %v2824, 48
        %v3621 = vpop.permute.xlu0 %3620
        %3622 = vrot.lane.b32.xlu0 %v2825, 48
        %v3623 = vpop.permute.xlu0 %3622
        %3624 = vrot.lane.b32.xlu0 %v2826, 48
        %v3625 = vpop.permute.xlu0 %3624
        %3626 = vrot.lane.b32.xlu0 %v2827, 48
        %v3627 = vpop.permute.xlu0 %3626
        %3692 = vrot.lane.b32.xlu0 %v2828, 56
        %v3693 = vpop.permute.xlu0 %3692
        %3694 = vrot.lane.b32.xlu0 %v2829, 56
        %v3695 = vpop.permute.xlu0 %3694
        %3696 = vrot.lane.b32.xlu0 %v2830, 56
        %v3697 = vpop.permute.xlu0 %3696
        %3698 = vrot.lane.b32.xlu0 %v2831, 56
        %v3699 = vpop.permute.xlu0 %3698
        %3700 = vrot.lane.b32.xlu0 %v2832, 56
        %v3701 = vpop.permute.xlu0 %3700
        %3702 = vrot.lane.b32.xlu0 %v2833, 56
        %v3703 = vpop.permute.xlu0 %3702
        %3704 = vrot.lane.b32.xlu0 %v2834, 56
        %v3705 = vpop.permute.xlu0 %3704
        %3706 = vrot.lane.b32.xlu0 %v2835, 56
        %v3707 = vpop.permute.xlu0 %3706
        %3708 = vrot.lane.b32.xlu0 %v2836, 56
        %v3709 = vpop.permute.xlu0 %3708
        %3710 = vrot.lane.b32.xlu0 %v2837, 56
        %v3711 = vpop.permute.xlu0 %3710
        %3712 = vrot.lane.b32.xlu0 %v2838, 56
        %v3713 = vpop.permute.xlu0 %3712
        %3714 = vrot.lane.b32.xlu0 %v2839, 56
        %v3715 = vpop.permute.xlu0 %3714
        %3716 = vrot.lane.b32.xlu0 %v2840, 56
        %v3717 = vpop.permute.xlu0 %3716
        %3718 = vrot.lane.b32.xlu0 %v2841, 56
        %v3719 = vpop.permute.xlu0 %3718
        %3720 = vrot.lane.b32.xlu0 %v2842, 56
        %v3721 = vpop.permute.xlu0 %3720
        %3722 = vrot.lane.b32.xlu0 %v2843, 56
        %v3723 = vpop.permute.xlu0 %3722
        %3724 = vrot.lane.b32.xlu0 %v2844, 56
        %v3725 = vpop.permute.xlu0 %3724
        %3726 = vrot.lane.b32.xlu0 %v2845, 56
        %v3727 = vpop.permute.xlu0 %3726
        %3728 = vrot.lane.b32.xlu0 %v2846, 56
        %v3729 = vpop.permute.xlu0 %3728
        %3730 = vrot.lane.b32.xlu0 %v2847, 56
        %v3731 = vpop.permute.xlu0 %3730
        %3732 = vrot.lane.b32.xlu0 %v2848, 56
        %v3733 = vpop.permute.xlu0 %3732
        %3734 = vrot.lane.b32.xlu0 %v2849, 56
        %v3735 = vpop.permute.xlu0 %3734
        %3736 = vrot.lane.b32.xlu0 %v2850, 56
        %v3737 = vpop.permute.xlu0 %3736
        %3738 = vrot.lane.b32.xlu0 %v2851, 56
        %v3739 = vpop.permute.xlu0 %3738
        %3740 = vrot.lane.b32.xlu0 %v2852, 56
        %v3741 = vpop.permute.xlu0 %3740
        %3742 = vrot.lane.b32.xlu0 %v2853, 56
        %v3743 = vpop.permute.xlu0 %3742
        %3744 = vrot.lane.b32.xlu0 %v2854, 56
        %v3745 = vpop.permute.xlu0 %3744
        %3746 = vrot.lane.b32.xlu0 %v2855, 56
        %v3747 = vpop.permute.xlu0 %3746
        %3748 = vrot.lane.b32.xlu0 %v2856, 56
        %v3749 = vpop.permute.xlu0 %3748
        %3750 = vrot.lane.b32.xlu0 %v2857, 56
        %v3751 = vpop.permute.xlu0 %3750
        %3752 = vrot.lane.b32.xlu0 %v2858, 56
        %v3753 = vpop.permute.xlu0 %3752
        %3754 = vrot.lane.b32.xlu0 %v2859, 56
        %v3755 = vpop.permute.xlu0 %3754
        %3820 = vrot.lane.b32.xlu0 %v2860, 64
        %v3821 = vpop.permute.xlu0 %3820
        %3822 = vrot.lane.b32.xlu0 %v2861, 64
        %v3823 = vpop.permute.xlu0 %3822
        %3824 = vrot.lane.b32.xlu0 %v2862, 64
        %v3825 = vpop.permute.xlu0 %3824
        %3826 = vrot.lane.b32.xlu0 %v2863, 64
        %v3827 = vpop.permute.xlu0 %3826
        %3828 = vrot.lane.b32.xlu0 %v2864, 64
        %v3829 = vpop.permute.xlu0 %3828
        %3830 = vrot.lane.b32.xlu0 %v2865, 64
        %v3831 = vpop.permute.xlu0 %3830
        %3832 = vrot.lane.b32.xlu0 %v2866, 64
        %v3833 = vpop.permute.xlu0 %3832
        %3834 = vrot.lane.b32.xlu0 %v2867, 64
        %v3835 = vpop.permute.xlu0 %3834
        %3836 = vrot.lane.b32.xlu0 %v2868, 64
        %v3837 = vpop.permute.xlu0 %3836
        %3838 = vrot.lane.b32.xlu0 %v2869, 64
        %v3839 = vpop.permute.xlu0 %3838
        %3840 = vrot.lane.b32.xlu0 %v2870, 64
        %v3841 = vpop.permute.xlu0 %3840
        %3842 = vrot.lane.b32.xlu0 %v2871, 64
        %v3843 = vpop.permute.xlu0 %3842
        %3844 = vrot.lane.b32.xlu0 %v2872, 64
        %v3845 = vpop.permute.xlu0 %3844
        %3846 = vrot.lane.b32.xlu0 %v2873, 64
        %v3847 = vpop.permute.xlu0 %3846
        %3848 = vrot.lane.b32.xlu0 %v2874, 64
        %v3849 = vpop.permute.xlu0 %3848
        %3850 = vrot.lane.b32.xlu0 %v2875, 64
        %v3851 = vpop.permute.xlu0 %3850
        %3852 = vrot.lane.b32.xlu0 %v2876, 64
        %v3853 = vpop.permute.xlu0 %3852
        %3854 = vrot.lane.b32.xlu0 %v2877, 64
        %v3855 = vpop.permute.xlu0 %3854
        %3856 = vrot.lane.b32.xlu0 %v2878, 64
        %v3857 = vpop.permute.xlu0 %3856
        %3858 = vrot.lane.b32.xlu0 %v2879, 64
        %v3859 = vpop.permute.xlu0 %3858
        %3860 = vrot.lane.b32.xlu0 %v2880, 64
        %v3861 = vpop.permute.xlu0 %3860
        %3862 = vrot.lane.b32.xlu0 %v2881, 64
        %v3863 = vpop.permute.xlu0 %3862
        %3864 = vrot.lane.b32.xlu0 %v2882, 64
        %v3865 = vpop.permute.xlu0 %3864
        %3866 = vrot.lane.b32.xlu0 %v2883, 64
        %v3867 = vpop.permute.xlu0 %3866
        %3868 = vrot.lane.b32.xlu0 %v2884, 64
        %v3869 = vpop.permute.xlu0 %3868
        %3870 = vrot.lane.b32.xlu0 %v2885, 64
        %v3871 = vpop.permute.xlu0 %3870
        %3872 = vrot.lane.b32.xlu0 %v2886, 64
        %v3873 = vpop.permute.xlu0 %3872
        %3874 = vrot.lane.b32.xlu0 %v2887, 64
        %v3875 = vpop.permute.xlu0 %3874
        %3876 = vrot.lane.b32.xlu0 %v2888, 64
        %v3877 = vpop.permute.xlu0 %3876
        %3878 = vrot.lane.b32.xlu0 %v2889, 64
        %v3879 = vpop.permute.xlu0 %3878
        %3880 = vrot.lane.b32.xlu0 %v2890, 64
        %v3881 = vpop.permute.xlu0 %3880
        %3882 = vrot.lane.b32.xlu0 %v2891, 64
        %v3883 = vpop.permute.xlu0 %3882
        %v3916 = vsel %vm330, %v2604, %v2925
        %v3917 = vsel %vm330, %v2605, %v2927
        %v3918 = vsel %vm330, %v2606, %v2929
        %v3919 = vsel %vm330, %v2607, %v2931
        %v3920 = vsel %vm330, %v2608, %v2933
        %v3921 = vsel %vm330, %v2609, %v2935
        %v3922 = vsel %vm330, %v2610, %v2937
        %v3923 = vsel %vm330, %v2611, %v2939
        %v3924 = vsel %vm330, %v2612, %v2941
        %v3925 = vsel %vm330, %v2613, %v2943
        %v3926 = vsel %vm330, %v2614, %v2945
        %v3927 = vsel %vm330, %v2615, %v2947
        %v3928 = vsel %vm330, %v2616, %v2949
        %v3929 = vsel %vm330, %v2617, %v2951
        %v3930 = vsel %vm330, %v2618, %v2953
        %v3931 = vsel %vm330, %v2619, %v2955
        %v3932 = vsel %vm330, %v2620, %v2957
        %v3933 = vsel %vm330, %v2621, %v2959
        %v3934 = vsel %vm330, %v2622, %v2961
        %v3935 = vsel %vm330, %v2623, %v2963
        %v3936 = vsel %vm330, %v2624, %v2965
        %v3937 = vsel %vm330, %v2625, %v2967
        %v3938 = vsel %vm330, %v2626, %v2969
        %v3939 = vsel %vm330, %v2627, %v2971
        %v3940 = vsel %vm330, %v2628, %v2973
        %v3941 = vsel %vm330, %v2629, %v2975
        %v3942 = vsel %vm330, %v2630, %v2977
        %v3943 = vsel %vm330, %v2631, %v2979
        %v3944 = vsel %vm330, %v2632, %v2981
        %v3945 = vsel %vm330, %v2633, %v2983
        %v3946 = vsel %vm330, %v2634, %v2985
        %v3947 = vsel %vm330, %v2635, %v2987
        %v3948 = vsel %vm1897, %v3916, %v3053
        %v3949 = vsel %vm1897, %v3917, %v3055
        %v3950 = vsel %vm1897, %v3918, %v3057
        %v3951 = vsel %vm1897, %v3919, %v3059
        %v3952 = vsel %vm1897, %v3920, %v3061
        %v3953 = vsel %vm1897, %v3921, %v3063
        %v3954 = vsel %vm1897, %v3922, %v3065
        %v3955 = vsel %vm1897, %v3923, %v3067
        %v3956 = vsel %vm1897, %v3924, %v3069
        %v3957 = vsel %vm1897, %v3925, %v3071
        %v3958 = vsel %vm1897, %v3926, %v3073
        %v3959 = vsel %vm1897, %v3927, %v3075
        %v3960 = vsel %vm1897, %v3928, %v3077
        %v3961 = vsel %vm1897, %v3929, %v3079
        %v3962 = vsel %vm1897, %v3930, %v3081
        %v3963 = vsel %vm1897, %v3931, %v3083
        %v3964 = vsel %vm1897, %v3932, %v3085
        %v3965 = vsel %vm1897, %v3933, %v3087
        %v3966 = vsel %vm1897, %v3934, %v3089
        %v3967 = vsel %vm1897, %v3935, %v3091
        %v3968 = vsel %vm1897, %v3936, %v3093
        %v3969 = vsel %vm1897, %v3937, %v3095
        %v3970 = vsel %vm1897, %v3938, %v3097
        %v3971 = vsel %vm1897, %v3939, %v3099
        %v3972 = vsel %vm1897, %v3940, %v3101
        %v3973 = vsel %vm1897, %v3941, %v3103
        %v3974 = vsel %vm1897, %v3942, %v3105
        %v3975 = vsel %vm1897, %v3943, %v3107
        %v3976 = vsel %vm1897, %v3944, %v3109
        %v3977 = vsel %vm1897, %v3945, %v3111
        %v3978 = vsel %vm1897, %v3946, %v3113
        %v3979 = vsel %vm1897, %v3947, %v3115
        %v3980 = vsel %vm1930, %v3948, %v3181
        %v3981 = vsel %vm1930, %v3949, %v3183
        %v3982 = vsel %vm1930, %v3950, %v3185
        %v3983 = vsel %vm1930, %v3951, %v3187
        %v3984 = vsel %vm1930, %v3952, %v3189
        %v3985 = vsel %vm1930, %v3953, %v3191
        %v3986 = vsel %vm1930, %v3954, %v3193
        %v3987 = vsel %vm1930, %v3955, %v3195
        %v3988 = vsel %vm1930, %v3956, %v3197
        %v3989 = vsel %vm1930, %v3957, %v3199
        %v3990 = vsel %vm1930, %v3958, %v3201
        %v3991 = vsel %vm1930, %v3959, %v3203
        %v3992 = vsel %vm1930, %v3960, %v3205
        %v3993 = vsel %vm1930, %v3961, %v3207
        %v3994 = vsel %vm1930, %v3962, %v3209
        %v3995 = vsel %vm1930, %v3963, %v3211
        %v3996 = vsel %vm1930, %v3964, %v3213
        %v3997 = vsel %vm1930, %v3965, %v3215
        %v3998 = vsel %vm1930, %v3966, %v3217
        %v3999 = vsel %vm1930, %v3967, %v3219
        %v4000 = vsel %vm1930, %v3968, %v3221
        %v4001 = vsel %vm1930, %v3969, %v3223
        %v4002 = vsel %vm1930, %v3970, %v3225
        %v4003 = vsel %vm1930, %v3971, %v3227
        %v4004 = vsel %vm1930, %v3972, %v3229
        %v4005 = vsel %vm1930, %v3973, %v3231
        %v4006 = vsel %vm1930, %v3974, %v3233
        %v4007 = vsel %vm1930, %v3975, %v3235
        %v4008 = vsel %vm1930, %v3976, %v3237
        %v4009 = vsel %vm1930, %v3977, %v3239
        %v4010 = vsel %vm1930, %v3978, %v3241
        %v4011 = vsel %vm1930, %v3979, %v3243
        %v4012 = vsel %vm1963, %v3980, %v3309
        %v4013 = vsel %vm1963, %v3981, %v3311
        %v4014 = vsel %vm1963, %v3982, %v3313
        %v4015 = vsel %vm1963, %v3983, %v3315
        %v4016 = vsel %vm1963, %v3984, %v3317
        %v4017 = vsel %vm1963, %v3985, %v3319
        %v4018 = vsel %vm1963, %v3986, %v3321
        %v4019 = vsel %vm1963, %v3987, %v3323
        %v4020 = vsel %vm1963, %v3988, %v3325
        %v4021 = vsel %vm1963, %v3989, %v3327
        %v4022 = vsel %vm1963, %v3990, %v3329
        %v4023 = vsel %vm1963, %v3991, %v3331
        %v4024 = vsel %vm1963, %v3992, %v3333
        %v4025 = vsel %vm1963, %v3993, %v3335
        %v4026 = vsel %vm1963, %v3994, %v3337
        %v4027 = vsel %vm1963, %v3995, %v3339
        %v4028 = vsel %vm1963, %v3996, %v3341
        %v4029 = vsel %vm1963, %v3997, %v3343
        %v4030 = vsel %vm1963, %v3998, %v3345
        %v4031 = vsel %vm1963, %v3999, %v3347
        %v4032 = vsel %vm1963, %v4000, %v3349
        %v4033 = vsel %vm1963, %v4001, %v3351
        %v4034 = vsel %vm1963, %v4002, %v3353
        %v4035 = vsel %vm1963, %v4003, %v3355
        %v4036 = vsel %vm1963, %v4004, %v3357
        %v4037 = vsel %vm1963, %v4005, %v3359
        %v4038 = vsel %vm1963, %v4006, %v3361
        %v4039 = vsel %vm1963, %v4007, %v3363
        %v4040 = vsel %vm1963, %v4008, %v3365
        %v4041 = vsel %vm1963, %v4009, %v3367
        %v4042 = vsel %vm1963, %v4010, %v3369
        %v4043 = vsel %vm1963, %v4011, %v3371
        %v4044 = vsel %vm1996, %v4012, %v3437
        %v4045 = vsel %vm1996, %v4013, %v3439
        %v4046 = vsel %vm1996, %v4014, %v3441
        %v4047 = vsel %vm1996, %v4015, %v3443
        %v4048 = vsel %vm1996, %v4016, %v3445
        %v4049 = vsel %vm1996, %v4017, %v3447
        %v4050 = vsel %vm1996, %v4018, %v3449
        %v4051 = vsel %vm1996, %v4019, %v3451
        %v4052 = vsel %vm1996, %v4020, %v3453
        %v4053 = vsel %vm1996, %v4021, %v3455
        %v4054 = vsel %vm1996, %v4022, %v3457
        %v4055 = vsel %vm1996, %v4023, %v3459
        %v4056 = vsel %vm1996, %v4024, %v3461
        %v4057 = vsel %vm1996, %v4025, %v3463
        %v4058 = vsel %vm1996, %v4026, %v3465
        %v4059 = vsel %vm1996, %v4027, %v3467
        %v4060 = vsel %vm1996, %v4028, %v3469
        %v4061 = vsel %vm1996, %v4029, %v3471
        %v4062 = vsel %vm1996, %v4030, %v3473
        %v4063 = vsel %vm1996, %v4031, %v3475
        %v4064 = vsel %vm1996, %v4032, %v3477
        %v4065 = vsel %vm1996, %v4033, %v3479
        %v4066 = vsel %vm1996, %v4034, %v3481
        %v4067 = vsel %vm1996, %v4035, %v3483
        %v4068 = vsel %vm1996, %v4036, %v3485
        %v4069 = vsel %vm1996, %v4037, %v3487
        %v4070 = vsel %vm1996, %v4038, %v3489
        %v4071 = vsel %vm1996, %v4039, %v3491
        %v4072 = vsel %vm1996, %v4040, %v3493
        %v4073 = vsel %vm1996, %v4041, %v3495
        %v4074 = vsel %vm1996, %v4042, %v3497
        %v4075 = vsel %vm1996, %v4043, %v3499
        %v4076 = vsel %vm2029, %v4044, %v3565
        %v4077 = vsel %vm2029, %v4045, %v3567
        %v4078 = vsel %vm2029, %v4046, %v3569
        %v4079 = vsel %vm2029, %v4047, %v3571
        %v4080 = vsel %vm2029, %v4048, %v3573
        %v4081 = vsel %vm2029, %v4049, %v3575
        %v4082 = vsel %vm2029, %v4050, %v3577
        %v4083 = vsel %vm2029, %v4051, %v3579
        %v4084 = vsel %vm2029, %v4052, %v3581
        %v4085 = vsel %vm2029, %v4053, %v3583
        %v4086 = vsel %vm2029, %v4054, %v3585
        %v4087 = vsel %vm2029, %v4055, %v3587
        %v4088 = vsel %vm2029, %v4056, %v3589
        %v4089 = vsel %vm2029, %v4057, %v3591
        %v4090 = vsel %vm2029, %v4058, %v3593
        %v4091 = vsel %vm2029, %v4059, %v3595
        %v4092 = vsel %vm2029, %v4060, %v3597
        %v4093 = vsel %vm2029, %v4061, %v3599
        %v4094 = vsel %vm2029, %v4062, %v3601
        %v4095 = vsel %vm2029, %v4063, %v3603
        %v4096 = vsel %vm2029, %v4064, %v3605
        %v4097 = vsel %vm2029, %v4065, %v3607
        %v4098 = vsel %vm2029, %v4066, %v3609
        %v4099 = vsel %vm2029, %v4067, %v3611
        %v4100 = vsel %vm2029, %v4068, %v3613
        %v4101 = vsel %vm2029, %v4069, %v3615
        %v4102 = vsel %vm2029, %v4070, %v3617
        %v4103 = vsel %vm2029, %v4071, %v3619
        %v4104 = vsel %vm2029, %v4072, %v3621
        %v4105 = vsel %vm2029, %v4073, %v3623
        %v4106 = vsel %vm2029, %v4074, %v3625
        %v4107 = vsel %vm2029, %v4075, %v3627
        %v4108 = vsel %vm2062, %v4076, %v3693
        %v4109 = vsel %vm2062, %v4077, %v3695
        %v4110 = vsel %vm2062, %v4078, %v3697
        %v4111 = vsel %vm2062, %v4079, %v3699
        %v4112 = vsel %vm2062, %v4080, %v3701
        %v4113 = vsel %vm2062, %v4081, %v3703
        %v4114 = vsel %vm2062, %v4082, %v3705
        %v4115 = vsel %vm2062, %v4083, %v3707
        %v4116 = vsel %vm2062, %v4084, %v3709
        %v4117 = vsel %vm2062, %v4085, %v3711
        %v4118 = vsel %vm2062, %v4086, %v3713
        %v4119 = vsel %vm2062, %v4087, %v3715
        %v4120 = vsel %vm2062, %v4088, %v3717
        %v4121 = vsel %vm2062, %v4089, %v3719
        %v4122 = vsel %vm2062, %v4090, %v3721
        %v4123 = vsel %vm2062, %v4091, %v3723
        %v4124 = vsel %vm2062, %v4092, %v3725
        %v4125 = vsel %vm2062, %v4093, %v3727
        %v4126 = vsel %vm2062, %v4094, %v3729
        %v4127 = vsel %vm2062, %v4095, %v3731
        %v4128 = vsel %vm2062, %v4096, %v3733
        %v4129 = vsel %vm2062, %v4097, %v3735
        %v4130 = vsel %vm2062, %v4098, %v3737
        %v4131 = vsel %vm2062, %v4099, %v3739
        %v4132 = vsel %vm2062, %v4100, %v3741
        %v4133 = vsel %vm2062, %v4101, %v3743
        %v4134 = vsel %vm2062, %v4102, %v3745
        %v4135 = vsel %vm2062, %v4103, %v3747
        %v4136 = vsel %vm2062, %v4104, %v3749
        %v4137 = vsel %vm2062, %v4105, %v3751
        %v4138 = vsel %vm2062, %v4106, %v3753
        %v4139 = vsel %vm2062, %v4107, %v3755
        %v4140 = vsel %vm2095, %v4108, %v3821
        %v4141 = vsel %vm2095, %v4109, %v3823
        %v4142 = vsel %vm2095, %v4110, %v3825
        %v4143 = vsel %vm2095, %v4111, %v3827
        %v4144 = vsel %vm2095, %v4112, %v3829
        %v4145 = vsel %vm2095, %v4113, %v3831
        %v4146 = vsel %vm2095, %v4114, %v3833
        %v4147 = vsel %vm2095, %v4115, %v3835
        %v4148 = vsel %vm2095, %v4116, %v3837
        %v4149 = vsel %vm2095, %v4117, %v3839
        %v4150 = vsel %vm2095, %v4118, %v3841
        %v4151 = vsel %vm2095, %v4119, %v3843
        %v4152 = vsel %vm2095, %v4120, %v3845
        %v4153 = vsel %vm2095, %v4121, %v3847
        %v4154 = vsel %vm2095, %v4122, %v3849
        %v4155 = vsel %vm2095, %v4123, %v3851
        %v4156 = vsel %vm2095, %v4124, %v3853
        %v4157 = vsel %vm2095, %v4125, %v3855
        %v4158 = vsel %vm2095, %v4126, %v3857
        %v4159 = vsel %vm2095, %v4127, %v3859
        %v4160 = vsel %vm2095, %v4128, %v3861
        %v4161 = vsel %vm2095, %v4129, %v3863
        %v4162 = vsel %vm2095, %v4130, %v3865
        %v4163 = vsel %vm2095, %v4131, %v3867
        %v4164 = vsel %vm2095, %v4132, %v3869
        %v4165 = vsel %vm2095, %v4133, %v3871
        %v4166 = vsel %vm2095, %v4134, %v3873
        %v4167 = vsel %vm2095, %v4135, %v3875
        %v4168 = vsel %vm2095, %v4136, %v3877
        %v4169 = vsel %vm2095, %v4137, %v3879
        %v4170 = vsel %vm2095, %v4138, %v3881
        %v4171 = vsel %vm2095, %v4139, %v3883
        %v4173 = vlaneseq
        %v4174 = vshrl.u32 %v4173, 7
        %v4175 = vsub.s32 0, %v4174
        %v4176 = vrot.slane %v2497, %v4175
        %v4179 = vsel %vm2134, %v4140, 0
        %v4182 = vsel %vm2134, %v4141, 0
        %v4185 = vsel %vm2134, %v4142, 0
        %v4188 = vsel %vm2134, %v4143, 0
        %v4191 = vsel %vm2134, %v4144, 0
        %v4194 = vsel %vm2134, %v4145, 0
        %v4197 = vsel %vm2134, %v4146, 0
        %v4200 = vsel %vm2134, %v4147, 0
        %v4203 = vsel %vm2134, %v4148, 0
        %v4206 = vsel %vm2134, %v4149, 0
        %v4209 = vsel %vm2134, %v4150, 0
        %v4212 = vsel %vm2134, %v4151, 0
        %v4215 = vsel %vm2134, %v4152, 0
        %v4218 = vsel %vm2134, %v4153, 0
        %v4221 = vsel %vm2134, %v4154, 0
        %v4224 = vsel %vm2134, %v4155, 0
        %v4227 = vsel %vm2134, %v4156, 0
        %v4230 = vsel %vm2134, %v4157, 0
        %v4233 = vsel %vm2134, %v4158, 0
        %v4236 = vsel %vm2134, %v4159, 0
        %v4239 = vsel %vm2134, %v4160, 0
        %v4242 = vsel %vm2134, %v4161, 0
        %v4245 = vsel %vm2134, %v4162, 0
        %v4248 = vsel %vm2134, %v4163, 0
        %v4251 = vsel %vm2134, %v4164, 0
        %v4254 = vsel %vm2134, %v4165, 0
        %v4257 = vsel %vm2134, %v4166, 0
        %v4260 = vsel %vm2134, %v4167, 0
        %v4263 = vsel %vm2134, %v4168, 0
        %v4266 = vsel %vm2134, %v4169, 0
        %v4269 = vsel %vm2134, %v4170, 0
        %v4272 = vsel %vm2134, %v4171, 0
        %4274 = vmatprep.subr.mxu0 0.0
        %4275 = vmatpush1.msra.mxu0 %v2488
        %4276 = vmatprep.subr.mxu0 0.0
        %4277 = vmatpush1.msra.mxu0 %v2489
        %4278 = vmatprep.subr.mxu0 0.0
        %4279 = vmatpush1.msra.mxu0 %v2490
        %4280 = vmatprep.subr.mxu0 0.0
        %4281 = vmatpush1.msra.mxu0 %v2491
        %4282 = vmatprep.subr.mxu0 0.0
        %4283 = vmatpush1.msra.mxu0 %v2492
        %4284 = vmatprep.subr.mxu0 0.0
        %4285 = vmatpush1.msra.mxu0 %v2493
        %4286 = vmatprep.subr.mxu0 0.0
        %4287 = vmatpush1.msra.mxu0 %v2494
        %4288 = vmatprep.subr.mxu0 0.0
        %4289 = vmatpush1.msra.mxu0 %v2495
        %4290 = vmatprep.subr.mxu0 0.0
        %4291 = vmatpush1.msra.mxu0 %v2496
        %4292 = vmatprep.subr.mxu0 0.0
        %4293 = vmatpush1.msra.mxu0 0.0
        %4294 = vmatprep.subr.mxu0 0.0
        %4295 = vmatpush1.msra.mxu0 0.0
        %4296 = vmatprep.subr.mxu0 0.0
        %4297 = vmatpush1.msra.mxu0 0.0
        %4298 = vmatprep.subr.mxu0 0.0
        %4299 = vmatpush1.msra.mxu0 0.0
        %4300 = vmatprep.subr.mxu0 0.0
        %4301 = vmatpush1.msra.mxu0 0.0
        %4302 = vmatprep.subr.mxu0 0.0
        %4303 = vmatpush1.msra.mxu0 0.0
        %4304 = vmatprep.subr.mxu0 0.0
        %4305 = vmatpush1.msra.mxu0 0.0
        %4306 = vmatprep.subr.mxu0 0.0
        %4307 = vmatpush1.msra.mxu0 0.0
        %4308 = vmatprep.subr.mxu0 0.0
        %4309 = vmatpush1.msra.mxu0 0.0
        %4310 = vmatprep.subr.mxu0 0.0
        %4311 = vmatpush1.msra.mxu0 0.0
        %4312 = vmatprep.subr.mxu0 0.0
        %4313 = vmatpush1.msra.mxu0 0.0
        %4314 = vmatprep.subr.mxu0 0.0
        %4315 = vmatpush1.msra.mxu0 0.0
        %4316 = vmatprep.subr.mxu0 0.0
        %4317 = vmatpush1.msra.mxu0 0.0
        %4318 = vmatprep.subr.mxu0 0.0
        %4319 = vmatpush1.msra.mxu0 0.0
        %4320 = vmatprep.subr.mxu0 0.0
        %4321 = vmatpush1.msra.mxu0 0.0
        %4322 = vmatprep.subr.mxu0 0.0
        %4323 = vmatpush1.msra.mxu0 0.0
        %4324 = vmatprep.subr.mxu0 0.0
        %4325 = vmatpush1.msra.mxu0 0.0
        %4326 = vmatprep.subr.mxu0 0.0
        %4327 = vmatpush1.msra.mxu0 0.0
        %4328 = vmatprep.subr.mxu0 0.0
        %4329 = vmatpush1.msra.mxu0 0.0
        %4330 = vmatprep.subr.mxu0 0.0
        %4331 = vmatpush1.msra.mxu0 0.0
        %4332 = vmatprep.subr.mxu0 0.0
        %4333 = vmatpush1.msra.mxu0 0.0
        %4334 = vmatprep.subr.mxu0 0.0
        %4335 = vmatpush1.msra.mxu0 0.0
        %4336 = vmatprep.subr.mxu0 0.0
        %4337 = vmatpush1.msra.mxu0 0.0
        %4338 = vmatprep.mubr.f32.mxu0 0.0
        %4339 = vmatmul.mubr.f32.gmra.mrb[0].mxu0 %v4179
        %v4340 = vpop.f32.mrb[0].mxu0
        %v4341 = vadd.f32 %v4176, %v4340
        %v4342 = vpop.f32.mrb[0].mxu0
        %4343 = vmatprep.mubr.f32.mxu0 0.0
        %4344 = vmatmul.mubr.f32.gmra.mrb[0].mxu0 %v4182
        %v4345 = vpop.f32.mrb[0].mxu0
        %v4346 = vadd.f32 %v4176, %v4345
        %v4347 = vpop.f32.mrb[0].mxu0
        %4348 = vmatprep.mubr.f32.mxu0 0.0
        %4349 = vmatmul.mubr.f32.gmra.mrb[0].mxu0 %v4185
        %v4350 = vpop.f32.mrb[0].mxu0
        %v4351 = vadd.f32 %v4176, %v4350
        %v4352 = vpop.f32.mrb[0].mxu0
        %4353 = vmatprep.mubr.f32.mxu0 0.0
        %4354 = vmatmul.mubr.f32.gmra.mrb[0].mxu0 %v4188
        %v4355 = vpop.f32.mrb[0].mxu0
        %v4356 = vadd.f32 %v4176, %v4355
        %v4357 = vpop.f32.mrb[0].mxu0
        %4358 = vmatprep.mubr.f32.mxu0 0.0
        %4359 = vmatmul.mubr.f32.gmra.mrb[0].mxu0 %v4191
        %v4360 = vpop.f32.mrb[0].mxu0
        %v4361 = vadd.f32 %v4176, %v4360
        %v4362 = vpop.f32.mrb[0].mxu0
        %4363 = vmatprep.mubr.f32.mxu0 0.0
        %4364 = vmatmul.mubr.f32.gmra.mrb[0].mxu0 %v4194
        %v4365 = vpop.f32.mrb[0].mxu0
        %v4366 = vadd.f32 %v4176, %v4365
        %v4367 = vpop.f32.mrb[0].mxu0
        %4368 = vmatprep.mubr.f32.mxu0 0.0
        %4369 = vmatmul.mubr.f32.gmra.mrb[0].mxu0 %v4197
        %v4370 = vpop.f32.mrb[0].mxu0
        %v4371 = vadd.f32 %v4176, %v4370
        %v4372 = vpop.f32.mrb[0].mxu0
        %4373 = vmatprep.mubr.f32.mxu0 0.0
        %4374 = vmatmul.mubr.f32.gmra.mrb[0].mxu0 %v4200
        %v4375 = vpop.f32.mrb[0].mxu0
        %v4376 = vadd.f32 %v4176, %v4375
        %v4377 = vpop.f32.mrb[0].mxu0
        %4378 = vmatprep.mubr.f32.mxu0 0.0
        %4379 = vmatmul.mubr.f32.gmra.mrb[0].mxu0 %v4203
        %v4380 = vpop.f32.mrb[0].mxu0
        %v4381 = vadd.f32 %v4176, %v4380
        %v4382 = vpop.f32.mrb[0].mxu0
        %4383 = vmatprep.mubr.f32.mxu0 0.0
        %4384 = vmatmul.mubr.f32.gmra.mrb[0].mxu0 %v4206
        %v4385 = vpop.f32.mrb[0].mxu0
        %v4386 = vadd.f32 %v4176, %v4385
        %v4387 = vpop.f32.mrb[0].mxu0
        %4388 = vmatprep.mubr.f32.mxu0 0.0
        %4389 = vmatmul.mubr.f32.gmra.mrb[0].mxu0 %v4209
        %v4390 = vpop.f32.mrb[0].mxu0
        %v4391 = vadd.f32 %v4176, %v4390
        %v4392 = vpop.f32.mrb[0].mxu0
        %4393 = vmatprep.mubr.f32.mxu0 0.0
        %4394 = vmatmul.mubr.f32.gmra.mrb[0].mxu0 %v4212
        %v4395 = vpop.f32.mrb[0].mxu0
        %v4396 = vadd.f32 %v4176, %v4395
        %v4397 = vpop.f32.mrb[0].mxu0
        %4398 = vmatprep.mubr.f32.mxu0 0.0
        %4399 = vmatmul.mubr.f32.gmra.mrb[0].mxu0 %v4215
        %v4400 = vpop.f32.mrb[0].mxu0
        %v4401 = vadd.f32 %v4176, %v4400
        %v4402 = vpop.f32.mrb[0].mxu0
        %4403 = vmatprep.mubr.f32.mxu0 0.0
        %4404 = vmatmul.mubr.f32.gmra.mrb[0].mxu0 %v4218
        %v4405 = vpop.f32.mrb[0].mxu0
        %v4406 = vadd.f32 %v4176, %v4405
        %v4407 = vpop.f32.mrb[0].mxu0
        %4408 = vmatprep.mubr.f32.mxu0 0.0
        %4409 = vmatmul.mubr.f32.gmra.mrb[0].mxu0 %v4221
        %v4410 = vpop.f32.mrb[0].mxu0
        %v4411 = vadd.f32 %v4176, %v4410
        %v4412 = vpop.f32.mrb[0].mxu0
        %4413 = vmatprep.mubr.f32.mxu0 0.0
        %4414 = vmatmul.mubr.f32.gmra.mrb[0].mxu0 %v4224
        %v4415 = vpop.f32.mrb[0].mxu0
        %v4416 = vadd.f32 %v4176, %v4415
        %v4417 = vpop.f32.mrb[0].mxu0
        %4418 = vmatprep.mubr.f32.mxu0 0.0
        %4419 = vmatmul.mubr.f32.gmra.mrb[0].mxu0 %v4227
        %v4420 = vpop.f32.mrb[0].mxu0
        %v4421 = vadd.f32 %v4176, %v4420
        %v4422 = vpop.f32.mrb[0].mxu0
        %4423 = vmatprep.mubr.f32.mxu0 0.0
        %4424 = vmatmul.mubr.f32.gmra.mrb[0].mxu0 %v4230
        %v4425 = vpop.f32.mrb[0].mxu0
        %v4426 = vadd.f32 %v4176, %v4425
        %v4427 = vpop.f32.mrb[0].mxu0
        %4428 = vmatprep.mubr.f32.mxu0 0.0
        %4429 = vmatmul.mubr.f32.gmra.mrb[0].mxu0 %v4233
        %v4430 = vpop.f32.mrb[0].mxu0
        %v4431 = vadd.f32 %v4176, %v4430
        %v4432 = vpop.f32.mrb[0].mxu0
        %4433 = vmatprep.mubr.f32.mxu0 0.0
        %4434 = vmatmul.mubr.f32.gmra.mrb[0].mxu0 %v4236
        %v4435 = vpop.f32.mrb[0].mxu0
        %v4436 = vadd.f32 %v4176, %v4435
        %v4437 = vpop.f32.mrb[0].mxu0
        %4438 = vmatprep.mubr.f32.mxu0 0.0
        %4439 = vmatmul.mubr.f32.gmra.mrb[0].mxu0 %v4239
        %v4440 = vpop.f32.mrb[0].mxu0
        %v4441 = vadd.f32 %v4176, %v4440
        %v4442 = vpop.f32.mrb[0].mxu0
        %4443 = vmatprep.mubr.f32.mxu0 0.0
        %4444 = vmatmul.mubr.f32.gmra.mrb[0].mxu0 %v4242
        %v4445 = vpop.f32.mrb[0].mxu0
        %v4446 = vadd.f32 %v4176, %v4445
        %v4447 = vpop.f32.mrb[0].mxu0
        %4448 = vmatprep.mubr.f32.mxu0 0.0
        %4449 = vmatmul.mubr.f32.gmra.mrb[0].mxu0 %v4245
        %v4450 = vpop.f32.mrb[0].mxu0
        %v4451 = vadd.f32 %v4176, %v4450
        %v4452 = vpop.f32.mrb[0].mxu0
        %4453 = vmatprep.mubr.f32.mxu0 0.0
        %4454 = vmatmul.mubr.f32.gmra.mrb[0].mxu0 %v4248
        %v4455 = vpop.f32.mrb[0].mxu0
        %v4456 = vadd.f32 %v4176, %v4455
        %v4457 = vpop.f32.mrb[0].mxu0
        %4458 = vmatprep.mubr.f32.mxu0 0.0
        %4459 = vmatmul.mubr.f32.gmra.mrb[0].mxu0 %v4251
        %v4460 = vpop.f32.mrb[0].mxu0
        %v4461 = vadd.f32 %v4176, %v4460
        %v4462 = vpop.f32.mrb[0].mxu0
        %4463 = vmatprep.mubr.f32.mxu0 0.0
        %4464 = vmatmul.mubr.f32.gmra.mrb[0].mxu0 %v4254
        %v4465 = vpop.f32.mrb[0].mxu0
        %v4466 = vadd.f32 %v4176, %v4465
        %v4467 = vpop.f32.mrb[0].mxu0
        %4468 = vmatprep.mubr.f32.mxu0 0.0
        %4469 = vmatmul.mubr.f32.gmra.mrb[0].mxu0 %v4257
        %v4470 = vpop.f32.mrb[0].mxu0
        %v4471 = vadd.f32 %v4176, %v4470
        %v4472 = vpop.f32.mrb[0].mxu0
        %4473 = vmatprep.mubr.f32.mxu0 0.0
        %4474 = vmatmul.mubr.f32.gmra.mrb[0].mxu0 %v4260
        %v4475 = vpop.f32.mrb[0].mxu0
        %v4476 = vadd.f32 %v4176, %v4475
        %v4477 = vpop.f32.mrb[0].mxu0
        %4478 = vmatprep.mubr.f32.mxu0 0.0
        %4479 = vmatmul.mubr.f32.gmra.mrb[0].mxu0 %v4263
        %v4480 = vpop.f32.mrb[0].mxu0
        %v4481 = vadd.f32 %v4176, %v4480
        %v4482 = vpop.f32.mrb[0].mxu0
        %4483 = vmatprep.mubr.f32.mxu0 0.0
        %4484 = vmatmul.mubr.f32.gmra.mrb[0].mxu0 %v4266
        %v4485 = vpop.f32.mrb[0].mxu0
        %v4486 = vadd.f32 %v4176, %v4485
        %v4487 = vpop.f32.mrb[0].mxu0
        %4488 = vmatprep.mubr.f32.mxu0 0.0
        %4489 = vmatmul.mubr.f32.gmra.mrb[0].mxu0 %v4269
        %v4490 = vpop.f32.mrb[0].mxu0
        %v4491 = vadd.f32 %v4176, %v4490
        %v4492 = vpop.f32.mrb[0].mxu0
        %4493 = vmatprep.mubr.f32.mxu0 0.0
        %4494 = vmatmul.mubr.f32.gmra.mrb[0].mxu0 %v4272
        %v4495 = vpop.f32.mrb[0].mxu0
        %v4496 = vadd.f32 %v4176, %v4495
        %v4497 = vpop.f32.mrb[0].mxu0
        %4498 = vdwg.mxu0
        %v4499 = vmax.f32 %v4341, 0.0
        %v4500 = vmax.f32 %v4346, 0.0
        %v4501 = vmax.f32 %v4351, 0.0
        %v4502 = vmax.f32 %v4356, 0.0
        %v4503 = vmax.f32 %v4361, 0.0
        %v4504 = vmax.f32 %v4366, 0.0
        %v4505 = vmax.f32 %v4371, 0.0
        %v4506 = vmax.f32 %v4376, 0.0
        %v4507 = vmax.f32 %v4381, 0.0
        %v4508 = vmax.f32 %v4386, 0.0
        %v4509 = vmax.f32 %v4391, 0.0
        %v4510 = vmax.f32 %v4396, 0.0
        %v4511 = vmax.f32 %v4401, 0.0
        %v4512 = vmax.f32 %v4406, 0.0
        %v4513 = vmax.f32 %v4411, 0.0
        %v4514 = vmax.f32 %v4416, 0.0
        %v4515 = vmax.f32 %v4421, 0.0
        %v4516 = vmax.f32 %v4426, 0.0
        %v4517 = vmax.f32 %v4431, 0.0
        %v4518 = vmax.f32 %v4436, 0.0
        %v4519 = vmax.f32 %v4441, 0.0
        %v4520 = vmax.f32 %v4446, 0.0
        %v4521 = vmax.f32 %v4451, 0.0
        %v4522 = vmax.f32 %v4456, 0.0
        %v4523 = vmax.f32 %v4461, 0.0
        %v4524 = vmax.f32 %v4466, 0.0
        %v4525 = vmax.f32 %v4471, 0.0
        %v4526 = vmax.f32 %v4476, 0.0
        %v4527 = vmax.f32 %v4481, 0.0
        %v4528 = vmax.f32 %v4486, 0.0
        %v4529 = vmax.f32 %v4491, 0.0
        %v4530 = vmax.f32 %v4496, 0.0
        %4563 = vrot.lane.b32.xlu0 %v4499, 8
        %v4564 = vpop.permute.xlu0 %4563
        %4565 = vrot.lane.b32.xlu0 %v4500, 8
        %v4566 = vpop.permute.xlu0 %4565
        %4567 = vrot.lane.b32.xlu0 %v4501, 8
        %v4568 = vpop.permute.xlu0 %4567
        %4569 = vrot.lane.b32.xlu0 %v4502, 8
        %v4570 = vpop.permute.xlu0 %4569
        %4571 = vrot.lane.b32.xlu0 %v4503, 8
        %v4572 = vpop.permute.xlu0 %4571
        %4573 = vrot.lane.b32.xlu0 %v4504, 8
        %v4574 = vpop.permute.xlu0 %4573
        %4575 = vrot.lane.b32.xlu0 %v4505, 8
        %v4576 = vpop.permute.xlu0 %4575
        %4577 = vrot.lane.b32.xlu0 %v4506, 8
        %v4578 = vpop.permute.xlu0 %4577
        %4579 = vrot.lane.b32.xlu0 %v4507, 8
        %v4580 = vpop.permute.xlu0 %4579
        %4581 = vrot.lane.b32.xlu0 %v4508, 8
        %v4582 = vpop.permute.xlu0 %4581
        %4583 = vrot.lane.b32.xlu0 %v4509, 8
        %v4584 = vpop.permute.xlu0 %4583
        %4585 = vrot.lane.b32.xlu0 %v4510, 8
        %v4586 = vpop.permute.xlu0 %4585
        %4587 = vrot.lane.b32.xlu0 %v4511, 8
        %v4588 = vpop.permute.xlu0 %4587
        %4589 = vrot.lane.b32.xlu0 %v4512, 8
        %v4590 = vpop.permute.xlu0 %4589
        %4591 = vrot.lane.b32.xlu0 %v4513, 8
        %v4592 = vpop.permute.xlu0 %4591
        %4593 = vrot.lane.b32.xlu0 %v4514, 8
        %v4594 = vpop.permute.xlu0 %4593
        %4595 = vrot.lane.b32.xlu0 %v4515, 8
        %v4596 = vpop.permute.xlu0 %4595
        %4597 = vrot.lane.b32.xlu0 %v4516, 8
        %v4598 = vpop.permute.xlu0 %4597
        %4599 = vrot.lane.b32.xlu0 %v4517, 8
        %v4600 = vpop.permute.xlu0 %4599
        %4601 = vrot.lane.b32.xlu0 %v4518, 8
        %v4602 = vpop.permute.xlu0 %4601
        %4603 = vrot.lane.b32.xlu0 %v4519, 8
        %v4604 = vpop.permute.xlu0 %4603
        %4605 = vrot.lane.b32.xlu0 %v4520, 8
        %v4606 = vpop.permute.xlu0 %4605
        %4607 = vrot.lane.b32.xlu0 %v4521, 8
        %v4608 = vpop.permute.xlu0 %4607
        %4609 = vrot.lane.b32.xlu0 %v4522, 8
        %v4610 = vpop.permute.xlu0 %4609
        %4611 = vrot.lane.b32.xlu0 %v4523, 8
        %v4612 = vpop.permute.xlu0 %4611
        %4613 = vrot.lane.b32.xlu0 %v4524, 8
        %v4614 = vpop.permute.xlu0 %4613
        %4615 = vrot.lane.b32.xlu0 %v4525, 8
        %v4616 = vpop.permute.xlu0 %4615
        %4617 = vrot.lane.b32.xlu0 %v4526, 8
        %v4618 = vpop.permute.xlu0 %4617
        %4619 = vrot.lane.b32.xlu0 %v4527, 8
        %v4620 = vpop.permute.xlu0 %4619
        %4621 = vrot.lane.b32.xlu0 %v4528, 8
        %v4622 = vpop.permute.xlu0 %4621
        %4623 = vrot.lane.b32.xlu0 %v4529, 8
        %v4624 = vpop.permute.xlu0 %4623
        %4625 = vrot.lane.b32.xlu0 %v4530, 8
        %v4626 = vpop.permute.xlu0 %4625
        %v4659 = vadd.f32 %v2298, %v4564
        %v4660 = vadd.f32 %v2303, %v4566
        %v4661 = vadd.f32 %v2308, %v4568
        %v4662 = vadd.f32 %v2313, %v4570
        %v4663 = vadd.f32 %v2318, %v4572
        %v4664 = vadd.f32 %v2323, %v4574
        %v4665 = vadd.f32 %v2328, %v4576
        %v4666 = vadd.f32 %v2333, %v4578
        %v4667 = vadd.f32 %v2338, %v4580
        %v4668 = vadd.f32 %v2343, %v4582
        %v4669 = vadd.f32 %v2348, %v4584
        %v4670 = vadd.f32 %v2353, %v4586
        %v4671 = vadd.f32 %v2358, %v4588
        %v4672 = vadd.f32 %v2363, %v4590
        %v4673 = vadd.f32 %v2368, %v4592
        %v4674 = vadd.f32 %v2373, %v4594
        %v4675 = vadd.f32 %v2378, %v4596
        %v4676 = vadd.f32 %v2383, %v4598
        %v4677 = vadd.f32 %v2388, %v4600
        %v4678 = vadd.f32 %v2393, %v4602
        %v4679 = vadd.f32 %v2398, %v4604
        %v4680 = vadd.f32 %v2403, %v4606
        %v4681 = vadd.f32 %v2408, %v4608
        %v4682 = vadd.f32 %v2413, %v4610
        %v4683 = vadd.f32 %v2418, %v4612
        %v4684 = vadd.f32 %v2423, %v4614
        %v4685 = vadd.f32 %v2428, %v4616
        %v4686 = vadd.f32 %v2433, %v4618
        %v4687 = vadd.f32 %v2438, %v4620
        %v4688 = vadd.f32 %v2443, %v4622
        %v4689 = vadd.f32 %v2448, %v4624
        %v4690 = vadd.f32 %v2453, %v4626
        %s4691 = scalar_lea.vmem %s3, 72
        %v4692 = vld [vmem:[%s4691] sm:$0xff]
        %v4693 = vld [vmem:[%s4691 + $0x8] sm:$0xff]
        %v4694 = vld [vmem:[%s4691 + $0x10] sm:$0xff]
        %v4695 = vld [vmem:[%s4691 + $0x18] sm:$0xff]
        %v4696 = vld [vmem:[%s4691 + $0x20] sm:$0xff]
        %v4697 = vld [vmem:[%s4691 + $0x28] sm:$0xff]
        %v4698 = vld [vmem:[%s4691 + $0x30] sm:$0xff]
        %v4699 = vld [vmem:[%s4691 + $0x38] sm:$0xff]
        %v4700 = vld [vmem:[%s4691 + $0x40] sm:$0xff]
        %s4701 = scalar_lea.vmem %s4, 1
        %v4702 = vld [vmem:[%s4701] sm:$0x1]
        %v4703 = vld [vmem:[%s1 + $0x2] sm:$0x1]
        %v4704 = vld [vmem:[%s2 + $0x2] sm:$0x1]
        %v4705 = vlaneseq
        %v4706 = vshrl.u32 %v4705, 7
        %v4707 = vsub.s32 0, %v4706
        %v4708 = vrot.slane %v4703, %v4707
        %4710 = vrot.lane.b32.xlu0 %v4708, 8
        %v4711 = vpop.permute.xlu0 %4710
        %v4713 = vmul.f32 %v4659, %v4711
        %v4714 = vmul.f32 %v4660, %v4711
        %v4715 = vmul.f32 %v4661, %v4711
        %v4716 = vmul.f32 %v4662, %v4711
        %v4717 = vmul.f32 %v4663, %v4711
        %v4718 = vmul.f32 %v4664, %v4711
        %v4719 = vmul.f32 %v4665, %v4711
        %v4720 = vmul.f32 %v4666, %v4711
        %v4721 = vmul.f32 %v4667, %v4711
        %v4722 = vmul.f32 %v4668, %v4711
        %v4723 = vmul.f32 %v4669, %v4711
        %v4724 = vmul.f32 %v4670, %v4711
        %v4725 = vmul.f32 %v4671, %v4711
        %v4726 = vmul.f32 %v4672, %v4711
        %v4727 = vmul.f32 %v4673, %v4711
        %v4728 = vmul.f32 %v4674, %v4711
        %v4729 = vmul.f32 %v4675, %v4711
        %v4730 = vmul.f32 %v4676, %v4711
        %v4731 = vmul.f32 %v4677, %v4711
        %v4732 = vmul.f32 %v4678, %v4711
        %v4733 = vmul.f32 %v4679, %v4711
        %v4734 = vmul.f32 %v4680, %v4711
        %v4735 = vmul.f32 %v4681, %v4711
        %v4736 = vmul.f32 %v4682, %v4711
        %v4737 = vmul.f32 %v4683, %v4711
        %v4738 = vmul.f32 %v4684, %v4711
        %v4739 = vmul.f32 %v4685, %v4711
        %v4740 = vmul.f32 %v4686, %v4711
        %v4741 = vmul.f32 %v4687, %v4711
        %v4742 = vmul.f32 %v4688, %v4711
        %v4743 = vmul.f32 %v4689, %v4711
        %v4744 = vmul.f32 %v4690, %v4711
        %v4745 = vlaneseq
        %v4746 = vshrl.u32 %v4745, 7
        %v4747 = vsub.s32 0, %v4746
        %v4748 = vrot.slane %v4704, %v4747
        %4750 = vrot.lane.b32.xlu0 %v4748, 8
        %v4751 = vpop.permute.xlu0 %4750
        %v4753 = vadd.f32 %v4713, %v4751
        %v4754 = vadd.f32 %v4714, %v4751
        %v4755 = vadd.f32 %v4715, %v4751
        %v4756 = vadd.f32 %v4716, %v4751
        %v4757 = vadd.f32 %v4717, %v4751
        %v4758 = vadd.f32 %v4718, %v4751
        %v4759 = vadd.f32 %v4719, %v4751
        %v4760 = vadd.f32 %v4720, %v4751
        %v4761 = vadd.f32 %v4721, %v4751
        %v4762 = vadd.f32 %v4722, %v4751
        %v4763 = vadd.f32 %v4723, %v4751
        %v4764 = vadd.f32 %v4724, %v4751
        %v4765 = vadd.f32 %v4725, %v4751
        %v4766 = vadd.f32 %v4726, %v4751
        %v4767 = vadd.f32 %v4727, %v4751
        %v4768 = vadd.f32 %v4728, %v4751
        %v4769 = vadd.f32 %v4729, %v4751
        %v4770 = vadd.f32 %v4730, %v4751
        %v4771 = vadd.f32 %v4731, %v4751
        %v4772 = vadd.f32 %v4732, %v4751
        %v4773 = vadd.f32 %v4733, %v4751
        %v4774 = vadd.f32 %v4734, %v4751
        %v4775 = vadd.f32 %v4735, %v4751
        %v4776 = vadd.f32 %v4736, %v4751
        %v4777 = vadd.f32 %v4737, %v4751
        %v4778 = vadd.f32 %v4738, %v4751
        %v4779 = vadd.f32 %v4739, %v4751
        %v4780 = vadd.f32 %v4740, %v4751
        %v4781 = vadd.f32 %v4741, %v4751
        %v4782 = vadd.f32 %v4742, %v4751
        %v4783 = vadd.f32 %v4743, %v4751
        %v4784 = vadd.f32 %v4744, %v4751
        %4817 = vrot.lane.b32.xlu0 %v4753, 120
        %v4818 = vpop.permute.xlu0 %4817
        %4819 = vrot.lane.b32.xlu0 %v4754, 120
        %v4820 = vpop.permute.xlu0 %4819
        %4821 = vrot.lane.b32.xlu0 %v4755, 120
        %v4822 = vpop.permute.xlu0 %4821
        %4823 = vrot.lane.b32.xlu0 %v4756, 120
        %v4824 = vpop.permute.xlu0 %4823
        %4825 = vrot.lane.b32.xlu0 %v4757, 120
        %v4826 = vpop.permute.xlu0 %4825
        %4827 = vrot.lane.b32.xlu0 %v4758, 120
        %v4828 = vpop.permute.xlu0 %4827
        %4829 = vrot.lane.b32.xlu0 %v4759, 120
        %v4830 = vpop.permute.xlu0 %4829
        %4831 = vrot.lane.b32.xlu0 %v4760, 120
        %v4832 = vpop.permute.xlu0 %4831
        %4833 = vrot.lane.b32.xlu0 %v4761, 120
        %v4834 = vpop.permute.xlu0 %4833
        %4835 = vrot.lane.b32.xlu0 %v4762, 120
        %v4836 = vpop.permute.xlu0 %4835
        %4837 = vrot.lane.b32.xlu0 %v4763, 120
        %v4838 = vpop.permute.xlu0 %4837
        %4839 = vrot.lane.b32.xlu0 %v4764, 120
        %v4840 = vpop.permute.xlu0 %4839
        %4841 = vrot.lane.b32.xlu0 %v4765, 120
        %v4842 = vpop.permute.xlu0 %4841
        %4843 = vrot.lane.b32.xlu0 %v4766, 120
        %v4844 = vpop.permute.xlu0 %4843
        %4845 = vrot.lane.b32.xlu0 %v4767, 120
        %v4846 = vpop.permute.xlu0 %4845
        %4847 = vrot.lane.b32.xlu0 %v4768, 120
        %v4848 = vpop.permute.xlu0 %4847
        %4849 = vrot.lane.b32.xlu0 %v4769, 120
        %v4850 = vpop.permute.xlu0 %4849
        %4851 = vrot.lane.b32.xlu0 %v4770, 120
        %v4852 = vpop.permute.xlu0 %4851
        %4853 = vrot.lane.b32.xlu0 %v4771, 120
        %v4854 = vpop.permute.xlu0 %4853
        %4855 = vrot.lane.b32.xlu0 %v4772, 120
        %v4856 = vpop.permute.xlu0 %4855
        %4857 = vrot.lane.b32.xlu0 %v4773, 120
        %v4858 = vpop.permute.xlu0 %4857
        %4859 = vrot.lane.b32.xlu0 %v4774, 120
        %v4860 = vpop.permute.xlu0 %4859
        %4861 = vrot.lane.b32.xlu0 %v4775, 120
        %v4862 = vpop.permute.xlu0 %4861
        %4863 = vrot.lane.b32.xlu0 %v4776, 120
        %v4864 = vpop.permute.xlu0 %4863
        %4865 = vrot.lane.b32.xlu0 %v4777, 120
        %v4866 = vpop.permute.xlu0 %4865
        %4867 = vrot.lane.b32.xlu0 %v4778, 120
        %v4868 = vpop.permute.xlu0 %4867
        %4869 = vrot.lane.b32.xlu0 %v4779, 120
        %v4870 = vpop.permute.xlu0 %4869
        %4871 = vrot.lane.b32.xlu0 %v4780, 120
        %v4872 = vpop.permute.xlu0 %4871
        %4873 = vrot.lane.b32.xlu0 %v4781, 120
        %v4874 = vpop.permute.xlu0 %4873
        %4875 = vrot.lane.b32.xlu0 %v4782, 120
        %v4876 = vpop.permute.xlu0 %4875
        %4877 = vrot.lane.b32.xlu0 %v4783, 120
        %v4878 = vpop.permute.xlu0 %4877
        %4879 = vrot.lane.b32.xlu0 %v4784, 120
        %v4880 = vpop.permute.xlu0 %4879
        %4913 = vst.msk [vmem:[%s519 + $0x8] sm:$0xff] %vm330, %v4818
        %4914 = vst.msk [vmem:[%s519 + $0x10] sm:$0xff] %vm330, %v4820
        %4915 = vst.msk [vmem:[%s519 + $0x28] sm:$0xff] %vm330, %v4822
        %4916 = vst.msk [vmem:[%s519 + $0x30] sm:$0xff] %vm330, %v4824
        %4917 = vst.msk [vmem:[%s519 + $0x48] sm:$0xff] %vm330, %v4826
        %4918 = vst.msk [vmem:[%s519 + $0x50] sm:$0xff] %vm330, %v4828
        %4919 = vst.msk [vmem:[%s519 + $0x68] sm:$0xff] %vm330, %v4830
        %4920 = vst.msk [vmem:[%s519 + $0x70] sm:$0xff] %vm330, %v4832
        %4921 = vst.msk [vmem:[%s519 + $0x88] sm:$0xff] %vm330, %v4834
        %4922 = vst.msk [vmem:[%s519 + $0x90] sm:$0xff] %vm330, %v4836
        %4923 = vst.msk [vmem:[%s519 + $0xa8] sm:$0xff] %vm330, %v4838
        %4924 = vst.msk [vmem:[%s519 + $0xb0] sm:$0xff] %vm330, %v4840
        %4925 = vst.msk [vmem:[%s519 + $0xc8] sm:$0xff] %vm330, %v4842
        %4926 = vst.msk [vmem:[%s519 + $0xd0] sm:$0xff] %vm330, %v4844
        %4927 = vst.msk [vmem:[%s519 + $0xe8] sm:$0xff] %vm330, %v4846
        %4928 = vst.msk [vmem:[%s519 + $0xf0] sm:$0xff] %vm330, %v4848
        %4929 = vst.msk [vmem:[%s519 + $0x108] sm:$0xff] %vm330, %v4850
        %4930 = vst.msk [vmem:[%s519 + $0x110] sm:$0xff] %vm330, %v4852
        %4931 = vst.msk [vmem:[%s519 + $0x128] sm:$0xff] %vm330, %v4854
        %4932 = vst.msk [vmem:[%s519 + $0x130] sm:$0xff] %vm330, %v4856
        %4933 = vst.msk [vmem:[%s519 + $0x148] sm:$0xff] %vm330, %v4858
        %4934 = vst.msk [vmem:[%s519 + $0x150] sm:$0xff] %vm330, %v4860
        %4935 = vst.msk [vmem:[%s519 + $0x168] sm:$0xff] %vm330, %v4862
        %4936 = vst.msk [vmem:[%s519 + $0x170] sm:$0xff] %vm330, %v4864
        %4937 = vst.msk [vmem:[%s519 + $0x188] sm:$0xff] %vm330, %v4866
        %4938 = vst.msk [vmem:[%s519 + $0x190] sm:$0xff] %vm330, %v4868
        %4939 = vst.msk [vmem:[%s519 + $0x1a8] sm:$0xff] %vm330, %v4870
        %4940 = vst.msk [vmem:[%s519 + $0x1b0] sm:$0xff] %vm330, %v4872
        %4941 = vst.msk [vmem:[%s519 + $0x1c8] sm:$0xff] %vm330, %v4874
        %4942 = vst.msk [vmem:[%s519 + $0x1d0] sm:$0xff] %vm330, %v4876
        %4943 = vst.msk [vmem:[%s519 + $0x1e8] sm:$0xff] %vm330, %v4878
        %4944 = vst.msk [vmem:[%s519 + $0x1f0] sm:$0xff] %vm330, %v4880
        %v4945 = vld [vmem:[#allocation2 + $0x7] sm:$0xff]
        %v4946 = vld [vmem:[#allocation2 + $0xf] sm:$0xff]
        %v4947 = vld [vmem:[#allocation2 + $0x27] sm:$0xff]
        %v4948 = vld [vmem:[#allocation2 + $0x2f] sm:$0xff]
        %v4949 = vld [vmem:[#allocation2 + $0x47] sm:$0xff]
        %v4950 = vld [vmem:[#allocation2 + $0x4f] sm:$0xff]
        %v4951 = vld [vmem:[#allocation2 + $0x67] sm:$0xff]
        %v4952 = vld [vmem:[#allocation2 + $0x6f] sm:$0xff]
        %v4953 = vld [vmem:[#allocation2 + $0x87] sm:$0xff]
        %v4954 = vld [vmem:[#allocation2 + $0x8f] sm:$0xff]
        %v4955 = vld [vmem:[#allocation2 + $0xa7] sm:$0xff]
        %v4956 = vld [vmem:[#allocation2 + $0xaf] sm:$0xff]
        %v4957 = vld [vmem:[#allocation2 + $0xc7] sm:$0xff]
        %v4958 = vld [vmem:[#allocation2 + $0xcf] sm:$0xff]
        %v4959 = vld [vmem:[#allocation2 + $0xe7] sm:$0xff]
        %v4960 = vld [vmem:[#allocation2 + $0xef] sm:$0xff]
        %v4961 = vld [vmem:[#allocation2 + $0x107] sm:$0xff]
        %v4962 = vld [vmem:[#allocation2 + $0x10f] sm:$0xff]
        %v4963 = vld [vmem:[#allocation2 + $0x127] sm:$0xff]
        %v4964 = vld [vmem:[#allocation2 + $0x12f] sm:$0xff]
        %v4965 = vld [vmem:[#allocation2 + $0x147] sm:$0xff]
        %v4966 = vld [vmem:[#allocation2 + $0x14f] sm:$0xff]
        %v4967 = vld [vmem:[#allocation2 + $0x167] sm:$0xff]
        %v4968 = vld [vmem:[#allocation2 + $0x16f] sm:$0xff]
        %v4969 = vld [vmem:[#allocation2 + $0x187] sm:$0xff]
        %v4970 = vld [vmem:[#allocation2 + $0x18f] sm:$0xff]
        %v4971 = vld [vmem:[#allocation2 + $0x1a7] sm:$0xff]
        %v4972 = vld [vmem:[#allocation2 + $0x1af] sm:$0xff]
        %v4973 = vld [vmem:[#allocation2 + $0x1c7] sm:$0xff]
        %v4974 = vld [vmem:[#allocation2 + $0x1cf] sm:$0xff]
        %v4975 = vld [vmem:[#allocation2 + $0x1e7] sm:$0xff]
        %v4976 = vld [vmem:[#allocation2 + $0x1ef] sm:$0xff]
        %v4977 = vld [vmem:[#allocation2 + $0x8] sm:$0xff]
        %v4978 = vld [vmem:[#allocation2 + $0x10] sm:$0xff]
        %v4979 = vld [vmem:[#allocation2 + $0x28] sm:$0xff]
        %v4980 = vld [vmem:[#allocation2 + $0x30] sm:$0xff]
        %v4981 = vld [vmem:[#allocation2 + $0x48] sm:$0xff]
        %v4982 = vld [vmem:[#allocation2 + $0x50] sm:$0xff]
        %v4983 = vld [vmem:[#allocation2 + $0x68] sm:$0xff]
        %v4984 = vld [vmem:[#allocation2 + $0x70] sm:$0xff]
        %v4985 = vld [vmem:[#allocation2 + $0x88] sm:$0xff]
        %v4986 = vld [vmem:[#allocation2 + $0x90] sm:$0xff]
        %v4987 = vld [vmem:[#allocation2 + $0xa8] sm:$0xff]
        %v4988 = vld [vmem:[#allocation2 + $0xb0] sm:$0xff]
        %v4989 = vld [vmem:[#allocation2 + $0xc8] sm:$0xff]
        %v4990 = vld [vmem:[#allocation2 + $0xd0] sm:$0xff]
        %v4991 = vld [vmem:[#allocation2 + $0xe8] sm:$0xff]
        %v4992 = vld [vmem:[#allocation2 + $0xf0] sm:$0xff]
        %v4993 = vld [vmem:[#allocation2 + $0x108] sm:$0xff]
        %v4994 = vld [vmem:[#allocation2 + $0x110] sm:$0xff]
        %v4995 = vld [vmem:[#allocation2 + $0x128] sm:$0xff]
        %v4996 = vld [vmem:[#allocation2 + $0x130] sm:$0xff]
        %v4997 = vld [vmem:[#allocation2 + $0x148] sm:$0xff]
        %v4998 = vld [vmem:[#allocation2 + $0x150] sm:$0xff]
        %v4999 = vld [vmem:[#allocation2 + $0x168] sm:$0xff]
        %v5000 = vld [vmem:[#allocation2 + $0x170] sm:$0xff]
        %v5001 = vld [vmem:[#allocation2 + $0x188] sm:$0xff]
        %v5002 = vld [vmem:[#allocation2 + $0x190] sm:$0xff]
        %v5003 = vld [vmem:[#allocation2 + $0x1a8] sm:$0xff]
        %v5004 = vld [vmem:[#allocation2 + $0x1b0] sm:$0xff]
        %v5005 = vld [vmem:[#allocation2 + $0x1c8] sm:$0xff]
        %v5006 = vld [vmem:[#allocation2 + $0x1d0] sm:$0xff]
        %v5007 = vld [vmem:[#allocation2 + $0x1e8] sm:$0xff]
        %v5008 = vld [vmem:[#allocation2 + $0x1f0] sm:$0xff]
        %v5009 = vld [vmem:[#allocation2 + $0x9] sm:$0xff]
        %v5010 = vld [vmem:[#allocation2 + $0x11] sm:$0xff]
        %v5011 = vld [vmem:[#allocation2 + $0x29] sm:$0xff]
        %v5012 = vld [vmem:[#allocation2 + $0x31] sm:$0xff]
        %v5013 = vld [vmem:[#allocation2 + $0x49] sm:$0xff]
        %v5014 = vld [vmem:[#allocation2 + $0x51] sm:$0xff]
        %v5015 = vld [vmem:[#allocation2 + $0x69] sm:$0xff]
        %v5016 = vld [vmem:[#allocation2 + $0x71] sm:$0xff]
        %v5017 = vld [vmem:[#allocation2 + $0x89] sm:$0xff]
        %v5018 = vld [vmem:[#allocation2 + $0x91] sm:$0xff]
        %v5019 = vld [vmem:[#allocation2 + $0xa9] sm:$0xff]
        %v5020 = vld [vmem:[#allocation2 + $0xb1] sm:$0xff]
        %v5021 = vld [vmem:[#allocation2 + $0xc9] sm:$0xff]
        %v5022 = vld [vmem:[#allocation2 + $0xd1] sm:$0xff]
        %v5023 = vld [vmem:[#allocation2 + $0xe9] sm:$0xff]
        %v5024 = vld [vmem:[#allocation2 + $0xf1] sm:$0xff]
        %v5025 = vld [vmem:[#allocation2 + $0x109] sm:$0xff]
        %v5026 = vld [vmem:[#allocation2 + $0x111] sm:$0xff]
        %v5027 = vld [vmem:[#allocation2 + $0x129] sm:$0xff]
        %v5028 = vld [vmem:[#allocation2 + $0x131] sm:$0xff]
        %v5029 = vld [vmem:[#allocation2 + $0x149] sm:$0xff]
        %v5030 = vld [vmem:[#allocation2 + $0x151] sm:$0xff]
        %v5031 = vld [vmem:[#allocation2 + $0x169] sm:$0xff]
        %v5032 = vld [vmem:[#allocation2 + $0x171] sm:$0xff]
        %v5033 = vld [vmem:[#allocation2 + $0x189] sm:$0xff]
        %v5034 = vld [vmem:[#allocation2 + $0x191] sm:$0xff]
        %v5035 = vld [vmem:[#allocation2 + $0x1a9] sm:$0xff]
        %v5036 = vld [vmem:[#allocation2 + $0x1b1] sm:$0xff]
        %v5037 = vld [vmem:[#allocation2 + $0x1c9] sm:$0xff]
        %v5038 = vld [vmem:[#allocation2 + $0x1d1] sm:$0xff]
        %v5039 = vld [vmem:[#allocation2 + $0x1e9] sm:$0xff]
        %v5040 = vld [vmem:[#allocation2 + $0x1f1] sm:$0xff]
        %v5041 = vld [vmem:[%s519 + $0x7] sm:$0xff]
        %v5042 = vld [vmem:[%s519 + $0xf] sm:$0xff]
        %v5043 = vld [vmem:[%s519 + $0x27] sm:$0xff]
        %v5044 = vld [vmem:[%s519 + $0x2f] sm:$0xff]
        %v5045 = vld [vmem:[%s519 + $0x47] sm:$0xff]
        %v5046 = vld [vmem:[%s519 + $0x4f] sm:$0xff]
        %v5047 = vld [vmem:[%s519 + $0x67] sm:$0xff]
        %v5048 = vld [vmem:[%s519 + $0x6f] sm:$0xff]
        %v5049 = vld [vmem:[%s519 + $0x87] sm:$0xff]
        %v5050 = vld [vmem:[%s519 + $0x8f] sm:$0xff]
        %v5051 = vld [vmem:[%s519 + $0xa7] sm:$0xff]
        %v5052 = vld [vmem:[%s519 + $0xaf] sm:$0xff]
        %v5053 = vld [vmem:[%s519 + $0xc7] sm:$0xff]
        %v5054 = vld [vmem:[%s519 + $0xcf] sm:$0xff]
        %v5055 = vld [vmem:[%s519 + $0xe7] sm:$0xff]
        %v5056 = vld [vmem:[%s519 + $0xef] sm:$0xff]
        %v5057 = vld [vmem:[%s519 + $0x107] sm:$0xff]
        %v5058 = vld [vmem:[%s519 + $0x10f] sm:$0xff]
        %v5059 = vld [vmem:[%s519 + $0x127] sm:$0xff]
        %v5060 = vld [vmem:[%s519 + $0x12f] sm:$0xff]
        %v5061 = vld [vmem:[%s519 + $0x147] sm:$0xff]
        %v5062 = vld [vmem:[%s519 + $0x14f] sm:$0xff]
        %v5063 = vld [vmem:[%s519 + $0x167] sm:$0xff]
        %v5064 = vld [vmem:[%s519 + $0x16f] sm:$0xff]
        %v5065 = vld [vmem:[%s519 + $0x187] sm:$0xff]
        %v5066 = vld [vmem:[%s519 + $0x18f] sm:$0xff]
        %v5067 = vld [vmem:[%s519 + $0x1a7] sm:$0xff]
        %v5068 = vld [vmem:[%s519 + $0x1af] sm:$0xff]
        %v5069 = vld [vmem:[%s519 + $0x1c7] sm:$0xff]
        %v5070 = vld [vmem:[%s519 + $0x1cf] sm:$0xff]
        %v5071 = vld [vmem:[%s519 + $0x1e7] sm:$0xff]
        %v5072 = vld [vmem:[%s519 + $0x1ef] sm:$0xff]
        %v5073 = vld [vmem:[%s519 + $0x8] sm:$0xff]
        %v5074 = vld [vmem:[%s519 + $0x10] sm:$0xff]
        %v5075 = vld [vmem:[%s519 + $0x28] sm:$0xff]
        %v5076 = vld [vmem:[%s519 + $0x30] sm:$0xff]
        %v5077 = vld [vmem:[%s519 + $0x48] sm:$0xff]
        %v5078 = vld [vmem:[%s519 + $0x50] sm:$0xff]
        %v5079 = vld [vmem:[%s519 + $0x68] sm:$0xff]
        %v5080 = vld [vmem:[%s519 + $0x70] sm:$0xff]
        %v5081 = vld [vmem:[%s519 + $0x88] sm:$0xff]
        %v5082 = vld [vmem:[%s519 + $0x90] sm:$0xff]
        %v5083 = vld [vmem:[%s519 + $0xa8] sm:$0xff]
        %v5084 = vld [vmem:[%s519 + $0xb0] sm:$0xff]
        %v5085 = vld [vmem:[%s519 + $0xc8] sm:$0xff]
        %v5086 = vld [vmem:[%s519 + $0xd0] sm:$0xff]
        %v5087 = vld [vmem:[%s519 + $0xe8] sm:$0xff]
        %v5088 = vld [vmem:[%s519 + $0xf0] sm:$0xff]
        %v5089 = vld [vmem:[%s519 + $0x108] sm:$0xff]
        %v5090 = vld [vmem:[%s519 + $0x110] sm:$0xff]
        %v5091 = vld [vmem:[%s519 + $0x128] sm:$0xff]
        %v5092 = vld [vmem:[%s519 + $0x130] sm:$0xff]
        %v5093 = vld [vmem:[%s519 + $0x148] sm:$0xff]
        %v5094 = vld [vmem:[%s519 + $0x150] sm:$0xff]
        %v5095 = vld [vmem:[%s519 + $0x168] sm:$0xff]
        %v5096 = vld [vmem:[%s519 + $0x170] sm:$0xff]
        %v5097 = vld [vmem:[%s519 + $0x188] sm:$0xff]
        %v5098 = vld [vmem:[%s519 + $0x190] sm:$0xff]
        %v5099 = vld [vmem:[%s519 + $0x1a8] sm:$0xff]
        %v5100 = vld [vmem:[%s519 + $0x1b0] sm:$0xff]
        %v5101 = vld [vmem:[%s519 + $0x1c8] sm:$0xff]
        %v5102 = vld [vmem:[%s519 + $0x1d0] sm:$0xff]
        %v5103 = vld [vmem:[%s519 + $0x1e8] sm:$0xff]
        %v5104 = vld [vmem:[%s519 + $0x1f0] sm:$0xff]
        %v5105 = vld [vmem:[%s519 + $0x9] sm:$0xff]
        %v5106 = vld [vmem:[%s519 + $0x11] sm:$0xff]
        %v5107 = vld [vmem:[%s519 + $0x29] sm:$0xff]
        %v5108 = vld [vmem:[%s519 + $0x31] sm:$0xff]
        %v5109 = vld [vmem:[%s519 + $0x49] sm:$0xff]
        %v5110 = vld [vmem:[%s519 + $0x51] sm:$0xff]
        %v5111 = vld [vmem:[%s519 + $0x69] sm:$0xff]
        %v5112 = vld [vmem:[%s519 + $0x71] sm:$0xff]
        %v5113 = vld [vmem:[%s519 + $0x89] sm:$0xff]
        %v5114 = vld [vmem:[%s519 + $0x91] sm:$0xff]
        %v5115 = vld [vmem:[%s519 + $0xa9] sm:$0xff]
        %v5116 = vld [vmem:[%s519 + $0xb1] sm:$0xff]
        %v5117 = vld [vmem:[%s519 + $0xc9] sm:$0xff]
        %v5118 = vld [vmem:[%s519 + $0xd1] sm:$0xff]
        %v5119 = vld [vmem:[%s519 + $0xe9] sm:$0xff]
        %v5120 = vld [vmem:[%s519 + $0xf1] sm:$0xff]
        %v5121 = vld [vmem:[%s519 + $0x109] sm:$0xff]
        %v5122 = vld [vmem:[%s519 + $0x111] sm:$0xff]
        %v5123 = vld [vmem:[%s519 + $0x129] sm:$0xff]
        %v5124 = vld [vmem:[%s519 + $0x131] sm:$0xff]
        %v5125 = vld [vmem:[%s519 + $0x149] sm:$0xff]
        %v5126 = vld [vmem:[%s519 + $0x151] sm:$0xff]
        %v5127 = vld [vmem:[%s519 + $0x169] sm:$0xff]
        %v5128 = vld [vmem:[%s519 + $0x171] sm:$0xff]
        %v5129 = vld [vmem:[%s519 + $0x189] sm:$0xff]
        %v5130 = vld [vmem:[%s519 + $0x191] sm:$0xff]
        %v5131 = vld [vmem:[%s519 + $0x1a9] sm:$0xff]
        %v5132 = vld [vmem:[%s519 + $0x1b1] sm:$0xff]
        %v5133 = vld [vmem:[%s519 + $0x1c9] sm:$0xff]
        %v5134 = vld [vmem:[%s519 + $0x1d1] sm:$0xff]
        %v5135 = vld [vmem:[%s519 + $0x1e9] sm:$0xff]
        %v5136 = vld [vmem:[%s519 + $0x1f1] sm:$0xff]
        %v5137 = vld [vmem:[%s744 + $0x7] sm:$0xff]
        %v5138 = vld [vmem:[%s744 + $0xf] sm:$0xff]
        %v5139 = vld [vmem:[%s744 + $0x27] sm:$0xff]
        %v5140 = vld [vmem:[%s744 + $0x2f] sm:$0xff]
        %v5141 = vld [vmem:[%s744 + $0x47] sm:$0xff]
        %v5142 = vld [vmem:[%s744 + $0x4f] sm:$0xff]
        %v5143 = vld [vmem:[%s744 + $0x67] sm:$0xff]
        %v5144 = vld [vmem:[%s744 + $0x6f] sm:$0xff]
        %v5145 = vld [vmem:[%s744 + $0x87] sm:$0xff]
        %v5146 = vld [vmem:[%s744 + $0x8f] sm:$0xff]
        %v5147 = vld [vmem:[%s744 + $0xa7] sm:$0xff]
        %v5148 = vld [vmem:[%s744 + $0xaf] sm:$0xff]
        %v5149 = vld [vmem:[%s744 + $0xc7] sm:$0xff]
        %v5150 = vld [vmem:[%s744 + $0xcf] sm:$0xff]
        %v5151 = vld [vmem:[%s744 + $0xe7] sm:$0xff]
        %v5152 = vld [vmem:[%s744 + $0xef] sm:$0xff]
        %v5153 = vld [vmem:[%s744 + $0x107] sm:$0xff]
        %v5154 = vld [vmem:[%s744 + $0x10f] sm:$0xff]
        %v5155 = vld [vmem:[%s744 + $0x127] sm:$0xff]
        %v5156 = vld [vmem:[%s744 + $0x12f] sm:$0xff]
        %v5157 = vld [vmem:[%s744 + $0x147] sm:$0xff]
        %v5158 = vld [vmem:[%s744 + $0x14f] sm:$0xff]
        %v5159 = vld [vmem:[%s744 + $0x167] sm:$0xff]
        %v5160 = vld [vmem:[%s744 + $0x16f] sm:$0xff]
        %v5161 = vld [vmem:[%s744 + $0x187] sm:$0xff]
        %v5162 = vld [vmem:[%s744 + $0x18f] sm:$0xff]
        %v5163 = vld [vmem:[%s744 + $0x1a7] sm:$0xff]
        %v5164 = vld [vmem:[%s744 + $0x1af] sm:$0xff]
        %v5165 = vld [vmem:[%s744 + $0x1c7] sm:$0xff]
        %v5166 = vld [vmem:[%s744 + $0x1cf] sm:$0xff]
        %v5167 = vld [vmem:[%s744 + $0x1e7] sm:$0xff]
        %v5168 = vld [vmem:[%s744 + $0x1ef] sm:$0xff]
        %v5169 = vld [vmem:[%s744 + $0x8] sm:$0xff]
        %v5170 = vld [vmem:[%s744 + $0x10] sm:$0xff]
        %v5171 = vld [vmem:[%s744 + $0x28] sm:$0xff]
        %v5172 = vld [vmem:[%s744 + $0x30] sm:$0xff]
        %v5173 = vld [vmem:[%s744 + $0x48] sm:$0xff]
        %v5174 = vld [vmem:[%s744 + $0x50] sm:$0xff]
        %v5175 = vld [vmem:[%s744 + $0x68] sm:$0xff]
        %v5176 = vld [vmem:[%s744 + $0x70] sm:$0xff]
        %v5177 = vld [vmem:[%s744 + $0x88] sm:$0xff]
        %v5178 = vld [vmem:[%s744 + $0x90] sm:$0xff]
        %v5179 = vld [vmem:[%s744 + $0xa8] sm:$0xff]
        %v5180 = vld [vmem:[%s744 + $0xb0] sm:$0xff]
        %v5181 = vld [vmem:[%s744 + $0xc8] sm:$0xff]
        %v5182 = vld [vmem:[%s744 + $0xd0] sm:$0xff]
        %v5183 = vld [vmem:[%s744 + $0xe8] sm:$0xff]
        %v5184 = vld [vmem:[%s744 + $0xf0] sm:$0xff]
        %v5185 = vld [vmem:[%s744 + $0x108] sm:$0xff]
        %v5186 = vld [vmem:[%s744 + $0x110] sm:$0xff]
        %v5187 = vld [vmem:[%s744 + $0x128] sm:$0xff]
        %v5188 = vld [vmem:[%s744 + $0x130] sm:$0xff]
        %v5189 = vld [vmem:[%s744 + $0x148] sm:$0xff]
        %v5190 = vld [vmem:[%s744 + $0x150] sm:$0xff]
        %v5191 = vld [vmem:[%s744 + $0x168] sm:$0xff]
        %v5192 = vld [vmem:[%s744 + $0x170] sm:$0xff]
        %v5193 = vld [vmem:[%s744 + $0x188] sm:$0xff]
        %v5194 = vld [vmem:[%s744 + $0x190] sm:$0xff]
        %v5195 = vld [vmem:[%s744 + $0x1a8] sm:$0xff]
        %v5196 = vld [vmem:[%s744 + $0x1b0] sm:$0xff]
        %v5197 = vld [vmem:[%s744 + $0x1c8] sm:$0xff]
        %v5198 = vld [vmem:[%s744 + $0x1d0] sm:$0xff]
        %v5199 = vld [vmem:[%s744 + $0x1e8] sm:$0xff]
        %v5200 = vld [vmem:[%s744 + $0x1f0] sm:$0xff]
        %v5201 = vld [vmem:[%s744 + $0x9] sm:$0xff]
        %v5202 = vld [vmem:[%s744 + $0x11] sm:$0xff]
        %v5203 = vld [vmem:[%s744 + $0x29] sm:$0xff]
        %v5204 = vld [vmem:[%s744 + $0x31] sm:$0xff]
        %v5205 = vld [vmem:[%s744 + $0x49] sm:$0xff]
        %v5206 = vld [vmem:[%s744 + $0x51] sm:$0xff]
        %v5207 = vld [vmem:[%s744 + $0x69] sm:$0xff]
        %v5208 = vld [vmem:[%s744 + $0x71] sm:$0xff]
        %v5209 = vld [vmem:[%s744 + $0x89] sm:$0xff]
        %v5210 = vld [vmem:[%s744 + $0x91] sm:$0xff]
        %v5211 = vld [vmem:[%s744 + $0xa9] sm:$0xff]
        %v5212 = vld [vmem:[%s744 + $0xb1] sm:$0xff]
        %v5213 = vld [vmem:[%s744 + $0xc9] sm:$0xff]
        %v5214 = vld [vmem:[%s744 + $0xd1] sm:$0xff]
        %v5215 = vld [vmem:[%s744 + $0xe9] sm:$0xff]
        %v5216 = vld [vmem:[%s744 + $0xf1] sm:$0xff]
        %v5217 = vld [vmem:[%s744 + $0x109] sm:$0xff]
        %v5218 = vld [vmem:[%s744 + $0x111] sm:$0xff]
        %v5219 = vld [vmem:[%s744 + $0x129] sm:$0xff]
        %v5220 = vld [vmem:[%s744 + $0x131] sm:$0xff]
        %v5221 = vld [vmem:[%s744 + $0x149] sm:$0xff]
        %v5222 = vld [vmem:[%s744 + $0x151] sm:$0xff]
        %v5223 = vld [vmem:[%s744 + $0x169] sm:$0xff]
        %v5224 = vld [vmem:[%s744 + $0x171] sm:$0xff]
        %v5225 = vld [vmem:[%s744 + $0x189] sm:$0xff]
        %v5226 = vld [vmem:[%s744 + $0x191] sm:$0xff]
        %v5227 = vld [vmem:[%s744 + $0x1a9] sm:$0xff]
        %v5228 = vld [vmem:[%s744 + $0x1b1] sm:$0xff]
        %v5229 = vld [vmem:[%s744 + $0x1c9] sm:$0xff]
        %v5230 = vld [vmem:[%s744 + $0x1d1] sm:$0xff]
        %v5231 = vld [vmem:[%s744 + $0x1e9] sm:$0xff]
        %v5232 = vld [vmem:[%s744 + $0x1f1] sm:$0xff]
        %5265 = vrot.lane.b32.xlu0 %v4977, 8
        %v5266 = vpop.permute.xlu0 %5265
        %5267 = vrot.lane.b32.xlu0 %v4978, 8
        %v5268 = vpop.permute.xlu0 %5267
        %5269 = vrot.lane.b32.xlu0 %v4979, 8
        %v5270 = vpop.permute.xlu0 %5269
        %5271 = vrot.lane.b32.xlu0 %v4980, 8
        %v5272 = vpop.permute.xlu0 %5271
        %5273 = vrot.lane.b32.xlu0 %v4981, 8
        %v5274 = vpop.permute.xlu0 %5273
        %5275 = vrot.lane.b32.xlu0 %v4982, 8
        %v5276 = vpop.permute.xlu0 %5275
        %5277 = vrot.lane.b32.xlu0 %v4983, 8
        %v5278 = vpop.permute.xlu0 %5277
        %5279 = vrot.lane.b32.xlu0 %v4984, 8
        %v5280 = vpop.permute.xlu0 %5279
        %5281 = vrot.lane.b32.xlu0 %v4985, 8
        %v5282 = vpop.permute.xlu0 %5281
        %5283 = vrot.lane.b32.xlu0 %v4986, 8
        %v5284 = vpop.permute.xlu0 %5283
        %5285 = vrot.lane.b32.xlu0 %v4987, 8
        %v5286 = vpop.permute.xlu0 %5285
        %5287 = vrot.lane.b32.xlu0 %v4988, 8
        %v5288 = vpop.permute.xlu0 %5287
        %5289 = vrot.lane.b32.xlu0 %v4989, 8
        %v5290 = vpop.permute.xlu0 %5289
        %5291 = vrot.lane.b32.xlu0 %v4990, 8
        %v5292 = vpop.permute.xlu0 %5291
        %5293 = vrot.lane.b32.xlu0 %v4991, 8
        %v5294 = vpop.permute.xlu0 %5293
        %5295 = vrot.lane.b32.xlu0 %v4992, 8
        %v5296 = vpop.permute.xlu0 %5295
        %5297 = vrot.lane.b32.xlu0 %v4993, 8
        %v5298 = vpop.permute.xlu0 %5297
        %5299 = vrot.lane.b32.xlu0 %v4994, 8
        %v5300 = vpop.permute.xlu0 %5299
        %5301 = vrot.lane.b32.xlu0 %v4995, 8
        %v5302 = vpop.permute.xlu0 %5301
        %5303 = vrot.lane.b32.xlu0 %v4996, 8
        %v5304 = vpop.permute.xlu0 %5303
        %5305 = vrot.lane.b32.xlu0 %v4997, 8
        %v5306 = vpop.permute.xlu0 %5305
        %5307 = vrot.lane.b32.xlu0 %v4998, 8
        %v5308 = vpop.permute.xlu0 %5307
        %5309 = vrot.lane.b32.xlu0 %v4999, 8
        %v5310 = vpop.permute.xlu0 %5309
        %5311 = vrot.lane.b32.xlu0 %v5000, 8
        %v5312 = vpop.permute.xlu0 %5311
        %5313 = vrot.lane.b32.xlu0 %v5001, 8
        %v5314 = vpop.permute.xlu0 %5313
        %5315 = vrot.lane.b32.xlu0 %v5002, 8
        %v5316 = vpop.permute.xlu0 %5315
        %5317 = vrot.lane.b32.xlu0 %v5003, 8
        %v5318 = vpop.permute.xlu0 %5317
        %5319 = vrot.lane.b32.xlu0 %v5004, 8
        %v5320 = vpop.permute.xlu0 %5319
        %5321 = vrot.lane.b32.xlu0 %v5005, 8
        %v5322 = vpop.permute.xlu0 %5321
        %5323 = vrot.lane.b32.xlu0 %v5006, 8
        %v5324 = vpop.permute.xlu0 %5323
        %5325 = vrot.lane.b32.xlu0 %v5007, 8
        %v5326 = vpop.permute.xlu0 %5325
        %5327 = vrot.lane.b32.xlu0 %v5008, 8
        %v5328 = vpop.permute.xlu0 %5327
        %5393 = vrot.lane.b32.xlu0 %v5009, 16
        %v5394 = vpop.permute.xlu0 %5393
        %5395 = vrot.lane.b32.xlu0 %v5010, 16
        %v5396 = vpop.permute.xlu0 %5395
        %5397 = vrot.lane.b32.xlu0 %v5011, 16
        %v5398 = vpop.permute.xlu0 %5397
        %5399 = vrot.lane.b32.xlu0 %v5012, 16
        %v5400 = vpop.permute.xlu0 %5399
        %5401 = vrot.lane.b32.xlu0 %v5013, 16
        %v5402 = vpop.permute.xlu0 %5401
        %5403 = vrot.lane.b32.xlu0 %v5014, 16
        %v5404 = vpop.permute.xlu0 %5403
        %5405 = vrot.lane.b32.xlu0 %v5015, 16
        %v5406 = vpop.permute.xlu0 %5405
        %5407 = vrot.lane.b32.xlu0 %v5016, 16
        %v5408 = vpop.permute.xlu0 %5407
        %5409 = vrot.lane.b32.xlu0 %v5017, 16
        %v5410 = vpop.permute.xlu0 %5409
        %5411 = vrot.lane.b32.xlu0 %v5018, 16
        %v5412 = vpop.permute.xlu0 %5411
        %5413 = vrot.lane.b32.xlu0 %v5019, 16
        %v5414 = vpop.permute.xlu0 %5413
        %5415 = vrot.lane.b32.xlu0 %v5020, 16
        %v5416 = vpop.permute.xlu0 %5415
        %5417 = vrot.lane.b32.xlu0 %v5021, 16
        %v5418 = vpop.permute.xlu0 %5417
        %5419 = vrot.lane.b32.xlu0 %v5022, 16
        %v5420 = vpop.permute.xlu0 %5419
        %5421 = vrot.lane.b32.xlu0 %v5023, 16
        %v5422 = vpop.permute.xlu0 %5421
        %5423 = vrot.lane.b32.xlu0 %v5024, 16
        %v5424 = vpop.permute.xlu0 %5423
        %5425 = vrot.lane.b32.xlu0 %v5025, 16
        %v5426 = vpop.permute.xlu0 %5425
        %5427 = vrot.lane.b32.xlu0 %v5026, 16
        %v5428 = vpop.permute.xlu0 %5427
        %5429 = vrot.lane.b32.xlu0 %v5027, 16
        %v5430 = vpop.permute.xlu0 %5429
        %5431 = vrot.lane.b32.xlu0 %v5028, 16
        %v5432 = vpop.permute.xlu0 %5431
        %5433 = vrot.lane.b32.xlu0 %v5029, 16
        %v5434 = vpop.permute.xlu0 %5433
        %5435 = vrot.lane.b32.xlu0 %v5030, 16
        %v5436 = vpop.permute.xlu0 %5435
        %5437 = vrot.lane.b32.xlu0 %v5031, 16
        %v5438 = vpop.permute.xlu0 %5437
        %5439 = vrot.lane.b32.xlu0 %v5032, 16
        %v5440 = vpop.permute.xlu0 %5439
        %5441 = vrot.lane.b32.xlu0 %v5033, 16
        %v5442 = vpop.permute.xlu0 %5441
        %5443 = vrot.lane.b32.xlu0 %v5034, 16
        %v5444 = vpop.permute.xlu0 %5443
        %5445 = vrot.lane.b32.xlu0 %v5035, 16
        %v5446 = vpop.permute.xlu0 %5445
        %5447 = vrot.lane.b32.xlu0 %v5036, 16
        %v5448 = vpop.permute.xlu0 %5447
        %5449 = vrot.lane.b32.xlu0 %v5037, 16
        %v5450 = vpop.permute.xlu0 %5449
        %5451 = vrot.lane.b32.xlu0 %v5038, 16
        %v5452 = vpop.permute.xlu0 %5451
        %5453 = vrot.lane.b32.xlu0 %v5039, 16
        %v5454 = vpop.permute.xlu0 %5453
        %5455 = vrot.lane.b32.xlu0 %v5040, 16
        %v5456 = vpop.permute.xlu0 %5455
        %5521 = vrot.lane.b32.xlu0 %v5041, 24
        %v5522 = vpop.permute.xlu0 %5521
        %5523 = vrot.lane.b32.xlu0 %v5042, 24
        %v5524 = vpop.permute.xlu0 %5523
        %5525 = vrot.lane.b32.xlu0 %v5043, 24
        %v5526 = vpop.permute.xlu0 %5525
        %5527 = vrot.lane.b32.xlu0 %v5044, 24
        %v5528 = vpop.permute.xlu0 %5527
        %5529 = vrot.lane.b32.xlu0 %v5045, 24
        %v5530 = vpop.permute.xlu0 %5529
        %5531 = vrot.lane.b32.xlu0 %v5046, 24
        %v5532 = vpop.permute.xlu0 %5531
        %5533 = vrot.lane.b32.xlu0 %v5047, 24
        %v5534 = vpop.permute.xlu0 %5533
        %5535 = vrot.lane.b32.xlu0 %v5048, 24
        %v5536 = vpop.permute.xlu0 %5535
        %5537 = vrot.lane.b32.xlu0 %v5049, 24
        %v5538 = vpop.permute.xlu0 %5537
        %5539 = vrot.lane.b32.xlu0 %v5050, 24
        %v5540 = vpop.permute.xlu0 %5539
        %5541 = vrot.lane.b32.xlu0 %v5051, 24
        %v5542 = vpop.permute.xlu0 %5541
        %5543 = vrot.lane.b32.xlu0 %v5052, 24
        %v5544 = vpop.permute.xlu0 %5543
        %5545 = vrot.lane.b32.xlu0 %v5053, 24
        %v5546 = vpop.permute.xlu0 %5545
        %5547 = vrot.lane.b32.xlu0 %v5054, 24
        %v5548 = vpop.permute.xlu0 %5547
        %5549 = vrot.lane.b32.xlu0 %v5055, 24
        %v5550 = vpop.permute.xlu0 %5549
        %5551 = vrot.lane.b32.xlu0 %v5056, 24
        %v5552 = vpop.permute.xlu0 %5551
        %5553 = vrot.lane.b32.xlu0 %v5057, 24
        %v5554 = vpop.permute.xlu0 %5553
        %5555 = vrot.lane.b32.xlu0 %v5058, 24
        %v5556 = vpop.permute.xlu0 %5555
        %5557 = vrot.lane.b32.xlu0 %v5059, 24
        %v5558 = vpop.permute.xlu0 %5557
        %5559 = vrot.lane.b32.xlu0 %v5060, 24
        %v5560 = vpop.permute.xlu0 %5559
        %5561 = vrot.lane.b32.xlu0 %v5061, 24
        %v5562 = vpop.permute.xlu0 %5561
        %5563 = vrot.lane.b32.xlu0 %v5062, 24
        %v5564 = vpop.permute.xlu0 %5563
        %5565 = vrot.lane.b32.xlu0 %v5063, 24
        %v5566 = vpop.permute.xlu0 %5565
        %5567 = vrot.lane.b32.xlu0 %v5064, 24
        %v5568 = vpop.permute.xlu0 %5567
        %5569 = vrot.lane.b32.xlu0 %v5065, 24
        %v5570 = vpop.permute.xlu0 %5569
        %5571 = vrot.lane.b32.xlu0 %v5066, 24
        %v5572 = vpop.permute.xlu0 %5571
        %5573 = vrot.lane.b32.xlu0 %v5067, 24
        %v5574 = vpop.permute.xlu0 %5573
        %5575 = vrot.lane.b32.xlu0 %v5068, 24
        %v5576 = vpop.permute.xlu0 %5575
        %5577 = vrot.lane.b32.xlu0 %v5069, 24
        %v5578 = vpop.permute.xlu0 %5577
        %5579 = vrot.lane.b32.xlu0 %v5070, 24
        %v5580 = vpop.permute.xlu0 %5579
        %5581 = vrot.lane.b32.xlu0 %v5071, 24
        %v5582 = vpop.permute.xlu0 %5581
        %5583 = vrot.lane.b32.xlu0 %v5072, 24
        %v5584 = vpop.permute.xlu0 %5583
        %5649 = vrot.lane.b32.xlu0 %v5073, 32
        %v5650 = vpop.permute.xlu0 %5649
        %5651 = vrot.lane.b32.xlu0 %v5074, 32
        %v5652 = vpop.permute.xlu0 %5651
        %5653 = vrot.lane.b32.xlu0 %v5075, 32
        %v5654 = vpop.permute.xlu0 %5653
        %5655 = vrot.lane.b32.xlu0 %v5076, 32
        %v5656 = vpop.permute.xlu0 %5655
        %5657 = vrot.lane.b32.xlu0 %v5077, 32
        %v5658 = vpop.permute.xlu0 %5657
        %5659 = vrot.lane.b32.xlu0 %v5078, 32
        %v5660 = vpop.permute.xlu0 %5659
        %5661 = vrot.lane.b32.xlu0 %v5079, 32
        %v5662 = vpop.permute.xlu0 %5661
        %5663 = vrot.lane.b32.xlu0 %v5080, 32
        %v5664 = vpop.permute.xlu0 %5663
        %5665 = vrot.lane.b32.xlu0 %v5081, 32
        %v5666 = vpop.permute.xlu0 %5665
        %5667 = vrot.lane.b32.xlu0 %v5082, 32
        %v5668 = vpop.permute.xlu0 %5667
        %5669 = vrot.lane.b32.xlu0 %v5083, 32
        %v5670 = vpop.permute.xlu0 %5669
        %5671 = vrot.lane.b32.xlu0 %v5084, 32
        %v5672 = vpop.permute.xlu0 %5671
        %5673 = vrot.lane.b32.xlu0 %v5085, 32
        %v5674 = vpop.permute.xlu0 %5673
        %5675 = vrot.lane.b32.xlu0 %v5086, 32
        %v5676 = vpop.permute.xlu0 %5675
        %5677 = vrot.lane.b32.xlu0 %v5087, 32
        %v5678 = vpop.permute.xlu0 %5677
        %5679 = vrot.lane.b32.xlu0 %v5088, 32
        %v5680 = vpop.permute.xlu0 %5679
        %5681 = vrot.lane.b32.xlu0 %v5089, 32
        %v5682 = vpop.permute.xlu0 %5681
        %5683 = vrot.lane.b32.xlu0 %v5090, 32
        %v5684 = vpop.permute.xlu0 %5683
        %5685 = vrot.lane.b32.xlu0 %v5091, 32
        %v5686 = vpop.permute.xlu0 %5685
        %5687 = vrot.lane.b32.xlu0 %v5092, 32
        %v5688 = vpop.permute.xlu0 %5687
        %5689 = vrot.lane.b32.xlu0 %v5093, 32
        %v5690 = vpop.permute.xlu0 %5689
        %5691 = vrot.lane.b32.xlu0 %v5094, 32
        %v5692 = vpop.permute.xlu0 %5691
        %5693 = vrot.lane.b32.xlu0 %v5095, 32
        %v5694 = vpop.permute.xlu0 %5693
        %5695 = vrot.lane.b32.xlu0 %v5096, 32
        %v5696 = vpop.permute.xlu0 %5695
        %5697 = vrot.lane.b32.xlu0 %v5097, 32
        %v5698 = vpop.permute.xlu0 %5697
        %5699 = vrot.lane.b32.xlu0 %v5098, 32
        %v5700 = vpop.permute.xlu0 %5699
        %5701 = vrot.lane.b32.xlu0 %v5099, 32
        %v5702 = vpop.permute.xlu0 %5701
        %5703 = vrot.lane.b32.xlu0 %v5100, 32
        %v5704 = vpop.permute.xlu0 %5703
        %5705 = vrot.lane.b32.xlu0 %v5101, 32
        %v5706 = vpop.permute.xlu0 %5705
        %5707 = vrot.lane.b32.xlu0 %v5102, 32
        %v5708 = vpop.permute.xlu0 %5707
        %5709 = vrot.lane.b32.xlu0 %v5103, 32
        %v5710 = vpop.permute.xlu0 %5709
        %5711 = vrot.lane.b32.xlu0 %v5104, 32
        %v5712 = vpop.permute.xlu0 %5711
        %5777 = vrot.lane.b32.xlu0 %v5105, 40
        %v5778 = vpop.permute.xlu0 %5777
        %5779 = vrot.lane.b32.xlu0 %v5106, 40
        %v5780 = vpop.permute.xlu0 %5779
        %5781 = vrot.lane.b32.xlu0 %v5107, 40
        %v5782 = vpop.permute.xlu0 %5781
        %5783 = vrot.lane.b32.xlu0 %v5108, 40
        %v5784 = vpop.permute.xlu0 %5783
        %5785 = vrot.lane.b32.xlu0 %v5109, 40
        %v5786 = vpop.permute.xlu0 %5785
        %5787 = vrot.lane.b32.xlu0 %v5110, 40
        %v5788 = vpop.permute.xlu0 %5787
        %5789 = vrot.lane.b32.xlu0 %v5111, 40
        %v5790 = vpop.permute.xlu0 %5789
        %5791 = vrot.lane.b32.xlu0 %v5112, 40
        %v5792 = vpop.permute.xlu0 %5791
        %5793 = vrot.lane.b32.xlu0 %v5113, 40
        %v5794 = vpop.permute.xlu0 %5793
        %5795 = vrot.lane.b32.xlu0 %v5114, 40
        %v5796 = vpop.permute.xlu0 %5795
        %5797 = vrot.lane.b32.xlu0 %v5115, 40
        %v5798 = vpop.permute.xlu0 %5797
        %5799 = vrot.lane.b32.xlu0 %v5116, 40
        %v5800 = vpop.permute.xlu0 %5799
        %5801 = vrot.lane.b32.xlu0 %v5117, 40
        %v5802 = vpop.permute.xlu0 %5801
        %5803 = vrot.lane.b32.xlu0 %v5118, 40
        %v5804 = vpop.permute.xlu0 %5803
        %5805 = vrot.lane.b32.xlu0 %v5119, 40
        %v5806 = vpop.permute.xlu0 %5805
        %5807 = vrot.lane.b32.xlu0 %v5120, 40
        %v5808 = vpop.permute.xlu0 %5807
        %5809 = vrot.lane.b32.xlu0 %v5121, 40
        %v5810 = vpop.permute.xlu0 %5809
        %5811 = vrot.lane.b32.xlu0 %v5122, 40
        %v5812 = vpop.permute.xlu0 %5811
        %5813 = vrot.lane.b32.xlu0 %v5123, 40
        %v5814 = vpop.permute.xlu0 %5813
        %5815 = vrot.lane.b32.xlu0 %v5124, 40
        %v5816 = vpop.permute.xlu0 %5815
        %5817 = vrot.lane.b32.xlu0 %v5125, 40
        %v5818 = vpop.permute.xlu0 %5817
        %5819 = vrot.lane.b32.xlu0 %v5126, 40
        %v5820 = vpop.permute.xlu0 %5819
        %5821 = vrot.lane.b32.xlu0 %v5127, 40
        %v5822 = vpop.permute.xlu0 %5821
        %5823 = vrot.lane.b32.xlu0 %v5128, 40
        %v5824 = vpop.permute.xlu0 %5823
        %5825 = vrot.lane.b32.xlu0 %v5129, 40
        %v5826 = vpop.permute.xlu0 %5825
        %5827 = vrot.lane.b32.xlu0 %v5130, 40
        %v5828 = vpop.permute.xlu0 %5827
        %5829 = vrot.lane.b32.xlu0 %v5131, 40
        %v5830 = vpop.permute.xlu0 %5829
        %5831 = vrot.lane.b32.xlu0 %v5132, 40
        %v5832 = vpop.permute.xlu0 %5831
        %5833 = vrot.lane.b32.xlu0 %v5133, 40
        %v5834 = vpop.permute.xlu0 %5833
        %5835 = vrot.lane.b32.xlu0 %v5134, 40
        %v5836 = vpop.permute.xlu0 %5835
        %5837 = vrot.lane.b32.xlu0 %v5135, 40
        %v5838 = vpop.permute.xlu0 %5837
        %5839 = vrot.lane.b32.xlu0 %v5136, 40
        %v5840 = vpop.permute.xlu0 %5839
        %5905 = vrot.lane.b32.xlu0 %v5137, 48
        %v5906 = vpop.permute.xlu0 %5905
        %5907 = vrot.lane.b32.xlu0 %v5138, 48
        %v5908 = vpop.permute.xlu0 %5907
        %5909 = vrot.lane.b32.xlu0 %v5139, 48
        %v5910 = vpop.permute.xlu0 %5909
        %5911 = vrot.lane.b32.xlu0 %v5140, 48
        %v5912 = vpop.permute.xlu0 %5911
        %5913 = vrot.lane.b32.xlu0 %v5141, 48
        %v5914 = vpop.permute.xlu0 %5913
        %5915 = vrot.lane.b32.xlu0 %v5142, 48
        %v5916 = vpop.permute.xlu0 %5915
        %5917 = vrot.lane.b32.xlu0 %v5143, 48
        %v5918 = vpop.permute.xlu0 %5917
        %5919 = vrot.lane.b32.xlu0 %v5144, 48
        %v5920 = vpop.permute.xlu0 %5919
        %5921 = vrot.lane.b32.xlu0 %v5145, 48
        %v5922 = vpop.permute.xlu0 %5921
        %5923 = vrot.lane.b32.xlu0 %v5146, 48
        %v5924 = vpop.permute.xlu0 %5923
        %5925 = vrot.lane.b32.xlu0 %v5147, 48
        %v5926 = vpop.permute.xlu0 %5925
        %5927 = vrot.lane.b32.xlu0 %v5148, 48
        %v5928 = vpop.permute.xlu0 %5927
        %5929 = vrot.lane.b32.xlu0 %v5149, 48
        %v5930 = vpop.permute.xlu0 %5929
        %5931 = vrot.lane.b32.xlu0 %v5150, 48
        %v5932 = vpop.permute.xlu0 %5931
        %5933 = vrot.lane.b32.xlu0 %v5151, 48
        %v5934 = vpop.permute.xlu0 %5933
        %5935 = vrot.lane.b32.xlu0 %v5152, 48
        %v5936 = vpop.permute.xlu0 %5935
        %5937 = vrot.lane.b32.xlu0 %v5153, 48
        %v5938 = vpop.permute.xlu0 %5937
        %5939 = vrot.lane.b32.xlu0 %v5154, 48
        %v5940 = vpop.permute.xlu0 %5939
        %5941 = vrot.lane.b32.xlu0 %v5155, 48
        %v5942 = vpop.permute.xlu0 %5941
        %5943 = vrot.lane.b32.xlu0 %v5156, 48
        %v5944 = vpop.permute.xlu0 %5943
        %5945 = vrot.lane.b32.xlu0 %v5157, 48
        %v5946 = vpop.permute.xlu0 %5945
        %5947 = vrot.lane.b32.xlu0 %v5158, 48
        %v5948 = vpop.permute.xlu0 %5947
        %5949 = vrot.lane.b32.xlu0 %v5159, 48
        %v5950 = vpop.permute.xlu0 %5949
        %5951 = vrot.lane.b32.xlu0 %v5160, 48
        %v5952 = vpop.permute.xlu0 %5951
        %5953 = vrot.lane.b32.xlu0 %v5161, 48
        %v5954 = vpop.permute.xlu0 %5953
        %5955 = vrot.lane.b32.xlu0 %v5162, 48
        %v5956 = vpop.permute.xlu0 %5955
        %5957 = vrot.lane.b32.xlu0 %v5163, 48
        %v5958 = vpop.permute.xlu0 %5957
        %5959 = vrot.lane.b32.xlu0 %v5164, 48
        %v5960 = vpop.permute.xlu0 %5959
        %5961 = vrot.lane.b32.xlu0 %v5165, 48
        %v5962 = vpop.permute.xlu0 %5961
        %5963 = vrot.lane.b32.xlu0 %v5166, 48
        %v5964 = vpop.permute.xlu0 %5963
        %5965 = vrot.lane.b32.xlu0 %v5167, 48
        %v5966 = vpop.permute.xlu0 %5965
        %5967 = vrot.lane.b32.xlu0 %v5168, 48
        %v5968 = vpop.permute.xlu0 %5967
        %6033 = vrot.lane.b32.xlu0 %v5169, 56
        %v6034 = vpop.permute.xlu0 %6033
        %6035 = vrot.lane.b32.xlu0 %v5170, 56
        %v6036 = vpop.permute.xlu0 %6035
        %6037 = vrot.lane.b32.xlu0 %v5171, 56
        %v6038 = vpop.permute.xlu0 %6037
        %6039 = vrot.lane.b32.xlu0 %v5172, 56
        %v6040 = vpop.permute.xlu0 %6039
        %6041 = vrot.lane.b32.xlu0 %v5173, 56
        %v6042 = vpop.permute.xlu0 %6041
        %6043 = vrot.lane.b32.xlu0 %v5174, 56
        %v6044 = vpop.permute.xlu0 %6043
        %6045 = vrot.lane.b32.xlu0 %v5175, 56
        %v6046 = vpop.permute.xlu0 %6045
        %6047 = vrot.lane.b32.xlu0 %v5176, 56
        %v6048 = vpop.permute.xlu0 %6047
        %6049 = vrot.lane.b32.xlu0 %v5177, 56
        %v6050 = vpop.permute.xlu0 %6049
        %6051 = vrot.lane.b32.xlu0 %v5178, 56
        %v6052 = vpop.permute.xlu0 %6051
        %6053 = vrot.lane.b32.xlu0 %v5179, 56
        %v6054 = vpop.permute.xlu0 %6053
        %6055 = vrot.lane.b32.xlu0 %v5180, 56
        %v6056 = vpop.permute.xlu0 %6055
        %6057 = vrot.lane.b32.xlu0 %v5181, 56
        %v6058 = vpop.permute.xlu0 %6057
        %6059 = vrot.lane.b32.xlu0 %v5182, 56
        %v6060 = vpop.permute.xlu0 %6059
        %6061 = vrot.lane.b32.xlu0 %v5183, 56
        %v6062 = vpop.permute.xlu0 %6061
        %6063 = vrot.lane.b32.xlu0 %v5184, 56
        %v6064 = vpop.permute.xlu0 %6063
        %6065 = vrot.lane.b32.xlu0 %v5185, 56
        %v6066 = vpop.permute.xlu0 %6065
        %6067 = vrot.lane.b32.xlu0 %v5186, 56
        %v6068 = vpop.permute.xlu0 %6067
        %6069 = vrot.lane.b32.xlu0 %v5187, 56
        %v6070 = vpop.permute.xlu0 %6069
        %6071 = vrot.lane.b32.xlu0 %v5188, 56
        %v6072 = vpop.permute.xlu0 %6071
        %6073 = vrot.lane.b32.xlu0 %v5189, 56
        %v6074 = vpop.permute.xlu0 %6073
        %6075 = vrot.lane.b32.xlu0 %v5190, 56
        %v6076 = vpop.permute.xlu0 %6075
        %6077 = vrot.lane.b32.xlu0 %v5191, 56
        %v6078 = vpop.permute.xlu0 %6077
        %6079 = vrot.lane.b32.xlu0 %v5192, 56
        %v6080 = vpop.permute.xlu0 %6079
        %6081 = vrot.lane.b32.xlu0 %v5193, 56
        %v6082 = vpop.permute.xlu0 %6081
        %6083 = vrot.lane.b32.xlu0 %v5194, 56
        %v6084 = vpop.permute.xlu0 %6083
        %6085 = vrot.lane.b32.xlu0 %v5195, 56
        %v6086 = vpop.permute.xlu0 %6085
        %6087 = vrot.lane.b32.xlu0 %v5196, 56
        %v6088 = vpop.permute.xlu0 %6087
        %6089 = vrot.lane.b32.xlu0 %v5197, 56
        %v6090 = vpop.permute.xlu0 %6089
        %6091 = vrot.lane.b32.xlu0 %v5198, 56
        %v6092 = vpop.permute.xlu0 %6091
        %6093 = vrot.lane.b32.xlu0 %v5199, 56
        %v6094 = vpop.permute.xlu0 %6093
        %6095 = vrot.lane.b32.xlu0 %v5200, 56
        %v6096 = vpop.permute.xlu0 %6095
        %6161 = vrot.lane.b32.xlu0 %v5201, 64
        %v6162 = vpop.permute.xlu0 %6161
        %6163 = vrot.lane.b32.xlu0 %v5202, 64
        %v6164 = vpop.permute.xlu0 %6163
        %6165 = vrot.lane.b32.xlu0 %v5203, 64
        %v6166 = vpop.permute.xlu0 %6165
        %6167 = vrot.lane.b32.xlu0 %v5204, 64
        %v6168 = vpop.permute.xlu0 %6167
        %6169 = vrot.lane.b32.xlu0 %v5205, 64
        %v6170 = vpop.permute.xlu0 %6169
        %6171 = vrot.lane.b32.xlu0 %v5206, 64
        %v6172 = vpop.permute.xlu0 %6171
        %6173 = vrot.lane.b32.xlu0 %v5207, 64
        %v6174 = vpop.permute.xlu0 %6173
        %6175 = vrot.lane.b32.xlu0 %v5208, 64
        %v6176 = vpop.permute.xlu0 %6175
        %6177 = vrot.lane.b32.xlu0 %v5209, 64
        %v6178 = vpop.permute.xlu0 %6177
        %6179 = vrot.lane.b32.xlu0 %v5210, 64
        %v6180 = vpop.permute.xlu0 %6179
        %6181 = vrot.lane.b32.xlu0 %v5211, 64
        %v6182 = vpop.permute.xlu0 %6181
        %6183 = vrot.lane.b32.xlu0 %v5212, 64
        %v6184 = vpop.permute.xlu0 %6183
        %6185 = vrot.lane.b32.xlu0 %v5213, 64
        %v6186 = vpop.permute.xlu0 %6185
        %6187 = vrot.lane.b32.xlu0 %v5214, 64
        %v6188 = vpop.permute.xlu0 %6187
        %6189 = vrot.lane.b32.xlu0 %v5215, 64
        %v6190 = vpop.permute.xlu0 %6189
        %6191 = vrot.lane.b32.xlu0 %v5216, 64
        %v6192 = vpop.permute.xlu0 %6191
        %6193 = vrot.lane.b32.xlu0 %v5217, 64
        %v6194 = vpop.permute.xlu0 %6193
        %6195 = vrot.lane.b32.xlu0 %v5218, 64
        %v6196 = vpop.permute.xlu0 %6195
        %6197 = vrot.lane.b32.xlu0 %v5219, 64
        %v6198 = vpop.permute.xlu0 %6197
        %6199 = vrot.lane.b32.xlu0 %v5220, 64
        %v6200 = vpop.permute.xlu0 %6199
        %6201 = vrot.lane.b32.xlu0 %v5221, 64
        %v6202 = vpop.permute.xlu0 %6201
        %6203 = vrot.lane.b32.xlu0 %v5222, 64
        %v6204 = vpop.permute.xlu0 %6203
        %6205 = vrot.lane.b32.xlu0 %v5223, 64
        %v6206 = vpop.permute.xlu0 %6205
        %6207 = vrot.lane.b32.xlu0 %v5224, 64
        %v6208 = vpop.permute.xlu0 %6207
        %6209 = vrot.lane.b32.xlu0 %v5225, 64
        %v6210 = vpop.permute.xlu0 %6209
        %6211 = vrot.lane.b32.xlu0 %v5226, 64
        %v6212 = vpop.permute.xlu0 %6211
        %6213 = vrot.lane.b32.xlu0 %v5227, 64
        %v6214 = vpop.permute.xlu0 %6213
        %6215 = vrot.lane.b32.xlu0 %v5228, 64
        %v6216 = vpop.permute.xlu0 %6215
        %6217 = vrot.lane.b32.xlu0 %v5229, 64
        %v6218 = vpop.permute.xlu0 %6217
        %6219 = vrot.lane.b32.xlu0 %v5230, 64
        %v6220 = vpop.permute.xlu0 %6219
        %6221 = vrot.lane.b32.xlu0 %v5231, 64
        %v6222 = vpop.permute.xlu0 %6221
        %6223 = vrot.lane.b32.xlu0 %v5232, 64
        %v6224 = vpop.permute.xlu0 %6223
        %v6257 = vsel %vm330, %v4945, %v5266
        %v6258 = vsel %vm330, %v4946, %v5268
        %v6259 = vsel %vm330, %v4947, %v5270
        %v6260 = vsel %vm330, %v4948, %v5272
        %v6261 = vsel %vm330, %v4949, %v5274
        %v6262 = vsel %vm330, %v4950, %v5276
        %v6263 = vsel %vm330, %v4951, %v5278
        %v6264 = vsel %vm330, %v4952, %v5280
        %v6265 = vsel %vm330, %v4953, %v5282
        %v6266 = vsel %vm330, %v4954, %v5284
        %v6267 = vsel %vm330, %v4955, %v5286
        %v6268 = vsel %vm330, %v4956, %v5288
        %v6269 = vsel %vm330, %v4957, %v5290
        %v6270 = vsel %vm330, %v4958, %v5292
        %v6271 = vsel %vm330, %v4959, %v5294
        %v6272 = vsel %vm330, %v4960, %v5296
        %v6273 = vsel %vm330, %v4961, %v5298
        %v6274 = vsel %vm330, %v4962, %v5300
        %v6275 = vsel %vm330, %v4963, %v5302
        %v6276 = vsel %vm330, %v4964, %v5304
        %v6277 = vsel %vm330, %v4965, %v5306
        %v6278 = vsel %vm330, %v4966, %v5308
        %v6279 = vsel %vm330, %v4967, %v5310
        %v6280 = vsel %vm330, %v4968, %v5312
        %v6281 = vsel %vm330, %v4969, %v5314
        %v6282 = vsel %vm330, %v4970, %v5316
        %v6283 = vsel %vm330, %v4971, %v5318
        %v6284 = vsel %vm330, %v4972, %v5320
        %v6285 = vsel %vm330, %v4973, %v5322
        %v6286 = vsel %vm330, %v4974, %v5324
        %v6287 = vsel %vm330, %v4975, %v5326
        %v6288 = vsel %vm330, %v4976, %v5328
        %v6289 = vsel %vm1897, %v6257, %v5394
        %v6290 = vsel %vm1897, %v6258, %v5396
        %v6291 = vsel %vm1897, %v6259, %v5398
        %v6292 = vsel %vm1897, %v6260, %v5400
        %v6293 = vsel %vm1897, %v6261, %v5402
        %v6294 = vsel %vm1897, %v6262, %v5404
        %v6295 = vsel %vm1897, %v6263, %v5406
        %v6296 = vsel %vm1897, %v6264, %v5408
        %v6297 = vsel %vm1897, %v6265, %v5410
        %v6298 = vsel %vm1897, %v6266, %v5412
        %v6299 = vsel %vm1897, %v6267, %v5414
        %v6300 = vsel %vm1897, %v6268, %v5416
        %v6301 = vsel %vm1897, %v6269, %v5418
        %v6302 = vsel %vm1897, %v6270, %v5420
        %v6303 = vsel %vm1897, %v6271, %v5422
        %v6304 = vsel %vm1897, %v6272, %v5424
        %v6305 = vsel %vm1897, %v6273, %v5426
        %v6306 = vsel %vm1897, %v6274, %v5428
        %v6307 = vsel %vm1897, %v6275, %v5430
        %v6308 = vsel %vm1897, %v6276, %v5432
        %v6309 = vsel %vm1897, %v6277, %v5434
        %v6310 = vsel %vm1897, %v6278, %v5436
        %v6311 = vsel %vm1897, %v6279, %v5438
        %v6312 = vsel %vm1897, %v6280, %v5440
        %v6313 = vsel %vm1897, %v6281, %v5442
        %v6314 = vsel %vm1897, %v6282, %v5444
        %v6315 = vsel %vm1897, %v6283, %v5446
        %v6316 = vsel %vm1897, %v6284, %v5448
        %v6317 = vsel %vm1897, %v6285, %v5450
        %v6318 = vsel %vm1897, %v6286, %v5452
        %v6319 = vsel %vm1897, %v6287, %v5454
        %v6320 = vsel %vm1897, %v6288, %v5456
        %v6321 = vsel %vm1930, %v6289, %v5522
        %v6322 = vsel %vm1930, %v6290, %v5524
        %v6323 = vsel %vm1930, %v6291, %v5526
        %v6324 = vsel %vm1930, %v6292, %v5528
        %v6325 = vsel %vm1930, %v6293, %v5530
        %v6326 = vsel %vm1930, %v6294, %v5532
        %v6327 = vsel %vm1930, %v6295, %v5534
        %v6328 = vsel %vm1930, %v6296, %v5536
        %v6329 = vsel %vm1930, %v6297, %v5538
        %v6330 = vsel %vm1930, %v6298, %v5540
        %v6331 = vsel %vm1930, %v6299, %v5542
        %v6332 = vsel %vm1930, %v6300, %v5544
        %v6333 = vsel %vm1930, %v6301, %v5546
        %v6334 = vsel %vm1930, %v6302, %v5548
        %v6335 = vsel %vm1930, %v6303, %v5550
        %v6336 = vsel %vm1930, %v6304, %v5552
        %v6337 = vsel %vm1930, %v6305, %v5554
        %v6338 = vsel %vm1930, %v6306, %v5556
        %v6339 = vsel %vm1930, %v6307, %v5558
        %v6340 = vsel %vm1930, %v6308, %v5560
        %v6341 = vsel %vm1930, %v6309, %v5562
        %v6342 = vsel %vm1930, %v6310, %v5564
        %v6343 = vsel %vm1930, %v6311, %v5566
        %v6344 = vsel %vm1930, %v6312, %v5568
        %v6345 = vsel %vm1930, %v6313, %v5570
        %v6346 = vsel %vm1930, %v6314, %v5572
        %v6347 = vsel %vm1930, %v6315, %v5574
        %v6348 = vsel %vm1930, %v6316, %v5576
        %v6349 = vsel %vm1930, %v6317, %v5578
        %v6350 = vsel %vm1930, %v6318, %v5580
        %v6351 = vsel %vm1930, %v6319, %v5582
        %v6352 = vsel %vm1930, %v6320, %v5584
        %v6353 = vsel %vm1963, %v6321, %v5650
        %v6354 = vsel %vm1963, %v6322, %v5652
        %v6355 = vsel %vm1963, %v6323, %v5654
        %v6356 = vsel %vm1963, %v6324, %v5656
        %v6357 = vsel %vm1963, %v6325, %v5658
        %v6358 = vsel %vm1963, %v6326, %v5660
        %v6359 = vsel %vm1963, %v6327, %v5662
        %v6360 = vsel %vm1963, %v6328, %v5664
        %v6361 = vsel %vm1963, %v6329, %v5666
        %v6362 = vsel %vm1963, %v6330, %v5668
        %v6363 = vsel %vm1963, %v6331, %v5670
        %v6364 = vsel %vm1963, %v6332, %v5672
        %v6365 = vsel %vm1963, %v6333, %v5674
        %v6366 = vsel %vm1963, %v6334, %v5676
        %v6367 = vsel %vm1963, %v6335, %v5678
        %v6368 = vsel %vm1963, %v6336, %v5680
        %v6369 = vsel %vm1963, %v6337, %v5682
        %v6370 = vsel %vm1963, %v6338, %v5684
        %v6371 = vsel %vm1963, %v6339, %v5686
        %v6372 = vsel %vm1963, %v6340, %v5688
        %v6373 = vsel %vm1963, %v6341, %v5690
        %v6374 = vsel %vm1963, %v6342, %v5692
        %v6375 = vsel %vm1963, %v6343, %v5694
        %v6376 = vsel %vm1963, %v6344, %v5696
        %v6377 = vsel %vm1963, %v6345, %v5698
        %v6378 = vsel %vm1963, %v6346, %v5700
        %v6379 = vsel %vm1963, %v6347, %v5702
        %v6380 = vsel %vm1963, %v6348, %v5704
        %v6381 = vsel %vm1963, %v6349, %v5706
        %v6382 = vsel %vm1963, %v6350, %v5708
        %v6383 = vsel %vm1963, %v6351, %v5710
        %v6384 = vsel %vm1963, %v6352, %v5712
        %v6385 = vsel %vm1996, %v6353, %v5778
        %v6386 = vsel %vm1996, %v6354, %v5780
        %v6387 = vsel %vm1996, %v6355, %v5782
        %v6388 = vsel %vm1996, %v6356, %v5784
        %v6389 = vsel %vm1996, %v6357, %v5786
        %v6390 = vsel %vm1996, %v6358, %v5788
        %v6391 = vsel %vm1996, %v6359, %v5790
        %v6392 = vsel %vm1996, %v6360, %v5792
        %v6393 = vsel %vm1996, %v6361, %v5794
        %v6394 = vsel %vm1996, %v6362, %v5796
        %v6395 = vsel %vm1996, %v6363, %v5798
        %v6396 = vsel %vm1996, %v6364, %v5800
        %v6397 = vsel %vm1996, %v6365, %v5802
        %v6398 = vsel %vm1996, %v6366, %v5804
        %v6399 = vsel %vm1996, %v6367, %v5806
        %v6400 = vsel %vm1996, %v6368, %v5808
        %v6401 = vsel %vm1996, %v6369, %v5810
        %v6402 = vsel %vm1996, %v6370, %v5812
        %v6403 = vsel %vm1996, %v6371, %v5814
        %v6404 = vsel %vm1996, %v6372, %v5816
        %v6405 = vsel %vm1996, %v6373, %v5818
        %v6406 = vsel %vm1996, %v6374, %v5820
        %v6407 = vsel %vm1996, %v6375, %v5822
        %v6408 = vsel %vm1996, %v6376, %v5824
        %v6409 = vsel %vm1996, %v6377, %v5826
        %v6410 = vsel %vm1996, %v6378, %v5828
        %v6411 = vsel %vm1996, %v6379, %v5830
        %v6412 = vsel %vm1996, %v6380, %v5832
        %v6413 = vsel %vm1996, %v6381, %v5834
        %v6414 = vsel %vm1996, %v6382, %v5836
        %v6415 = vsel %vm1996, %v6383, %v5838
        %v6416 = vsel %vm1996, %v6384, %v5840
        %v6417 = vsel %vm2029, %v6385, %v5906
        %v6418 = vsel %vm2029, %v6386, %v5908
        %v6419 = vsel %vm2029, %v6387, %v5910
        %v6420 = vsel %vm2029, %v6388, %v5912
        %v6421 = vsel %vm2029, %v6389, %v5914
        %v6422 = vsel %vm2029, %v6390, %v5916
        %v6423 = vsel %vm2029, %v6391, %v5918
        %v6424 = vsel %vm2029, %v6392, %v5920
        %v6425 = vsel %vm2029, %v6393, %v5922
        %v6426 = vsel %vm2029, %v6394, %v5924
        %v6427 = vsel %vm2029, %v6395, %v5926
        %v6428 = vsel %vm2029, %v6396, %v5928
        %v6429 = vsel %vm2029, %v6397, %v5930
        %v6430 = vsel %vm2029, %v6398, %v5932
        %v6431 = vsel %vm2029, %v6399, %v5934
        %v6432 = vsel %vm2029, %v6400, %v5936
        %v6433 = vsel %vm2029, %v6401, %v5938
        %v6434 = vsel %vm2029, %v6402, %v5940
        %v6435 = vsel %vm2029, %v6403, %v5942
        %v6436 = vsel %vm2029, %v6404, %v5944
        %v6437 = vsel %vm2029, %v6405, %v5946
        %v6438 = vsel %vm2029, %v6406, %v5948
        %v6439 = vsel %vm2029, %v6407, %v5950
        %v6440 = vsel %vm2029, %v6408, %v5952
        %v6441 = vsel %vm2029, %v6409, %v5954
        %v6442 = vsel %vm2029, %v6410, %v5956
        %v6443 = vsel %vm2029, %v6411, %v5958
        %v6444 = vsel %vm2029, %v6412, %v5960
        %v6445 = vsel %vm2029, %v6413, %v5962
        %v6446 = vsel %vm2029, %v6414, %v5964
        %v6447 = vsel %vm2029, %v6415, %v5966
        %v6448 = vsel %vm2029, %v6416, %v5968
        %v6449 = vsel %vm2062, %v6417, %v6034
        %v6450 = vsel %vm2062, %v6418, %v6036
        %v6451 = vsel %vm2062, %v6419, %v6038
        %v6452 = vsel %vm2062, %v6420, %v6040
        %v6453 = vsel %vm2062, %v6421, %v6042
        %v6454 = vsel %vm2062, %v6422, %v6044
        %v6455 = vsel %vm2062, %v6423, %v6046
        %v6456 = vsel %vm2062, %v6424, %v6048
        %v6457 = vsel %vm2062, %v6425, %v6050
        %v6458 = vsel %vm2062, %v6426, %v6052
        %v6459 = vsel %vm2062, %v6427, %v6054
        %v6460 = vsel %vm2062, %v6428, %v6056
        %v6461 = vsel %vm2062, %v6429, %v6058
        %v6462 = vsel %vm2062, %v6430, %v6060
        %v6463 = vsel %vm2062, %v6431, %v6062
        %v6464 = vsel %vm2062, %v6432, %v6064
        %v6465 = vsel %vm2062, %v6433, %v6066
        %v6466 = vsel %vm2062, %v6434, %v6068
        %v6467 = vsel %vm2062, %v6435, %v6070
        %v6468 = vsel %vm2062, %v6436, %v6072
        %v6469 = vsel %vm2062, %v6437, %v6074
        %v6470 = vsel %vm2062, %v6438, %v6076
        %v6471 = vsel %vm2062, %v6439, %v6078
        %v6472 = vsel %vm2062, %v6440, %v6080
        %v6473 = vsel %vm2062, %v6441, %v6082
        %v6474 = vsel %vm2062, %v6442, %v6084
        %v6475 = vsel %vm2062, %v6443, %v6086
        %v6476 = vsel %vm2062, %v6444, %v6088
        %v6477 = vsel %vm2062, %v6445, %v6090
        %v6478 = vsel %vm2062, %v6446, %v6092
        %v6479 = vsel %vm2062, %v6447, %v6094
        %v6480 = vsel %vm2062, %v6448, %v6096
        %v6481 = vsel %vm2095, %v6449, %v6162
        %v6482 = vsel %vm2095, %v6450, %v6164
        %v6483 = vsel %vm2095, %v6451, %v6166
        %v6484 = vsel %vm2095, %v6452, %v6168
        %v6485 = vsel %vm2095, %v6453, %v6170
        %v6486 = vsel %vm2095, %v6454, %v6172
        %v6487 = vsel %vm2095, %v6455, %v6174
        %v6488 = vsel %vm2095, %v6456, %v6176
        %v6489 = vsel %vm2095, %v6457, %v6178
        %v6490 = vsel %vm2095, %v6458, %v6180
        %v6491 = vsel %vm2095, %v6459, %v6182
        %v6492 = vsel %vm2095, %v6460, %v6184
        %v6493 = vsel %vm2095, %v6461, %v6186
        %v6494 = vsel %vm2095, %v6462, %v6188
        %v6495 = vsel %vm2095, %v6463, %v6190
        %v6496 = vsel %vm2095, %v6464, %v6192
        %v6497 = vsel %vm2095, %v6465, %v6194
        %v6498 = vsel %vm2095, %v6466, %v6196
        %v6499 = vsel %vm2095, %v6467, %v6198
        %v6500 = vsel %vm2095, %v6468, %v6200
        %v6501 = vsel %vm2095, %v6469, %v6202
        %v6502 = vsel %vm2095, %v6470, %v6204
        %v6503 = vsel %vm2095, %v6471, %v6206
        %v6504 = vsel %vm2095, %v6472, %v6208
        %v6505 = vsel %vm2095, %v6473, %v6210
        %v6506 = vsel %vm2095, %v6474, %v6212
        %v6507 = vsel %vm2095, %v6475, %v6214
        %v6508 = vsel %vm2095, %v6476, %v6216
        %v6509 = vsel %vm2095, %v6477, %v6218
        %v6510 = vsel %vm2095, %v6478, %v6220
        %v6511 = vsel %vm2095, %v6479, %v6222
        %v6512 = vsel %vm2095, %v6480, %v6224
        %v6514 = vlaneseq
        %v6515 = vshrl.u32 %v6514, 7
        %v6516 = vsub.s32 0, %v6515
        %v6517 = vrot.slane %v4702, %v6516
        %v6520 = vsel %vm2134, %v6481, 0
        %v6523 = vsel %vm2134, %v6482, 0
        %v6526 = vsel %vm2134, %v6483, 0
        %v6529 = vsel %vm2134, %v6484, 0
        %v6532 = vsel %vm2134, %v6485, 0
        %v6535 = vsel %vm2134, %v6486, 0
        %v6538 = vsel %vm2134, %v6487, 0
        %v6541 = vsel %vm2134, %v6488, 0
        %v6544 = vsel %vm2134, %v6489, 0
        %v6547 = vsel %vm2134, %v6490, 0
        %v6550 = vsel %vm2134, %v6491, 0
        %v6553 = vsel %vm2134, %v6492, 0
        %v6556 = vsel %vm2134, %v6493, 0
        %v6559 = vsel %vm2134, %v6494, 0
        %v6562 = vsel %vm2134, %v6495, 0
        %v6565 = vsel %vm2134, %v6496, 0
        %v6568 = vsel %vm2134, %v6497, 0
        %v6571 = vsel %vm2134, %v6498, 0
        %v6574 = vsel %vm2134, %v6499, 0
        %v6577 = vsel %vm2134, %v6500, 0
        %v6580 = vsel %vm2134, %v6501, 0
        %v6583 = vsel %vm2134, %v6502, 0
        %v6586 = vsel %vm2134, %v6503, 0
        %v6589 = vsel %vm2134, %v6504, 0
        %v6592 = vsel %vm2134, %v6505, 0
        %v6595 = vsel %vm2134, %v6506, 0
        %v6598 = vsel %vm2134, %v6507, 0
        %v6601 = vsel %vm2134, %v6508, 0
        %v6604 = vsel %vm2134, %v6509, 0
        %v6607 = vsel %vm2134, %v6510, 0
        %v6610 = vsel %vm2134, %v6511, 0
        %v6613 = vsel %vm2134, %v6512, 0
        %6615 = vmatprep.subr.mxu0 0.0
        %6616 = vmatpush1.msra.mxu0 %v4692
        %6617 = vmatprep.subr.mxu0 0.0
        %6618 = vmatpush1.msra.mxu0 %v4693
        %6619 = vmatprep.subr.mxu0 0.0
        %6620 = vmatpush1.msra.mxu0 %v4694
        %6621 = vmatprep.subr.mxu0 0.0
        %6622 = vmatpush1.msra.mxu0 %v4695
        %6623 = vmatprep.subr.mxu0 0.0
        %6624 = vmatpush1.msra.mxu0 %v4696
        %6625 = vmatprep.subr.mxu0 0.0
        %6626 = vmatpush1.msra.mxu0 %v4697
        %6627 = vmatprep.subr.mxu0 0.0
        %6628 = vmatpush1.msra.mxu0 %v4698
        %6629 = vmatprep.subr.mxu0 0.0
        %6630 = vmatpush1.msra.mxu0 %v4699
        %6631 = vmatprep.subr.mxu0 0.0
        %6632 = vmatpush1.msra.mxu0 %v4700
        %6633 = vmatprep.subr.mxu0 0.0
        %6634 = vmatpush1.msra.mxu0 0.0
        %6635 = vmatprep.subr.mxu0 0.0
        %6636 = vmatpush1.msra.mxu0 0.0
        %6637 = vmatprep.subr.mxu0 0.0
        %6638 = vmatpush1.msra.mxu0 0.0
        %6639 = vmatprep.subr.mxu0 0.0
        %6640 = vmatpush1.msra.mxu0 0.0
        %6641 = vmatprep.subr.mxu0 0.0
        %6642 = vmatpush1.msra.mxu0 0.0
        %6643 = vmatprep.subr.mxu0 0.0
        %6644 = vmatpush1.msra.mxu0 0.0
        %6645 = vmatprep.subr.mxu0 0.0
        %6646 = vmatpush1.msra.mxu0 0.0
        %6647 = vmatprep.subr.mxu0 0.0
        %6648 = vmatpush1.msra.mxu0 0.0
        %6649 = vmatprep.subr.mxu0 0.0
        %6650 = vmatpush1.msra.mxu0 0.0
        %6651 = vmatprep.subr.mxu0 0.0
        %6652 = vmatpush1.msra.mxu0 0.0
        %6653 = vmatprep.subr.mxu0 0.0
        %6654 = vmatpush1.msra.mxu0 0.0
        %6655 = vmatprep.subr.mxu0 0.0
        %6656 = vmatpush1.msra.mxu0 0.0
        %6657 = vmatprep.subr.mxu0 0.0
        %6658 = vmatpush1.msra.mxu0 0.0
        %6659 = vmatprep.subr.mxu0 0.0
        %6660 = vmatpush1.msra.mxu0 0.0
        %6661 = vmatprep.subr.mxu0 0.0
        %6662 = vmatpush1.msra.mxu0 0.0
        %6663 = vmatprep.subr.mxu0 0.0
        %6664 = vmatpush1.msra.mxu0 0.0
        %6665 = vmatprep.subr.mxu0 0.0
        %6666 = vmatpush1.msra.mxu0 0.0
        %6667 = vmatprep.subr.mxu0 0.0
        %6668 = vmatpush1.msra.mxu0 0.0
        %6669 = vmatprep.subr.mxu0 0.0
        %6670 = vmatpush1.msra.mxu0 0.0
        %6671 = vmatprep.subr.mxu0 0.0
        %6672 = vmatpush1.msra.mxu0 0.0
        %6673 = vmatprep.subr.mxu0 0.0
        %6674 = vmatpush1.msra.mxu0 0.0
        %6675 = vmatprep.subr.mxu0 0.0
        %6676 = vmatpush1.msra.mxu0 0.0
        %6677 = vmatprep.subr.mxu0 0.0
        %6678 = vmatpush1.msra.mxu0 0.0
        %6679 = vmatprep.mubr.f32.mxu0 0.0
        %6680 = vmatmul.mubr.f32.gmra.mrb[0].mxu0 %v6520
        %v6681 = vpop.f32.mrb[0].mxu0
        %v6682 = vadd.f32 %v6517, %v6681
        %v6683 = vpop.f32.mrb[0].mxu0
        %6684 = vmatprep.mubr.f32.mxu0 0.0
        %6685 = vmatmul.mubr.f32.gmra.mrb[0].mxu0 %v6523
        %v6686 = vpop.f32.mrb[0].mxu0
        %v6687 = vadd.f32 %v6517, %v6686
        %v6688 = vpop.f32.mrb[0].mxu0
        %6689 = vmatprep.mubr.f32.mxu0 0.0
        %6690 = vmatmul.mubr.f32.gmra.mrb[0].mxu0 %v6526
        %v6691 = vpop.f32.mrb[0].mxu0
        %v6692 = vadd.f32 %v6517, %v6691
        %v6693 = vpop.f32.mrb[0].mxu0
        %6694 = vmatprep.mubr.f32.mxu0 0.0
        %6695 = vmatmul.mubr.f32.gmra.mrb[0].mxu0 %v6529
        %v6696 = vpop.f32.mrb[0].mxu0
        %v6697 = vadd.f32 %v6517, %v6696
        %v6698 = vpop.f32.mrb[0].mxu0
        %6699 = vmatprep.mubr.f32.mxu0 0.0
        %6700 = vmatmul.mubr.f32.gmra.mrb[0].mxu0 %v6532
        %v6701 = vpop.f32.mrb[0].mxu0
        %v6702 = vadd.f32 %v6517, %v6701
        %v6703 = vpop.f32.mrb[0].mxu0
        %6704 = vmatprep.mubr.f32.mxu0 0.0
        %6705 = vmatmul.mubr.f32.gmra.mrb[0].mxu0 %v6535
        %v6706 = vpop.f32.mrb[0].mxu0
        %v6707 = vadd.f32 %v6517, %v6706
        %v6708 = vpop.f32.mrb[0].mxu0
        %6709 = vmatprep.mubr.f32.mxu0 0.0
        %6710 = vmatmul.mubr.f32.gmra.mrb[0].mxu0 %v6538
        %v6711 = vpop.f32.mrb[0].mxu0
        %v6712 = vadd.f32 %v6517, %v6711
        %v6713 = vpop.f32.mrb[0].mxu0
        %6714 = vmatprep.mubr.f32.mxu0 0.0
        %6715 = vmatmul.mubr.f32.gmra.mrb[0].mxu0 %v6541
        %v6716 = vpop.f32.mrb[0].mxu0
        %v6717 = vadd.f32 %v6517, %v6716
        %v6718 = vpop.f32.mrb[0].mxu0
        %6719 = vmatprep.mubr.f32.mxu0 0.0
        %6720 = vmatmul.mubr.f32.gmra.mrb[0].mxu0 %v6544
        %v6721 = vpop.f32.mrb[0].mxu0
        %v6722 = vadd.f32 %v6517, %v6721
        %v6723 = vpop.f32.mrb[0].mxu0
        %6724 = vmatprep.mubr.f32.mxu0 0.0
        %6725 = vmatmul.mubr.f32.gmra.mrb[0].mxu0 %v6547
        %v6726 = vpop.f32.mrb[0].mxu0
        %v6727 = vadd.f32 %v6517, %v6726
        %v6728 = vpop.f32.mrb[0].mxu0
        %6729 = vmatprep.mubr.f32.mxu0 0.0
        %6730 = vmatmul.mubr.f32.gmra.mrb[0].mxu0 %v6550
        %v6731 = vpop.f32.mrb[0].mxu0
        %v6732 = vadd.f32 %v6517, %v6731
        %v6733 = vpop.f32.mrb[0].mxu0
        %6734 = vmatprep.mubr.f32.mxu0 0.0
        %6735 = vmatmul.mubr.f32.gmra.mrb[0].mxu0 %v6553
        %v6736 = vpop.f32.mrb[0].mxu0
        %v6737 = vadd.f32 %v6517, %v6736
        %v6738 = vpop.f32.mrb[0].mxu0
        %6739 = vmatprep.mubr.f32.mxu0 0.0
        %6740 = vmatmul.mubr.f32.gmra.mrb[0].mxu0 %v6556
        %v6741 = vpop.f32.mrb[0].mxu0
        %v6742 = vadd.f32 %v6517, %v6741
        %v6743 = vpop.f32.mrb[0].mxu0
        %6744 = vmatprep.mubr.f32.mxu0 0.0
        %6745 = vmatmul.mubr.f32.gmra.mrb[0].mxu0 %v6559
        %v6746 = vpop.f32.mrb[0].mxu0
        %v6747 = vadd.f32 %v6517, %v6746
        %v6748 = vpop.f32.mrb[0].mxu0
        %6749 = vmatprep.mubr.f32.mxu0 0.0
        %6750 = vmatmul.mubr.f32.gmra.mrb[0].mxu0 %v6562
        %v6751 = vpop.f32.mrb[0].mxu0
        %v6752 = vadd.f32 %v6517, %v6751
        %v6753 = vpop.f32.mrb[0].mxu0
        %6754 = vmatprep.mubr.f32.mxu0 0.0
        %6755 = vmatmul.mubr.f32.gmra.mrb[0].mxu0 %v6565
        %v6756 = vpop.f32.mrb[0].mxu0
        %v6757 = vadd.f32 %v6517, %v6756
        %v6758 = vpop.f32.mrb[0].mxu0
        %6759 = vmatprep.mubr.f32.mxu0 0.0
        %6760 = vmatmul.mubr.f32.gmra.mrb[0].mxu0 %v6568
        %v6761 = vpop.f32.mrb[0].mxu0
        %v6762 = vadd.f32 %v6517, %v6761
        %v6763 = vpop.f32.mrb[0].mxu0
        %6764 = vmatprep.mubr.f32.mxu0 0.0
        %6765 = vmatmul.mubr.f32.gmra.mrb[0].mxu0 %v6571
        %v6766 = vpop.f32.mrb[0].mxu0
        %v6767 = vadd.f32 %v6517, %v6766
        %v6768 = vpop.f32.mrb[0].mxu0
        %6769 = vmatprep.mubr.f32.mxu0 0.0
        %6770 = vmatmul.mubr.f32.gmra.mrb[0].mxu0 %v6574
        %v6771 = vpop.f32.mrb[0].mxu0
        %v6772 = vadd.f32 %v6517, %v6771
        %v6773 = vpop.f32.mrb[0].mxu0
        %6774 = vmatprep.mubr.f32.mxu0 0.0
        %6775 = vmatmul.mubr.f32.gmra.mrb[0].mxu0 %v6577
        %v6776 = vpop.f32.mrb[0].mxu0
        %v6777 = vadd.f32 %v6517, %v6776
        %v6778 = vpop.f32.mrb[0].mxu0
        %6779 = vmatprep.mubr.f32.mxu0 0.0
        %6780 = vmatmul.mubr.f32.gmra.mrb[0].mxu0 %v6580
        %v6781 = vpop.f32.mrb[0].mxu0
        %v6782 = vadd.f32 %v6517, %v6781
        %v6783 = vpop.f32.mrb[0].mxu0
        %6784 = vmatprep.mubr.f32.mxu0 0.0
        %6785 = vmatmul.mubr.f32.gmra.mrb[0].mxu0 %v6583
        %v6786 = vpop.f32.mrb[0].mxu0
        %v6787 = vadd.f32 %v6517, %v6786
        %v6788 = vpop.f32.mrb[0].mxu0
        %6789 = vmatprep.mubr.f32.mxu0 0.0
        %6790 = vmatmul.mubr.f32.gmra.mrb[0].mxu0 %v6586
        %v6791 = vpop.f32.mrb[0].mxu0
        %v6792 = vadd.f32 %v6517, %v6791
        %v6793 = vpop.f32.mrb[0].mxu0
        %6794 = vmatprep.mubr.f32.mxu0 0.0
        %6795 = vmatmul.mubr.f32.gmra.mrb[0].mxu0 %v6589
        %v6796 = vpop.f32.mrb[0].mxu0
        %v6797 = vadd.f32 %v6517, %v6796
        %v6798 = vpop.f32.mrb[0].mxu0
        %6799 = vmatprep.mubr.f32.mxu0 0.0
        %6800 = vmatmul.mubr.f32.gmra.mrb[0].mxu0 %v6592
        %v6801 = vpop.f32.mrb[0].mxu0
        %v6802 = vadd.f32 %v6517, %v6801
        %v6803 = vpop.f32.mrb[0].mxu0
        %6804 = vmatprep.mubr.f32.mxu0 0.0
        %6805 = vmatmul.mubr.f32.gmra.mrb[0].mxu0 %v6595
        %v6806 = vpop.f32.mrb[0].mxu0
        %v6807 = vadd.f32 %v6517, %v6806
        %v6808 = vpop.f32.mrb[0].mxu0
        %6809 = vmatprep.mubr.f32.mxu0 0.0
        %6810 = vmatmul.mubr.f32.gmra.mrb[0].mxu0 %v6598
        %v6811 = vpop.f32.mrb[0].mxu0
        %v6812 = vadd.f32 %v6517, %v6811
        %v6813 = vpop.f32.mrb[0].mxu0
        %6814 = vmatprep.mubr.f32.mxu0 0.0
        %6815 = vmatmul.mubr.f32.gmra.mrb[0].mxu0 %v6601
        %v6816 = vpop.f32.mrb[0].mxu0
        %v6817 = vadd.f32 %v6517, %v6816
        %v6818 = vpop.f32.mrb[0].mxu0
        %6819 = vmatprep.mubr.f32.mxu0 0.0
        %6820 = vmatmul.mubr.f32.gmra.mrb[0].mxu0 %v6604
        %v6821 = vpop.f32.mrb[0].mxu0
        %v6822 = vadd.f32 %v6517, %v6821
        %v6823 = vpop.f32.mrb[0].mxu0
        %6824 = vmatprep.mubr.f32.mxu0 0.0
        %6825 = vmatmul.mubr.f32.gmra.mrb[0].mxu0 %v6607
        %v6826 = vpop.f32.mrb[0].mxu0
        %v6827 = vadd.f32 %v6517, %v6826
        %v6828 = vpop.f32.mrb[0].mxu0
        %6829 = vmatprep.mubr.f32.mxu0 0.0
        %6830 = vmatmul.mubr.f32.gmra.mrb[0].mxu0 %v6610
        %v6831 = vpop.f32.mrb[0].mxu0
        %v6832 = vadd.f32 %v6517, %v6831
        %v6833 = vpop.f32.mrb[0].mxu0
        %6834 = vmatprep.mubr.f32.mxu0 0.0
        %6835 = vmatmul.mubr.f32.gmra.mrb[0].mxu0 %v6613
        %v6836 = vpop.f32.mrb[0].mxu0
        %v6837 = vadd.f32 %v6517, %v6836
        %v6838 = vpop.f32.mrb[0].mxu0
        %6839 = vdwg.mxu0
        %v6840 = vmax.f32 %v6682, 0.0
        %v6841 = vmax.f32 %v6687, 0.0
        %v6842 = vmax.f32 %v6692, 0.0
        %v6843 = vmax.f32 %v6697, 0.0
        %v6844 = vmax.f32 %v6702, 0.0
        %v6845 = vmax.f32 %v6707, 0.0
        %v6846 = vmax.f32 %v6712, 0.0
        %v6847 = vmax.f32 %v6717, 0.0
        %v6848 = vmax.f32 %v6722, 0.0
        %v6849 = vmax.f32 %v6727, 0.0
        %v6850 = vmax.f32 %v6732, 0.0
        %v6851 = vmax.f32 %v6737, 0.0
        %v6852 = vmax.f32 %v6742, 0.0
        %v6853 = vmax.f32 %v6747, 0.0
        %v6854 = vmax.f32 %v6752, 0.0
        %v6855 = vmax.f32 %v6757, 0.0
        %v6856 = vmax.f32 %v6762, 0.0
        %v6857 = vmax.f32 %v6767, 0.0
        %v6858 = vmax.f32 %v6772, 0.0
        %v6859 = vmax.f32 %v6777, 0.0
        %v6860 = vmax.f32 %v6782, 0.0
        %v6861 = vmax.f32 %v6787, 0.0
        %v6862 = vmax.f32 %v6792, 0.0
        %v6863 = vmax.f32 %v6797, 0.0
        %v6864 = vmax.f32 %v6802, 0.0
        %v6865 = vmax.f32 %v6807, 0.0
        %v6866 = vmax.f32 %v6812, 0.0
        %v6867 = vmax.f32 %v6817, 0.0
        %v6868 = vmax.f32 %v6822, 0.0
        %v6869 = vmax.f32 %v6827, 0.0
        %v6870 = vmax.f32 %v6832, 0.0
        %v6871 = vmax.f32 %v6837, 0.0
        %s6872 = scalar_lea.vmem %s5, 72
        %v6873 = vld [vmem:[%s6872] sm:$0xff]
        %v6874 = vld [vmem:[%s6872 + $0x8] sm:$0xff]
        %v6875 = vld [vmem:[%s6872 + $0x10] sm:$0xff]
        %v6876 = vld [vmem:[%s6872 + $0x18] sm:$0xff]
        %v6877 = vld [vmem:[%s6872 + $0x20] sm:$0xff]
        %v6878 = vld [vmem:[%s6872 + $0x28] sm:$0xff]
        %v6879 = vld [vmem:[%s6872 + $0x30] sm:$0xff]
        %v6880 = vld [vmem:[%s6872 + $0x38] sm:$0xff]
        %v6881 = vld [vmem:[%s6872 + $0x40] sm:$0xff]
        %s6882 = scalar_lea.vmem %s6, 1
        %v6883 = vld [vmem:[%s6882] sm:$0x1]
        %v6884 = vld [vmem:[%s1 + $0x3] sm:$0x1]
        %v6885 = vld [vmem:[%s2 + $0x3] sm:$0x1]
        %v6886 = vlaneseq
        %v6887 = vshrl.u32 %v6886, 7
        %v6888 = vsub.s32 0, %v6887
        %v6889 = vrot.slane %v6884, %v6888
        %v6890 = vmul.f32 %v6840, %v6889
        %v6891 = vmul.f32 %v6841, %v6889
        %v6892 = vmul.f32 %v6842, %v6889
        %v6893 = vmul.f32 %v6843, %v6889
        %v6894 = vmul.f32 %v6844, %v6889
        %v6895 = vmul.f32 %v6845, %v6889
        %v6896 = vmul.f32 %v6846, %v6889
        %v6897 = vmul.f32 %v6847, %v6889
        %v6898 = vmul.f32 %v6848, %v6889
        %v6899 = vmul.f32 %v6849, %v6889
        %v6900 = vmul.f32 %v6850, %v6889
        %v6901 = vmul.f32 %v6851, %v6889
        %v6902 = vmul.f32 %v6852, %v6889
        %v6903 = vmul.f32 %v6853, %v6889
        %v6904 = vmul.f32 %v6854, %v6889
        %v6905 = vmul.f32 %v6855, %v6889
        %v6906 = vmul.f32 %v6856, %v6889
        %v6907 = vmul.f32 %v6857, %v6889
        %v6908 = vmul.f32 %v6858, %v6889
        %v6909 = vmul.f32 %v6859, %v6889
        %v6910 = vmul.f32 %v6860, %v6889
        %v6911 = vmul.f32 %v6861, %v6889
        %v6912 = vmul.f32 %v6862, %v6889
        %v6913 = vmul.f32 %v6863, %v6889
        %v6914 = vmul.f32 %v6864, %v6889
        %v6915 = vmul.f32 %v6865, %v6889
        %v6916 = vmul.f32 %v6866, %v6889
        %v6917 = vmul.f32 %v6867, %v6889
        %v6918 = vmul.f32 %v6868, %v6889
        %v6919 = vmul.f32 %v6869, %v6889
        %v6920 = vmul.f32 %v6870, %v6889
        %v6921 = vmul.f32 %v6871, %v6889
        %v6922 = vlaneseq
        %v6923 = vshrl.u32 %v6922, 7
        %v6924 = vsub.s32 0, %v6923
        %v6925 = vrot.slane %v6885, %v6924
        %v6926 = vadd.f32 %v6890, %v6925
        %v6927 = vadd.f32 %v6891, %v6925
        %v6928 = vadd.f32 %v6892, %v6925
        %v6929 = vadd.f32 %v6893, %v6925
        %v6930 = vadd.f32 %v6894, %v6925
        %v6931 = vadd.f32 %v6895, %v6925
        %v6932 = vadd.f32 %v6896, %v6925
        %v6933 = vadd.f32 %v6897, %v6925
        %v6934 = vadd.f32 %v6898, %v6925
        %v6935 = vadd.f32 %v6899, %v6925
        %v6936 = vadd.f32 %v6900, %v6925
        %v6937 = vadd.f32 %v6901, %v6925
        %v6938 = vadd.f32 %v6902, %v6925
        %v6939 = vadd.f32 %v6903, %v6925
        %v6940 = vadd.f32 %v6904, %v6925
        %v6941 = vadd.f32 %v6905, %v6925
        %v6942 = vadd.f32 %v6906, %v6925
        %v6943 = vadd.f32 %v6907, %v6925
        %v6944 = vadd.f32 %v6908, %v6925
        %v6945 = vadd.f32 %v6909, %v6925
        %v6946 = vadd.f32 %v6910, %v6925
        %v6947 = vadd.f32 %v6911, %v6925
        %v6948 = vadd.f32 %v6912, %v6925
        %v6949 = vadd.f32 %v6913, %v6925
        %v6950 = vadd.f32 %v6914, %v6925
        %v6951 = vadd.f32 %v6915, %v6925
        %v6952 = vadd.f32 %v6916, %v6925
        %v6953 = vadd.f32 %v6917, %v6925
        %v6954 = vadd.f32 %v6918, %v6925
        %v6955 = vadd.f32 %v6919, %v6925
        %v6956 = vadd.f32 %v6920, %v6925
        %v6957 = vadd.f32 %v6921, %v6925
        %6958 = vst.msk [vmem:[%s519 + $0x8] sm:$0xff] %vm330, %v6926
        %6959 = vst.msk [vmem:[%s519 + $0x10] sm:$0xff] %vm330, %v6927
        %6960 = vst.msk [vmem:[%s519 + $0x28] sm:$0xff] %vm330, %v6928
        %6961 = vst.msk [vmem:[%s519 + $0x30] sm:$0xff] %vm330, %v6929
        %6962 = vst.msk [vmem:[%s519 + $0x48] sm:$0xff] %vm330, %v6930
        %6963 = vst.msk [vmem:[%s519 + $0x50] sm:$0xff] %vm330, %v6931
        %6964 = vst.msk [vmem:[%s519 + $0x68] sm:$0xff] %vm330, %v6932
        %6965 = vst.msk [vmem:[%s519 + $0x70] sm:$0xff] %vm330, %v6933
        %6966 = vst.msk [vmem:[%s519 + $0x88] sm:$0xff] %vm330, %v6934
        %6967 = vst.msk [vmem:[%s519 + $0x90] sm:$0xff] %vm330, %v6935
        %6968 = vst.msk [vmem:[%s519 + $0xa8] sm:$0xff] %vm330, %v6936
        %6969 = vst.msk [vmem:[%s519 + $0xb0] sm:$0xff] %vm330, %v6937
        %6970 = vst.msk [vmem:[%s519 + $0xc8] sm:$0xff] %vm330, %v6938
        %6971 = vst.msk [vmem:[%s519 + $0xd0] sm:$0xff] %vm330, %v6939
        %6972 = vst.msk [vmem:[%s519 + $0xe8] sm:$0xff] %vm330, %v6940
        %6973 = vst.msk [vmem:[%s519 + $0xf0] sm:$0xff] %vm330, %v6941
        %6974 = vst.msk [vmem:[%s519 + $0x108] sm:$0xff] %vm330, %v6942
        %6975 = vst.msk [vmem:[%s519 + $0x110] sm:$0xff] %vm330, %v6943
        %6976 = vst.msk [vmem:[%s519 + $0x128] sm:$0xff] %vm330, %v6944
        %6977 = vst.msk [vmem:[%s519 + $0x130] sm:$0xff] %vm330, %v6945
        %6978 = vst.msk [vmem:[%s519 + $0x148] sm:$0xff] %vm330, %v6946
        %6979 = vst.msk [vmem:[%s519 + $0x150] sm:$0xff] %vm330, %v6947
        %6980 = vst.msk [vmem:[%s519 + $0x168] sm:$0xff] %vm330, %v6948
        %6981 = vst.msk [vmem:[%s519 + $0x170] sm:$0xff] %vm330, %v6949
        %6982 = vst.msk [vmem:[%s519 + $0x188] sm:$0xff] %vm330, %v6950
        %6983 = vst.msk [vmem:[%s519 + $0x190] sm:$0xff] %vm330, %v6951
        %6984 = vst.msk [vmem:[%s519 + $0x1a8] sm:$0xff] %vm330, %v6952
        %6985 = vst.msk [vmem:[%s519 + $0x1b0] sm:$0xff] %vm330, %v6953
        %6986 = vst.msk [vmem:[%s519 + $0x1c8] sm:$0xff] %vm330, %v6954
        %6987 = vst.msk [vmem:[%s519 + $0x1d0] sm:$0xff] %vm330, %v6955
        %6988 = vst.msk [vmem:[%s519 + $0x1e8] sm:$0xff] %vm330, %v6956
        %6989 = vst.msk [vmem:[%s519 + $0x1f0] sm:$0xff] %vm330, %v6957
        %v6990 = vld [vmem:[#allocation2 + $0x7] sm:$0xff]
        %v6991 = vld [vmem:[#allocation2 + $0xf] sm:$0xff]
        %v6992 = vld [vmem:[#allocation2 + $0x27] sm:$0xff]
        %v6993 = vld [vmem:[#allocation2 + $0x2f] sm:$0xff]
        %v6994 = vld [vmem:[#allocation2 + $0x47] sm:$0xff]
        %v6995 = vld [vmem:[#allocation2 + $0x4f] sm:$0xff]
        %v6996 = vld [vmem:[#allocation2 + $0x67] sm:$0xff]
        %v6997 = vld [vmem:[#allocation2 + $0x6f] sm:$0xff]
        %v6998 = vld [vmem:[#allocation2 + $0x87] sm:$0xff]
        %v6999 = vld [vmem:[#allocation2 + $0x8f] sm:$0xff]
        %v7000 = vld [vmem:[#allocation2 + $0xa7] sm:$0xff]
        %v7001 = vld [vmem:[#allocation2 + $0xaf] sm:$0xff]
        %v7002 = vld [vmem:[#allocation2 + $0xc7] sm:$0xff]
        %v7003 = vld [vmem:[#allocation2 + $0xcf] sm:$0xff]
        %v7004 = vld [vmem:[#allocation2 + $0xe7] sm:$0xff]
        %v7005 = vld [vmem:[#allocation2 + $0xef] sm:$0xff]
        %v7006 = vld [vmem:[#allocation2 + $0x107] sm:$0xff]
        %v7007 = vld [vmem:[#allocation2 + $0x10f] sm:$0xff]
        %v7008 = vld [vmem:[#allocation2 + $0x127] sm:$0xff]
        %v7009 = vld [vmem:[#allocation2 + $0x12f] sm:$0xff]
        %v7010 = vld [vmem:[#allocation2 + $0x147] sm:$0xff]
        %v7011 = vld [vmem:[#allocation2 + $0x14f] sm:$0xff]
        %v7012 = vld [vmem:[#allocation2 + $0x167] sm:$0xff]
        %v7013 = vld [vmem:[#allocation2 + $0x16f] sm:$0xff]
        %v7014 = vld [vmem:[#allocation2 + $0x187] sm:$0xff]
        %v7015 = vld [vmem:[#allocation2 + $0x18f] sm:$0xff]
        %v7016 = vld [vmem:[#allocation2 + $0x1a7] sm:$0xff]
        %v7017 = vld [vmem:[#allocation2 + $0x1af] sm:$0xff]
        %v7018 = vld [vmem:[#allocation2 + $0x1c7] sm:$0xff]
        %v7019 = vld [vmem:[#allocation2 + $0x1cf] sm:$0xff]
        %v7020 = vld [vmem:[#allocation2 + $0x1e7] sm:$0xff]
        %v7021 = vld [vmem:[#allocation2 + $0x1ef] sm:$0xff]
        %v7022 = vld [vmem:[#allocation2 + $0x8] sm:$0xff]
        %v7023 = vld [vmem:[#allocation2 + $0x10] sm:$0xff]
        %v7024 = vld [vmem:[#allocation2 + $0x28] sm:$0xff]
        %v7025 = vld [vmem:[#allocation2 + $0x30] sm:$0xff]
        %v7026 = vld [vmem:[#allocation2 + $0x48] sm:$0xff]
        %v7027 = vld [vmem:[#allocation2 + $0x50] sm:$0xff]
        %v7028 = vld [vmem:[#allocation2 + $0x68] sm:$0xff]
        %v7029 = vld [vmem:[#allocation2 + $0x70] sm:$0xff]
        %v7030 = vld [vmem:[#allocation2 + $0x88] sm:$0xff]
        %v7031 = vld [vmem:[#allocation2 + $0x90] sm:$0xff]
        %v7032 = vld [vmem:[#allocation2 + $0xa8] sm:$0xff]
        %v7033 = vld [vmem:[#allocation2 + $0xb0] sm:$0xff]
        %v7034 = vld [vmem:[#allocation2 + $0xc8] sm:$0xff]
        %v7035 = vld [vmem:[#allocation2 + $0xd0] sm:$0xff]
        %v7036 = vld [vmem:[#allocation2 + $0xe8] sm:$0xff]
        %v7037 = vld [vmem:[#allocation2 + $0xf0] sm:$0xff]
        %v7038 = vld [vmem:[#allocation2 + $0x108] sm:$0xff]
        %v7039 = vld [vmem:[#allocation2 + $0x110] sm:$0xff]
        %v7040 = vld [vmem:[#allocation2 + $0x128] sm:$0xff]
        %v7041 = vld [vmem:[#allocation2 + $0x130] sm:$0xff]
        %v7042 = vld [vmem:[#allocation2 + $0x148] sm:$0xff]
        %v7043 = vld [vmem:[#allocation2 + $0x150] sm:$0xff]
        %v7044 = vld [vmem:[#allocation2 + $0x168] sm:$0xff]
        %v7045 = vld [vmem:[#allocation2 + $0x170] sm:$0xff]
        %v7046 = vld [vmem:[#allocation2 + $0x188] sm:$0xff]
        %v7047 = vld [vmem:[#allocation2 + $0x190] sm:$0xff]
        %v7048 = vld [vmem:[#allocation2 + $0x1a8] sm:$0xff]
        %v7049 = vld [vmem:[#allocation2 + $0x1b0] sm:$0xff]
        %v7050 = vld [vmem:[#allocation2 + $0x1c8] sm:$0xff]
        %v7051 = vld [vmem:[#allocation2 + $0x1d0] sm:$0xff]
        %v7052 = vld [vmem:[#allocation2 + $0x1e8] sm:$0xff]
        %v7053 = vld [vmem:[#allocation2 + $0x1f0] sm:$0xff]
        %v7054 = vld [vmem:[#allocation2 + $0x9] sm:$0xff]
        %v7055 = vld [vmem:[#allocation2 + $0x11] sm:$0xff]
        %v7056 = vld [vmem:[#allocation2 + $0x29] sm:$0xff]
        %v7057 = vld [vmem:[#allocation2 + $0x31] sm:$0xff]
        %v7058 = vld [vmem:[#allocation2 + $0x49] sm:$0xff]
        %v7059 = vld [vmem:[#allocation2 + $0x51] sm:$0xff]
        %v7060 = vld [vmem:[#allocation2 + $0x69] sm:$0xff]
        %v7061 = vld [vmem:[#allocation2 + $0x71] sm:$0xff]
        %v7062 = vld [vmem:[#allocation2 + $0x89] sm:$0xff]
        %v7063 = vld [vmem:[#allocation2 + $0x91] sm:$0xff]
        %v7064 = vld [vmem:[#allocation2 + $0xa9] sm:$0xff]
        %v7065 = vld [vmem:[#allocation2 + $0xb1] sm:$0xff]
        %v7066 = vld [vmem:[#allocation2 + $0xc9] sm:$0xff]
        %v7067 = vld [vmem:[#allocation2 + $0xd1] sm:$0xff]
        %v7068 = vld [vmem:[#allocation2 + $0xe9] sm:$0xff]
        %v7069 = vld [vmem:[#allocation2 + $0xf1] sm:$0xff]
        %v7070 = vld [vmem:[#allocation2 + $0x109] sm:$0xff]
        %v7071 = vld [vmem:[#allocation2 + $0x111] sm:$0xff]
        %v7072 = vld [vmem:[#allocation2 + $0x129] sm:$0xff]
        %v7073 = vld [vmem:[#allocation2 + $0x131] sm:$0xff]
        %v7074 = vld [vmem:[#allocation2 + $0x149] sm:$0xff]
        %v7075 = vld [vmem:[#allocation2 + $0x151] sm:$0xff]
        %v7076 = vld [vmem:[#allocation2 + $0x169] sm:$0xff]
        %v7077 = vld [vmem:[#allocation2 + $0x171] sm:$0xff]
        %v7078 = vld [vmem:[#allocation2 + $0x189] sm:$0xff]
        %v7079 = vld [vmem:[#allocation2 + $0x191] sm:$0xff]
        %v7080 = vld [vmem:[#allocation2 + $0x1a9] sm:$0xff]
        %v7081 = vld [vmem:[#allocation2 + $0x1b1] sm:$0xff]
        %v7082 = vld [vmem:[#allocation2 + $0x1c9] sm:$0xff]
        %v7083 = vld [vmem:[#allocation2 + $0x1d1] sm:$0xff]
        %v7084 = vld [vmem:[#allocation2 + $0x1e9] sm:$0xff]
        %v7085 = vld [vmem:[#allocation2 + $0x1f1] sm:$0xff]
        %v7086 = vld [vmem:[%s519 + $0x7] sm:$0xff]
        %v7087 = vld [vmem:[%s519 + $0xf] sm:$0xff]
        %v7088 = vld [vmem:[%s519 + $0x27] sm:$0xff]
        %v7089 = vld [vmem:[%s519 + $0x2f] sm:$0xff]
        %v7090 = vld [vmem:[%s519 + $0x47] sm:$0xff]
        %v7091 = vld [vmem:[%s519 + $0x4f] sm:$0xff]
        %v7092 = vld [vmem:[%s519 + $0x67] sm:$0xff]
        %v7093 = vld [vmem:[%s519 + $0x6f] sm:$0xff]
        %v7094 = vld [vmem:[%s519 + $0x87] sm:$0xff]
        %v7095 = vld [vmem:[%s519 + $0x8f] sm:$0xff]
        %v7096 = vld [vmem:[%s519 + $0xa7] sm:$0xff]
        %v7097 = vld [vmem:[%s519 + $0xaf] sm:$0xff]
        %v7098 = vld [vmem:[%s519 + $0xc7] sm:$0xff]
        %v7099 = vld [vmem:[%s519 + $0xcf] sm:$0xff]
        %v7100 = vld [vmem:[%s519 + $0xe7] sm:$0xff]
        %v7101 = vld [vmem:[%s519 + $0xef] sm:$0xff]
        %v7102 = vld [vmem:[%s519 + $0x107] sm:$0xff]
        %v7103 = vld [vmem:[%s519 + $0x10f] sm:$0xff]
        %v7104 = vld [vmem:[%s519 + $0x127] sm:$0xff]
        %v7105 = vld [vmem:[%s519 + $0x12f] sm:$0xff]
        %v7106 = vld [vmem:[%s519 + $0x147] sm:$0xff]
        %v7107 = vld [vmem:[%s519 + $0x14f] sm:$0xff]
        %v7108 = vld [vmem:[%s519 + $0x167] sm:$0xff]
        %v7109 = vld [vmem:[%s519 + $0x16f] sm:$0xff]
        %v7110 = vld [vmem:[%s519 + $0x187] sm:$0xff]
        %v7111 = vld [vmem:[%s519 + $0x18f] sm:$0xff]
        %v7112 = vld [vmem:[%s519 + $0x1a7] sm:$0xff]
        %v7113 = vld [vmem:[%s519 + $0x1af] sm:$0xff]
        %v7114 = vld [vmem:[%s519 + $0x1c7] sm:$0xff]
        %v7115 = vld [vmem:[%s519 + $0x1cf] sm:$0xff]
        %v7116 = vld [vmem:[%s519 + $0x1e7] sm:$0xff]
        %v7117 = vld [vmem:[%s519 + $0x1ef] sm:$0xff]
        %v7118 = vld [vmem:[%s519 + $0x8] sm:$0xff]
        %v7119 = vld [vmem:[%s519 + $0x10] sm:$0xff]
        %v7120 = vld [vmem:[%s519 + $0x28] sm:$0xff]
        %v7121 = vld [vmem:[%s519 + $0x30] sm:$0xff]
        %v7122 = vld [vmem:[%s519 + $0x48] sm:$0xff]
        %v7123 = vld [vmem:[%s519 + $0x50] sm:$0xff]
        %v7124 = vld [vmem:[%s519 + $0x68] sm:$0xff]
        %v7125 = vld [vmem:[%s519 + $0x70] sm:$0xff]
        %v7126 = vld [vmem:[%s519 + $0x88] sm:$0xff]
        %v7127 = vld [vmem:[%s519 + $0x90] sm:$0xff]
        %v7128 = vld [vmem:[%s519 + $0xa8] sm:$0xff]
        %v7129 = vld [vmem:[%s519 + $0xb0] sm:$0xff]
        %v7130 = vld [vmem:[%s519 + $0xc8] sm:$0xff]
        %v7131 = vld [vmem:[%s519 + $0xd0] sm:$0xff]
        %v7132 = vld [vmem:[%s519 + $0xe8] sm:$0xff]
        %v7133 = vld [vmem:[%s519 + $0xf0] sm:$0xff]
        %v7134 = vld [vmem:[%s519 + $0x108] sm:$0xff]
        %v7135 = vld [vmem:[%s519 + $0x110] sm:$0xff]
        %v7136 = vld [vmem:[%s519 + $0x128] sm:$0xff]
        %v7137 = vld [vmem:[%s519 + $0x130] sm:$0xff]
        %v7138 = vld [vmem:[%s519 + $0x148] sm:$0xff]
        %v7139 = vld [vmem:[%s519 + $0x150] sm:$0xff]
        %v7140 = vld [vmem:[%s519 + $0x168] sm:$0xff]
        %v7141 = vld [vmem:[%s519 + $0x170] sm:$0xff]
        %v7142 = vld [vmem:[%s519 + $0x188] sm:$0xff]
        %v7143 = vld [vmem:[%s519 + $0x190] sm:$0xff]
        %v7144 = vld [vmem:[%s519 + $0x1a8] sm:$0xff]
        %v7145 = vld [vmem:[%s519 + $0x1b0] sm:$0xff]
        %v7146 = vld [vmem:[%s519 + $0x1c8] sm:$0xff]
        %v7147 = vld [vmem:[%s519 + $0x1d0] sm:$0xff]
        %v7148 = vld [vmem:[%s519 + $0x1e8] sm:$0xff]
        %v7149 = vld [vmem:[%s519 + $0x1f0] sm:$0xff]
        %v7150 = vld [vmem:[%s519 + $0x9] sm:$0xff]
        %v7151 = vld [vmem:[%s519 + $0x11] sm:$0xff]
        %v7152 = vld [vmem:[%s519 + $0x29] sm:$0xff]
        %v7153 = vld [vmem:[%s519 + $0x31] sm:$0xff]
        %v7154 = vld [vmem:[%s519 + $0x49] sm:$0xff]
        %v7155 = vld [vmem:[%s519 + $0x51] sm:$0xff]
        %v7156 = vld [vmem:[%s519 + $0x69] sm:$0xff]
        %v7157 = vld [vmem:[%s519 + $0x71] sm:$0xff]
        %v7158 = vld [vmem:[%s519 + $0x89] sm:$0xff]
        %v7159 = vld [vmem:[%s519 + $0x91] sm:$0xff]
        %v7160 = vld [vmem:[%s519 + $0xa9] sm:$0xff]
        %v7161 = vld [vmem:[%s519 + $0xb1] sm:$0xff]
        %v7162 = vld [vmem:[%s519 + $0xc9] sm:$0xff]
        %v7163 = vld [vmem:[%s519 + $0xd1] sm:$0xff]
        %v7164 = vld [vmem:[%s519 + $0xe9] sm:$0xff]
        %v7165 = vld [vmem:[%s519 + $0xf1] sm:$0xff]
        %v7166 = vld [vmem:[%s519 + $0x109] sm:$0xff]
        %v7167 = vld [vmem:[%s519 + $0x111] sm:$0xff]
        %v7168 = vld [vmem:[%s519 + $0x129] sm:$0xff]
        %v7169 = vld [vmem:[%s519 + $0x131] sm:$0xff]
        %v7170 = vld [vmem:[%s519 + $0x149] sm:$0xff]
        %v7171 = vld [vmem:[%s519 + $0x151] sm:$0xff]
        %v7172 = vld [vmem:[%s519 + $0x169] sm:$0xff]
        %v7173 = vld [vmem:[%s519 + $0x171] sm:$0xff]
        %v7174 = vld [vmem:[%s519 + $0x189] sm:$0xff]
        %v7175 = vld [vmem:[%s519 + $0x191] sm:$0xff]
        %v7176 = vld [vmem:[%s519 + $0x1a9] sm:$0xff]
        %v7177 = vld [vmem:[%s519 + $0x1b1] sm:$0xff]
        %v7178 = vld [vmem:[%s519 + $0x1c9] sm:$0xff]
        %v7179 = vld [vmem:[%s519 + $0x1d1] sm:$0xff]
        %v7180 = vld [vmem:[%s519 + $0x1e9] sm:$0xff]
        %v7181 = vld [vmem:[%s519 + $0x1f1] sm:$0xff]
        %v7182 = vld [vmem:[%s744 + $0x7] sm:$0xff]
        %v7183 = vld [vmem:[%s744 + $0xf] sm:$0xff]
        %v7184 = vld [vmem:[%s744 + $0x27] sm:$0xff]
        %v7185 = vld [vmem:[%s744 + $0x2f] sm:$0xff]
        %v7186 = vld [vmem:[%s744 + $0x47] sm:$0xff]
        %v7187 = vld [vmem:[%s744 + $0x4f] sm:$0xff]
        %v7188 = vld [vmem:[%s744 + $0x67] sm:$0xff]
        %v7189 = vld [vmem:[%s744 + $0x6f] sm:$0xff]
        %v7190 = vld [vmem:[%s744 + $0x87] sm:$0xff]
        %v7191 = vld [vmem:[%s744 + $0x8f] sm:$0xff]
        %v7192 = vld [vmem:[%s744 + $0xa7] sm:$0xff]
        %v7193 = vld [vmem:[%s744 + $0xaf] sm:$0xff]
        %v7194 = vld [vmem:[%s744 + $0xc7] sm:$0xff]
        %v7195 = vld [vmem:[%s744 + $0xcf] sm:$0xff]
        %v7196 = vld [vmem:[%s744 + $0xe7] sm:$0xff]
        %v7197 = vld [vmem:[%s744 + $0xef] sm:$0xff]
        %v7198 = vld [vmem:[%s744 + $0x107] sm:$0xff]
        %v7199 = vld [vmem:[%s744 + $0x10f] sm:$0xff]
        %v7200 = vld [vmem:[%s744 + $0x127] sm:$0xff]
        %v7201 = vld [vmem:[%s744 + $0x12f] sm:$0xff]
        %v7202 = vld [vmem:[%s744 + $0x147] sm:$0xff]
        %v7203 = vld [vmem:[%s744 + $0x14f] sm:$0xff]
        %v7204 = vld [vmem:[%s744 + $0x167] sm:$0xff]
        %v7205 = vld [vmem:[%s744 + $0x16f] sm:$0xff]
        %v7206 = vld [vmem:[%s744 + $0x187] sm:$0xff]
        %v7207 = vld [vmem:[%s744 + $0x18f] sm:$0xff]
        %v7208 = vld [vmem:[%s744 + $0x1a7] sm:$0xff]
        %v7209 = vld [vmem:[%s744 + $0x1af] sm:$0xff]
        %v7210 = vld [vmem:[%s744 + $0x1c7] sm:$0xff]
        %v7211 = vld [vmem:[%s744 + $0x1cf] sm:$0xff]
        %v7212 = vld [vmem:[%s744 + $0x1e7] sm:$0xff]
        %v7213 = vld [vmem:[%s744 + $0x1ef] sm:$0xff]
        %v7214 = vld [vmem:[%s744 + $0x8] sm:$0xff]
        %v7215 = vld [vmem:[%s744 + $0x10] sm:$0xff]
        %v7216 = vld [vmem:[%s744 + $0x28] sm:$0xff]
        %v7217 = vld [vmem:[%s744 + $0x30] sm:$0xff]
        %v7218 = vld [vmem:[%s744 + $0x48] sm:$0xff]
        %v7219 = vld [vmem:[%s744 + $0x50] sm:$0xff]
        %v7220 = vld [vmem:[%s744 + $0x68] sm:$0xff]
        %v7221 = vld [vmem:[%s744 + $0x70] sm:$0xff]
        %v7222 = vld [vmem:[%s744 + $0x88] sm:$0xff]
        %v7223 = vld [vmem:[%s744 + $0x90] sm:$0xff]
        %v7224 = vld [vmem:[%s744 + $0xa8] sm:$0xff]
        %v7225 = vld [vmem:[%s744 + $0xb0] sm:$0xff]
        %v7226 = vld [vmem:[%s744 + $0xc8] sm:$0xff]
        %v7227 = vld [vmem:[%s744 + $0xd0] sm:$0xff]
        %v7228 = vld [vmem:[%s744 + $0xe8] sm:$0xff]
        %v7229 = vld [vmem:[%s744 + $0xf0] sm:$0xff]
        %v7230 = vld [vmem:[%s744 + $0x108] sm:$0xff]
        %v7231 = vld [vmem:[%s744 + $0x110] sm:$0xff]
        %v7232 = vld [vmem:[%s744 + $0x128] sm:$0xff]
        %v7233 = vld [vmem:[%s744 + $0x130] sm:$0xff]
        %v7234 = vld [vmem:[%s744 + $0x148] sm:$0xff]
        %v7235 = vld [vmem:[%s744 + $0x150] sm:$0xff]
        %v7236 = vld [vmem:[%s744 + $0x168] sm:$0xff]
        %v7237 = vld [vmem:[%s744 + $0x170] sm:$0xff]
        %v7238 = vld [vmem:[%s744 + $0x188] sm:$0xff]
        %v7239 = vld [vmem:[%s744 + $0x190] sm:$0xff]
        %v7240 = vld [vmem:[%s744 + $0x1a8] sm:$0xff]
        %v7241 = vld [vmem:[%s744 + $0x1b0] sm:$0xff]
        %v7242 = vld [vmem:[%s744 + $0x1c8] sm:$0xff]
        %v7243 = vld [vmem:[%s744 + $0x1d0] sm:$0xff]
        %v7244 = vld [vmem:[%s744 + $0x1e8] sm:$0xff]
        %v7245 = vld [vmem:[%s744 + $0x1f0] sm:$0xff]
        %v7246 = vld [vmem:[%s744 + $0x9] sm:$0xff]
        %v7247 = vld [vmem:[%s744 + $0x11] sm:$0xff]
        %v7248 = vld [vmem:[%s744 + $0x29] sm:$0xff]
        %v7249 = vld [vmem:[%s744 + $0x31] sm:$0xff]
        %v7250 = vld [vmem:[%s744 + $0x49] sm:$0xff]
        %v7251 = vld [vmem:[%s744 + $0x51] sm:$0xff]
        %v7252 = vld [vmem:[%s744 + $0x69] sm:$0xff]
        %v7253 = vld [vmem:[%s744 + $0x71] sm:$0xff]
        %v7254 = vld [vmem:[%s744 + $0x89] sm:$0xff]
        %v7255 = vld [vmem:[%s744 + $0x91] sm:$0xff]
        %v7256 = vld [vmem:[%s744 + $0xa9] sm:$0xff]
        %v7257 = vld [vmem:[%s744 + $0xb1] sm:$0xff]
        %v7258 = vld [vmem:[%s744 + $0xc9] sm:$0xff]
        %v7259 = vld [vmem:[%s744 + $0xd1] sm:$0xff]
        %v7260 = vld [vmem:[%s744 + $0xe9] sm:$0xff]
        %v7261 = vld [vmem:[%s744 + $0xf1] sm:$0xff]
        %v7262 = vld [vmem:[%s744 + $0x109] sm:$0xff]
        %v7263 = vld [vmem:[%s744 + $0x111] sm:$0xff]
        %v7264 = vld [vmem:[%s744 + $0x129] sm:$0xff]
        %v7265 = vld [vmem:[%s744 + $0x131] sm:$0xff]
        %v7266 = vld [vmem:[%s744 + $0x149] sm:$0xff]
        %v7267 = vld [vmem:[%s744 + $0x151] sm:$0xff]
        %v7268 = vld [vmem:[%s744 + $0x169] sm:$0xff]
        %v7269 = vld [vmem:[%s744 + $0x171] sm:$0xff]
        %v7270 = vld [vmem:[%s744 + $0x189] sm:$0xff]
        %v7271 = vld [vmem:[%s744 + $0x191] sm:$0xff]
        %v7272 = vld [vmem:[%s744 + $0x1a9] sm:$0xff]
        %v7273 = vld [vmem:[%s744 + $0x1b1] sm:$0xff]
        %v7274 = vld [vmem:[%s744 + $0x1c9] sm:$0xff]
        %v7275 = vld [vmem:[%s744 + $0x1d1] sm:$0xff]
        %v7276 = vld [vmem:[%s744 + $0x1e9] sm:$0xff]
        %v7277 = vld [vmem:[%s744 + $0x1f1] sm:$0xff]
        %7310 = vrot.lane.b32.xlu0 %v7022, 8
        %v7311 = vpop.permute.xlu0 %7310
        %7312 = vrot.lane.b32.xlu0 %v7023, 8
        %v7313 = vpop.permute.xlu0 %7312
        %7314 = vrot.lane.b32.xlu0 %v7024, 8
        %v7315 = vpop.permute.xlu0 %7314
        %7316 = vrot.lane.b32.xlu0 %v7025, 8
        %v7317 = vpop.permute.xlu0 %7316
        %7318 = vrot.lane.b32.xlu0 %v7026, 8
        %v7319 = vpop.permute.xlu0 %7318
        %7320 = vrot.lane.b32.xlu0 %v7027, 8
        %v7321 = vpop.permute.xlu0 %7320
        %7322 = vrot.lane.b32.xlu0 %v7028, 8
        %v7323 = vpop.permute.xlu0 %7322
        %7324 = vrot.lane.b32.xlu0 %v7029, 8
        %v7325 = vpop.permute.xlu0 %7324
        %7326 = vrot.lane.b32.xlu0 %v7030, 8
        %v7327 = vpop.permute.xlu0 %7326
        %7328 = vrot.lane.b32.xlu0 %v7031, 8
        %v7329 = vpop.permute.xlu0 %7328
        %7330 = vrot.lane.b32.xlu0 %v7032, 8
        %v7331 = vpop.permute.xlu0 %7330
        %7332 = vrot.lane.b32.xlu0 %v7033, 8
        %v7333 = vpop.permute.xlu0 %7332
        %7334 = vrot.lane.b32.xlu0 %v7034, 8
        %v7335 = vpop.permute.xlu0 %7334
        %7336 = vrot.lane.b32.xlu0 %v7035, 8
        %v7337 = vpop.permute.xlu0 %7336
        %7338 = vrot.lane.b32.xlu0 %v7036, 8
        %v7339 = vpop.permute.xlu0 %7338
        %7340 = vrot.lane.b32.xlu0 %v7037, 8
        %v7341 = vpop.permute.xlu0 %7340
        %7342 = vrot.lane.b32.xlu0 %v7038, 8
        %v7343 = vpop.permute.xlu0 %7342
        %7344 = vrot.lane.b32.xlu0 %v7039, 8
        %v7345 = vpop.permute.xlu0 %7344
        %7346 = vrot.lane.b32.xlu0 %v7040, 8
        %v7347 = vpop.permute.xlu0 %7346
        %7348 = vrot.lane.b32.xlu0 %v7041, 8
        %v7349 = vpop.permute.xlu0 %7348
        %7350 = vrot.lane.b32.xlu0 %v7042, 8
        %v7351 = vpop.permute.xlu0 %7350
        %7352 = vrot.lane.b32.xlu0 %v7043, 8
        %v7353 = vpop.permute.xlu0 %7352
        %7354 = vrot.lane.b32.xlu0 %v7044, 8
        %v7355 = vpop.permute.xlu0 %7354
        %7356 = vrot.lane.b32.xlu0 %v7045, 8
        %v7357 = vpop.permute.xlu0 %7356
        %7358 = vrot.lane.b32.xlu0 %v7046, 8
        %v7359 = vpop.permute.xlu0 %7358
        %7360 = vrot.lane.b32.xlu0 %v7047, 8
        %v7361 = vpop.permute.xlu0 %7360
        %7362 = vrot.lane.b32.xlu0 %v7048, 8
        %v7363 = vpop.permute.xlu0 %7362
        %7364 = vrot.lane.b32.xlu0 %v7049, 8
        %v7365 = vpop.permute.xlu0 %7364
        %7366 = vrot.lane.b32.xlu0 %v7050, 8
        %v7367 = vpop.permute.xlu0 %7366
        %7368 = vrot.lane.b32.xlu0 %v7051, 8
        %v7369 = vpop.permute.xlu0 %7368
        %7370 = vrot.lane.b32.xlu0 %v7052, 8
        %v7371 = vpop.permute.xlu0 %7370
        %7372 = vrot.lane.b32.xlu0 %v7053, 8
        %v7373 = vpop.permute.xlu0 %7372
        %7438 = vrot.lane.b32.xlu0 %v7054, 16
        %v7439 = vpop.permute.xlu0 %7438
        %7440 = vrot.lane.b32.xlu0 %v7055, 16
        %v7441 = vpop.permute.xlu0 %7440
        %7442 = vrot.lane.b32.xlu0 %v7056, 16
        %v7443 = vpop.permute.xlu0 %7442
        %7444 = vrot.lane.b32.xlu0 %v7057, 16
        %v7445 = vpop.permute.xlu0 %7444
        %7446 = vrot.lane.b32.xlu0 %v7058, 16
        %v7447 = vpop.permute.xlu0 %7446
        %7448 = vrot.lane.b32.xlu0 %v7059, 16
        %v7449 = vpop.permute.xlu0 %7448
        %7450 = vrot.lane.b32.xlu0 %v7060, 16
        %v7451 = vpop.permute.xlu0 %7450
        %7452 = vrot.lane.b32.xlu0 %v7061, 16
        %v7453 = vpop.permute.xlu0 %7452
        %7454 = vrot.lane.b32.xlu0 %v7062, 16
        %v7455 = vpop.permute.xlu0 %7454
        %7456 = vrot.lane.b32.xlu0 %v7063, 16
        %v7457 = vpop.permute.xlu0 %7456
        %7458 = vrot.lane.b32.xlu0 %v7064, 16
        %v7459 = vpop.permute.xlu0 %7458
        %7460 = vrot.lane.b32.xlu0 %v7065, 16
        %v7461 = vpop.permute.xlu0 %7460
        %7462 = vrot.lane.b32.xlu0 %v7066, 16
        %v7463 = vpop.permute.xlu0 %7462
        %7464 = vrot.lane.b32.xlu0 %v7067, 16
        %v7465 = vpop.permute.xlu0 %7464
        %7466 = vrot.lane.b32.xlu0 %v7068, 16
        %v7467 = vpop.permute.xlu0 %7466
        %7468 = vrot.lane.b32.xlu0 %v7069, 16
        %v7469 = vpop.permute.xlu0 %7468
        %7470 = vrot.lane.b32.xlu0 %v7070, 16
        %v7471 = vpop.permute.xlu0 %7470
        %7472 = vrot.lane.b32.xlu0 %v7071, 16
        %v7473 = vpop.permute.xlu0 %7472
        %7474 = vrot.lane.b32.xlu0 %v7072, 16
        %v7475 = vpop.permute.xlu0 %7474
        %7476 = vrot.lane.b32.xlu0 %v7073, 16
        %v7477 = vpop.permute.xlu0 %7476
        %7478 = vrot.lane.b32.xlu0 %v7074, 16
        %v7479 = vpop.permute.xlu0 %7478
        %7480 = vrot.lane.b32.xlu0 %v7075, 16
        %v7481 = vpop.permute.xlu0 %7480
        %7482 = vrot.lane.b32.xlu0 %v7076, 16
        %v7483 = vpop.permute.xlu0 %7482
        %7484 = vrot.lane.b32.xlu0 %v7077, 16
        %v7485 = vpop.permute.xlu0 %7484
        %7486 = vrot.lane.b32.xlu0 %v7078, 16
        %v7487 = vpop.permute.xlu0 %7486
        %7488 = vrot.lane.b32.xlu0 %v7079, 16
        %v7489 = vpop.permute.xlu0 %7488
        %7490 = vrot.lane.b32.xlu0 %v7080, 16
        %v7491 = vpop.permute.xlu0 %7490
        %7492 = vrot.lane.b32.xlu0 %v7081, 16
        %v7493 = vpop.permute.xlu0 %7492
        %7494 = vrot.lane.b32.xlu0 %v7082, 16
        %v7495 = vpop.permute.xlu0 %7494
        %7496 = vrot.lane.b32.xlu0 %v7083, 16
        %v7497 = vpop.permute.xlu0 %7496
        %7498 = vrot.lane.b32.xlu0 %v7084, 16
        %v7499 = vpop.permute.xlu0 %7498
        %7500 = vrot.lane.b32.xlu0 %v7085, 16
        %v7501 = vpop.permute.xlu0 %7500
        %7566 = vrot.lane.b32.xlu0 %v7086, 24
        %v7567 = vpop.permute.xlu0 %7566
        %7568 = vrot.lane.b32.xlu0 %v7087, 24
        %v7569 = vpop.permute.xlu0 %7568
        %7570 = vrot.lane.b32.xlu0 %v7088, 24
        %v7571 = vpop.permute.xlu0 %7570
        %7572 = vrot.lane.b32.xlu0 %v7089, 24
        %v7573 = vpop.permute.xlu0 %7572
        %7574 = vrot.lane.b32.xlu0 %v7090, 24
        %v7575 = vpop.permute.xlu0 %7574
        %7576 = vrot.lane.b32.xlu0 %v7091, 24
        %v7577 = vpop.permute.xlu0 %7576
        %7578 = vrot.lane.b32.xlu0 %v7092, 24
        %v7579 = vpop.permute.xlu0 %7578
        %7580 = vrot.lane.b32.xlu0 %v7093, 24
        %v7581 = vpop.permute.xlu0 %7580
        %7582 = vrot.lane.b32.xlu0 %v7094, 24
        %v7583 = vpop.permute.xlu0 %7582
        %7584 = vrot.lane.b32.xlu0 %v7095, 24
        %v7585 = vpop.permute.xlu0 %7584
        %7586 = vrot.lane.b32.xlu0 %v7096, 24
        %v7587 = vpop.permute.xlu0 %7586
        %7588 = vrot.lane.b32.xlu0 %v7097, 24
        %v7589 = vpop.permute.xlu0 %7588
        %7590 = vrot.lane.b32.xlu0 %v7098, 24
        %v7591 = vpop.permute.xlu0 %7590
        %7592 = vrot.lane.b32.xlu0 %v7099, 24
        %v7593 = vpop.permute.xlu0 %7592
        %7594 = vrot.lane.b32.xlu0 %v7100, 24
        %v7595 = vpop.permute.xlu0 %7594
        %7596 = vrot.lane.b32.xlu0 %v7101, 24
        %v7597 = vpop.permute.xlu0 %7596
        %7598 = vrot.lane.b32.xlu0 %v7102, 24
        %v7599 = vpop.permute.xlu0 %7598
        %7600 = vrot.lane.b32.xlu0 %v7103, 24
        %v7601 = vpop.permute.xlu0 %7600
        %7602 = vrot.lane.b32.xlu0 %v7104, 24
        %v7603 = vpop.permute.xlu0 %7602
        %7604 = vrot.lane.b32.xlu0 %v7105, 24
        %v7605 = vpop.permute.xlu0 %7604
        %7606 = vrot.lane.b32.xlu0 %v7106, 24
        %v7607 = vpop.permute.xlu0 %7606
        %7608 = vrot.lane.b32.xlu0 %v7107, 24
        %v7609 = vpop.permute.xlu0 %7608
        %7610 = vrot.lane.b32.xlu0 %v7108, 24
        %v7611 = vpop.permute.xlu0 %7610
        %7612 = vrot.lane.b32.xlu0 %v7109, 24
        %v7613 = vpop.permute.xlu0 %7612
        %7614 = vrot.lane.b32.xlu0 %v7110, 24
        %v7615 = vpop.permute.xlu0 %7614
        %7616 = vrot.lane.b32.xlu0 %v7111, 24
        %v7617 = vpop.permute.xlu0 %7616
        %7618 = vrot.lane.b32.xlu0 %v7112, 24
        %v7619 = vpop.permute.xlu0 %7618
        %7620 = vrot.lane.b32.xlu0 %v7113, 24
        %v7621 = vpop.permute.xlu0 %7620
        %7622 = vrot.lane.b32.xlu0 %v7114, 24
        %v7623 = vpop.permute.xlu0 %7622
        %7624 = vrot.lane.b32.xlu0 %v7115, 24
        %v7625 = vpop.permute.xlu0 %7624
        %7626 = vrot.lane.b32.xlu0 %v7116, 24
        %v7627 = vpop.permute.xlu0 %7626
        %7628 = vrot.lane.b32.xlu0 %v7117, 24
        %v7629 = vpop.permute.xlu0 %7628
        %7694 = vrot.lane.b32.xlu0 %v7118, 32
        %v7695 = vpop.permute.xlu0 %7694
        %7696 = vrot.lane.b32.xlu0 %v7119, 32
        %v7697 = vpop.permute.xlu0 %7696
        %7698 = vrot.lane.b32.xlu0 %v7120, 32
        %v7699 = vpop.permute.xlu0 %7698
        %7700 = vrot.lane.b32.xlu0 %v7121, 32
        %v7701 = vpop.permute.xlu0 %7700
        %7702 = vrot.lane.b32.xlu0 %v7122, 32
        %v7703 = vpop.permute.xlu0 %7702
        %7704 = vrot.lane.b32.xlu0 %v7123, 32
        %v7705 = vpop.permute.xlu0 %7704
        %7706 = vrot.lane.b32.xlu0 %v7124, 32
        %v7707 = vpop.permute.xlu0 %7706
        %7708 = vrot.lane.b32.xlu0 %v7125, 32
        %v7709 = vpop.permute.xlu0 %7708
        %7710 = vrot.lane.b32.xlu0 %v7126, 32
        %v7711 = vpop.permute.xlu0 %7710
        %7712 = vrot.lane.b32.xlu0 %v7127, 32
        %v7713 = vpop.permute.xlu0 %7712
        %7714 = vrot.lane.b32.xlu0 %v7128, 32
        %v7715 = vpop.permute.xlu0 %7714
        %7716 = vrot.lane.b32.xlu0 %v7129, 32
        %v7717 = vpop.permute.xlu0 %7716
        %7718 = vrot.lane.b32.xlu0 %v7130, 32
        %v7719 = vpop.permute.xlu0 %7718
        %7720 = vrot.lane.b32.xlu0 %v7131, 32
        %v7721 = vpop.permute.xlu0 %7720
        %7722 = vrot.lane.b32.xlu0 %v7132, 32
        %v7723 = vpop.permute.xlu0 %7722
        %7724 = vrot.lane.b32.xlu0 %v7133, 32
        %v7725 = vpop.permute.xlu0 %7724
        %7726 = vrot.lane.b32.xlu0 %v7134, 32
        %v7727 = vpop.permute.xlu0 %7726
        %7728 = vrot.lane.b32.xlu0 %v7135, 32
        %v7729 = vpop.permute.xlu0 %7728
        %7730 = vrot.lane.b32.xlu0 %v7136, 32
        %v7731 = vpop.permute.xlu0 %7730
        %7732 = vrot.lane.b32.xlu0 %v7137, 32
        %v7733 = vpop.permute.xlu0 %7732
        %7734 = vrot.lane.b32.xlu0 %v7138, 32
        %v7735 = vpop.permute.xlu0 %7734
        %7736 = vrot.lane.b32.xlu0 %v7139, 32
        %v7737 = vpop.permute.xlu0 %7736
        %7738 = vrot.lane.b32.xlu0 %v7140, 32
        %v7739 = vpop.permute.xlu0 %7738
        %7740 = vrot.lane.b32.xlu0 %v7141, 32
        %v7741 = vpop.permute.xlu0 %7740
        %7742 = vrot.lane.b32.xlu0 %v7142, 32
        %v7743 = vpop.permute.xlu0 %7742
        %7744 = vrot.lane.b32.xlu0 %v7143, 32
        %v7745 = vpop.permute.xlu0 %7744
        %7746 = vrot.lane.b32.xlu0 %v7144, 32
        %v7747 = vpop.permute.xlu0 %7746
        %7748 = vrot.lane.b32.xlu0 %v7145, 32
        %v7749 = vpop.permute.xlu0 %7748
        %7750 = vrot.lane.b32.xlu0 %v7146, 32
        %v7751 = vpop.permute.xlu0 %7750
        %7752 = vrot.lane.b32.xlu0 %v7147, 32
        %v7753 = vpop.permute.xlu0 %7752
        %7754 = vrot.lane.b32.xlu0 %v7148, 32
        %v7755 = vpop.permute.xlu0 %7754
        %7756 = vrot.lane.b32.xlu0 %v7149, 32
        %v7757 = vpop.permute.xlu0 %7756
        %7822 = vrot.lane.b32.xlu0 %v7150, 40
        %v7823 = vpop.permute.xlu0 %7822
        %7824 = vrot.lane.b32.xlu0 %v7151, 40
        %v7825 = vpop.permute.xlu0 %7824
        %7826 = vrot.lane.b32.xlu0 %v7152, 40
        %v7827 = vpop.permute.xlu0 %7826
        %7828 = vrot.lane.b32.xlu0 %v7153, 40
        %v7829 = vpop.permute.xlu0 %7828
        %7830 = vrot.lane.b32.xlu0 %v7154, 40
        %v7831 = vpop.permute.xlu0 %7830
        %7832 = vrot.lane.b32.xlu0 %v7155, 40
        %v7833 = vpop.permute.xlu0 %7832
        %7834 = vrot.lane.b32.xlu0 %v7156, 40
        %v7835 = vpop.permute.xlu0 %7834
        %7836 = vrot.lane.b32.xlu0 %v7157, 40
        %v7837 = vpop.permute.xlu0 %7836
        %7838 = vrot.lane.b32.xlu0 %v7158, 40
        %v7839 = vpop.permute.xlu0 %7838
        %7840 = vrot.lane.b32.xlu0 %v7159, 40
        %v7841 = vpop.permute.xlu0 %7840
        %7842 = vrot.lane.b32.xlu0 %v7160, 40
        %v7843 = vpop.permute.xlu0 %7842
        %7844 = vrot.lane.b32.xlu0 %v7161, 40
        %v7845 = vpop.permute.xlu0 %7844
        %7846 = vrot.lane.b32.xlu0 %v7162, 40
        %v7847 = vpop.permute.xlu0 %7846
        %7848 = vrot.lane.b32.xlu0 %v7163, 40
        %v7849 = vpop.permute.xlu0 %7848
        %7850 = vrot.lane.b32.xlu0 %v7164, 40
        %v7851 = vpop.permute.xlu0 %7850
        %7852 = vrot.lane.b32.xlu0 %v7165, 40
        %v7853 = vpop.permute.xlu0 %7852
        %7854 = vrot.lane.b32.xlu0 %v7166, 40
        %v7855 = vpop.permute.xlu0 %7854
        %7856 = vrot.lane.b32.xlu0 %v7167, 40
        %v7857 = vpop.permute.xlu0 %7856
        %7858 = vrot.lane.b32.xlu0 %v7168, 40
        %v7859 = vpop.permute.xlu0 %7858
        %7860 = vrot.lane.b32.xlu0 %v7169, 40
        %v7861 = vpop.permute.xlu0 %7860
        %7862 = vrot.lane.b32.xlu0 %v7170, 40
        %v7863 = vpop.permute.xlu0 %7862
        %7864 = vrot.lane.b32.xlu0 %v7171, 40
        %v7865 = vpop.permute.xlu0 %7864
        %7866 = vrot.lane.b32.xlu0 %v7172, 40
        %v7867 = vpop.permute.xlu0 %7866
        %7868 = vrot.lane.b32.xlu0 %v7173, 40
        %v7869 = vpop.permute.xlu0 %7868
        %7870 = vrot.lane.b32.xlu0 %v7174, 40
        %v7871 = vpop.permute.xlu0 %7870
        %7872 = vrot.lane.b32.xlu0 %v7175, 40
        %v7873 = vpop.permute.xlu0 %7872
        %7874 = vrot.lane.b32.xlu0 %v7176, 40
        %v7875 = vpop.permute.xlu0 %7874
        %7876 = vrot.lane.b32.xlu0 %v7177, 40
        %v7877 = vpop.permute.xlu0 %7876
        %7878 = vrot.lane.b32.xlu0 %v7178, 40
        %v7879 = vpop.permute.xlu0 %7878
        %7880 = vrot.lane.b32.xlu0 %v7179, 40
        %v7881 = vpop.permute.xlu0 %7880
        %7882 = vrot.lane.b32.xlu0 %v7180, 40
        %v7883 = vpop.permute.xlu0 %7882
        %7884 = vrot.lane.b32.xlu0 %v7181, 40
        %v7885 = vpop.permute.xlu0 %7884
        %7950 = vrot.lane.b32.xlu0 %v7182, 48
        %v7951 = vpop.permute.xlu0 %7950
        %7952 = vrot.lane.b32.xlu0 %v7183, 48
        %v7953 = vpop.permute.xlu0 %7952
        %7954 = vrot.lane.b32.xlu0 %v7184, 48
        %v7955 = vpop.permute.xlu0 %7954
        %7956 = vrot.lane.b32.xlu0 %v7185, 48
        %v7957 = vpop.permute.xlu0 %7956
        %7958 = vrot.lane.b32.xlu0 %v7186, 48
        %v7959 = vpop.permute.xlu0 %7958
        %7960 = vrot.lane.b32.xlu0 %v7187, 48
        %v7961 = vpop.permute.xlu0 %7960
        %7962 = vrot.lane.b32.xlu0 %v7188, 48
        %v7963 = vpop.permute.xlu0 %7962
        %7964 = vrot.lane.b32.xlu0 %v7189, 48
        %v7965 = vpop.permute.xlu0 %7964
        %7966 = vrot.lane.b32.xlu0 %v7190, 48
        %v7967 = vpop.permute.xlu0 %7966
        %7968 = vrot.lane.b32.xlu0 %v7191, 48
        %v7969 = vpop.permute.xlu0 %7968
        %7970 = vrot.lane.b32.xlu0 %v7192, 48
        %v7971 = vpop.permute.xlu0 %7970
        %7972 = vrot.lane.b32.xlu0 %v7193, 48
        %v7973 = vpop.permute.xlu0 %7972
        %7974 = vrot.lane.b32.xlu0 %v7194, 48
        %v7975 = vpop.permute.xlu0 %7974
        %7976 = vrot.lane.b32.xlu0 %v7195, 48
        %v7977 = vpop.permute.xlu0 %7976
        %7978 = vrot.lane.b32.xlu0 %v7196, 48
        %v7979 = vpop.permute.xlu0 %7978
        %7980 = vrot.lane.b32.xlu0 %v7197, 48
        %v7981 = vpop.permute.xlu0 %7980
        %7982 = vrot.lane.b32.xlu0 %v7198, 48
        %v7983 = vpop.permute.xlu0 %7982
        %7984 = vrot.lane.b32.xlu0 %v7199, 48
        %v7985 = vpop.permute.xlu0 %7984
        %7986 = vrot.lane.b32.xlu0 %v7200, 48
        %v7987 = vpop.permute.xlu0 %7986
        %7988 = vrot.lane.b32.xlu0 %v7201, 48
        %v7989 = vpop.permute.xlu0 %7988
        %7990 = vrot.lane.b32.xlu0 %v7202, 48
        %v7991 = vpop.permute.xlu0 %7990
        %7992 = vrot.lane.b32.xlu0 %v7203, 48
        %v7993 = vpop.permute.xlu0 %7992
        %7994 = vrot.lane.b32.xlu0 %v7204, 48
        %v7995 = vpop.permute.xlu0 %7994
        %7996 = vrot.lane.b32.xlu0 %v7205, 48
        %v7997 = vpop.permute.xlu0 %7996
        %7998 = vrot.lane.b32.xlu0 %v7206, 48
        %v7999 = vpop.permute.xlu0 %7998
        %8000 = vrot.lane.b32.xlu0 %v7207, 48
        %v8001 = vpop.permute.xlu0 %8000
        %8002 = vrot.lane.b32.xlu0 %v7208, 48
        %v8003 = vpop.permute.xlu0 %8002
        %8004 = vrot.lane.b32.xlu0 %v7209, 48
        %v8005 = vpop.permute.xlu0 %8004
        %8006 = vrot.lane.b32.xlu0 %v7210, 48
        %v8007 = vpop.permute.xlu0 %8006
        %8008 = vrot.lane.b32.xlu0 %v7211, 48
        %v8009 = vpop.permute.xlu0 %8008
        %8010 = vrot.lane.b32.xlu0 %v7212, 48
        %v8011 = vpop.permute.xlu0 %8010
        %8012 = vrot.lane.b32.xlu0 %v7213, 48
        %v8013 = vpop.permute.xlu0 %8012
        %8078 = vrot.lane.b32.xlu0 %v7214, 56
        %v8079 = vpop.permute.xlu0 %8078
        %8080 = vrot.lane.b32.xlu0 %v7215, 56
        %v8081 = vpop.permute.xlu0 %8080
        %8082 = vrot.lane.b32.xlu0 %v7216, 56
        %v8083 = vpop.permute.xlu0 %8082
        %8084 = vrot.lane.b32.xlu0 %v7217, 56
        %v8085 = vpop.permute.xlu0 %8084
        %8086 = vrot.lane.b32.xlu0 %v7218, 56
        %v8087 = vpop.permute.xlu0 %8086
        %8088 = vrot.lane.b32.xlu0 %v7219, 56
        %v8089 = vpop.permute.xlu0 %8088
        %8090 = vrot.lane.b32.xlu0 %v7220, 56
        %v8091 = vpop.permute.xlu0 %8090
        %8092 = vrot.lane.b32.xlu0 %v7221, 56
        %v8093 = vpop.permute.xlu0 %8092
        %8094 = vrot.lane.b32.xlu0 %v7222, 56
        %v8095 = vpop.permute.xlu0 %8094
        %8096 = vrot.lane.b32.xlu0 %v7223, 56
        %v8097 = vpop.permute.xlu0 %8096
        %8098 = vrot.lane.b32.xlu0 %v7224, 56
        %v8099 = vpop.permute.xlu0 %8098
        %8100 = vrot.lane.b32.xlu0 %v7225, 56
        %v8101 = vpop.permute.xlu0 %8100
        %8102 = vrot.lane.b32.xlu0 %v7226, 56
        %v8103 = vpop.permute.xlu0 %8102
        %8104 = vrot.lane.b32.xlu0 %v7227, 56
        %v8105 = vpop.permute.xlu0 %8104
        %8106 = vrot.lane.b32.xlu0 %v7228, 56
        %v8107 = vpop.permute.xlu0 %8106
        %8108 = vrot.lane.b32.xlu0 %v7229, 56
        %v8109 = vpop.permute.xlu0 %8108
        %8110 = vrot.lane.b32.xlu0 %v7230, 56
        %v8111 = vpop.permute.xlu0 %8110
        %8112 = vrot.lane.b32.xlu0 %v7231, 56
        %v8113 = vpop.permute.xlu0 %8112
        %8114 = vrot.lane.b32.xlu0 %v7232, 56
        %v8115 = vpop.permute.xlu0 %8114
        %8116 = vrot.lane.b32.xlu0 %v7233, 56
        %v8117 = vpop.permute.xlu0 %8116
        %8118 = vrot.lane.b32.xlu0 %v7234, 56
        %v8119 = vpop.permute.xlu0 %8118
        %8120 = vrot.lane.b32.xlu0 %v7235, 56
        %v8121 = vpop.permute.xlu0 %8120
        %8122 = vrot.lane.b32.xlu0 %v7236, 56
        %v8123 = vpop.permute.xlu0 %8122
        %8124 = vrot.lane.b32.xlu0 %v7237, 56
        %v8125 = vpop.permute.xlu0 %8124
        %8126 = vrot.lane.b32.xlu0 %v7238, 56
        %v8127 = vpop.permute.xlu0 %8126
        %8128 = vrot.lane.b32.xlu0 %v7239, 56
        %v8129 = vpop.permute.xlu0 %8128
        %8130 = vrot.lane.b32.xlu0 %v7240, 56
        %v8131 = vpop.permute.xlu0 %8130
        %8132 = vrot.lane.b32.xlu0 %v7241, 56
        %v8133 = vpop.permute.xlu0 %8132
        %8134 = vrot.lane.b32.xlu0 %v7242, 56
        %v8135 = vpop.permute.xlu0 %8134
        %8136 = vrot.lane.b32.xlu0 %v7243, 56
        %v8137 = vpop.permute.xlu0 %8136
        %8138 = vrot.lane.b32.xlu0 %v7244, 56
        %v8139 = vpop.permute.xlu0 %8138
        %8140 = vrot.lane.b32.xlu0 %v7245, 56
        %v8141 = vpop.permute.xlu0 %8140
        %8206 = vrot.lane.b32.xlu0 %v7246, 64
        %v8207 = vpop.permute.xlu0 %8206
        %8208 = vrot.lane.b32.xlu0 %v7247, 64
        %v8209 = vpop.permute.xlu0 %8208
        %8210 = vrot.lane.b32.xlu0 %v7248, 64
        %v8211 = vpop.permute.xlu0 %8210
        %8212 = vrot.lane.b32.xlu0 %v7249, 64
        %v8213 = vpop.permute.xlu0 %8212
        %8214 = vrot.lane.b32.xlu0 %v7250, 64
        %v8215 = vpop.permute.xlu0 %8214
        %8216 = vrot.lane.b32.xlu0 %v7251, 64
        %v8217 = vpop.permute.xlu0 %8216
        %8218 = vrot.lane.b32.xlu0 %v7252, 64
        %v8219 = vpop.permute.xlu0 %8218
        %8220 = vrot.lane.b32.xlu0 %v7253, 64
        %v8221 = vpop.permute.xlu0 %8220
        %8222 = vrot.lane.b32.xlu0 %v7254, 64
        %v8223 = vpop.permute.xlu0 %8222
        %8224 = vrot.lane.b32.xlu0 %v7255, 64
        %v8225 = vpop.permute.xlu0 %8224
        %8226 = vrot.lane.b32.xlu0 %v7256, 64
        %v8227 = vpop.permute.xlu0 %8226
        %8228 = vrot.lane.b32.xlu0 %v7257, 64
        %v8229 = vpop.permute.xlu0 %8228
        %8230 = vrot.lane.b32.xlu0 %v7258, 64
        %v8231 = vpop.permute.xlu0 %8230
        %8232 = vrot.lane.b32.xlu0 %v7259, 64
        %v8233 = vpop.permute.xlu0 %8232
        %8234 = vrot.lane.b32.xlu0 %v7260, 64
        %v8235 = vpop.permute.xlu0 %8234
        %8236 = vrot.lane.b32.xlu0 %v7261, 64
        %v8237 = vpop.permute.xlu0 %8236
        %8238 = vrot.lane.b32.xlu0 %v7262, 64
        %v8239 = vpop.permute.xlu0 %8238
        %8240 = vrot.lane.b32.xlu0 %v7263, 64
        %v8241 = vpop.permute.xlu0 %8240
        %8242 = vrot.lane.b32.xlu0 %v7264, 64
        %v8243 = vpop.permute.xlu0 %8242
        %8244 = vrot.lane.b32.xlu0 %v7265, 64
        %v8245 = vpop.permute.xlu0 %8244
        %8246 = vrot.lane.b32.xlu0 %v7266, 64
        %v8247 = vpop.permute.xlu0 %8246
        %8248 = vrot.lane.b32.xlu0 %v7267, 64
        %v8249 = vpop.permute.xlu0 %8248
        %8250 = vrot.lane.b32.xlu0 %v7268, 64
        %v8251 = vpop.permute.xlu0 %8250
        %8252 = vrot.lane.b32.xlu0 %v7269, 64
        %v8253 = vpop.permute.xlu0 %8252
        %8254 = vrot.lane.b32.xlu0 %v7270, 64
        %v8255 = vpop.permute.xlu0 %8254
        %8256 = vrot.lane.b32.xlu0 %v7271, 64
        %v8257 = vpop.permute.xlu0 %8256
        %8258 = vrot.lane.b32.xlu0 %v7272, 64
        %v8259 = vpop.permute.xlu0 %8258
        %8260 = vrot.lane.b32.xlu0 %v7273, 64
        %v8261 = vpop.permute.xlu0 %8260
        %8262 = vrot.lane.b32.xlu0 %v7274, 64
        %v8263 = vpop.permute.xlu0 %8262
        %8264 = vrot.lane.b32.xlu0 %v7275, 64
        %v8265 = vpop.permute.xlu0 %8264
        %8266 = vrot.lane.b32.xlu0 %v7276, 64
        %v8267 = vpop.permute.xlu0 %8266
        %8268 = vrot.lane.b32.xlu0 %v7277, 64
        %v8269 = vpop.permute.xlu0 %8268
        %v8302 = vsel %vm330, %v6990, %v7311
        %v8303 = vsel %vm330, %v6991, %v7313
        %v8304 = vsel %vm330, %v6992, %v7315
        %v8305 = vsel %vm330, %v6993, %v7317
        %v8306 = vsel %vm330, %v6994, %v7319
        %v8307 = vsel %vm330, %v6995, %v7321
        %v8308 = vsel %vm330, %v6996, %v7323
        %v8309 = vsel %vm330, %v6997, %v7325
        %v8310 = vsel %vm330, %v6998, %v7327
        %v8311 = vsel %vm330, %v6999, %v7329
        %v8312 = vsel %vm330, %v7000, %v7331
        %v8313 = vsel %vm330, %v7001, %v7333
        %v8314 = vsel %vm330, %v7002, %v7335
        %v8315 = vsel %vm330, %v7003, %v7337
        %v8316 = vsel %vm330, %v7004, %v7339
        %v8317 = vsel %vm330, %v7005, %v7341
        %v8318 = vsel %vm330, %v7006, %v7343
        %v8319 = vsel %vm330, %v7007, %v7345
        %v8320 = vsel %vm330, %v7008, %v7347
        %v8321 = vsel %vm330, %v7009, %v7349
        %v8322 = vsel %vm330, %v7010, %v7351
        %v8323 = vsel %vm330, %v7011, %v7353
        %v8324 = vsel %vm330, %v7012, %v7355
        %v8325 = vsel %vm330, %v7013, %v7357
        %v8326 = vsel %vm330, %v7014, %v7359
        %v8327 = vsel %vm330, %v7015, %v7361
        %v8328 = vsel %vm330, %v7016, %v7363
        %v8329 = vsel %vm330, %v7017, %v7365
        %v8330 = vsel %vm330, %v7018, %v7367
        %v8331 = vsel %vm330, %v7019, %v7369
        %v8332 = vsel %vm330, %v7020, %v7371
        %v8333 = vsel %vm330, %v7021, %v7373
        %v8334 = vsel %vm1897, %v8302, %v7439
        %v8335 = vsel %vm1897, %v8303, %v7441
        %v8336 = vsel %vm1897, %v8304, %v7443
        %v8337 = vsel %vm1897, %v8305, %v7445
        %v8338 = vsel %vm1897, %v8306, %v7447
        %v8339 = vsel %vm1897, %v8307, %v7449
        %v8340 = vsel %vm1897, %v8308, %v7451
        %v8341 = vsel %vm1897, %v8309, %v7453
        %v8342 = vsel %vm1897, %v8310, %v7455
        %v8343 = vsel %vm1897, %v8311, %v7457
        %v8344 = vsel %vm1897, %v8312, %v7459
        %v8345 = vsel %vm1897, %v8313, %v7461
        %v8346 = vsel %vm1897, %v8314, %v7463
        %v8347 = vsel %vm1897, %v8315, %v7465
        %v8348 = vsel %vm1897, %v8316, %v7467
        %v8349 = vsel %vm1897, %v8317, %v7469
        %v8350 = vsel %vm1897, %v8318, %v7471
        %v8351 = vsel %vm1897, %v8319, %v7473
        %v8352 = vsel %vm1897, %v8320, %v7475
        %v8353 = vsel %vm1897, %v8321, %v7477
        %v8354 = vsel %vm1897, %v8322, %v7479
        %v8355 = vsel %vm1897, %v8323, %v7481
        %v8356 = vsel %vm1897, %v8324, %v7483
        %v8357 = vsel %vm1897, %v8325, %v7485
        %v8358 = vsel %vm1897, %v8326, %v7487
        %v8359 = vsel %vm1897, %v8327, %v7489
        %v8360 = vsel %vm1897, %v8328, %v7491
        %v8361 = vsel %vm1897, %v8329, %v7493
        %v8362 = vsel %vm1897, %v8330, %v7495
        %v8363 = vsel %vm1897, %v8331, %v7497
        %v8364 = vsel %vm1897, %v8332, %v7499
        %v8365 = vsel %vm1897, %v8333, %v7501
        %v8366 = vsel %vm1930, %v8334, %v7567
        %v8367 = vsel %vm1930, %v8335, %v7569
        %v8368 = vsel %vm1930, %v8336, %v7571
        %v8369 = vsel %vm1930, %v8337, %v7573
        %v8370 = vsel %vm1930, %v8338, %v7575
        %v8371 = vsel %vm1930, %v8339, %v7577
        %v8372 = vsel %vm1930, %v8340, %v7579
        %v8373 = vsel %vm1930, %v8341, %v7581
        %v8374 = vsel %vm1930, %v8342, %v7583
        %v8375 = vsel %vm1930, %v8343, %v7585
        %v8376 = vsel %vm1930, %v8344, %v7587
        %v8377 = vsel %vm1930, %v8345, %v7589
        %v8378 = vsel %vm1930, %v8346, %v7591
        %v8379 = vsel %vm1930, %v8347, %v7593
        %v8380 = vsel %vm1930, %v8348, %v7595
        %v8381 = vsel %vm1930, %v8349, %v7597
        %v8382 = vsel %vm1930, %v8350, %v7599
        %v8383 = vsel %vm1930, %v8351, %v7601
        %v8384 = vsel %vm1930, %v8352, %v7603
        %v8385 = vsel %vm1930, %v8353, %v7605
        %v8386 = vsel %vm1930, %v8354, %v7607
        %v8387 = vsel %vm1930, %v8355, %v7609
        %v8388 = vsel %vm1930, %v8356, %v7611
        %v8389 = vsel %vm1930, %v8357, %v7613
        %v8390 = vsel %vm1930, %v8358, %v7615
        %v8391 = vsel %vm1930, %v8359, %v7617
        %v8392 = vsel %vm1930, %v8360, %v7619
        %v8393 = vsel %vm1930, %v8361, %v7621
        %v8394 = vsel %vm1930, %v8362, %v7623
        %v8395 = vsel %vm1930, %v8363, %v7625
        %v8396 = vsel %vm1930, %v8364, %v7627
        %v8397 = vsel %vm1930, %v8365, %v7629
        %v8398 = vsel %vm1963, %v8366, %v7695
        %v8399 = vsel %vm1963, %v8367, %v7697
        %v8400 = vsel %vm1963, %v8368, %v7699
        %v8401 = vsel %vm1963, %v8369, %v7701
        %v8402 = vsel %vm1963, %v8370, %v7703
        %v8403 = vsel %vm1963, %v8371, %v7705
        %v8404 = vsel %vm1963, %v8372, %v7707
        %v8405 = vsel %vm1963, %v8373, %v7709
        %v8406 = vsel %vm1963, %v8374, %v7711
        %v8407 = vsel %vm1963, %v8375, %v7713
        %v8408 = vsel %vm1963, %v8376, %v7715
        %v8409 = vsel %vm1963, %v8377, %v7717
        %v8410 = vsel %vm1963, %v8378, %v7719
        %v8411 = vsel %vm1963, %v8379, %v7721
        %v8412 = vsel %vm1963, %v8380, %v7723
        %v8413 = vsel %vm1963, %v8381, %v7725
        %v8414 = vsel %vm1963, %v8382, %v7727
        %v8415 = vsel %vm1963, %v8383, %v7729
        %v8416 = vsel %vm1963, %v8384, %v7731
        %v8417 = vsel %vm1963, %v8385, %v7733
        %v8418 = vsel %vm1963, %v8386, %v7735
        %v8419 = vsel %vm1963, %v8387, %v7737
        %v8420 = vsel %vm1963, %v8388, %v7739
        %v8421 = vsel %vm1963, %v8389, %v7741
        %v8422 = vsel %vm1963, %v8390, %v7743
        %v8423 = vsel %vm1963, %v8391, %v7745
        %v8424 = vsel %vm1963, %v8392, %v7747
        %v8425 = vsel %vm1963, %v8393, %v7749
        %v8426 = vsel %vm1963, %v8394, %v7751
        %v8427 = vsel %vm1963, %v8395, %v7753
        %v8428 = vsel %vm1963, %v8396, %v7755
        %v8429 = vsel %vm1963, %v8397, %v7757
        %v8430 = vsel %vm1996, %v8398, %v7823
        %v8431 = vsel %vm1996, %v8399, %v7825
        %v8432 = vsel %vm1996, %v8400, %v7827
        %v8433 = vsel %vm1996, %v8401, %v7829
        %v8434 = vsel %vm1996, %v8402, %v7831
        %v8435 = vsel %vm1996, %v8403, %v7833
        %v8436 = vsel %vm1996, %v8404, %v7835
        %v8437 = vsel %vm1996, %v8405, %v7837
        %v8438 = vsel %vm1996, %v8406, %v7839
        %v8439 = vsel %vm1996, %v8407, %v7841
        %v8440 = vsel %vm1996, %v8408, %v7843
        %v8441 = vsel %vm1996, %v8409, %v7845
        %v8442 = vsel %vm1996, %v8410, %v7847
        %v8443 = vsel %vm1996, %v8411, %v7849
        %v8444 = vsel %vm1996, %v8412, %v7851
        %v8445 = vsel %vm1996, %v8413, %v7853
        %v8446 = vsel %vm1996, %v8414, %v7855
        %v8447 = vsel %vm1996, %v8415, %v7857
        %v8448 = vsel %vm1996, %v8416, %v7859
        %v8449 = vsel %vm1996, %v8417, %v7861
        %v8450 = vsel %vm1996, %v8418, %v7863
        %v8451 = vsel %vm1996, %v8419, %v7865
        %v8452 = vsel %vm1996, %v8420, %v7867
        %v8453 = vsel %vm1996, %v8421, %v7869
        %v8454 = vsel %vm1996, %v8422, %v7871
        %v8455 = vsel %vm1996, %v8423, %v7873
        %v8456 = vsel %vm1996, %v8424, %v7875
        %v8457 = vsel %vm1996, %v8425, %v7877
        %v8458 = vsel %vm1996, %v8426, %v7879
        %v8459 = vsel %vm1996, %v8427, %v7881
        %v8460 = vsel %vm1996, %v8428, %v7883
        %v8461 = vsel %vm1996, %v8429, %v7885
        %v8462 = vsel %vm2029, %v8430, %v7951
        %v8463 = vsel %vm2029, %v8431, %v7953
        %v8464 = vsel %vm2029, %v8432, %v7955
        %v8465 = vsel %vm2029, %v8433, %v7957
        %v8466 = vsel %vm2029, %v8434, %v7959
        %v8467 = vsel %vm2029, %v8435, %v7961
        %v8468 = vsel %vm2029, %v8436, %v7963
        %v8469 = vsel %vm2029, %v8437, %v7965
        %v8470 = vsel %vm2029, %v8438, %v7967
        %v8471 = vsel %vm2029, %v8439, %v7969
        %v8472 = vsel %vm2029, %v8440, %v7971
        %v8473 = vsel %vm2029, %v8441, %v7973
        %v8474 = vsel %vm2029, %v8442, %v7975
        %v8475 = vsel %vm2029, %v8443, %v7977
        %v8476 = vsel %vm2029, %v8444, %v7979
        %v8477 = vsel %vm2029, %v8445, %v7981
        %v8478 = vsel %vm2029, %v8446, %v7983
        %v8479 = vsel %vm2029, %v8447, %v7985
        %v8480 = vsel %vm2029, %v8448, %v7987
        %v8481 = vsel %vm2029, %v8449, %v7989
        %v8482 = vsel %vm2029, %v8450, %v7991
        %v8483 = vsel %vm2029, %v8451, %v7993
        %v8484 = vsel %vm2029, %v8452, %v7995
        %v8485 = vsel %vm2029, %v8453, %v7997
        %v8486 = vsel %vm2029, %v8454, %v7999
        %v8487 = vsel %vm2029, %v8455, %v8001
        %v8488 = vsel %vm2029, %v8456, %v8003
        %v8489 = vsel %vm2029, %v8457, %v8005
        %v8490 = vsel %vm2029, %v8458, %v8007
        %v8491 = vsel %vm2029, %v8459, %v8009
        %v8492 = vsel %vm2029, %v8460, %v8011
        %v8493 = vsel %vm2029, %v8461, %v8013
        %v8494 = vsel %vm2062, %v8462, %v8079
        %v8495 = vsel %vm2062, %v8463, %v8081
        %v8496 = vsel %vm2062, %v8464, %v8083
        %v8497 = vsel %vm2062, %v8465, %v8085
        %v8498 = vsel %vm2062, %v8466, %v8087
        %v8499 = vsel %vm2062, %v8467, %v8089
        %v8500 = vsel %vm2062, %v8468, %v8091
        %v8501 = vsel %vm2062, %v8469, %v8093
        %v8502 = vsel %vm2062, %v8470, %v8095
        %v8503 = vsel %vm2062, %v8471, %v8097
        %v8504 = vsel %vm2062, %v8472, %v8099
        %v8505 = vsel %vm2062, %v8473, %v8101
        %v8506 = vsel %vm2062, %v8474, %v8103
        %v8507 = vsel %vm2062, %v8475, %v8105
        %v8508 = vsel %vm2062, %v8476, %v8107
        %v8509 = vsel %vm2062, %v8477, %v8109
        %v8510 = vsel %vm2062, %v8478, %v8111
        %v8511 = vsel %vm2062, %v8479, %v8113
        %v8512 = vsel %vm2062, %v8480, %v8115
        %v8513 = vsel %vm2062, %v8481, %v8117
        %v8514 = vsel %vm2062, %v8482, %v8119
        %v8515 = vsel %vm2062, %v8483, %v8121
        %v8516 = vsel %vm2062, %v8484, %v8123
        %v8517 = vsel %vm2062, %v8485, %v8125
        %v8518 = vsel %vm2062, %v8486, %v8127
        %v8519 = vsel %vm2062, %v8487, %v8129
        %v8520 = vsel %vm2062, %v8488, %v8131
        %v8521 = vsel %vm2062, %v8489, %v8133
        %v8522 = vsel %vm2062, %v8490, %v8135
        %v8523 = vsel %vm2062, %v8491, %v8137
        %v8524 = vsel %vm2062, %v8492, %v8139
        %v8525 = vsel %vm2062, %v8493, %v8141
        %v8526 = vsel %vm2095, %v8494, %v8207
        %v8527 = vsel %vm2095, %v8495, %v8209
        %v8528 = vsel %vm2095, %v8496, %v8211
        %v8529 = vsel %vm2095, %v8497, %v8213
        %v8530 = vsel %vm2095, %v8498, %v8215
        %v8531 = vsel %vm2095, %v8499, %v8217
        %v8532 = vsel %vm2095, %v8500, %v8219
        %v8533 = vsel %vm2095, %v8501, %v8221
        %v8534 = vsel %vm2095, %v8502, %v8223
        %v8535 = vsel %vm2095, %v8503, %v8225
        %v8536 = vsel %vm2095, %v8504, %v8227
        %v8537 = vsel %vm2095, %v8505, %v8229
        %v8538 = vsel %vm2095, %v8506, %v8231
        %v8539 = vsel %vm2095, %v8507, %v8233
        %v8540 = vsel %vm2095, %v8508, %v8235
        %v8541 = vsel %vm2095, %v8509, %v8237
        %v8542 = vsel %vm2095, %v8510, %v8239
        %v8543 = vsel %vm2095, %v8511, %v8241
        %v8544 = vsel %vm2095, %v8512, %v8243
        %v8545 = vsel %vm2095, %v8513, %v8245
        %v8546 = vsel %vm2095, %v8514, %v8247
        %v8547 = vsel %vm2095, %v8515, %v8249
        %v8548 = vsel %vm2095, %v8516, %v8251
        %v8549 = vsel %vm2095, %v8517, %v8253
        %v8550 = vsel %vm2095, %v8518, %v8255
        %v8551 = vsel %vm2095, %v8519, %v8257
        %v8552 = vsel %vm2095, %v8520, %v8259
        %v8553 = vsel %vm2095, %v8521, %v8261
        %v8554 = vsel %vm2095, %v8522, %v8263
        %v8555 = vsel %vm2095, %v8523, %v8265
        %v8556 = vsel %vm2095, %v8524, %v8267
        %v8557 = vsel %vm2095, %v8525, %v8269
        %v8559 = vlaneseq
        %v8560 = vshrl.u32 %v8559, 7
        %v8561 = vsub.s32 0, %v8560
        %v8562 = vrot.slane %v6883, %v8561
        %v8565 = vsel %vm2134, %v8526, 0
        %v8568 = vsel %vm2134, %v8527, 0
        %v8571 = vsel %vm2134, %v8528, 0
        %v8574 = vsel %vm2134, %v8529, 0
        %v8577 = vsel %vm2134, %v8530, 0
        %v8580 = vsel %vm2134, %v8531, 0
        %v8583 = vsel %vm2134, %v8532, 0
        %v8586 = vsel %vm2134, %v8533, 0
        %v8589 = vsel %vm2134, %v8534, 0
        %v8592 = vsel %vm2134, %v8535, 0
        %v8595 = vsel %vm2134, %v8536, 0
        %v8598 = vsel %vm2134, %v8537, 0
        %v8601 = vsel %vm2134, %v8538, 0
        %v8604 = vsel %vm2134, %v8539, 0
        %v8607 = vsel %vm2134, %v8540, 0
        %v8610 = vsel %vm2134, %v8541, 0
        %v8613 = vsel %vm2134, %v8542, 0
        %v8616 = vsel %vm2134, %v8543, 0
        %v8619 = vsel %vm2134, %v8544, 0
        %v8622 = vsel %vm2134, %v8545, 0
        %v8625 = vsel %vm2134, %v8546, 0
        %v8628 = vsel %vm2134, %v8547, 0
        %v8631 = vsel %vm2134, %v8548, 0
        %v8634 = vsel %vm2134, %v8549, 0
        %v8637 = vsel %vm2134, %v8550, 0
        %v8640 = vsel %vm2134, %v8551, 0
        %v8643 = vsel %vm2134, %v8552, 0
        %v8646 = vsel %vm2134, %v8553, 0
        %v8649 = vsel %vm2134, %v8554, 0
        %v8652 = vsel %vm2134, %v8555, 0
        %v8655 = vsel %vm2134, %v8556, 0
        %v8658 = vsel %vm2134, %v8557, 0
        %8660 = vmatprep.subr.mxu0 0.0
        %8661 = vmatpush1.msra.mxu0 %v6873
        %8662 = vmatprep.subr.mxu0 0.0
        %8663 = vmatpush1.msra.mxu0 %v6874
        %8664 = vmatprep.subr.mxu0 0.0
        %8665 = vmatpush1.msra.mxu0 %v6875
        %8666 = vmatprep.subr.mxu0 0.0
        %8667 = vmatpush1.msra.mxu0 %v6876
        %8668 = vmatprep.subr.mxu0 0.0
        %8669 = vmatpush1.msra.mxu0 %v6877
        %8670 = vmatprep.subr.mxu0 0.0
        %8671 = vmatpush1.msra.mxu0 %v6878
        %8672 = vmatprep.subr.mxu0 0.0
        %8673 = vmatpush1.msra.mxu0 %v6879
        %8674 = vmatprep.subr.mxu0 0.0
        %8675 = vmatpush1.msra.mxu0 %v6880
        %8676 = vmatprep.subr.mxu0 0.0
        %8677 = vmatpush1.msra.mxu0 %v6881
        %8678 = vmatprep.subr.mxu0 0.0
        %8679 = vmatpush1.msra.mxu0 0.0
        %8680 = vmatprep.subr.mxu0 0.0
        %8681 = vmatpush1.msra.mxu0 0.0
        %8682 = vmatprep.subr.mxu0 0.0
        %8683 = vmatpush1.msra.mxu0 0.0
        %8684 = vmatprep.subr.mxu0 0.0
        %8685 = vmatpush1.msra.mxu0 0.0
        %8686 = vmatprep.subr.mxu0 0.0
        %8687 = vmatpush1.msra.mxu0 0.0
        %8688 = vmatprep.subr.mxu0 0.0
        %8689 = vmatpush1.msra.mxu0 0.0
        %8690 = vmatprep.subr.mxu0 0.0
        %8691 = vmatpush1.msra.mxu0 0.0
        %8692 = vmatprep.subr.mxu0 0.0
        %8693 = vmatpush1.msra.mxu0 0.0
        %8694 = vmatprep.subr.mxu0 0.0
        %8695 = vmatpush1.msra.mxu0 0.0
        %8696 = vmatprep.subr.mxu0 0.0
        %8697 = vmatpush1.msra.mxu0 0.0
        %8698 = vmatprep.subr.mxu0 0.0
        %8699 = vmatpush1.msra.mxu0 0.0
        %8700 = vmatprep.subr.mxu0 0.0
        %8701 = vmatpush1.msra.mxu0 0.0
        %8702 = vmatprep.subr.mxu0 0.0
        %8703 = vmatpush1.msra.mxu0 0.0
        %8704 = vmatprep.subr.mxu0 0.0
        %8705 = vmatpush1.msra.mxu0 0.0
        %8706 = vmatprep.subr.mxu0 0.0
        %8707 = vmatpush1.msra.mxu0 0.0
        %8708 = vmatprep.subr.mxu0 0.0
        %8709 = vmatpush1.msra.mxu0 0.0
        %8710 = vmatprep.subr.mxu0 0.0
        %8711 = vmatpush1.msra.mxu0 0.0
        %8712 = vmatprep.subr.mxu0 0.0
        %8713 = vmatpush1.msra.mxu0 0.0
        %8714 = vmatprep.subr.mxu0 0.0
        %8715 = vmatpush1.msra.mxu0 0.0
        %8716 = vmatprep.subr.mxu0 0.0
        %8717 = vmatpush1.msra.mxu0 0.0
        %8718 = vmatprep.subr.mxu0 0.0
        %8719 = vmatpush1.msra.mxu0 0.0
        %8720 = vmatprep.subr.mxu0 0.0
        %8721 = vmatpush1.msra.mxu0 0.0
        %8722 = vmatprep.subr.mxu0 0.0
        %8723 = vmatpush1.msra.mxu0 0.0
        %8724 = vmatprep.mubr.f32.mxu0 0.0
        %8725 = vmatmul.mubr.f32.gmra.mrb[0].mxu0 %v8565
        %v8726 = vpop.f32.mrb[0].mxu0
        %v8727 = vadd.f32 %v8562, %v8726
        %v8728 = vpop.f32.mrb[0].mxu0
        %8729 = vmatprep.mubr.f32.mxu0 0.0
        %8730 = vmatmul.mubr.f32.gmra.mrb[0].mxu0 %v8568
        %v8731 = vpop.f32.mrb[0].mxu0
        %v8732 = vadd.f32 %v8562, %v8731
        %v8733 = vpop.f32.mrb[0].mxu0
        %8734 = vmatprep.mubr.f32.mxu0 0.0
        %8735 = vmatmul.mubr.f32.gmra.mrb[0].mxu0 %v8571
        %v8736 = vpop.f32.mrb[0].mxu0
        %v8737 = vadd.f32 %v8562, %v8736
        %v8738 = vpop.f32.mrb[0].mxu0
        %8739 = vmatprep.mubr.f32.mxu0 0.0
        %8740 = vmatmul.mubr.f32.gmra.mrb[0].mxu0 %v8574
        %v8741 = vpop.f32.mrb[0].mxu0
        %v8742 = vadd.f32 %v8562, %v8741
        %v8743 = vpop.f32.mrb[0].mxu0
        %8744 = vmatprep.mubr.f32.mxu0 0.0
        %8745 = vmatmul.mubr.f32.gmra.mrb[0].mxu0 %v8577
        %v8746 = vpop.f32.mrb[0].mxu0
        %v8747 = vadd.f32 %v8562, %v8746
        %v8748 = vpop.f32.mrb[0].mxu0
        %8749 = vmatprep.mubr.f32.mxu0 0.0
        %8750 = vmatmul.mubr.f32.gmra.mrb[0].mxu0 %v8580
        %v8751 = vpop.f32.mrb[0].mxu0
        %v8752 = vadd.f32 %v8562, %v8751
        %v8753 = vpop.f32.mrb[0].mxu0
        %8754 = vmatprep.mubr.f32.mxu0 0.0
        %8755 = vmatmul.mubr.f32.gmra.mrb[0].mxu0 %v8583
        %v8756 = vpop.f32.mrb[0].mxu0
        %v8757 = vadd.f32 %v8562, %v8756
        %v8758 = vpop.f32.mrb[0].mxu0
        %8759 = vmatprep.mubr.f32.mxu0 0.0
        %8760 = vmatmul.mubr.f32.gmra.mrb[0].mxu0 %v8586
        %v8761 = vpop.f32.mrb[0].mxu0
        %v8762 = vadd.f32 %v8562, %v8761
        %v8763 = vpop.f32.mrb[0].mxu0
        %8764 = vmatprep.mubr.f32.mxu0 0.0
        %8765 = vmatmul.mubr.f32.gmra.mrb[0].mxu0 %v8589
        %v8766 = vpop.f32.mrb[0].mxu0
        %v8767 = vadd.f32 %v8562, %v8766
        %v8768 = vpop.f32.mrb[0].mxu0
        %8769 = vmatprep.mubr.f32.mxu0 0.0
        %8770 = vmatmul.mubr.f32.gmra.mrb[0].mxu0 %v8592
        %v8771 = vpop.f32.mrb[0].mxu0
        %v8772 = vadd.f32 %v8562, %v8771
        %v8773 = vpop.f32.mrb[0].mxu0
        %8774 = vmatprep.mubr.f32.mxu0 0.0
        %8775 = vmatmul.mubr.f32.gmra.mrb[0].mxu0 %v8595
        %v8776 = vpop.f32.mrb[0].mxu0
        %v8777 = vadd.f32 %v8562, %v8776
        %v8778 = vpop.f32.mrb[0].mxu0
        %8779 = vmatprep.mubr.f32.mxu0 0.0
        %8780 = vmatmul.mubr.f32.gmra.mrb[0].mxu0 %v8598
        %v8781 = vpop.f32.mrb[0].mxu0
        %v8782 = vadd.f32 %v8562, %v8781
        %v8783 = vpop.f32.mrb[0].mxu0
        %8784 = vmatprep.mubr.f32.mxu0 0.0
        %8785 = vmatmul.mubr.f32.gmra.mrb[0].mxu0 %v8601
        %v8786 = vpop.f32.mrb[0].mxu0
        %v8787 = vadd.f32 %v8562, %v8786
        %v8788 = vpop.f32.mrb[0].mxu0
        %8789 = vmatprep.mubr.f32.mxu0 0.0
        %8790 = vmatmul.mubr.f32.gmra.mrb[0].mxu0 %v8604
        %v8791 = vpop.f32.mrb[0].mxu0
        %v8792 = vadd.f32 %v8562, %v8791
        %v8793 = vpop.f32.mrb[0].mxu0
        %8794 = vmatprep.mubr.f32.mxu0 0.0
        %8795 = vmatmul.mubr.f32.gmra.mrb[0].mxu0 %v8607
        %v8796 = vpop.f32.mrb[0].mxu0
        %v8797 = vadd.f32 %v8562, %v8796
        %v8798 = vpop.f32.mrb[0].mxu0
        %8799 = vmatprep.mubr.f32.mxu0 0.0
        %8800 = vmatmul.mubr.f32.gmra.mrb[0].mxu0 %v8610
        %v8801 = vpop.f32.mrb[0].mxu0
        %v8802 = vadd.f32 %v8562, %v8801
        %v8803 = vpop.f32.mrb[0].mxu0
        %8804 = vmatprep.mubr.f32.mxu0 0.0
        %8805 = vmatmul.mubr.f32.gmra.mrb[0].mxu0 %v8613
        %v8806 = vpop.f32.mrb[0].mxu0
        %v8807 = vadd.f32 %v8562, %v8806
        %v8808 = vpop.f32.mrb[0].mxu0
        %8809 = vmatprep.mubr.f32.mxu0 0.0
        %8810 = vmatmul.mubr.f32.gmra.mrb[0].mxu0 %v8616
        %v8811 = vpop.f32.mrb[0].mxu0
        %v8812 = vadd.f32 %v8562, %v8811
        %v8813 = vpop.f32.mrb[0].mxu0
        %8814 = vmatprep.mubr.f32.mxu0 0.0
        %8815 = vmatmul.mubr.f32.gmra.mrb[0].mxu0 %v8619
        %v8816 = vpop.f32.mrb[0].mxu0
        %v8817 = vadd.f32 %v8562, %v8816
        %v8818 = vpop.f32.mrb[0].mxu0
        %8819 = vmatprep.mubr.f32.mxu0 0.0
        %8820 = vmatmul.mubr.f32.gmra.mrb[0].mxu0 %v8622
        %v8821 = vpop.f32.mrb[0].mxu0
        %v8822 = vadd.f32 %v8562, %v8821
        %v8823 = vpop.f32.mrb[0].mxu0
        %8824 = vmatprep.mubr.f32.mxu0 0.0
        %8825 = vmatmul.mubr.f32.gmra.mrb[0].mxu0 %v8625
        %v8826 = vpop.f32.mrb[0].mxu0
        %v8827 = vadd.f32 %v8562, %v8826
        %v8828 = vpop.f32.mrb[0].mxu0
        %8829 = vmatprep.mubr.f32.mxu0 0.0
        %8830 = vmatmul.mubr.f32.gmra.mrb[0].mxu0 %v8628
        %v8831 = vpop.f32.mrb[0].mxu0
        %v8832 = vadd.f32 %v8562, %v8831
        %v8833 = vpop.f32.mrb[0].mxu0
        %8834 = vmatprep.mubr.f32.mxu0 0.0
        %8835 = vmatmul.mubr.f32.gmra.mrb[0].mxu0 %v8631
        %v8836 = vpop.f32.mrb[0].mxu0
        %v8837 = vadd.f32 %v8562, %v8836
        %v8838 = vpop.f32.mrb[0].mxu0
        %8839 = vmatprep.mubr.f32.mxu0 0.0
        %8840 = vmatmul.mubr.f32.gmra.mrb[0].mxu0 %v8634
        %v8841 = vpop.f32.mrb[0].mxu0
        %v8842 = vadd.f32 %v8562, %v8841
        %v8843 = vpop.f32.mrb[0].mxu0
        %8844 = vmatprep.mubr.f32.mxu0 0.0
        %8845 = vmatmul.mubr.f32.gmra.mrb[0].mxu0 %v8637
        %v8846 = vpop.f32.mrb[0].mxu0
        %v8847 = vadd.f32 %v8562, %v8846
        %v8848 = vpop.f32.mrb[0].mxu0
        %8849 = vmatprep.mubr.f32.mxu0 0.0
        %8850 = vmatmul.mubr.f32.gmra.mrb[0].mxu0 %v8640
        %v8851 = vpop.f32.mrb[0].mxu0
        %v8852 = vadd.f32 %v8562, %v8851
        %v8853 = vpop.f32.mrb[0].mxu0
        %8854 = vmatprep.mubr.f32.mxu0 0.0
        %8855 = vmatmul.mubr.f32.gmra.mrb[0].mxu0 %v8643
        %v8856 = vpop.f32.mrb[0].mxu0
        %v8857 = vadd.f32 %v8562, %v8856
        %v8858 = vpop.f32.mrb[0].mxu0
        %8859 = vmatprep.mubr.f32.mxu0 0.0
        %8860 = vmatmul.mubr.f32.gmra.mrb[0].mxu0 %v8646
        %v8861 = vpop.f32.mrb[0].mxu0
        %v8862 = vadd.f32 %v8562, %v8861
        %v8863 = vpop.f32.mrb[0].mxu0
        %8864 = vmatprep.mubr.f32.mxu0 0.0
        %8865 = vmatmul.mubr.f32.gmra.mrb[0].mxu0 %v8649
        %v8866 = vpop.f32.mrb[0].mxu0
        %v8867 = vadd.f32 %v8562, %v8866
        %v8868 = vpop.f32.mrb[0].mxu0
        %8869 = vmatprep.mubr.f32.mxu0 0.0
        %8870 = vmatmul.mubr.f32.gmra.mrb[0].mxu0 %v8652
        %v8871 = vpop.f32.mrb[0].mxu0
        %v8872 = vadd.f32 %v8562, %v8871
        %v8873 = vpop.f32.mrb[0].mxu0
        %8874 = vmatprep.mubr.f32.mxu0 0.0
        %8875 = vmatmul.mubr.f32.gmra.mrb[0].mxu0 %v8655
        %v8876 = vpop.f32.mrb[0].mxu0
        %v8877 = vadd.f32 %v8562, %v8876
        %v8878 = vpop.f32.mrb[0].mxu0
        %8879 = vmatprep.mubr.f32.mxu0 0.0
        %8880 = vmatmul.mubr.f32.gmra.mrb[0].mxu0 %v8658
        %v8881 = vpop.f32.mrb[0].mxu0
        %v8882 = vadd.f32 %v8562, %v8881
        %v8883 = vpop.f32.mrb[0].mxu0
        %8884 = vdwg.mxu0
        %v8885 = vmax.f32 %v8727, 0.0
        %v8886 = vmax.f32 %v8732, 0.0
        %v8887 = vmax.f32 %v8737, 0.0
        %v8888 = vmax.f32 %v8742, 0.0
        %v8889 = vmax.f32 %v8747, 0.0
        %v8890 = vmax.f32 %v8752, 0.0
        %v8891 = vmax.f32 %v8757, 0.0
        %v8892 = vmax.f32 %v8762, 0.0
        %v8893 = vmax.f32 %v8767, 0.0
        %v8894 = vmax.f32 %v8772, 0.0
        %v8895 = vmax.f32 %v8777, 0.0
        %v8896 = vmax.f32 %v8782, 0.0
        %v8897 = vmax.f32 %v8787, 0.0
        %v8898 = vmax.f32 %v8792, 0.0
        %v8899 = vmax.f32 %v8797, 0.0
        %v8900 = vmax.f32 %v8802, 0.0
        %v8901 = vmax.f32 %v8807, 0.0
        %v8902 = vmax.f32 %v8812, 0.0
        %v8903 = vmax.f32 %v8817, 0.0
        %v8904 = vmax.f32 %v8822, 0.0
        %v8905 = vmax.f32 %v8827, 0.0
        %v8906 = vmax.f32 %v8832, 0.0
        %v8907 = vmax.f32 %v8837, 0.0
        %v8908 = vmax.f32 %v8842, 0.0
        %v8909 = vmax.f32 %v8847, 0.0
        %v8910 = vmax.f32 %v8852, 0.0
        %v8911 = vmax.f32 %v8857, 0.0
        %v8912 = vmax.f32 %v8862, 0.0
        %v8913 = vmax.f32 %v8867, 0.0
        %v8914 = vmax.f32 %v8872, 0.0
        %v8915 = vmax.f32 %v8877, 0.0
        %v8916 = vmax.f32 %v8882, 0.0
        %8949 = vrot.lane.b32.xlu0 %v8885, 8
        %v8950 = vpop.permute.xlu0 %8949
        %8951 = vrot.lane.b32.xlu0 %v8886, 8
        %v8952 = vpop.permute.xlu0 %8951
        %8953 = vrot.lane.b32.xlu0 %v8887, 8
        %v8954 = vpop.permute.xlu0 %8953
        %8955 = vrot.lane.b32.xlu0 %v8888, 8
        %v8956 = vpop.permute.xlu0 %8955
        %8957 = vrot.lane.b32.xlu0 %v8889, 8
        %v8958 = vpop.permute.xlu0 %8957
        %8959 = vrot.lane.b32.xlu0 %v8890, 8
        %v8960 = vpop.permute.xlu0 %8959
        %8961 = vrot.lane.b32.xlu0 %v8891, 8
        %v8962 = vpop.permute.xlu0 %8961
        %8963 = vrot.lane.b32.xlu0 %v8892, 8
        %v8964 = vpop.permute.xlu0 %8963
        %8965 = vrot.lane.b32.xlu0 %v8893, 8
        %v8966 = vpop.permute.xlu0 %8965
        %8967 = vrot.lane.b32.xlu0 %v8894, 8
        %v8968 = vpop.permute.xlu0 %8967
        %8969 = vrot.lane.b32.xlu0 %v8895, 8
        %v8970 = vpop.permute.xlu0 %8969
        %8971 = vrot.lane.b32.xlu0 %v8896, 8
        %v8972 = vpop.permute.xlu0 %8971
        %8973 = vrot.lane.b32.xlu0 %v8897, 8
        %v8974 = vpop.permute.xlu0 %8973
        %8975 = vrot.lane.b32.xlu0 %v8898, 8
        %v8976 = vpop.permute.xlu0 %8975
        %8977 = vrot.lane.b32.xlu0 %v8899, 8
        %v8978 = vpop.permute.xlu0 %8977
        %8979 = vrot.lane.b32.xlu0 %v8900, 8
        %v8980 = vpop.permute.xlu0 %8979
        %8981 = vrot.lane.b32.xlu0 %v8901, 8
        %v8982 = vpop.permute.xlu0 %8981
        %8983 = vrot.lane.b32.xlu0 %v8902, 8
        %v8984 = vpop.permute.xlu0 %8983
        %8985 = vrot.lane.b32.xlu0 %v8903, 8
        %v8986 = vpop.permute.xlu0 %8985
        %8987 = vrot.lane.b32.xlu0 %v8904, 8
        %v8988 = vpop.permute.xlu0 %8987
        %8989 = vrot.lane.b32.xlu0 %v8905, 8
        %v8990 = vpop.permute.xlu0 %8989
        %8991 = vrot.lane.b32.xlu0 %v8906, 8
        %v8992 = vpop.permute.xlu0 %8991
        %8993 = vrot.lane.b32.xlu0 %v8907, 8
        %v8994 = vpop.permute.xlu0 %8993
        %8995 = vrot.lane.b32.xlu0 %v8908, 8
        %v8996 = vpop.permute.xlu0 %8995
        %8997 = vrot.lane.b32.xlu0 %v8909, 8
        %v8998 = vpop.permute.xlu0 %8997
        %8999 = vrot.lane.b32.xlu0 %v8910, 8
        %v9000 = vpop.permute.xlu0 %8999
        %9001 = vrot.lane.b32.xlu0 %v8911, 8
        %v9002 = vpop.permute.xlu0 %9001
        %9003 = vrot.lane.b32.xlu0 %v8912, 8
        %v9004 = vpop.permute.xlu0 %9003
        %9005 = vrot.lane.b32.xlu0 %v8913, 8
        %v9006 = vpop.permute.xlu0 %9005
        %9007 = vrot.lane.b32.xlu0 %v8914, 8
        %v9008 = vpop.permute.xlu0 %9007
        %9009 = vrot.lane.b32.xlu0 %v8915, 8
        %v9010 = vpop.permute.xlu0 %9009
        %9011 = vrot.lane.b32.xlu0 %v8916, 8
        %v9012 = vpop.permute.xlu0 %9011
        %v9045 = vadd.f32 %v6682, %v8950
        %v9046 = vadd.f32 %v6687, %v8952
        %v9047 = vadd.f32 %v6692, %v8954
        %v9048 = vadd.f32 %v6697, %v8956
        %v9049 = vadd.f32 %v6702, %v8958
        %v9050 = vadd.f32 %v6707, %v8960
        %v9051 = vadd.f32 %v6712, %v8962
        %v9052 = vadd.f32 %v6717, %v8964
        %v9053 = vadd.f32 %v6722, %v8966
        %v9054 = vadd.f32 %v6727, %v8968
        %v9055 = vadd.f32 %v6732, %v8970
        %v9056 = vadd.f32 %v6737, %v8972
        %v9057 = vadd.f32 %v6742, %v8974
        %v9058 = vadd.f32 %v6747, %v8976
        %v9059 = vadd.f32 %v6752, %v8978
        %v9060 = vadd.f32 %v6757, %v8980
        %v9061 = vadd.f32 %v6762, %v8982
        %v9062 = vadd.f32 %v6767, %v8984
        %v9063 = vadd.f32 %v6772, %v8986
        %v9064 = vadd.f32 %v6777, %v8988
        %v9065 = vadd.f32 %v6782, %v8990
        %v9066 = vadd.f32 %v6787, %v8992
        %v9067 = vadd.f32 %v6792, %v8994
        %v9068 = vadd.f32 %v6797, %v8996
        %v9069 = vadd.f32 %v6802, %v8998
        %v9070 = vadd.f32 %v6807, %v9000
        %v9071 = vadd.f32 %v6812, %v9002
        %v9072 = vadd.f32 %v6817, %v9004
        %v9073 = vadd.f32 %v6822, %v9006
        %v9074 = vadd.f32 %v6827, %v9008
        %v9075 = vadd.f32 %v6832, %v9010
        %v9076 = vadd.f32 %v6837, %v9012
        %9109 = vrot.lane.b32.xlu0 %v9045, 120
        %v9110 = vpop.permute.xlu0 %9109
        %9111 = vrot.lane.b32.xlu0 %v9046, 120
        %v9112 = vpop.permute.xlu0 %9111
        %9113 = vrot.lane.b32.xlu0 %v9047, 120
        %v9114 = vpop.permute.xlu0 %9113
        %9115 = vrot.lane.b32.xlu0 %v9048, 120
        %v9116 = vpop.permute.xlu0 %9115
        %9117 = vrot.lane.b32.xlu0 %v9049, 120
        %v9118 = vpop.permute.xlu0 %9117
        %9119 = vrot.lane.b32.xlu0 %v9050, 120
        %v9120 = vpop.permute.xlu0 %9119
        %9121 = vrot.lane.b32.xlu0 %v9051, 120
        %v9122 = vpop.permute.xlu0 %9121
        %9123 = vrot.lane.b32.xlu0 %v9052, 120
        %v9124 = vpop.permute.xlu0 %9123
        %9125 = vrot.lane.b32.xlu0 %v9053, 120
        %v9126 = vpop.permute.xlu0 %9125
        %9127 = vrot.lane.b32.xlu0 %v9054, 120
        %v9128 = vpop.permute.xlu0 %9127
        %9129 = vrot.lane.b32.xlu0 %v9055, 120
        %v9130 = vpop.permute.xlu0 %9129
        %9131 = vrot.lane.b32.xlu0 %v9056, 120
        %v9132 = vpop.permute.xlu0 %9131
        %9133 = vrot.lane.b32.xlu0 %v9057, 120
        %v9134 = vpop.permute.xlu0 %9133
        %9135 = vrot.lane.b32.xlu0 %v9058, 120
        %v9136 = vpop.permute.xlu0 %9135
        %9137 = vrot.lane.b32.xlu0 %v9059, 120
        %v9138 = vpop.permute.xlu0 %9137
        %9139 = vrot.lane.b32.xlu0 %v9060, 120
        %v9140 = vpop.permute.xlu0 %9139
        %9141 = vrot.lane.b32.xlu0 %v9061, 120
        %v9142 = vpop.permute.xlu0 %9141
        %9143 = vrot.lane.b32.xlu0 %v9062, 120
        %v9144 = vpop.permute.xlu0 %9143
        %9145 = vrot.lane.b32.xlu0 %v9063, 120
        %v9146 = vpop.permute.xlu0 %9145
        %9147 = vrot.lane.b32.xlu0 %v9064, 120
        %v9148 = vpop.permute.xlu0 %9147
        %9149 = vrot.lane.b32.xlu0 %v9065, 120
        %v9150 = vpop.permute.xlu0 %9149
        %9151 = vrot.lane.b32.xlu0 %v9066, 120
        %v9152 = vpop.permute.xlu0 %9151
        %9153 = vrot.lane.b32.xlu0 %v9067, 120
        %v9154 = vpop.permute.xlu0 %9153
        %9155 = vrot.lane.b32.xlu0 %v9068, 120
        %v9156 = vpop.permute.xlu0 %9155
        %9157 = vrot.lane.b32.xlu0 %v9069, 120
        %v9158 = vpop.permute.xlu0 %9157
        %9159 = vrot.lane.b32.xlu0 %v9070, 120
        %v9160 = vpop.permute.xlu0 %9159
        %9161 = vrot.lane.b32.xlu0 %v9071, 120
        %v9162 = vpop.permute.xlu0 %9161
        %9163 = vrot.lane.b32.xlu0 %v9072, 120
        %v9164 = vpop.permute.xlu0 %9163
        %9165 = vrot.lane.b32.xlu0 %v9073, 120
        %v9166 = vpop.permute.xlu0 %9165
        %9167 = vrot.lane.b32.xlu0 %v9074, 120
        %v9168 = vpop.permute.xlu0 %9167
        %9169 = vrot.lane.b32.xlu0 %v9075, 120
        %v9170 = vpop.permute.xlu0 %9169
        %9171 = vrot.lane.b32.xlu0 %v9076, 120
        %v9172 = vpop.permute.xlu0 %9171
        %9205 = vmatprep.subr.mxu0 0.0
        %9206 = vmatpush1.msra.mxu0 %v9110
        %9207 = vmatprep.subr.mxu0 0.0
        %9208 = vmatpush1.msra.mxu0 %v9112
        %9209 = vmatprep.subr.mxu0 0.0
        %9210 = vmatpush1.msra.mxu0 %v9114
        %9211 = vmatprep.subr.mxu0 0.0
        %9212 = vmatpush1.msra.mxu0 %v9116
        %9213 = vmatprep.subr.mxu0 0.0
        %9214 = vmatpush1.msra.mxu0 %v9118
        %9215 = vmatprep.subr.mxu0 0.0
        %9216 = vmatpush1.msra.mxu0 %v9120
        %9217 = vmatprep.subr.mxu0 0.0
        %9218 = vmatpush1.msra.mxu0 %v9122
        %9219 = vmatprep.subr.mxu0 0.0
        %9220 = vmatpush1.msra.mxu0 %v9124
        %9221 = vmatprep.subr.mxu0 0.0
        %9222 = vmatpush1.msra.mxu0 %v9126
        %9223 = vmatprep.subr.mxu0 0.0
        %9224 = vmatpush1.msra.mxu0 %v9128
        %9225 = vmatprep.subr.mxu0 0.0
        %9226 = vmatpush1.msra.mxu0 %v9130
        %9227 = vmatprep.subr.mxu0 0.0
        %9228 = vmatpush1.msra.mxu0 %v9132
        %9229 = vmatprep.subr.mxu0 0.0
        %9230 = vmatpush1.msra.mxu0 %v9134
        %9231 = vmatprep.subr.mxu0 0.0
        %9232 = vmatpush1.msra.mxu0 %v9136
        %9233 = vmatprep.subr.mxu0 0.0
        %9234 = vmatpush1.msra.mxu0 %v9138
        %9235 = vmatprep.subr.mxu0 0.0
        %9236 = vmatpush1.msra.mxu0 %v9140
        %9237 = vmatprep.subr.mxu0 0.0
        %9238 = vmatpush1.msra.mxu0 %v9142
        %9239 = vmatprep.subr.mxu0 0.0
        %9240 = vmatpush1.msra.mxu0 %v9144
        %9241 = vmatprep.subr.mxu0 0.0
        %9242 = vmatpush1.msra.mxu0 %v9146
        %9243 = vmatprep.subr.mxu0 0.0
        %9244 = vmatpush1.msra.mxu0 %v9148
        %9245 = vmatprep.subr.mxu0 0.0
        %9246 = vmatpush1.msra.mxu0 %v9150
        %9247 = vmatprep.subr.mxu0 0.0
        %9248 = vmatpush1.msra.mxu0 %v9152
        %9249 = vmatprep.subr.mxu0 0.0
        %9250 = vmatpush1.msra.mxu0 %v9154
        %9251 = vmatprep.subr.mxu0 0.0
        %9252 = vmatpush1.msra.mxu0 %v9156
        %9253 = vmatprep.subr.mxu0 0.0
        %9254 = vmatpush1.msra.mxu0 %v9158
        %9255 = vmatprep.subr.mxu0 0.0
        %9256 = vmatpush1.msra.mxu0 %v9160
        %9257 = vmatprep.subr.mxu0 0.0
        %9258 = vmatpush1.msra.mxu0 %v9162
        %9259 = vmatprep.subr.mxu0 0.0
        %9260 = vmatpush1.msra.mxu0 %v9164
        %9261 = vmatprep.subr.mxu0 0.0
        %9262 = vmatpush1.msra.mxu0 %v9166
        %9263 = vmatprep.subr.mxu0 0.0
        %9264 = vmatpush1.msra.mxu0 %v9168
        %9265 = vmatprep.subr.mxu0 0.0
        %9266 = vmatpush1.msra.mxu0 %v9170
        %9267 = vmatprep.subr.mxu0 0.0
        %9268 = vmatpush1.msra.mxu0 %v9172
        %9269 = vmatprep.mubr.f32.mxu0 0.00390625
        %9270 = vmatmul.mubr.f32.gmra.mrb[0].mxu0 0.00390625
        %v9271 = vpop.f32.mrb[0].mxu0
        %v9272 = vadd.f32 0.0, %v9271
        %v9273 = vpop.f32.mrb[0].mxu0
        %9274 = vdwg.mxu0
        %v9275 = vld [vmem:[%s7] sm:$0xff]
        %v9276 = vld [vmem:[%s8] sm:$0x1]
        %v9278 = vsel %vm330, %v9272, 0
        %9280 = vmatprep.subr.mxu0 0.0
        %9281 = vmatpush1.msra.mxu0 %v9275
        %9282 = vmatprep.subr.mxu0 0.0
        %9283 = vmatpush1.msra.mxu0 0.0
        %9284 = vmatprep.subr.mxu0 0.0
        %9285 = vmatpush1.msra.mxu0 0.0
        %9286 = vmatprep.subr.mxu0 0.0
        %9287 = vmatpush1.msra.mxu0 0.0
        %9288 = vmatprep.subr.mxu0 0.0
        %9289 = vmatpush1.msra.mxu0 0.0
        %9290 = vmatprep.subr.mxu0 0.0
        %9291 = vmatpush1.msra.mxu0 0.0
        %9292 = vmatprep.subr.mxu0 0.0
        %9293 = vmatpush1.msra.mxu0 0.0
        %9294 = vmatprep.subr.mxu0 0.0
        %9295 = vmatpush1.msra.mxu0 0.0
        %9296 = vmatprep.subr.mxu0 0.0
        %9297 = vmatpush1.msra.mxu0 0.0
        %9298 = vmatprep.subr.mxu0 0.0
        %9299 = vmatpush1.msra.mxu0 0.0
        %9300 = vmatprep.subr.mxu0 0.0
        %9301 = vmatpush1.msra.mxu0 0.0
        %9302 = vmatprep.subr.mxu0 0.0
        %9303 = vmatpush1.msra.mxu0 0.0
        %9304 = vmatprep.subr.mxu0 0.0
        %9305 = vmatpush1.msra.mxu0 0.0
        %9306 = vmatprep.subr.mxu0 0.0
        %9307 = vmatpush1.msra.mxu0 0.0
        %9308 = vmatprep.subr.mxu0 0.0
        %9309 = vmatpush1.msra.mxu0 0.0
        %9310 = vmatprep.subr.mxu0 0.0
        %9311 = vmatpush1.msra.mxu0 0.0
        %9312 = vmatprep.subr.mxu0 0.0
        %9313 = vmatpush1.msra.mxu0 0.0
        %9314 = vmatprep.subr.mxu0 0.0
        %9315 = vmatpush1.msra.mxu0 0.0
        %9316 = vmatprep.subr.mxu0 0.0
        %9317 = vmatpush1.msra.mxu0 0.0
        %9318 = vmatprep.subr.mxu0 0.0
        %9319 = vmatpush1.msra.mxu0 0.0
        %9320 = vmatprep.subr.mxu0 0.0
        %9321 = vmatpush1.msra.mxu0 0.0
        %9322 = vmatprep.subr.mxu0 0.0
        %9323 = vmatpush1.msra.mxu0 0.0
        %9324 = vmatprep.subr.mxu0 0.0
        %9325 = vmatpush1.msra.mxu0 0.0
        %9326 = vmatprep.subr.mxu0 0.0
        %9327 = vmatpush1.msra.mxu0 0.0
        %9328 = vmatprep.subr.mxu0 0.0
        %9329 = vmatpush1.msra.mxu0 0.0
        %9330 = vmatprep.subr.mxu0 0.0
        %9331 = vmatpush1.msra.mxu0 0.0
        %9332 = vmatprep.subr.mxu0 0.0
        %9333 = vmatpush1.msra.mxu0 0.0
        %9334 = vmatprep.subr.mxu0 0.0
        %9335 = vmatpush1.msra.mxu0 0.0
        %9336 = vmatprep.subr.mxu0 0.0
        %9337 = vmatpush1.msra.mxu0 0.0
        %9338 = vmatprep.subr.mxu0 0.0
        %9339 = vmatpush1.msra.mxu0 0.0
        %9340 = vmatprep.subr.mxu0 0.0
        %9341 = vmatpush1.msra.mxu0 0.0
        %9342 = vmatprep.subr.mxu0 0.0
        %9343 = vmatpush1.msra.mxu0 0.0
        %9344 = vmatprep.mubr.f32.mxu0 0.0
        %9345 = vmatmul.mubr.f32.gmra.mrb[0].mxu0 %v9278
        %v9346 = vpop.f32.mrb[0].mxu0
        %v9347 = vadd.f32 %v9276, %v9346
        %v9348 = vpop.f32.mrb[0].mxu0
        %9349 = vdwg.mxu0
        %vm9350 = vcmask 73728
        %9351 = vst.msk [vmem:[%s324] sm:$0x1] %vm9350, %v9347
        %s9352 = sand.u32 %s225, 1
        %s9353 = scalar_lea.sflag [#allocation4], %s9352
        %s9354 = sand.u32 %s225, 1
        %s9355 = scalar_lea.vmem [#allocation3], %s9354
        // Predicated region
        $region57: #{tpu_custom_call.1} parent=55 // pred_check
          %p9356 = pneg %p235
        $region58: #{tpu_custom_call.1} parent=55 // pred_check_branch
          %9358 = sbr.rel (%p9356) target = $region60
        $region59: #{tpu_custom_call.1} parent=55 // pred_region
          %s9360 = ssub.s32 16, 16
          %9361 = vsyncadd %s9353, %s9360
          %s9362 = smul.addr %s23, 16
          %s9363 = scalar_lea.hbm %s9, %s9362
          %s9365 = sshll.u32 %s9355, 4
          %s9366 = int_to_ptr.vmem [resolvable:$true] %s9365
          %9368 = dma.vmem_to_hbm [thread:$0]  %s9366, 16, %s9363, %s9353
        $region60: #{tpu_custom_call.1} parent=55 // pred_fallthru
          _
      $region56: #{tpu_custom_call.1} parent=5 // pred_fallthru
        _
      %p9369 = scmp.le.s32.totalorder 2, %s18
      // Predicated region
      $region61: #{tpu_custom_call.1} parent=5 // pred_check
        %p9370 = pneg %p9369
      $region62: #{tpu_custom_call.1} parent=5 // pred_check_branch
        %9372 = sbr.rel (%p9370) target = $region64
      $region63: #{tpu_custom_call.1} parent=5 // pred_region
        %s9373 = ssub.s32 %s18, 2
        // Predicated region
        $region65: #{tpu_custom_call.1} parent=63 // pred_check
          %p9374 = pneg %p241
        $region66: #{tpu_custom_call.1} parent=63 // pred_check_branch
          %9376 = sbr.rel (%p9374) target = $region68
        $region67: #{tpu_custom_call.1} parent=63 // pred_region
          %s9377 = sand.u32 %s226, 1
          %s9378 = scalar_lea.sflag [#allocation4], %s9377
          %s9379 = sand.u32 %s226, 1
          %s9380 = scalar_lea.vmem [#allocation3], %s9379
          %9381 = dma.done %s9378, 16
        $region68: #{tpu_custom_call.1} parent=63 // pred_fallthru
          _
      $region64: #{tpu_custom_call.1} parent=5 // pred_fallthru
        _
    $region6: #{tpu_custom_call.1} parent=1 // loop_footer
      %s22 = sadd.s32 1, %s18
    $region7: #{tpu_custom_call.1} parent=1 // loop_footer_branch
      %17 = sbr.rel target = $region3
    $region8: #{tpu_custom_call.1} parent=1 // loop_exit
      _
    %9382 = vsyncpa [#allocation4], 1
    %s9383 = scalar_lea.sflag [#allocation4], 1
    %9384 = vsyncpa %s9383, 1

</llo_original>
